<compile_context>
chip_gen: v6e
topology: v6e:2x2x1
jax: 0.10.0
libtpu: 0.0.40
codegen_flags: <defaults>
</compile_context>

<pallas_src>
import jax
import jax.numpy as jnp
from jax import lax
from jax.experimental import pallas as pl
from jax.experimental.pallas import tpu as pltpu


_VMEM_LIMIT = 48 * 1024 * 1024   # stay under v7x's 64 MiB physical VMEM


# --------------------------------------------------------------------------------------
# Kernel 1: frame encoder — conv (im2col matmul, bf16 operands) + ReLU + global avg pool.
# patch_ref : (FPB, H*W, Kp) bf16   w_ref : (Kp, F) bf16   b_ref : (1, F) f32
# out_ref   : (FPB, F) bf16  (F is a multiple of 128 -> lane-dense, unmasked stores)
# --------------------------------------------------------------------------------------
def conv_pool_kernel(patch_ref, w_ref, b_ref, out_ref):
    fpb, hw, kp = patch_ref.shape
    f = w_ref.shape[1]
    p2d = patch_ref[...].reshape(fpb * hw, kp)                         # bf16
    y = jnp.dot(p2d, w_ref[...], preferred_element_type=jnp.float32)   # MXU, f32 acc
    y = jnp.maximum(y + b_ref[...], 0.0)                               # bias + ReLU (f32)
    y = y.reshape(fpb, hw, f)
    out_ref[...] = jnp.mean(y, axis=1).astype(out_ref.dtype)           # global avg pool


# --------------------------------------------------------------------------------------
# Kernel 2: fused BiLSTM (gate order i,f,g,o like PyTorch) + attention + classifier.
#   x_ref    : (T*Bp, D) bf16, time-major (row = t*Bp + b)
#   wih_ref  : (D, 8H) bf16  = [W_ih_fwd | W_ih_bwd]
#   whh_*    : (H, 4H) bf16     bias_ref : (1, 8H) f32 (b_ih + b_hh, fwd|bwd)
#   attn_ref : (2H, 1) bf16     meta_ref : (Bp, M) bf16
#   wemb_ref : (2H, NC) bf16    wmeta_ref: (M, NC) bf16    cb_ref : (1, NC) f32
#   out_ref  : (Bp, NC) f32 logits
# --------------------------------------------------------------------------------------
def bilstm_attn_cls_kernel(x_ref, wih_ref, whh_f_ref, whh_b_ref, bias_ref,
                           attn_ref, meta_ref, wemb_ref, wmeta_ref, cb_ref,
                           out_ref, gf_ref, gb_ref, sf_ref, sb_ref):
    T, Bp, H4 = gf_ref.shape
    H = H4 // 4

    # (1) Hoisted input projection: one big MXU matmul for both directions + folded bias.
    g_all = jnp.dot(x_ref[...], wih_ref[...], preferred_element_type=jnp.float32)
    g_all = g_all + bias_ref[...]                                      # (T*Bp, 8H) f32
    gf_ref[...] = g_all[:, 0:4 * H].reshape(T, Bp, 4 * H)
    gb_ref[...] = g_all[:, 4 * H:8 * H].reshape(T, Bp, 4 * H)

    # (2) Recurrent weights loaded ONCE, closed over by the loop body.
    whh_f = whh_f_ref[...]
    whh_b = whh_b_ref[...]

    def gates(z):
        # H is a multiple of 128, so every slice is a whole lane block (no masked lanes).
        i = jax.nn.sigmoid(z[:, 0:H])
        f = jax.nn.sigmoid(z[:, H:2 * H])
        g = jnp.tanh(z[:, 2 * H:3 * H])
        o = jax.nn.sigmoid(z[:, 3 * H:4 * H])
        return i, f, g, o

    # (3) Fused fwd/bwd recurrence: two independent chains per iteration, fully unrolled.
    def step(t, carry):
        h_f, c_f, h_b, c_b = carry
        tb = T - 1 - t
        z_f = gf_ref[t] + jnp.dot(h_f, whh_f, preferred_element_type=jnp.float32)
        z_b = gb_ref[tb] + jnp.dot(h_b, whh_b, preferred_element_type=jnp.float32)
        i_f, f_f, g_f, o_f = gates(z_f)
        i_b, f_b, g_b, o_b = gates(z_b)
        c_f = f_f * c_f + i_f * g_f
        c_b = f_b * c_b + i_b * g_b
        h_f = o_f * jnp.tanh(c_f)
        h_b = o_b * jnp.tanh(c_b)
        sf_ref[t] = h_f                     # fwd output at time t
        sb_ref[tb] = h_b                    # bwd output stored at the true time index
        return (h_f.astype(jnp.bfloat16), c_f, h_b.astype(jnp.bfloat16), c_b)

    h0 = jnp.zeros((Bp, H), jnp.bfloat16)
    c0 = jnp.zeros((Bp, H), jnp.float32)
    lax.fori_loop(0, T, step, (h0, c0, h0, c0), unroll=True)

    # (4) Attention pooling over time (scores via MXU, softmax in f32).
    seq = jnp.concatenate([sf_ref[...], sb_ref[...]], axis=-1)          # (T, Bp, 2H) f32
    seq2d = seq.reshape(T * Bp, 2 * H)
    scores = jnp.dot(seq2d.astype(jnp.bfloat16), attn_ref[...],
                     preferred_element_type=jnp.float32)                # (T*Bp, 1)
    scores = scores.reshape(T, Bp, 1)
    scores = scores - jnp.max(scores, axis=0, keepdims=True)
    alpha = jnp.exp(scores)
    alpha = alpha / jnp.sum(alpha, axis=0, keepdims=True)               # softmax over T
    emb = jnp.sum(seq * alpha, axis=0)                                  # (Bp, 2H)

    # (5) Classifier epilogue: logits = emb @ W_emb + meta @ W_meta + b (no 3rd kernel).
    logits = (jnp.dot(emb.astype(jnp.bfloat16), wemb_ref[...],
                      preferred_element_type=jnp.float32)
              + jnp.dot(meta_ref[...], wmeta_ref[...],
                        preferred_element_type=jnp.float32)
              + cb_ref[...])
    out_ref[...] = logits


# --------------------------------------------------------------------------------------
# Parameter init (deterministic, PyTorch-layout shapes).
# --------------------------------------------------------------------------------------
def init_params(key, c_in, f_conv, hid, meta_dim, n_classes):
    ks = jax.random.split(key, 12)

    def u(k, shape, fan_in):
        bound = float(fan_in) ** -0.5
        return jax.random.uniform(k, shape, jnp.float32, -bound, bound)

    d_in = f_conv  # frm_output_size == conv output channels (after global pool)
    return {
        "conv_w": u(ks[0], (f_conv, c_in, 3, 3), c_in * 9),
        "conv_b": u(ks[1], (f_conv,), c_in * 9),
        "w_ih_f": u(ks[2], (4 * hid, d_in), hid),
        "w_hh_f": u(ks[3], (4 * hid, hid), hid),
        "b_ih_f": u(ks[4], (4 * hid,), hid),
        "b_hh_f": u(ks[5], (4 * hid,), hid),
        "w_ih_b": u(ks[6], (4 * hid, d_in), hid),
        "w_hh_b": u(ks[7], (4 * hid, hid), hid),
        "b_ih_b": u(ks[8], (4 * hid,), hid),
        "b_hh_b": u(ks[9], (4 * hid,), hid),
        "attn":   jax.random.normal(ks[10], (2 * hid, 1), jnp.float32) / (2 * hid) ** 0.5,
        "cls_w":  u(ks[11], (n_classes, 2 * hid + meta_dim), 2 * hid + meta_dim),
        "cls_b":  jnp.zeros((n_classes,), jnp.float32),
    }


def _round_up(v, m):
    return ((v + m - 1) // m) * m


def _pick_fpb(n, cap=64):
    # largest block (frames per grid step) <= cap that evenly divides n
    for d in range(min(n, cap), 0, -1):
        if n % d == 0:
            return d
    return 1


# --------------------------------------------------------------------------------------
# Wrapper = MRIMetaSequenceRNN.forward((x, meta), hidden=None)
# --------------------------------------------------------------------------------------
def mri_meta_sequence_rnn_forward(x, meta, params):
    B, T, C, Hi, Wi = x.shape
    F = params["conv_w"].shape[0]
    H = params["w_hh_f"].shape[1]
    NC = params["cls_w"].shape[0]
    N = B * T
    HW = Hi * Wi
    K = C * 9
    Kp = _round_up(K, 32)                 # MXU/packing-friendly contraction width

    # ---- glue: im2col of all frames (3x3, pad=1, stride=1), bf16, K padded to 32 ----
    frames = x.reshape(N, C, Hi, Wi).astype(jnp.bfloat16)
    xp = jnp.pad(frames, ((0, 0), (0, 0), (1, 1), (1, 1)))
    cols = [xp[:, :, dy:dy + Hi, dx:dx + Wi] for dy in range(3) for dx in range(3)]
    patches = jnp.stack(cols, axis=2)                          # [N, C, 9, H, W]
    patches = patches.transpose(0, 3, 4, 1, 2).reshape(N, HW, K)
    patches = jnp.pad(patches, ((0, 0), (0, 0), (0, Kp - K)))
    w_mat = params["conv_w"].reshape(F, K).T                   # [K, F]
    w_mat = jnp.pad(w_mat, ((0, Kp - K), (0, 0))).astype(jnp.bfloat16)
    b_row = params["conv_b"].reshape(1, F).astype(jnp.float32)

    FPB = _pick_fpb(N)
    frm = pl.pallas_call(
        conv_pool_kernel,
        out_shape=jax.ShapeDtypeStruct((N, F), jnp.bfloat16),
        grid=(N // FPB,),
        in_specs=[
            pl.BlockSpec((FPB, HW, Kp), lambda i: (i, 0, 0)),
            pl.BlockSpec((Kp, F), lambda i: (0, 0)),
            pl.BlockSpec((1, F), lambda i: (0, 0)),
        ],
        out_specs=pl.BlockSpec((FPB, F), lambda i: (i, 0)),
        compiler_params=pltpu.CompilerParams(
            dimension_semantics=("parallel",),          # frames are independent (v7x 2 TCs)
            vmem_limit_bytes=_VMEM_LIMIT),
    )(patches, w_mat, b_row)                                   # [N, F] bf16

    # ---- glue: time-major sequence, batch padded to a sublane multiple of 8 ----
    Bp = _round_up(B, 8)
    x_seq = frm.reshape(B, T, F).transpose(1, 0, 2)            # [T, B, F]
    x_seq = jnp.pad(x_seq, ((0, 0), (0, Bp - B), (0, 0)))
    x2d = x_seq.reshape(T * Bp, F)                             # row = t*Bp + b, bf16

    wih2 = jnp.concatenate([params["w_ih_f"].T, params["w_ih_b"].T],
                           axis=1).astype(jnp.bfloat16)        # [F, 8H]
    whh_f = params["w_hh_f"].T.astype(jnp.bfloat16)            # [H, 4H]
    whh_b = params["w_hh_b"].T.astype(jnp.bfloat16)
    bias2 = jnp.concatenate([params["b_ih_f"] + params["b_hh_f"],
                             params["b_ih_b"] + params["b_hh_b"]]).reshape(1, 8 * H)
    attn = params["attn"].astype(jnp.bfloat16)                 # [2H, 1]
    meta2 = meta.reshape(B, -1).astype(jnp.float32)
    M = meta2.shape[1]
    meta_p = jnp.pad(meta2, ((0, Bp - B), (0, 0))).astype(jnp.bfloat16)
    cls_wt = params["cls_w"].T                                 # [2H + M, NC]
    w_emb = cls_wt[:2 * H].astype(jnp.bfloat16)
    w_meta = cls_wt[2 * H:].astype(jnp.bfloat16)
    cls_b = params["cls_b"].reshape(1, NC).astype(jnp.float32)

    logits = pl.pallas_call(
        bilstm_attn_cls_kernel,
        out_shape=jax.ShapeDtypeStruct((Bp, NC), jnp.float32),
        grid=(1,),
        in_specs=[
            pl.BlockSpec((T * Bp, F), lambda i: (0, 0)),
            pl.BlockSpec((F, 8 * H), lambda i: (0, 0)),
            pl.BlockSpec((H, 4 * H), lambda i: (0, 0)),
            pl.BlockSpec((H, 4 * H), lambda i: (0, 0)),
            pl.BlockSpec((1, 8 * H), lambda i: (0, 0)),
            pl.BlockSpec((2 * H, 1), lambda i: (0, 0)),
            pl.BlockSpec((Bp, M), lambda i: (0, 0)),
            pl.BlockSpec((2 * H, NC), lambda i: (0, 0)),
            pl.BlockSpec((M, NC), lambda i: (0, 0)),
            pl.BlockSpec((1, NC), lambda i: (0, 0)),
        ],
        out_specs=pl.BlockSpec((Bp, NC), lambda i: (0, 0)),
        scratch_shapes=[
            pltpu.VMEM((T, Bp, 4 * H), jnp.float32),   # pre-projected fwd gate inputs
            pltpu.VMEM((T, Bp, 4 * H), jnp.float32),   # pre-projected bwd gate inputs
            pltpu.VMEM((T, Bp, H), jnp.float32),       # fwd hidden states
            pltpu.VMEM((T, Bp, H), jnp.float32),       # bwd hidden states
        ],
        compiler_params=pltpu.CompilerParams(
            dimension_semantics=("arbitrary",),
            vmem_limit_bytes=_VMEM_LIMIT),
    )(x2d, wih2, whh_f, whh_b, bias2, attn, meta_p, w_emb, w_meta, cls_b)

    return logits[:B]


if __name__ == "__main__":
    B, T, C, IMG = 2, 8, 3, 16          # batch, num_frames, channels, spatial
    META, N_CLASSES = 3, 2
    # frm_output_size / seq_output_size chosen as multiples of 128 so frame features,
    # LSTM gate slices and attention stay lane-aligned (module default seq_output_size=128).
    F_CONV, HID = 128, 128

    key = jax.random.PRNGKey(0)
    k_x, k_m, k_p = jax.random.split(key, 3)
    x = jax.random.normal(k_x, (B, T, C, IMG, IMG), jnp.float32)
    meta = jax.random.normal(k_m, (B, META), jnp.float32)
    params = init_params(k_p, C, F_CONV, HID, META, N_CLASSES)

    fwd = jax.jit(mri_meta_sequence_rnn_forward)
    logits = fwd(x, meta, params)
    jax.block_until_ready(logits)
    assert logits.shape == (B, N_CLASSES)
    assert bool(jnp.all(jnp.isfinite(logits)))
    print("KERNEL_OK")
</pallas_src>

<mosaic_0001>
module attributes {stable_mosaic.version = 11 : i64} {
  func.func @conv_pool_kernel(%arg0: i32, %arg1: memref<16x256x32xbf16, #tpu.memory_space<vmem>>, %arg2: memref<32x128xbf16, #tpu.memory_space<vmem>>, %arg3: memref<1x128xf32, #tpu.memory_space<vmem>>, %arg4: memref<16x128xbf16, #tpu.memory_space<vmem>>) attributes {dimension_semantics = [#tpu.dimension_semantics<parallel>], iteration_bounds = array<i64: 1>, scalar_prefetch = 0 : i64, scratch_operands = 0 : i64, tpu.core_type = #tpu.core_type<tc>, window_params = [{transform_indices = @transform_0, window_bounds = array<i64: 16, 256, 32>}, {pipeline_mode = #tpu.pipeline_mode<synchronous>, transform_indices = @transform_1, window_bounds = array<i64: 32, 128>}, {pipeline_mode = #tpu.pipeline_mode<synchronous>, transform_indices = @transform_2, window_bounds = array<i64: 1, 128>}, {transform_indices = @transform_3, window_bounds = array<i64: 16, 128>}]} {
    %c0 = arith.constant 0 : index
    %c0_0 = arith.constant 0 : index
    %c0_1 = arith.constant 0 : index
    %0 = vector.load %arg1[%c0, %c0_0, %c0_1] : memref<16x256x32xbf16, #tpu.memory_space<vmem>>, vector<16x256x32xbf16>
    %1 = vector.shape_cast %0 : vector<16x256x32xbf16> to vector<4096x32xbf16>
    %c0_2 = arith.constant 0 : index
    %c0_3 = arith.constant 0 : index
    %2 = vector.load %arg2[%c0_2, %c0_3] : memref<32x128xbf16, #tpu.memory_space<vmem>>, vector<32x128xbf16>
    %cst = arith.constant dense<0.000000e+00> : vector<4096x128xf32>
    %3 = tpu.matmul %1, %2, %cst {dimension_numbers = #tpu.dot_dimension_numbers<[1], [0], [0], [1], [0, 0, 1, 1], [], []>} : vector<4096x32xbf16>, vector<32x128xbf16>, vector<4096x128xf32> -> vector<4096x128xf32>
    %c0_4 = arith.constant 0 : index
    %c0_5 = arith.constant 0 : index
    %4 = vector.load %arg3[%c0_4, %c0_5] : memref<1x128xf32, #tpu.memory_space<vmem>>, vector<1x128xf32>
    %5 = vector.broadcast %4 : vector<1x128xf32> to vector<4096x128xf32>
    %6 = arith.addf %3, %5 : vector<4096x128xf32>
    %cst_6 = arith.constant 0.000000e+00 : f32
    %7 = vector.broadcast %cst_6 : f32 to vector<4096x128xf32>
    %8 = arith.maximumf %6, %7 : vector<4096x128xf32>
    %9 = vector.shape_cast %8 : vector<4096x128xf32> to vector<16x256x128xf32>
    %cst_7 = arith.constant dense<0.000000e+00> : vector<16x128xf32>
    %10 = vector.multi_reduction <add>, %9, %cst_7 [1] : vector<16x256x128xf32> to vector<16x128xf32>
    %cst_8 = arith.constant 2.560000e+02 : f32
    %11 = vector.broadcast %cst_8 : f32 to vector<16x128xf32>
    %12 = arith.divf %10, %11 : vector<16x128xf32>
    %13 = arith.truncf %12 : vector<16x128xf32> to vector<16x128xbf16>
    %c0_9 = arith.constant 0 : index
    %c0_10 = arith.constant 0 : index
    %14 = vector.load %arg4[%c0_9, %c0_10] : memref<16x128xbf16, #tpu.memory_space<vmem>>, vector<16x128xbf16>
    tpu.vector_store %arg4[%c0_9, %c0_10], %13 {strides = array<i32>} : memref<16x128xbf16, #tpu.memory_space<vmem>>, vector<16x128xbf16>,
    return
  }
  func.func @transform_0(%arg0: i32) -> (i32, i32, i32) {
    %c0_i32 = arith.constant 0 : i32
    %c0_i32_0 = arith.constant 0 : i32
    %c0_i32_1 = arith.constant 0 : i32
    return %arg0, %c0_i32, %c0_i32_0 : i32, i32, i32
  }
  func.func @transform_1(%arg0: i32) -> (i32, i32) {
    %c0_i32 = arith.constant 0 : i32
    %c0_i32_0 = arith.constant 0 : i32
    %c0_i32_1 = arith.constant 0 : i32
    return %c0_i32, %c0_i32_0 : i32, i32
  }
  func.func @transform_2(%arg0: i32) -> (i32, i32) {
    %c0_i32 = arith.constant 0 : i32
    %c0_i32_0 = arith.constant 0 : i32
    %c0_i32_1 = arith.constant 0 : i32
    return %c0_i32, %c0_i32_0 : i32, i32
  }
  func.func @transform_3(%arg0: i32) -> (i32, i32) {
    %c0_i32 = arith.constant 0 : i32
    %c0_i32_0 = arith.constant 0 : i32
    return %arg0, %c0_i32 : i32, i32
  }
}

module attributes {stable_mosaic.version = 11 : i64} {
  func.func @bilstm_attn_cls_kernel(%arg0: i32, %arg1: memref<64x128xbf16, #tpu.memory_space<vmem>>, %arg2: memref<128x1024xbf16, #tpu.memory_space<vmem>>, %arg3: memref<128x512xbf16, #tpu.memory_space<vmem>>, %arg4: memref<128x512xbf16, #tpu.memory_space<vmem>>, %arg5: memref<1x1024xf32, #tpu.memory_space<vmem>>, %arg6: memref<256x1xbf16, #tpu.memory_space<vmem>>, %arg7: memref<8x3xbf16, #tpu.memory_space<vmem>>, %arg8: memref<256x2xbf16, #tpu.memory_space<vmem>>, %arg9: memref<3x2xbf16, #tpu.memory_space<vmem>>, %arg10: memref<1x2xf32, #tpu.memory_space<vmem>>, %arg11: memref<8x2xf32, #tpu.memory_space<vmem>>, %arg12: memref<8x8x512xf32, #tpu.memory_space<vmem>>, %arg13: memref<8x8x512xf32, #tpu.memory_space<vmem>>, %arg14: memref<8x8x128xf32, #tpu.memory_space<vmem>>, %arg15: memref<8x8x128xf32, #tpu.memory_space<vmem>>) attributes {dimension_semantics = [#tpu.dimension_semantics<arbitrary>], iteration_bounds = array<i64: 1>, scalar_prefetch = 0 : i64, scratch_operands = 4 : i64, tpu.core_type = #tpu.core_type<tc>, window_params = [{pipeline_mode = #tpu.pipeline_mode<synchronous>, transform_indices = @transform_0, window_bounds = array<i64: 64, 128>}, {pipeline_mode = #tpu.pipeline_mode<synchronous>, transform_indices = @transform_1, window_bounds = array<i64: 128, 1024>}, {pipeline_mode = #tpu.pipeline_mode<synchronous>, transform_indices = @transform_2, window_bounds = array<i64: 128, 512>}, {pipeline_mode = #tpu.pipeline_mode<synchronous>, transform_indices = @transform_3, window_bounds = array<i64: 128, 512>}, {pipeline_mode = #tpu.pipeline_mode<synchronous>, transform_indices = @transform_4, window_bounds = array<i64: 1, 1024>}, {pipeline_mode = #tpu.pipeline_mode<synchronous>, transform_indices = @transform_5, window_bounds = array<i64: 256, 1>}, {pipeline_mode = #tpu.pipeline_mode<synchronous>, transform_indices = @transform_6, window_bounds = array<i64: 8, 3>}, {pipeline_mode = #tpu.pipeline_mode<synchronous>, transform_indices = @transform_7, window_bounds = array<i64: 256, 2>}, {pipeline_mode = #tpu.pipeline_mode<synchronous>, transform_indices = @transform_8, window_bounds = array<i64: 3, 2>}, {pipeline_mode = #tpu.pipeline_mode<synchronous>, transform_indices = @transform_9, window_bounds = array<i64: 1, 2>}, {pipeline_mode = #tpu.pipeline_mode<synchronous>, transform_indices = @transform_10, window_bounds = array<i64: 8, 2>}]} {
    %c0 = arith.constant 0 : index
    %c0_0 = arith.constant 0 : index
    %0 = vector.load %arg1[%c0, %c0_0] : memref<64x128xbf16, #tpu.memory_space<vmem>>, vector<64x128xbf16>
    %c0_1 = arith.constant 0 : index
    %c0_2 = arith.constant 0 : index
    %1 = vector.load %arg2[%c0_1, %c0_2] : memref<128x1024xbf16, #tpu.memory_space<vmem>>, vector<128x1024xbf16>
    %cst = arith.constant dense<0.000000e+00> : vector<64x1024xf32>
    %2 = tpu.matmul %0, %1, %cst {dimension_numbers = #tpu.dot_dimension_numbers<[1], [0], [0], [1], [0, 0, 1, 1], [], []>} : vector<64x128xbf16>, vector<128x1024xbf16>, vector<64x1024xf32> -> vector<64x1024xf32>
    %c0_3 = arith.constant 0 : index
    %c0_4 = arith.constant 0 : index
    %3 = vector.load %arg5[%c0_3, %c0_4] : memref<1x1024xf32, #tpu.memory_space<vmem>>, vector<1x1024xf32>
    %4 = vector.broadcast %3 : vector<1x1024xf32> to vector<64x1024xf32>
    %5 = arith.addf %2, %4 : vector<64x1024xf32>
    %6 = vector.extract_strided_slice %5 {offsets = [0, 0], sizes = [64, 512], strides = [1, 1]} : vector<64x1024xf32> to vector<64x512xf32>
    %7 = vector.shape_cast %6 : vector<64x512xf32> to vector<8x8x512xf32>
    %c0_5 = arith.constant 0 : index
    %c0_6 = arith.constant 0 : index
    %c0_7 = arith.constant 0 : index
    %8 = vector.load %arg12[%c0_5, %c0_6, %c0_7] : memref<8x8x512xf32, #tpu.memory_space<vmem>>, vector<8x8x512xf32>
    tpu.vector_store %arg12[%c0_5, %c0_6, %c0_7], %7 {strides = array<i32>} : memref<8x8x512xf32, #tpu.memory_space<vmem>>, vector<8x8x512xf32>,
    %9 = vector.extract_strided_slice %5 {offsets = [0, 512], sizes = [64, 512], strides = [1, 1]} : vector<64x1024xf32> to vector<64x512xf32>
    %10 = vector.shape_cast %9 : vector<64x512xf32> to vector<8x8x512xf32>
    %c0_8 = arith.constant 0 : index
    %c0_9 = arith.constant 0 : index
    %c0_10 = arith.constant 0 : index
    %11 = vector.load %arg13[%c0_8, %c0_9, %c0_10] : memref<8x8x512xf32, #tpu.memory_space<vmem>>, vector<8x8x512xf32>
    tpu.vector_store %arg13[%c0_8, %c0_9, %c0_10], %10 {strides = array<i32>} : memref<8x8x512xf32, #tpu.memory_space<vmem>>, vector<8x8x512xf32>,
    %c0_11 = arith.constant 0 : index
    %c0_12 = arith.constant 0 : index
    %12 = vector.load %arg3[%c0_11, %c0_12] : memref<128x512xbf16, #tpu.memory_space<vmem>>, vector<128x512xbf16>
    %c0_13 = arith.constant 0 : index
    %c0_14 = arith.constant 0 : index
    %13 = vector.load %arg4[%c0_13, %c0_14] : memref<128x512xbf16, #tpu.memory_space<vmem>>, vector<128x512xbf16>
    %cst_15 = arith.constant 0.000000e+00 : bf16
    %14 = vector.broadcast %cst_15 : bf16 to vector<8x128xbf16>
    %cst_16 = arith.constant 0.000000e+00 : f32
    %15 = vector.broadcast %cst_16 : f32 to vector<8x128xf32>
    %c0_i32 = arith.constant 0 : i32
    %c7_i32 = arith.constant 7 : i32
    %16 = arith.subi %c7_i32, %c0_i32 : i32
    %17 = arith.index_cast %c0_i32 : i32 to index
    %c0_17 = arith.constant 0 : index
    %c0_18 = arith.constant 0 : index
    %18 = vector.load %arg12[%17, %c0_17, %c0_18] : memref<8x8x512xf32, #tpu.memory_space<vmem>>, vector<1x8x512xf32>
    %19 = vector.shape_cast %18 : vector<1x8x512xf32> to vector<8x512xf32>
    %cst_19 = arith.constant dense<0.000000e+00> : vector<8x512xf32>
    %20 = tpu.matmul %14, %12, %cst_19 {dimension_numbers = #tpu.dot_dimension_numbers<[1], [0], [0], [1], [0, 0, 1, 1], [], []>} : vector<8x128xbf16>, vector<128x512xbf16>, vector<8x512xf32> -> vector<8x512xf32>
    %21 = arith.addf %19, %20 : vector<8x512xf32>
    %22 = arith.index_cast %16 : i32 to index
    %c0_20 = arith.constant 0 : index
    %c0_21 = arith.constant 0 : index
    %23 = vector.load %arg13[%22, %c0_20, %c0_21] : memref<8x8x512xf32, #tpu.memory_space<vmem>>, vector<1x8x512xf32>
    %24 = vector.shape_cast %23 : vector<1x8x512xf32> to vector<8x512xf32>
    %cst_22 = arith.constant dense<0.000000e+00> : vector<8x512xf32>
    %25 = tpu.matmul %14, %13, %cst_22 {dimension_numbers = #tpu.dot_dimension_numbers<[1], [0], [0], [1], [0, 0, 1, 1], [], []>} : vector<8x128xbf16>, vector<128x512xbf16>, vector<8x512xf32> -> vector<8x512xf32>
    %26 = arith.addf %24, %25 : vector<8x512xf32>
    %27 = vector.extract_strided_slice %21 {offsets = [0, 0], sizes = [8, 128], strides = [1, 1]} : vector<8x512xf32> to vector<8x128xf32>
    %28 = arith.negf %27 : vector<8x128xf32>
    %29 = math.exp %28 : vector<8x128xf32>
    %cst_23 = arith.constant 1.000000e+00 : f32
    %30 = vector.broadcast %cst_23 : f32 to vector<8x128xf32>
    %31 = arith.addf %30, %29 : vector<8x128xf32>
    %32 = arith.divf %30, %31 : vector<8x128xf32>
    %33 = vector.extract_strided_slice %21 {offsets = [0, 128], sizes = [8, 128], strides = [1, 1]} : vector<8x512xf32> to vector<8x128xf32>
    %34 = arith.negf %33 : vector<8x128xf32>
    %35 = math.exp %34 : vector<8x128xf32>
    %cst_24 = arith.constant 1.000000e+00 : f32
    %36 = vector.broadcast %cst_24 : f32 to vector<8x128xf32>
    %37 = arith.addf %36, %35 : vector<8x128xf32>
    %38 = arith.divf %36, %37 : vector<8x128xf32>
    %39 = vector.extract_strided_slice %21 {offsets = [0, 256], sizes = [8, 128], strides = [1, 1]} : vector<8x512xf32> to vector<8x128xf32>
    %40 = math.tanh %39 : vector<8x128xf32>
    %41 = vector.extract_strided_slice %21 {offsets = [0, 384], sizes = [8, 128], strides = [1, 1]} : vector<8x512xf32> to vector<8x128xf32>
    %42 = arith.negf %41 : vector<8x128xf32>
    %43 = math.exp %42 : vector<8x128xf32>
    %cst_25 = arith.constant 1.000000e+00 : f32
    %44 = vector.broadcast %cst_25 : f32 to vector<8x128xf32>
    %45 = arith.addf %44, %43 : vector<8x128xf32>
    %46 = arith.divf %44, %45 : vector<8x128xf32>
    %47 = vector.extract_strided_slice %26 {offsets = [0, 0], sizes = [8, 128], strides = [1, 1]} : vector<8x512xf32> to vector<8x128xf32>
    %48 = arith.negf %47 : vector<8x128xf32>
    %49 = math.exp %48 : vector<8x128xf32>
    %cst_26 = arith.constant 1.000000e+00 : f32
    %50 = vector.broadcast %cst_26 : f32 to vector<8x128xf32>
    %51 = arith.addf %50, %49 : vector<8x128xf32>
    %52 = arith.divf %50, %51 : vector<8x128xf32>
    %53 = vector.extract_strided_slice %26 {offsets = [0, 128], sizes = [8, 128], strides = [1, 1]} : vector<8x512xf32> to vector<8x128xf32>
    %54 = arith.negf %53 : vector<8x128xf32>
    %55 = math.exp %54 : vector<8x128xf32>
    %cst_27 = arith.constant 1.000000e+00 : f32
    %56 = vector.broadcast %cst_27 : f32 to vector<8x128xf32>
    %57 = arith.addf %56, %55 : vector<8x128xf32>
    %58 = arith.divf %56, %57 : vector<8x128xf32>
    %59 = vector.extract_strided_slice %26 {offsets = [0, 256], sizes = [8, 128], strides = [1, 1]} : vector<8x512xf32> to vector<8x128xf32>
    %60 = math.tanh %59 : vector<8x128xf32>
    %61 = vector.extract_strided_slice %26 {offsets = [0, 384], sizes = [8, 128], strides = [1, 1]} : vector<8x512xf32> to vector<8x128xf32>
    %62 = arith.negf %61 : vector<8x128xf32>
    %63 = math.exp %62 : vector<8x128xf32>
    %cst_28 = arith.constant 1.000000e+00 : f32
    %64 = vector.broadcast %cst_28 : f32 to vector<8x128xf32>
    %65 = arith.addf %64, %63 : vector<8x128xf32>
    %66 = arith.divf %64, %65 : vector<8x128xf32>
    %67 = arith.mulf %38, %15 : vector<8x128xf32>
    %68 = arith.mulf %32, %40 : vector<8x128xf32>
    %69 = arith.addf %67, %68 : vector<8x128xf32>
    %70 = arith.mulf %58, %15 : vector<8x128xf32>
    %71 = arith.mulf %52, %60 : vector<8x128xf32>
    %72 = arith.addf %70, %71 : vector<8x128xf32>
    %73 = math.tanh %69 : vector<8x128xf32>
    %74 = arith.mulf %46, %73 : vector<8x128xf32>
    %75 = math.tanh %72 : vector<8x128xf32>
    %76 = arith.mulf %66, %75 : vector<8x128xf32>
    %77 = arith.index_cast %c0_i32 : i32 to index
    %c0_29 = arith.constant 0 : index
    %c0_30 = arith.constant 0 : index
    %78 = vector.load %arg14[%77, %c0_29, %c0_30] : memref<8x8x128xf32, #tpu.memory_space<vmem>>, vector<1x8x128xf32>
    %79 = vector.shape_cast %78 : vector<1x8x128xf32> to vector<8x128xf32>
    %80 = vector.shape_cast %74 : vector<8x128xf32> to vector<1x8x128xf32>
    tpu.vector_store %arg14[%77, %c0_29, %c0_30], %80 {strides = array<i32>} : memref<8x8x128xf32, #tpu.memory_space<vmem>>, vector<1x8x128xf32>,
    %81 = arith.index_cast %16 : i32 to index
    %c0_31 = arith.constant 0 : index
    %c0_32 = arith.constant 0 : index
    %82 = vector.load %arg15[%81, %c0_31, %c0_32] : memref<8x8x128xf32, #tpu.memory_space<vmem>>, vector<1x8x128xf32>
    %83 = vector.shape_cast %82 : vector<1x8x128xf32> to vector<8x128xf32>
    %84 = vector.shape_cast %76 : vector<8x128xf32> to vector<1x8x128xf32>
    tpu.vector_store %arg15[%81, %c0_31, %c0_32], %84 {strides = array<i32>} : memref<8x8x128xf32, #tpu.memory_space<vmem>>, vector<1x8x128xf32>,
    %85 = arith.truncf %74 : vector<8x128xf32> to vector<8x128xbf16>
    %86 = arith.truncf %76 : vector<8x128xf32> to vector<8x128xbf16>
    %c1_i32 = arith.constant 1 : i32
    %c7_i32_33 = arith.constant 7 : i32
    %87 = arith.subi %c7_i32_33, %c1_i32 : i32
    %88 = arith.index_cast %c1_i32 : i32 to index
    %c0_34 = arith.constant 0 : index
    %c0_35 = arith.constant 0 : index
    %89 = vector.load %arg12[%88, %c0_34, %c0_35] : memref<8x8x512xf32, #tpu.memory_space<vmem>>, vector<1x8x512xf32>
    %90 = vector.shape_cast %89 : vector<1x8x512xf32> to vector<8x512xf32>
    %cst_36 = arith.constant dense<0.000000e+00> : vector<8x512xf32>
    %91 = tpu.matmul %85, %12, %cst_36 {dimension_numbers = #tpu.dot_dimension_numbers<[1], [0], [0], [1], [0, 0, 1, 1], [], []>} : vector<8x128xbf16>, vector<128x512xbf16>, vector<8x512xf32> -> vector<8x512xf32>
    %92 = arith.addf %90, %91 : vector<8x512xf32>
    %93 = arith.index_cast %87 : i32 to index
    %c0_37 = arith.constant 0 : index
    %c0_38 = arith.constant 0 : index
    %94 = vector.load %arg13[%93, %c0_37, %c0_38] : memref<8x8x512xf32, #tpu.memory_space<vmem>>, vector<1x8x512xf32>
    %95 = vector.shape_cast %94 : vector<1x8x512xf32> to vector<8x512xf32>
    %cst_39 = arith.constant dense<0.000000e+00> : vector<8x512xf32>
    %96 = tpu.matmul %86, %13, %cst_39 {dimension_numbers = #tpu.dot_dimension_numbers<[1], [0], [0], [1], [0, 0, 1, 1], [], []>} : vector<8x128xbf16>, vector<128x512xbf16>, vector<8x512xf32> -> vector<8x512xf32>
    %97 = arith.addf %95, %96 : vector<8x512xf32>
    %98 = vector.extract_strided_slice %92 {offsets = [0, 0], sizes = [8, 128], strides = [1, 1]} : vector<8x512xf32> to vector<8x128xf32>
    %99 = arith.negf %98 : vector<8x128xf32>
    %100 = math.exp %99 : vector<8x128xf32>
    %cst_40 = arith.constant 1.000000e+00 : f32
    %101 = vector.broadcast %cst_40 : f32 to vector<8x128xf32>
    %102 = arith.addf %101, %100 : vector<8x128xf32>
    %103 = arith.divf %101, %102 : vector<8x128xf32>
    %104 = vector.extract_strided_slice %92 {offsets = [0, 128], sizes = [8, 128], strides = [1, 1]} : vector<8x512xf32> to vector<8x128xf32>
    %105 = arith.negf %104 : vector<8x128xf32>
    %106 = math.exp %105 : vector<8x128xf32>
    %cst_41 = arith.constant 1.000000e+00 : f32
    %107 = vector.broadcast %cst_41 : f32 to vector<8x128xf32>
    %108 = arith.addf %107, %106 : vector<8x128xf32>
    %109 = arith.divf %107, %108 : vector<8x128xf32>
    %110 = vector.extract_strided_slice %92 {offsets = [0, 256], sizes = [8, 128], strides = [1, 1]} : vector<8x512xf32> to vector<8x128xf32>
    %111 = math.tanh %110 : vector<8x128xf32>
    %112 = vector.extract_strided_slice %92 {offsets = [0, 384], sizes = [8, 128], strides = [1, 1]} : vector<8x512xf32> to vector<8x128xf32>
    %113 = arith.negf %112 : vector<8x128xf32>
    %114 = math.exp %113 : vector<8x128xf32>
    %cst_42 = arith.constant 1.000000e+00 : f32
    %115 = vector.broadcast %cst_42 : f32 to vector<8x128xf32>
    %116 = arith.addf %115, %114 : vector<8x128xf32>
    %117 = arith.divf %115, %116 : vector<8x128xf32>
    %118 = vector.extract_strided_slice %97 {offsets = [0, 0], sizes = [8, 128], strides = [1, 1]} : vector<8x512xf32> to vector<8x128xf32>
    %119 = arith.negf %118 : vector<8x128xf32>
    %120 = math.exp %119 : vector<8x128xf32>
    %cst_43 = arith.constant 1.000000e+00 : f32
    %121 = vector.broadcast %cst_43 : f32 to vector<8x128xf32>
    %122 = arith.addf %121, %120 : vector<8x128xf32>
    %123 = arith.divf %121, %122 : vector<8x128xf32>
    %124 = vector.extract_strided_slice %97 {offsets = [0, 128], sizes = [8, 128], strides = [1, 1]} : vector<8x512xf32> to vector<8x128xf32>
    %125 = arith.negf %124 : vector<8x128xf32>
    %126 = math.exp %125 : vector<8x128xf32>
    %cst_44 = arith.constant 1.000000e+00 : f32
    %127 = vector.broadcast %cst_44 : f32 to vector<8x128xf32>
    %128 = arith.addf %127, %126 : vector<8x128xf32>
    %129 = arith.divf %127, %128 : vector<8x128xf32>
    %130 = vector.extract_strided_slice %97 {offsets = [0, 256], sizes = [8, 128], strides = [1, 1]} : vector<8x512xf32> to vector<8x128xf32>
    %131 = math.tanh %130 : vector<8x128xf32>
    %132 = vector.extract_strided_slice %97 {offsets = [0, 384], sizes = [8, 128], strides = [1, 1]} : vector<8x512xf32> to vector<8x128xf32>
    %133 = arith.negf %132 : vector<8x128xf32>
    %134 = math.exp %133 : vector<8x128xf32>
    %cst_45 = arith.constant 1.000000e+00 : f32
    %135 = vector.broadcast %cst_45 : f32 to vector<8x128xf32>
    %136 = arith.addf %135, %134 : vector<8x128xf32>
    %137 = arith.divf %135, %136 : vector<8x128xf32>
    %138 = arith.mulf %109, %69 : vector<8x128xf32>
    %139 = arith.mulf %103, %111 : vector<8x128xf32>
    %140 = arith.addf %138, %139 : vector<8x128xf32>
    %141 = arith.mulf %129, %72 : vector<8x128xf32>
    %142 = arith.mulf %123, %131 : vector<8x128xf32>
    %143 = arith.addf %141, %142 : vector<8x128xf32>
    %144 = math.tanh %140 : vector<8x128xf32>
    %145 = arith.mulf %117, %144 : vector<8x128xf32>
    %146 = math.tanh %143 : vector<8x128xf32>
    %147 = arith.mulf %137, %146 : vector<8x128xf32>
    %148 = arith.index_cast %c1_i32 : i32 to index
    %c0_46 = arith.constant 0 : index
    %c0_47 = arith.constant 0 : index
    %149 = vector.load %arg14[%148, %c0_46, %c0_47] : memref<8x8x128xf32, #tpu.memory_space<vmem>>, vector<1x8x128xf32>
    %150 = vector.shape_cast %149 : vector<1x8x128xf32> to vector<8x128xf32>
    %151 = vector.shape_cast %145 : vector<8x128xf32> to vector<1x8x128xf32>
    tpu.vector_store %arg14[%148, %c0_46, %c0_47], %151 {strides = array<i32>} : memref<8x8x128xf32, #tpu.memory_space<vmem>>, vector<1x8x128xf32>,
    %152 = arith.index_cast %87 : i32 to index
    %c0_48 = arith.constant 0 : index
    %c0_49 = arith.constant 0 : index
    %153 = vector.load %arg15[%152, %c0_48, %c0_49] : memref<8x8x128xf32, #tpu.memory_space<vmem>>, vector<1x8x128xf32>
    %154 = vector.shape_cast %153 : vector<1x8x128xf32> to vector<8x128xf32>
    %155 = vector.shape_cast %147 : vector<8x128xf32> to vector<1x8x128xf32>
    tpu.vector_store %arg15[%152, %c0_48, %c0_49], %155 {strides = array<i32>} : memref<8x8x128xf32, #tpu.memory_space<vmem>>, vector<1x8x128xf32>,
    %156 = arith.truncf %145 : vector<8x128xf32> to vector<8x128xbf16>
    %157 = arith.truncf %147 : vector<8x128xf32> to vector<8x128xbf16>
    %c2_i32 = arith.constant 2 : i32
    %c7_i32_50 = arith.constant 7 : i32
    %158 = arith.subi %c7_i32_50, %c2_i32 : i32
    %159 = arith.index_cast %c2_i32 : i32 to index
    %c0_51 = arith.constant 0 : index
    %c0_52 = arith.constant 0 : index
    %160 = vector.load %arg12[%159, %c0_51, %c0_52] : memref<8x8x512xf32, #tpu.memory_space<vmem>>, vector<1x8x512xf32>
    %161 = vector.shape_cast %160 : vector<1x8x512xf32> to vector<8x512xf32>
    %cst_53 = arith.constant dense<0.000000e+00> : vector<8x512xf32>
    %162 = tpu.matmul %156, %12, %cst_53 {dimension_numbers = #tpu.dot_dimension_numbers<[1], [0], [0], [1], [0, 0, 1, 1], [], []>} : vector<8x128xbf16>, vector<128x512xbf16>, vector<8x512xf32> -> vector<8x512xf32>
    %163 = arith.addf %161, %162 : vector<8x512xf32>
    %164 = arith.index_cast %158 : i32 to index
    %c0_54 = arith.constant 0 : index
    %c0_55 = arith.constant 0 : index
    %165 = vector.load %arg13[%164, %c0_54, %c0_55] : memref<8x8x512xf32, #tpu.memory_space<vmem>>, vector<1x8x512xf32>
    %166 = vector.shape_cast %165 : vector<1x8x512xf32> to vector<8x512xf32>
    %cst_56 = arith.constant dense<0.000000e+00> : vector<8x512xf32>
    %167 = tpu.matmul %157, %13, %cst_56 {dimension_numbers = #tpu.dot_dimension_numbers<[1], [0], [0], [1], [0, 0, 1, 1], [], []>} : vector<8x128xbf16>, vector<128x512xbf16>, vector<8x512xf32> -> vector<8x512xf32>
    %168 = arith.addf %166, %167 : vector<8x512xf32>
    %169 = vector.extract_strided_slice %163 {offsets = [0, 0], sizes = [8, 128], strides = [1, 1]} : vector<8x512xf32> to vector<8x128xf32>
    %170 = arith.negf %169 : vector<8x128xf32>
    %171 = math.exp %170 : vector<8x128xf32>
    %cst_57 = arith.constant 1.000000e+00 : f32
    %172 = vector.broadcast %cst_57 : f32 to vector<8x128xf32>
    %173 = arith.addf %172, %171 : vector<8x128xf32>
    %174 = arith.divf %172, %173 : vector<8x128xf32>
    %175 = vector.extract_strided_slice %163 {offsets = [0, 128], sizes = [8, 128], strides = [1, 1]} : vector<8x512xf32> to vector<8x128xf32>
    %176 = arith.negf %175 : vector<8x128xf32>
    %177 = math.exp %176 : vector<8x128xf32>
    %cst_58 = arith.constant 1.000000e+00 : f32
    %178 = vector.broadcast %cst_58 : f32 to vector<8x128xf32>
    %179 = arith.addf %178, %177 : vector<8x128xf32>
    %180 = arith.divf %178, %179 : vector<8x128xf32>
    %181 = vector.extract_strided_slice %163 {offsets = [0, 256], sizes = [8, 128], strides = [1, 1]} : vector<8x512xf32> to vector<8x128xf32>
    %182 = math.tanh %181 : vector<8x128xf32>
    %183 = vector.extract_strided_slice %163 {offsets = [0, 384], sizes = [8, 128], strides = [1, 1]} : vector<8x512xf32> to vector<8x128xf32>
    %184 = arith.negf %183 : vector<8x128xf32>
    %185 = math.exp %184 : vector<8x128xf32>
    %cst_59 = arith.constant 1.000000e+00 : f32
    %186 = vector.broadcast %cst_59 : f32 to vector<8x128xf32>
    %187 = arith.addf %186, %185 : vector<8x128xf32>
    %188 = arith.divf %186, %187 : vector<8x128xf32>
    %189 = vector.extract_strided_slice %168 {offsets = [0, 0], sizes = [8, 128], strides = [1, 1]} : vector<8x512xf32> to vector<8x128xf32>
    %190 = arith.negf %189 : vector<8x128xf32>
    %191 = math.exp %190 : vector<8x128xf32>
    %cst_60 = arith.constant 1.000000e+00 : f32
    %192 = vector.broadcast %cst_60 : f32 to vector<8x128xf32>
    %193 = arith.addf %192, %191 : vector<8x128xf32>
    %194 = arith.divf %192, %193 : vector<8x128xf32>
    %195 = vector.extract_strided_slice %168 {offsets = [0, 128], sizes = [8, 128], strides = [1, 1]} : vector<8x512xf32> to vector<8x128xf32>
    %196 = arith.negf %195 : vector<8x128xf32>
    %197 = math.exp %196 : vector<8x128xf32>
    %cst_61 = arith.constant 1.000000e+00 : f32
    %198 = vector.broadcast %cst_61 : f32 to vector<8x128xf32>
    %199 = arith.addf %198, %197 : vector<8x128xf32>
    %200 = arith.divf %198, %199 : vector<8x128xf32>
    %201 = vector.extract_strided_slice %168 {offsets = [0, 256], sizes = [8, 128], strides = [1, 1]} : vector<8x512xf32> to vector<8x128xf32>
    %202 = math.tanh %201 : vector<8x128xf32>
    %203 = vector.extract_strided_slice %168 {offsets = [0, 384], sizes = [8, 128], strides = [1, 1]} : vector<8x512xf32> to vector<8x128xf32>
    %204 = arith.negf %203 : vector<8x128xf32>
    %205 = math.exp %204 : vector<8x128xf32>
    %cst_62 = arith.constant 1.000000e+00 : f32
    %206 = vector.broadcast %cst_62 : f32 to vector<8x128xf32>
    %207 = arith.addf %206, %205 : vector<8x128xf32>
    %208 = arith.divf %206, %207 : vector<8x128xf32>
    %209 = arith.mulf %180, %140 : vector<8x128xf32>
    %210 = arith.mulf %174, %182 : vector<8x128xf32>
    %211 = arith.addf %209, %210 : vector<8x128xf32>
    %212 = arith.mulf %200, %143 : vector<8x128xf32>
    %213 = arith.mulf %194, %202 : vector<8x128xf32>
    %214 = arith.addf %212, %213 : vector<8x128xf32>
    %215 = math.tanh %211 : vector<8x128xf32>
    %216 = arith.mulf %188, %215 : vector<8x128xf32>
    %217 = math.tanh %214 : vector<8x128xf32>
    %218 = arith.mulf %208, %217 : vector<8x128xf32>
    %219 = arith.index_cast %c2_i32 : i32 to index
    %c0_63 = arith.constant 0 : index
    %c0_64 = arith.constant 0 : index
    %220 = vector.load %arg14[%219, %c0_63, %c0_64] : memref<8x8x128xf32, #tpu.memory_space<vmem>>, vector<1x8x128xf32>
    %221 = vector.shape_cast %220 : vector<1x8x128xf32> to vector<8x128xf32>
    %222 = vector.shape_cast %216 : vector<8x128xf32> to vector<1x8x128xf32>
    tpu.vector_store %arg14[%219, %c0_63, %c0_64], %222 {strides = array<i32>} : memref<8x8x128xf32, #tpu.memory_space<vmem>>, vector<1x8x128xf32>,
    %223 = arith.index_cast %158 : i32 to index
    %c0_65 = arith.constant 0 : index
    %c0_66 = arith.constant 0 : index
    %224 = vector.load %arg15[%223, %c0_65, %c0_66] : memref<8x8x128xf32, #tpu.memory_space<vmem>>, vector<1x8x128xf32>
    %225 = vector.shape_cast %224 : vector<1x8x128xf32> to vector<8x128xf32>
    %226 = vector.shape_cast %218 : vector<8x128xf32> to vector<1x8x128xf32>
    tpu.vector_store %arg15[%223, %c0_65, %c0_66], %226 {strides = array<i32>} : memref<8x8x128xf32, #tpu.memory_space<vmem>>, vector<1x8x128xf32>,
    %227 = arith.truncf %216 : vector<8x128xf32> to vector<8x128xbf16>
    %228 = arith.truncf %218 : vector<8x128xf32> to vector<8x128xbf16>
    %c3_i32 = arith.constant 3 : i32
    %c7_i32_67 = arith.constant 7 : i32
    %229 = arith.subi %c7_i32_67, %c3_i32 : i32
    %230 = arith.index_cast %c3_i32 : i32 to index
    %c0_68 = arith.constant 0 : index
    %c0_69 = arith.constant 0 : index
    %231 = vector.load %arg12[%230, %c0_68, %c0_69] : memref<8x8x512xf32, #tpu.memory_space<vmem>>, vector<1x8x512xf32>
    %232 = vector.shape_cast %231 : vector<1x8x512xf32> to vector<8x512xf32>
    %cst_70 = arith.constant dense<0.000000e+00> : vector<8x512xf32>
    %233 = tpu.matmul %227, %12, %cst_70 {dimension_numbers = #tpu.dot_dimension_numbers<[1], [0], [0], [1], [0, 0, 1, 1], [], []>} : vector<8x128xbf16>, vector<128x512xbf16>, vector<8x512xf32> -> vector<8x512xf32>
    %234 = arith.addf %232, %233 : vector<8x512xf32>
    %235 = arith.index_cast %229 : i32 to index
    %c0_71 = arith.constant 0 : index
    %c0_72 = arith.constant 0 : index
    %236 = vector.load %arg13[%235, %c0_71, %c0_72] : memref<8x8x512xf32, #tpu.memory_space<vmem>>, vector<1x8x512xf32>
    %237 = vector.shape_cast %236 : vector<1x8x512xf32> to vector<8x512xf32>
    %cst_73 = arith.constant dense<0.000000e+00> : vector<8x512xf32>
    %238 = tpu.matmul %228, %13, %cst_73 {dimension_numbers = #tpu.dot_dimension_numbers<[1], [0], [0], [1], [0, 0, 1, 1], [], []>} : vector<8x128xbf16>, vector<128x512xbf16>, vector<8x512xf32> -> vector<8x512xf32>
    %239 = arith.addf %237, %238 : vector<8x512xf32>
    %240 = vector.extract_strided_slice %234 {offsets = [0, 0], sizes = [8, 128], strides = [1, 1]} : vector<8x512xf32> to vector<8x128xf32>
    %241 = arith.negf %240 : vector<8x128xf32>
    %242 = math.exp %241 : vector<8x128xf32>
    %cst_74 = arith.constant 1.000000e+00 : f32
    %243 = vector.broadcast %cst_74 : f32 to vector<8x128xf32>
    %244 = arith.addf %243, %242 : vector<8x128xf32>
    %245 = arith.divf %243, %244 : vector<8x128xf32>
    %246 = vector.extract_strided_slice %234 {offsets = [0, 128], sizes = [8, 128], strides = [1, 1]} : vector<8x512xf32> to vector<8x128xf32>
    %247 = arith.negf %246 : vector<8x128xf32>
    %248 = math.exp %247 : vector<8x128xf32>
    %cst_75 = arith.constant 1.000000e+00 : f32
    %249 = vector.broadcast %cst_75 : f32 to vector<8x128xf32>
    %250 = arith.addf %249, %248 : vector<8x128xf32>
    %251 = arith.divf %249, %250 : vector<8x128xf32>
    %252 = vector.extract_strided_slice %234 {offsets = [0, 256], sizes = [8, 128], strides = [1, 1]} : vector<8x512xf32> to vector<8x128xf32>
    %253 = math.tanh %252 : vector<8x128xf32>
    %254 = vector.extract_strided_slice %234 {offsets = [0, 384], sizes = [8, 128], strides = [1, 1]} : vector<8x512xf32> to vector<8x128xf32>
    %255 = arith.negf %254 : vector<8x128xf32>
    %256 = math.exp %255 : vector<8x128xf32>
    %cst_76 = arith.constant 1.000000e+00 : f32
    %257 = vector.broadcast %cst_76 : f32 to vector<8x128xf32>
    %258 = arith.addf %257, %256 : vector<8x128xf32>
    %259 = arith.divf %257, %258 : vector<8x128xf32>
    %260 = vector.extract_strided_slice %239 {offsets = [0, 0], sizes = [8, 128], strides = [1, 1]} : vector<8x512xf32> to vector<8x128xf32>
    %261 = arith.negf %260 : vector<8x128xf32>
    %262 = math.exp %261 : vector<8x128xf32>
    %cst_77 = arith.constant 1.000000e+00 : f32
    %263 = vector.broadcast %cst_77 : f32 to vector<8x128xf32>
    %264 = arith.addf %263, %262 : vector<8x128xf32>
    %265 = arith.divf %263, %264 : vector<8x128xf32>
    %266 = vector.extract_strided_slice %239 {offsets = [0, 128], sizes = [8, 128], strides = [1, 1]} : vector<8x512xf32> to vector<8x128xf32>
    %267 = arith.negf %266 : vector<8x128xf32>
    %268 = math.exp %267 : vector<8x128xf32>
    %cst_78 = arith.constant 1.000000e+00 : f32
    %269 = vector.broadcast %cst_78 : f32 to vector<8x128xf32>
    %270 = arith.addf %269, %268 : vector<8x128xf32>
    %271 = arith.divf %269, %270 : vector<8x128xf32>
    %272 = vector.extract_strided_slice %239 {offsets = [0, 256], sizes = [8, 128], strides = [1, 1]} : vector<8x512xf32> to vector<8x128xf32>
    %273 = math.tanh %272 : vector<8x128xf32>
    %274 = vector.extract_strided_slice %239 {offsets = [0, 384], sizes = [8, 128], strides = [1, 1]} : vector<8x512xf32> to vector<8x128xf32>
    %275 = arith.negf %274 : vector<8x128xf32>
    %276 = math.exp %275 : vector<8x128xf32>
    %cst_79 = arith.constant 1.000000e+00 : f32
    %277 = vector.broadcast %cst_79 : f32 to vector<8x128xf32>
    %278 = arith.addf %277, %276 : vector<8x128xf32>
    %279 = arith.divf %277, %278 : vector<8x128xf32>
    %280 = arith.mulf %251, %211 : vector<8x128xf32>
    %281 = arith.mulf %245, %253 : vector<8x128xf32>
    %282 = arith.addf %280, %281 : vector<8x128xf32>
    %283 = arith.mulf %271, %214 : vector<8x128xf32>
    %284 = arith.mulf %265, %273 : vector<8x128xf32>
    %285 = arith.addf %283, %284 : vector<8x128xf32>
    %286 = math.tanh %282 : vector<8x128xf32>
    %287 = arith.mulf %259, %286 : vector<8x128xf32>
    %288 = math.tanh %285 : vector<8x128xf32>
    %289 = arith.mulf %279, %288 : vector<8x128xf32>
    %290 = arith.index_cast %c3_i32 : i32 to index
    %c0_80 = arith.constant 0 : index
    %c0_81 = arith.constant 0 : index
    %291 = vector.load %arg14[%290, %c0_80, %c0_81] : memref<8x8x128xf32, #tpu.memory_space<vmem>>, vector<1x8x128xf32>
    %292 = vector.shape_cast %291 : vector<1x8x128xf32> to vector<8x128xf32>
    %293 = vector.shape_cast %287 : vector<8x128xf32> to vector<1x8x128xf32>
    tpu.vector_store %arg14[%290, %c0_80, %c0_81], %293 {strides = array<i32>} : memref<8x8x128xf32, #tpu.memory_space<vmem>>, vector<1x8x128xf32>,
    %294 = arith.index_cast %229 : i32 to index
    %c0_82 = arith.constant 0 : index
    %c0_83 = arith.constant 0 : index
    %295 = vector.load %arg15[%294, %c0_82, %c0_83] : memref<8x8x128xf32, #tpu.memory_space<vmem>>, vector<1x8x128xf32>
    %296 = vector.shape_cast %295 : vector<1x8x128xf32> to vector<8x128xf32>
    %297 = vector.shape_cast %289 : vector<8x128xf32> to vector<1x8x128xf32>
    tpu.vector_store %arg15[%294, %c0_82, %c0_83], %297 {strides = array<i32>} : memref<8x8x128xf32, #tpu.memory_space<vmem>>, vector<1x8x128xf32>,
    %298 = arith.truncf %287 : vector<8x128xf32> to vector<8x128xbf16>
    %299 = arith.truncf %289 : vector<8x128xf32> to vector<8x128xbf16>
    %c4_i32 = arith.constant 4 : i32
    %c7_i32_84 = arith.constant 7 : i32
    %300 = arith.subi %c7_i32_84, %c4_i32 : i32
    %301 = arith.index_cast %c4_i32 : i32 to index
    %c0_85 = arith.constant 0 : index
    %c0_86 = arith.constant 0 : index
    %302 = vector.load %arg12[%301, %c0_85, %c0_86] : memref<8x8x512xf32, #tpu.memory_space<vmem>>, vector<1x8x512xf32>
    %303 = vector.shape_cast %302 : vector<1x8x512xf32> to vector<8x512xf32>
    %cst_87 = arith.constant dense<0.000000e+00> : vector<8x512xf32>
    %304 = tpu.matmul %298, %12, %cst_87 {dimension_numbers = #tpu.dot_dimension_numbers<[1], [0], [0], [1], [0, 0, 1, 1], [], []>} : vector<8x128xbf16>, vector<128x512xbf16>, vector<8x512xf32> -> vector<8x512xf32>
    %305 = arith.addf %303, %304 : vector<8x512xf32>
    %306 = arith.index_cast %300 : i32 to index
    %c0_88 = arith.constant 0 : index
    %c0_89 = arith.constant 0 : index
    %307 = vector.load %arg13[%306, %c0_88, %c0_89] : memref<8x8x512xf32, #tpu.memory_space<vmem>>, vector<1x8x512xf32>
    %308 = vector.shape_cast %307 : vector<1x8x512xf32> to vector<8x512xf32>
    %cst_90 = arith.constant dense<0.000000e+00> : vector<8x512xf32>
    %309 = tpu.matmul %299, %13, %cst_90 {dimension_numbers = #tpu.dot_dimension_numbers<[1], [0], [0], [1], [0, 0, 1, 1], [], []>} : vector<8x128xbf16>, vector<128x512xbf16>, vector<8x512xf32> -> vector<8x512xf32>
    %310 = arith.addf %308, %309 : vector<8x512xf32>
    %311 = vector.extract_strided_slice %305 {offsets = [0, 0], sizes = [8, 128], strides = [1, 1]} : vector<8x512xf32> to vector<8x128xf32>
    %312 = arith.negf %311 : vector<8x128xf32>
    %313 = math.exp %312 : vector<8x128xf32>
    %cst_91 = arith.constant 1.000000e+00 : f32
    %314 = vector.broadcast %cst_91 : f32 to vector<8x128xf32>
    %315 = arith.addf %314, %313 : vector<8x128xf32>
    %316 = arith.divf %314, %315 : vector<8x128xf32>
    %317 = vector.extract_strided_slice %305 {offsets = [0, 128], sizes = [8, 128], strides = [1, 1]} : vector<8x512xf32> to vector<8x128xf32>
    %318 = arith.negf %317 : vector<8x128xf32>
    %319 = math.exp %318 : vector<8x128xf32>
    %cst_92 = arith.constant 1.000000e+00 : f32
    %320 = vector.broadcast %cst_92 : f32 to vector<8x128xf32>
    %321 = arith.addf %320, %319 : vector<8x128xf32>
    %322 = arith.divf %320, %321 : vector<8x128xf32>
    %323 = vector.extract_strided_slice %305 {offsets = [0, 256], sizes = [8, 128], strides = [1, 1]} : vector<8x512xf32> to vector<8x128xf32>
    %324 = math.tanh %323 : vector<8x128xf32>
    %325 = vector.extract_strided_slice %305 {offsets = [0, 384], sizes = [8, 128], strides = [1, 1]} : vector<8x512xf32> to vector<8x128xf32>
    %326 = arith.negf %325 : vector<8x128xf32>
    %327 = math.exp %326 : vector<8x128xf32>
    %cst_93 = arith.constant 1.000000e+00 : f32
    %328 = vector.broadcast %cst_93 : f32 to vector<8x128xf32>
    %329 = arith.addf %328, %327 : vector<8x128xf32>
    %330 = arith.divf %328, %329 : vector<8x128xf32>
    %331 = vector.extract_strided_slice %310 {offsets = [0, 0], sizes = [8, 128], strides = [1, 1]} : vector<8x512xf32> to vector<8x128xf32>
    %332 = arith.negf %331 : vector<8x128xf32>
    %333 = math.exp %332 : vector<8x128xf32>
    %cst_94 = arith.constant 1.000000e+00 : f32
    %334 = vector.broadcast %cst_94 : f32 to vector<8x128xf32>
    %335 = arith.addf %334, %333 : vector<8x128xf32>
    %336 = arith.divf %334, %335 : vector<8x128xf32>
    %337 = vector.extract_strided_slice %310 {offsets = [0, 128], sizes = [8, 128], strides = [1, 1]} : vector<8x512xf32> to vector<8x128xf32>
    %338 = arith.negf %337 : vector<8x128xf32>
    %339 = math.exp %338 : vector<8x128xf32>
    %cst_95 = arith.constant 1.000000e+00 : f32
    %340 = vector.broadcast %cst_95 : f32 to vector<8x128xf32>
    %341 = arith.addf %340, %339 : vector<8x128xf32>
    %342 = arith.divf %340, %341 : vector<8x128xf32>
    %343 = vector.extract_strided_slice %310 {offsets = [0, 256], sizes = [8, 128], strides = [1, 1]} : vector<8x512xf32> to vector<8x128xf32>
    %344 = math.tanh %343 : vector<8x128xf32>
    %345 = vector.extract_strided_slice %310 {offsets = [0, 384], sizes = [8, 128], strides = [1, 1]} : vector<8x512xf32> to vector<8x128xf32>
    %346 = arith.negf %345 : vector<8x128xf32>
    %347 = math.exp %346 : vector<8x128xf32>
    %cst_96 = arith.constant 1.000000e+00 : f32
    %348 = vector.broadcast %cst_96 : f32 to vector<8x128xf32>
    %349 = arith.addf %348, %347 : vector<8x128xf32>
    %350 = arith.divf %348, %349 : vector<8x128xf32>
    %351 = arith.mulf %322, %282 : vector<8x128xf32>
    %352 = arith.mulf %316, %324 : vector<8x128xf32>
    %353 = arith.addf %351, %352 : vector<8x128xf32>
    %354 = arith.mulf %342, %285 : vector<8x128xf32>
    %355 = arith.mulf %336, %344 : vector<8x128xf32>
    %356 = arith.addf %354, %355 : vector<8x128xf32>
    %357 = math.tanh %353 : vector<8x128xf32>
    %358 = arith.mulf %330, %357 : vector<8x128xf32>
    %359 = math.tanh %356 : vector<8x128xf32>
    %360 = arith.mulf %350, %359 : vector<8x128xf32>
    %361 = arith.index_cast %c4_i32 : i32 to index
    %c0_97 = arith.constant 0 : index
    %c0_98 = arith.constant 0 : index
    %362 = vector.load %arg14[%361, %c0_97, %c0_98] : memref<8x8x128xf32, #tpu.memory_space<vmem>>, vector<1x8x128xf32>
    %363 = vector.shape_cast %362 : vector<1x8x128xf32> to vector<8x128xf32>
    %364 = vector.shape_cast %358 : vector<8x128xf32> to vector<1x8x128xf32>
    tpu.vector_store %arg14[%361, %c0_97, %c0_98], %364 {strides = array<i32>} : memref<8x8x128xf32, #tpu.memory_space<vmem>>, vector<1x8x128xf32>,
    %365 = arith.index_cast %300 : i32 to index
    %c0_99 = arith.constant 0 : index
    %c0_100 = arith.constant 0 : index
    %366 = vector.load %arg15[%365, %c0_99, %c0_100] : memref<8x8x128xf32, #tpu.memory_space<vmem>>, vector<1x8x128xf32>
    %367 = vector.shape_cast %366 : vector<1x8x128xf32> to vector<8x128xf32>
    %368 = vector.shape_cast %360 : vector<8x128xf32> to vector<1x8x128xf32>
    tpu.vector_store %arg15[%365, %c0_99, %c0_100], %368 {strides = array<i32>} : memref<8x8x128xf32, #tpu.memory_space<vmem>>, vector<1x8x128xf32>,
    %369 = arith.truncf %358 : vector<8x128xf32> to vector<8x128xbf16>
    %370 = arith.truncf %360 : vector<8x128xf32> to vector<8x128xbf16>
    %c5_i32 = arith.constant 5 : i32
    %c7_i32_101 = arith.constant 7 : i32
    %371 = arith.subi %c7_i32_101, %c5_i32 : i32
    %372 = arith.index_cast %c5_i32 : i32 to index
    %c0_102 = arith.constant 0 : index
    %c0_103 = arith.constant 0 : index
    %373 = vector.load %arg12[%372, %c0_102, %c0_103] : memref<8x8x512xf32, #tpu.memory_space<vmem>>, vector<1x8x512xf32>
    %374 = vector.shape_cast %373 : vector<1x8x512xf32> to vector<8x512xf32>
    %cst_104 = arith.constant dense<0.000000e+00> : vector<8x512xf32>
    %375 = tpu.matmul %369, %12, %cst_104 {dimension_numbers = #tpu.dot_dimension_numbers<[1], [0], [0], [1], [0, 0, 1, 1], [], []>} : vector<8x128xbf16>, vector<128x512xbf16>, vector<8x512xf32> -> vector<8x512xf32>
    %376 = arith.addf %374, %375 : vector<8x512xf32>
    %377 = arith.index_cast %371 : i32 to index
    %c0_105 = arith.constant 0 : index
    %c0_106 = arith.constant 0 : index
    %378 = vector.load %arg13[%377, %c0_105, %c0_106] : memref<8x8x512xf32, #tpu.memory_space<vmem>>, vector<1x8x512xf32>
    %379 = vector.shape_cast %378 : vector<1x8x512xf32> to vector<8x512xf32>
    %cst_107 = arith.constant dense<0.000000e+00> : vector<8x512xf32>
    %380 = tpu.matmul %370, %13, %cst_107 {dimension_numbers = #tpu.dot_dimension_numbers<[1], [0], [0], [1], [0, 0, 1, 1], [], []>} : vector<8x128xbf16>, vector<128x512xbf16>, vector<8x512xf32> -> vector<8x512xf32>
    %381 = arith.addf %379, %380 : vector<8x512xf32>
    %382 = vector.extract_strided_slice %376 {offsets = [0, 0], sizes = [8, 128], strides = [1, 1]} : vector<8x512xf32> to vector<8x128xf32>
    %383 = arith.negf %382 : vector<8x128xf32>
    %384 = math.exp %383 : vector<8x128xf32>
    %cst_108 = arith.constant 1.000000e+00 : f32
    %385 = vector.broadcast %cst_108 : f32 to vector<8x128xf32>
    %386 = arith.addf %385, %384 : vector<8x128xf32>
    %387 = arith.divf %385, %386 : vector<8x128xf32>
    %388 = vector.extract_strided_slice %376 {offsets = [0, 128], sizes = [8, 128], strides = [1, 1]} : vector<8x512xf32> to vector<8x128xf32>
    %389 = arith.negf %388 : vector<8x128xf32>
    %390 = math.exp %389 : vector<8x128xf32>
    %cst_109 = arith.constant 1.000000e+00 : f32
    %391 = vector.broadcast %cst_109 : f32 to vector<8x128xf32>
    %392 = arith.addf %391, %390 : vector<8x128xf32>
    %393 = arith.divf %391, %392 : vector<8x128xf32>
    %394 = vector.extract_strided_slice %376 {offsets = [0, 256], sizes = [8, 128], strides = [1, 1]} : vector<8x512xf32> to vector<8x128xf32>
    %395 = math.tanh %394 : vector<8x128xf32>
    %396 = vector.extract_strided_slice %376 {offsets = [0, 384], sizes = [8, 128], strides = [1, 1]} : vector<8x512xf32> to vector<8x128xf32>
    %397 = arith.negf %396 : vector<8x128xf32>
    %398 = math.exp %397 : vector<8x128xf32>
    %cst_110 = arith.constant 1.000000e+00 : f32
    %399 = vector.broadcast %cst_110 : f32 to vector<8x128xf32>
    %400 = arith.addf %399, %398 : vector<8x128xf32>
    %401 = arith.divf %399, %400 : vector<8x128xf32>
    %402 = vector.extract_strided_slice %381 {offsets = [0, 0], sizes = [8, 128], strides = [1, 1]} : vector<8x512xf32> to vector<8x128xf32>
    %403 = arith.negf %402 : vector<8x128xf32>
    %404 = math.exp %403 : vector<8x128xf32>
    %cst_111 = arith.constant 1.000000e+00 : f32
    %405 = vector.broadcast %cst_111 : f32 to vector<8x128xf32>
    %406 = arith.addf %405, %404 : vector<8x128xf32>
    %407 = arith.divf %405, %406 : vector<8x128xf32>
    %408 = vector.extract_strided_slice %381 {offsets = [0, 128], sizes = [8, 128], strides = [1, 1]} : vector<8x512xf32> to vector<8x128xf32>
    %409 = arith.negf %408 : vector<8x128xf32>
    %410 = math.exp %409 : vector<8x128xf32>
    %cst_112 = arith.constant 1.000000e+00 : f32
    %411 = vector.broadcast %cst_112 : f32 to vector<8x128xf32>
    %412 = arith.addf %411, %410 : vector<8x128xf32>
    %413 = arith.divf %411, %412 : vector<8x128xf32>
    %414 = vector.extract_strided_slice %381 {offsets = [0, 256], sizes = [8, 128], strides = [1, 1]} : vector<8x512xf32> to vector<8x128xf32>
    %415 = math.tanh %414 : vector<8x128xf32>
    %416 = vector.extract_strided_slice %381 {offsets = [0, 384], sizes = [8, 128], strides = [1, 1]} : vector<8x512xf32> to vector<8x128xf32>
    %417 = arith.negf %416 : vector<8x128xf32>
    %418 = math.exp %417 : vector<8x128xf32>
    %cst_113 = arith.constant 1.000000e+00 : f32
    %419 = vector.broadcast %cst_113 : f32 to vector<8x128xf32>
    %420 = arith.addf %419, %418 : vector<8x128xf32>
    %421 = arith.divf %419, %420 : vector<8x128xf32>
    %422 = arith.mulf %393, %353 : vector<8x128xf32>
    %423 = arith.mulf %387, %395 : vector<8x128xf32>
    %424 = arith.addf %422, %423 : vector<8x128xf32>
    %425 = arith.mulf %413, %356 : vector<8x128xf32>
    %426 = arith.mulf %407, %415 : vector<8x128xf32>
    %427 = arith.addf %425, %426 : vector<8x128xf32>
    %428 = math.tanh %424 : vector<8x128xf32>
    %429 = arith.mulf %401, %428 : vector<8x128xf32>
    %430 = math.tanh %427 : vector<8x128xf32>
    %431 = arith.mulf %421, %430 : vector<8x128xf32>
    %432 = arith.index_cast %c5_i32 : i32 to index
    %c0_114 = arith.constant 0 : index
    %c0_115 = arith.constant 0 : index
    %433 = vector.load %arg14[%432, %c0_114, %c0_115] : memref<8x8x128xf32, #tpu.memory_space<vmem>>, vector<1x8x128xf32>
    %434 = vector.shape_cast %433 : vector<1x8x128xf32> to vector<8x128xf32>
    %435 = vector.shape_cast %429 : vector<8x128xf32> to vector<1x8x128xf32>
    tpu.vector_store %arg14[%432, %c0_114, %c0_115], %435 {strides = array<i32>} : memref<8x8x128xf32, #tpu.memory_space<vmem>>, vector<1x8x128xf32>,
    %436 = arith.index_cast %371 : i32 to index
    %c0_116 = arith.constant 0 : index
    %c0_117 = arith.constant 0 : index
    %437 = vector.load %arg15[%436, %c0_116, %c0_117] : memref<8x8x128xf32, #tpu.memory_space<vmem>>, vector<1x8x128xf32>
    %438 = vector.shape_cast %437 : vector<1x8x128xf32> to vector<8x128xf32>
    %439 = vector.shape_cast %431 : vector<8x128xf32> to vector<1x8x128xf32>
    tpu.vector_store %arg15[%436, %c0_116, %c0_117], %439 {strides = array<i32>} : memref<8x8x128xf32, #tpu.memory_space<vmem>>, vector<1x8x128xf32>,
    %440 = arith.truncf %429 : vector<8x128xf32> to vector<8x128xbf16>
    %441 = arith.truncf %431 : vector<8x128xf32> to vector<8x128xbf16>
    %c6_i32 = arith.constant 6 : i32
    %c7_i32_118 = arith.constant 7 : i32
    %442 = arith.subi %c7_i32_118, %c6_i32 : i32
    %443 = arith.index_cast %c6_i32 : i32 to index
    %c0_119 = arith.constant 0 : index
    %c0_120 = arith.constant 0 : index
    %444 = vector.load %arg12[%443, %c0_119, %c0_120] : memref<8x8x512xf32, #tpu.memory_space<vmem>>, vector<1x8x512xf32>
    %445 = vector.shape_cast %444 : vector<1x8x512xf32> to vector<8x512xf32>
    %cst_121 = arith.constant dense<0.000000e+00> : vector<8x512xf32>
    %446 = tpu.matmul %440, %12, %cst_121 {dimension_numbers = #tpu.dot_dimension_numbers<[1], [0], [0], [1], [0, 0, 1, 1], [], []>} : vector<8x128xbf16>, vector<128x512xbf16>, vector<8x512xf32> -> vector<8x512xf32>
    %447 = arith.addf %445, %446 : vector<8x512xf32>
    %448 = arith.index_cast %442 : i32 to index
    %c0_122 = arith.constant 0 : index
    %c0_123 = arith.constant 0 : index
    %449 = vector.load %arg13[%448, %c0_122, %c0_123] : memref<8x8x512xf32, #tpu.memory_space<vmem>>, vector<1x8x512xf32>
    %450 = vector.shape_cast %449 : vector<1x8x512xf32> to vector<8x512xf32>
    %cst_124 = arith.constant dense<0.000000e+00> : vector<8x512xf32>
    %451 = tpu.matmul %441, %13, %cst_124 {dimension_numbers = #tpu.dot_dimension_numbers<[1], [0], [0], [1], [0, 0, 1, 1], [], []>} : vector<8x128xbf16>, vector<128x512xbf16>, vector<8x512xf32> -> vector<8x512xf32>
    %452 = arith.addf %450, %451 : vector<8x512xf32>
    %453 = vector.extract_strided_slice %447 {offsets = [0, 0], sizes = [8, 128], strides = [1, 1]} : vector<8x512xf32> to vector<8x128xf32>
    %454 = arith.negf %453 : vector<8x128xf32>
    %455 = math.exp %454 : vector<8x128xf32>
    %cst_125 = arith.constant 1.000000e+00 : f32
    %456 = vector.broadcast %cst_125 : f32 to vector<8x128xf32>
    %457 = arith.addf %456, %455 : vector<8x128xf32>
    %458 = arith.divf %456, %457 : vector<8x128xf32>
    %459 = vector.extract_strided_slice %447 {offsets = [0, 128], sizes = [8, 128], strides = [1, 1]} : vector<8x512xf32> to vector<8x128xf32>
    %460 = arith.negf %459 : vector<8x128xf32>
    %461 = math.exp %460 : vector<8x128xf32>
    %cst_126 = arith.constant 1.000000e+00 : f32
    %462 = vector.broadcast %cst_126 : f32 to vector<8x128xf32>
    %463 = arith.addf %462, %461 : vector<8x128xf32>
    %464 = arith.divf %462, %463 : vector<8x128xf32>
    %465 = vector.extract_strided_slice %447 {offsets = [0, 256], sizes = [8, 128], strides = [1, 1]} : vector<8x512xf32> to vector<8x128xf32>
    %466 = math.tanh %465 : vector<8x128xf32>
    %467 = vector.extract_strided_slice %447 {offsets = [0, 384], sizes = [8, 128], strides = [1, 1]} : vector<8x512xf32> to vector<8x128xf32>
    %468 = arith.negf %467 : vector<8x128xf32>
    %469 = math.exp %468 : vector<8x128xf32>
    %cst_127 = arith.constant 1.000000e+00 : f32
    %470 = vector.broadcast %cst_127 : f32 to vector<8x128xf32>
    %471 = arith.addf %470, %469 : vector<8x128xf32>
    %472 = arith.divf %470, %471 : vector<8x128xf32>
    %473 = vector.extract_strided_slice %452 {offsets = [0, 0], sizes = [8, 128], strides = [1, 1]} : vector<8x512xf32> to vector<8x128xf32>
    %474 = arith.negf %473 : vector<8x128xf32>
    %475 = math.exp %474 : vector<8x128xf32>
    %cst_128 = arith.constant 1.000000e+00 : f32
    %476 = vector.broadcast %cst_128 : f32 to vector<8x128xf32>
    %477 = arith.addf %476, %475 : vector<8x128xf32>
    %478 = arith.divf %476, %477 : vector<8x128xf32>
    %479 = vector.extract_strided_slice %452 {offsets = [0, 128], sizes = [8, 128], strides = [1, 1]} : vector<8x512xf32> to vector<8x128xf32>
    %480 = arith.negf %479 : vector<8x128xf32>
    %481 = math.exp %480 : vector<8x128xf32>
    %cst_129 = arith.constant 1.000000e+00 : f32
    %482 = vector.broadcast %cst_129 : f32 to vector<8x128xf32>
    %483 = arith.addf %482, %481 : vector<8x128xf32>
    %484 = arith.divf %482, %483 : vector<8x128xf32>
    %485 = vector.extract_strided_slice %452 {offsets = [0, 256], sizes = [8, 128], strides = [1, 1]} : vector<8x512xf32> to vector<8x128xf32>
    %486 = math.tanh %485 : vector<8x128xf32>
    %487 = vector.extract_strided_slice %452 {offsets = [0, 384], sizes = [8, 128], strides = [1, 1]} : vector<8x512xf32> to vector<8x128xf32>
    %488 = arith.negf %487 : vector<8x128xf32>
    %489 = math.exp %488 : vector<8x128xf32>
    %cst_130 = arith.constant 1.000000e+00 : f32
    %490 = vector.broadcast %cst_130 : f32 to vector<8x128xf32>
    %491 = arith.addf %490, %489 : vector<8x128xf32>
    %492 = arith.divf %490, %491 : vector<8x128xf32>
    %493 = arith.mulf %464, %424 : vector<8x128xf32>
    %494 = arith.mulf %458, %466 : vector<8x128xf32>
    %495 = arith.addf %493, %494 : vector<8x128xf32>
    %496 = arith.mulf %484, %427 : vector<8x128xf32>
    %497 = arith.mulf %478, %486 : vector<8x128xf32>
    %498 = arith.addf %496, %497 : vector<8x128xf32>
    %499 = math.tanh %495 : vector<8x128xf32>
    %500 = arith.mulf %472, %499 : vector<8x128xf32>
    %501 = math.tanh %498 : vector<8x128xf32>
    %502 = arith.mulf %492, %501 : vector<8x128xf32>
    %503 = arith.index_cast %c6_i32 : i32 to index
    %c0_131 = arith.constant 0 : index
    %c0_132 = arith.constant 0 : index
    %504 = vector.load %arg14[%503, %c0_131, %c0_132] : memref<8x8x128xf32, #tpu.memory_space<vmem>>, vector<1x8x128xf32>
    %505 = vector.shape_cast %504 : vector<1x8x128xf32> to vector<8x128xf32>
    %506 = vector.shape_cast %500 : vector<8x128xf32> to vector<1x8x128xf32>
    tpu.vector_store %arg14[%503, %c0_131, %c0_132], %506 {strides = array<i32>} : memref<8x8x128xf32, #tpu.memory_space<vmem>>, vector<1x8x128xf32>,
    %507 = arith.index_cast %442 : i32 to index
    %c0_133 = arith.constant 0 : index
    %c0_134 = arith.constant 0 : index
    %508 = vector.load %arg15[%507, %c0_133, %c0_134] : memref<8x8x128xf32, #tpu.memory_space<vmem>>, vector<1x8x128xf32>
    %509 = vector.shape_cast %508 : vector<1x8x128xf32> to vector<8x128xf32>
    %510 = vector.shape_cast %502 : vector<8x128xf32> to vector<1x8x128xf32>
    tpu.vector_store %arg15[%507, %c0_133, %c0_134], %510 {strides = array<i32>} : memref<8x8x128xf32, #tpu.memory_space<vmem>>, vector<1x8x128xf32>,
    %511 = arith.truncf %500 : vector<8x128xf32> to vector<8x128xbf16>
    %512 = arith.truncf %502 : vector<8x128xf32> to vector<8x128xbf16>
    %c7_i32_135 = arith.constant 7 : i32
    %c7_i32_136 = arith.constant 7 : i32
    %513 = arith.subi %c7_i32_136, %c7_i32_135 : i32
    %514 = arith.index_cast %c7_i32_135 : i32 to index
    %c0_137 = arith.constant 0 : index
    %c0_138 = arith.constant 0 : index
    %515 = vector.load %arg12[%514, %c0_137, %c0_138] : memref<8x8x512xf32, #tpu.memory_space<vmem>>, vector<1x8x512xf32>
    %516 = vector.shape_cast %515 : vector<1x8x512xf32> to vector<8x512xf32>
    %cst_139 = arith.constant dense<0.000000e+00> : vector<8x512xf32>
    %517 = tpu.matmul %511, %12, %cst_139 {dimension_numbers = #tpu.dot_dimension_numbers<[1], [0], [0], [1], [0, 0, 1, 1], [], []>} : vector<8x128xbf16>, vector<128x512xbf16>, vector<8x512xf32> -> vector<8x512xf32>
    %518 = arith.addf %516, %517 : vector<8x512xf32>
    %519 = arith.index_cast %513 : i32 to index
    %c0_140 = arith.constant 0 : index
    %c0_141 = arith.constant 0 : index
    %520 = vector.load %arg13[%519, %c0_140, %c0_141] : memref<8x8x512xf32, #tpu.memory_space<vmem>>, vector<1x8x512xf32>
    %521 = vector.shape_cast %520 : vector<1x8x512xf32> to vector<8x512xf32>
    %cst_142 = arith.constant dense<0.000000e+00> : vector<8x512xf32>
    %522 = tpu.matmul %512, %13, %cst_142 {dimension_numbers = #tpu.dot_dimension_numbers<[1], [0], [0], [1], [0, 0, 1, 1], [], []>} : vector<8x128xbf16>, vector<128x512xbf16>, vector<8x512xf32> -> vector<8x512xf32>
    %523 = arith.addf %521, %522 : vector<8x512xf32>
    %524 = vector.extract_strided_slice %518 {offsets = [0, 0], sizes = [8, 128], strides = [1, 1]} : vector<8x512xf32> to vector<8x128xf32>
    %525 = arith.negf %524 : vector<8x128xf32>
    %526 = math.exp %525 : vector<8x128xf32>
    %cst_143 = arith.constant 1.000000e+00 : f32
    %527 = vector.broadcast %cst_143 : f32 to vector<8x128xf32>
    %528 = arith.addf %527, %526 : vector<8x128xf32>
    %529 = arith.divf %527, %528 : vector<8x128xf32>
    %530 = vector.extract_strided_slice %518 {offsets = [0, 128], sizes = [8, 128], strides = [1, 1]} : vector<8x512xf32> to vector<8x128xf32>
    %531 = arith.negf %530 : vector<8x128xf32>
    %532 = math.exp %531 : vector<8x128xf32>
    %cst_144 = arith.constant 1.000000e+00 : f32
    %533 = vector.broadcast %cst_144 : f32 to vector<8x128xf32>
    %534 = arith.addf %533, %532 : vector<8x128xf32>
    %535 = arith.divf %533, %534 : vector<8x128xf32>
    %536 = vector.extract_strided_slice %518 {offsets = [0, 256], sizes = [8, 128], strides = [1, 1]} : vector<8x512xf32> to vector<8x128xf32>
    %537 = math.tanh %536 : vector<8x128xf32>
    %538 = vector.extract_strided_slice %518 {offsets = [0, 384], sizes = [8, 128], strides = [1, 1]} : vector<8x512xf32> to vector<8x128xf32>
    %539 = arith.negf %538 : vector<8x128xf32>
    %540 = math.exp %539 : vector<8x128xf32>
    %cst_145 = arith.constant 1.000000e+00 : f32
    %541 = vector.broadcast %cst_145 : f32 to vector<8x128xf32>
    %542 = arith.addf %541, %540 : vector<8x128xf32>
    %543 = arith.divf %541, %542 : vector<8x128xf32>
    %544 = vector.extract_strided_slice %523 {offsets = [0, 0], sizes = [8, 128], strides = [1, 1]} : vector<8x512xf32> to vector<8x128xf32>
    %545 = arith.negf %544 : vector<8x128xf32>
    %546 = math.exp %545 : vector<8x128xf32>
    %cst_146 = arith.constant 1.000000e+00 : f32
    %547 = vector.broadcast %cst_146 : f32 to vector<8x128xf32>
    %548 = arith.addf %547, %546 : vector<8x128xf32>
    %549 = arith.divf %547, %548 : vector<8x128xf32>
    %550 = vector.extract_strided_slice %523 {offsets = [0, 128], sizes = [8, 128], strides = [1, 1]} : vector<8x512xf32> to vector<8x128xf32>
    %551 = arith.negf %550 : vector<8x128xf32>
    %552 = math.exp %551 : vector<8x128xf32>
    %cst_147 = arith.constant 1.000000e+00 : f32
    %553 = vector.broadcast %cst_147 : f32 to vector<8x128xf32>
    %554 = arith.addf %553, %552 : vector<8x128xf32>
    %555 = arith.divf %553, %554 : vector<8x128xf32>
    %556 = vector.extract_strided_slice %523 {offsets = [0, 256], sizes = [8, 128], strides = [1, 1]} : vector<8x512xf32> to vector<8x128xf32>
    %557 = math.tanh %556 : vector<8x128xf32>
    %558 = vector.extract_strided_slice %523 {offsets = [0, 384], sizes = [8, 128], strides = [1, 1]} : vector<8x512xf32> to vector<8x128xf32>
    %559 = arith.negf %558 : vector<8x128xf32>
    %560 = math.exp %559 : vector<8x128xf32>
    %cst_148 = arith.constant 1.000000e+00 : f32
    %561 = vector.broadcast %cst_148 : f32 to vector<8x128xf32>
    %562 = arith.addf %561, %560 : vector<8x128xf32>
    %563 = arith.divf %561, %562 : vector<8x128xf32>
    %564 = arith.mulf %535, %495 : vector<8x128xf32>
    %565 = arith.mulf %529, %537 : vector<8x128xf32>
    %566 = arith.addf %564, %565 : vector<8x128xf32>
    %567 = arith.mulf %555, %498 : vector<8x128xf32>
    %568 = arith.mulf %549, %557 : vector<8x128xf32>
    %569 = arith.addf %567, %568 : vector<8x128xf32>
    %570 = math.tanh %566 : vector<8x128xf32>
    %571 = arith.mulf %543, %570 : vector<8x128xf32>
    %572 = math.tanh %569 : vector<8x128xf32>
    %573 = arith.mulf %563, %572 : vector<8x128xf32>
    %574 = arith.index_cast %c7_i32_135 : i32 to index
    %c0_149 = arith.constant 0 : index
    %c0_150 = arith.constant 0 : index
    %575 = vector.load %arg14[%574, %c0_149, %c0_150] : memref<8x8x128xf32, #tpu.memory_space<vmem>>, vector<1x8x128xf32>
    %576 = vector.shape_cast %575 : vector<1x8x128xf32> to vector<8x128xf32>
    %577 = vector.shape_cast %571 : vector<8x128xf32> to vector<1x8x128xf32>
    tpu.vector_store %arg14[%574, %c0_149, %c0_150], %577 {strides = array<i32>} : memref<8x8x128xf32, #tpu.memory_space<vmem>>, vector<1x8x128xf32>,
    %578 = arith.index_cast %513 : i32 to index
    %c0_151 = arith.constant 0 : index
    %c0_152 = arith.constant 0 : index
    %579 = vector.load %arg15[%578, %c0_151, %c0_152] : memref<8x8x128xf32, #tpu.memory_space<vmem>>, vector<1x8x128xf32>
    %580 = vector.shape_cast %579 : vector<1x8x128xf32> to vector<8x128xf32>
    %581 = vector.shape_cast %573 : vector<8x128xf32> to vector<1x8x128xf32>
    tpu.vector_store %arg15[%578, %c0_151, %c0_152], %581 {strides = array<i32>} : memref<8x8x128xf32, #tpu.memory_space<vmem>>, vector<1x8x128xf32>,
    %582 = arith.truncf %571 : vector<8x128xf32> to vector<8x128xbf16>
    %583 = arith.truncf %573 : vector<8x128xf32> to vector<8x128xbf16>
    %c8_i32 = arith.constant 8 : i32
    %c0_153 = arith.constant 0 : index
    %c0_154 = arith.constant 0 : index
    %c0_155 = arith.constant 0 : index
    %584 = vector.load %arg14[%c0_153, %c0_154, %c0_155] : memref<8x8x128xf32, #tpu.memory_space<vmem>>, vector<8x8x128xf32>
    %c0_156 = arith.constant 0 : index
    %c0_157 = arith.constant 0 : index
    %c0_158 = arith.constant 0 : index
    %585 = vector.load %arg15[%c0_156, %c0_157, %c0_158] : memref<8x8x128xf32, #tpu.memory_space<vmem>>, vector<8x8x128xf32>
    %586 = tpu.concatenate %584, %585 in 2 : vector<8x8x128xf32>, vector<8x8x128xf32> -> vector<8x8x256xf32>
    %587 = vector.shape_cast %586 : vector<8x8x256xf32> to vector<64x256xf32>
    %588 = arith.truncf %587 : vector<64x256xf32> to vector<64x256xbf16>
    %c0_159 = arith.constant 0 : index
    %c0_160 = arith.constant 0 : index
    %589 = vector.load %arg6[%c0_159, %c0_160] : memref<256x1xbf16, #tpu.memory_space<vmem>>, vector<256x1xbf16>
    %cst_161 = arith.constant dense<0.000000e+00> : vector<64x1xf32>
    %590 = tpu.matmul %588, %589, %cst_161 {dimension_numbers = #tpu.dot_dimension_numbers<[1], [0], [0], [1], [0, 0, 1, 1], [], []>} : vector<64x256xbf16>, vector<256x1xbf16>, vector<64x1xf32> -> vector<64x1xf32>
    %591 = vector.shape_cast %590 : vector<64x1xf32> to vector<8x8x1xf32>
    %cst_162 = arith.constant dense<0xFF800000> : vector<8x1xf32>
    %592 = vector.multi_reduction <maximumf>, %591, %cst_162 [0] : vector<8x8x1xf32> to vector<8x1xf32>
    %593 = vector.shape_cast %592 : vector<8x1xf32> to vector<1x8x1xf32>
    %594 = vector.broadcast %593 : vector<1x8x1xf32> to vector<8x8x1xf32>
    %595 = arith.subf %591, %594 : vector<8x8x1xf32>
    %596 = math.exp %595 : vector<8x8x1xf32>
    %cst_163 = arith.constant dense<0.000000e+00> : vector<8x1xf32>
    %597 = vector.multi_reduction <add>, %596, %cst_163 [0] : vector<8x8x1xf32> to vector<8x1xf32>
    %598 = vector.shape_cast %597 : vector<8x1xf32> to vector<1x8x1xf32>
    %599 = vector.broadcast %598 : vector<1x8x1xf32> to vector<8x8x1xf32>
    %600 = arith.divf %596, %599 : vector<8x8x1xf32>
    %601 = vector.broadcast %600 : vector<8x8x1xf32> to vector<8x8x256xf32>
    %602 = arith.mulf %586, %601 : vector<8x8x256xf32>
    %cst_164 = arith.constant dense<0.000000e+00> : vector<8x256xf32>
    %603 = vector.multi_reduction <add>, %602, %cst_164 [0] : vector<8x8x256xf32> to vector<8x256xf32>
    %604 = arith.truncf %603 : vector<8x256xf32> to vector<8x256xbf16>
    %c0_165 = arith.constant 0 : index
    %c0_166 = arith.constant 0 : index
    %605 = vector.load %arg8[%c0_165, %c0_166] : memref<256x2xbf16, #tpu.memory_space<vmem>>, vector<256x2xbf16>
    %cst_167 = arith.constant dense<0.000000e+00> : vector<8x2xf32>
    %606 = tpu.matmul %604, %605, %cst_167 {dimension_numbers = #tpu.dot_dimension_numbers<[1], [0], [0], [1], [0, 0, 1, 1], [], []>} : vector<8x256xbf16>, vector<256x2xbf16>, vector<8x2xf32> -> vector<8x2xf32>
    %c0_168 = arith.constant 0 : index
    %c0_169 = arith.constant 0 : index
    %607 = vector.load %arg7[%c0_168, %c0_169] : memref<8x3xbf16, #tpu.memory_space<vmem>>, vector<8x3xbf16>
    %c0_170 = arith.constant 0 : index
    %c0_171 = arith.constant 0 : index
    %608 = vector.load %arg9[%c0_170, %c0_171] : memref<3x2xbf16, #tpu.memory_space<vmem>>, vector<3x2xbf16>
    %cst_172 = arith.constant dense<0.000000e+00> : vector<8x2xf32>
    %609 = tpu.matmul %607, %608, %cst_172 {dimension_numbers = #tpu.dot_dimension_numbers<[1], [0], [0], [1], [0, 0, 1, 1], [], []>} : vector<8x3xbf16>, vector<3x2xbf16>, vector<8x2xf32> -> vector<8x2xf32>
    %610 = arith.addf %606, %609 : vector<8x2xf32>
    %c0_173 = arith.constant 0 : index
    %c0_174 = arith.constant 0 : index
    %611 = vector.load %arg10[%c0_173, %c0_174] : memref<1x2xf32, #tpu.memory_space<vmem>>, vector<1x2xf32>
    %612 = vector.broadcast %611 : vector<1x2xf32> to vector<8x2xf32>
    %613 = arith.addf %610, %612 : vector<8x2xf32>
    %c0_175 = arith.constant 0 : index
    %c0_176 = arith.constant 0 : index
    %614 = vector.load %arg11[%c0_175, %c0_176] : memref<8x2xf32, #tpu.memory_space<vmem>>, vector<8x2xf32>
    tpu.vector_store %arg11[%c0_175, %c0_176], %613 {strides = array<i32>} : memref<8x2xf32, #tpu.memory_space<vmem>>, vector<8x2xf32>,
    return
  }
  func.func @transform_0(%arg0: i32) -> (i32, i32) {
    %c0_i32 = arith.constant 0 : i32
    %c0_i32_0 = arith.constant 0 : i32
    %c0_i32_1 = arith.constant 0 : i32
    return %c0_i32, %c0_i32_0 : i32, i32
  }
  func.func @transform_1(%arg0: i32) -> (i32, i32) {
    %c0_i32 = arith.constant 0 : i32
    %c0_i32_0 = arith.constant 0 : i32
    %c0_i32_1 = arith.constant 0 : i32
    return %c0_i32, %c0_i32_0 : i32, i32
  }
  func.func @transform_2(%arg0: i32) -> (i32, i32) {
    %c0_i32 = arith.constant 0 : i32
    %c0_i32_0 = arith.constant 0 : i32
    %c0_i32_1 = arith.constant 0 : i32
    return %c0_i32, %c0_i32_0 : i32, i32
  }
  func.func @transform_3(%arg0: i32) -> (i32, i32) {
    %c0_i32 = arith.constant 0 : i32
    %c0_i32_0 = arith.constant 0 : i32
    %c0_i32_1 = arith.constant 0 : i32
    return %c0_i32, %c0_i32_0 : i32, i32
  }
  func.func @transform_4(%arg0: i32) -> (i32, i32) {
    %c0_i32 = arith.constant 0 : i32
    %c0_i32_0 = arith.constant 0 : i32
    %c0_i32_1 = arith.constant 0 : i32
    return %c0_i32, %c0_i32_0 : i32, i32
  }
  func.func @transform_5(%arg0: i32) -> (i32, i32) {
    %c0_i32 = arith.constant 0 : i32
    %c0_i32_0 = arith.constant 0 : i32
    %c0_i32_1 = arith.constant 0 : i32
    return %c0_i32, %c0_i32_0 : i32, i32
  }
  func.func @transform_6(%arg0: i32) -> (i32, i32) {
    %c0_i32 = arith.constant 0 : i32
    %c0_i32_0 = arith.constant 0 : i32
    %c0_i32_1 = arith.constant 0 : i32
    return %c0_i32, %c0_i32_0 : i32, i32
  }
  func.func @transform_7(%arg0: i32) -> (i32, i32) {
    %c0_i32 = arith.constant 0 : i32
    %c0_i32_0 = arith.constant 0 : i32
    %c0_i32_1 = arith.constant 0 : i32
    return %c0_i32, %c0_i32_0 : i32, i32
  }
  func.func @transform_8(%arg0: i32) -> (i32, i32) {
    %c0_i32 = arith.constant 0 : i32
    %c0_i32_0 = arith.constant 0 : i32
    %c0_i32_1 = arith.constant 0 : i32
    return %c0_i32, %c0_i32_0 : i32, i32
  }
  func.func @transform_9(%arg0: i32) -> (i32, i32) {
    %c0_i32 = arith.constant 0 : i32
    %c0_i32_0 = arith.constant 0 : i32
    %c0_i32_1 = arith.constant 0 : i32
    return %c0_i32, %c0_i32_0 : i32, i32
  }
  func.func @transform_10(%arg0: i32) -> (i32, i32) {
    %c0_i32 = arith.constant 0 : i32
    %c0_i32_0 = arith.constant 0 : i32
    %c0_i32_1 = arith.constant 0 : i32
    return %c0_i32, %c0_i32_0 : i32, i32
  }
}

</mosaic_0001>

<llo_original>
// kernel: mri_meta_sequence_rnn_forward.3
$region0: #{mri_meta_sequence_rnn_forward.3}
  #allocation0 [shape = 'u32[]', space=smem, size = 0x4, offset = 0x4, fixed_abs, tag = 'smem constant byte address 0x4 - core index']
  #allocation1 [shape = 'u32[144,128]{1,0:T(1,128)}', space=vmem, size = 0x12000, scoped, tag = 'internal scratch']
  #allocation2 [shape = 'f32[8,8,512]{2,1,0:T(8,128)}', space=vmem, size = 0x20000, scoped, tag = 'scratch operand']
  #allocation3 [shape = 'f32[8,8,512]{2,1,0:T(8,128)}', space=vmem, size = 0x20000, scoped, tag = 'scratch operand']
  #allocation4 [shape = 'f32[8,8,128]{2,1,0:T(8,128)}', space=vmem, size = 0x8000, scoped, tag = 'scratch operand']
  #allocation5 [shape = 'f32[8,8,128]{2,1,0:T(8,128)}', space=vmem, size = 0x8000, scoped, tag = 'scratch operand']
  %s0 = inlined_call_operand.vmem [shape: bf16[64,128], index: 0, kind: input, shape index: {}]
  %s1 = inlined_call_operand.vmem [shape: bf16[128,1024], index: 1, kind: input, shape index: {}]
  %s2 = inlined_call_operand.vmem [shape: bf16[128,512], index: 2, kind: input, shape index: {}]
  %s3 = inlined_call_operand.vmem [shape: bf16[128,512], index: 3, kind: input, shape index: {}]
  %s4 = inlined_call_operand.vmem [shape: f32[1,1024], index: 4, kind: input, shape index: {}]
  %s5 = inlined_call_operand.vmem [shape: bf16[256,1], index: 5, kind: input, shape index: {}]
  %s6 = inlined_call_operand.vmem [shape: bf16[8,3], index: 6, kind: input, shape index: {}]
  %s7 = inlined_call_operand.vmem [shape: bf16[256,2], index: 7, kind: input, shape index: {}]
  %s8 = inlined_call_operand.vmem [shape: bf16[3,2], index: 8, kind: input, shape index: {}]
  %s9 = inlined_call_operand.vmem [shape: f32[1,2], index: 9, kind: input, shape index: {}]
  %s10 = inlined_call_operand.vmem [shape: f32[8,2], index: 10, kind: output, shape index: {}]
  %s11 = sld [smem:[#allocation0]]
  $region50: #{mri_meta_sequence_rnn_forward.3} parent=0
    _
  %s13 = ssub.s32 1, %s11
  %s14 = scalar_select 0, %s13, %s11
  // Predicated region
  $region2: #{mri_meta_sequence_rnn_forward.3} parent=0 // pred_check
    _
  $region3: #{mri_meta_sequence_rnn_forward.3} parent=0 // pred_check_branch
    %16 = sbr.rel (0) target = $region5
  $region4: #{mri_meta_sequence_rnn_forward.3} parent=0 // pred_region
    _
  $region5: #{mri_meta_sequence_rnn_forward.3} parent=0 // pred_fallthru
    _
  // Predicated region
  $region6: #{mri_meta_sequence_rnn_forward.3} parent=0 // pred_check
    _
  $region7: #{mri_meta_sequence_rnn_forward.3} parent=0 // pred_check_branch
    %18 = sbr.rel (0) target = $region9
  $region8: #{mri_meta_sequence_rnn_forward.3} parent=0 // pred_region
    _
  $region9: #{mri_meta_sequence_rnn_forward.3} parent=0 // pred_fallthru
    _
  // Predicated region
  $region10: #{mri_meta_sequence_rnn_forward.3} parent=0 // pred_check
    _
  $region11: #{mri_meta_sequence_rnn_forward.3} parent=0 // pred_check_branch
    %20 = sbr.rel (0) target = $region13
  $region12: #{mri_meta_sequence_rnn_forward.3} parent=0 // pred_region
    _
  $region13: #{mri_meta_sequence_rnn_forward.3} parent=0 // pred_fallthru
    _
  // Predicated region
  $region14: #{mri_meta_sequence_rnn_forward.3} parent=0 // pred_check
    _
  $region15: #{mri_meta_sequence_rnn_forward.3} parent=0 // pred_check_branch
    %22 = sbr.rel (0) target = $region17
  $region16: #{mri_meta_sequence_rnn_forward.3} parent=0 // pred_region
    _
  $region17: #{mri_meta_sequence_rnn_forward.3} parent=0 // pred_fallthru
    _
  // Predicated region
  $region18: #{mri_meta_sequence_rnn_forward.3} parent=0 // pred_check
    _
  $region19: #{mri_meta_sequence_rnn_forward.3} parent=0 // pred_check_branch
    %24 = sbr.rel (0) target = $region21
  $region20: #{mri_meta_sequence_rnn_forward.3} parent=0 // pred_region
    _
  $region21: #{mri_meta_sequence_rnn_forward.3} parent=0 // pred_fallthru
    _
  // Predicated region
  $region22: #{mri_meta_sequence_rnn_forward.3} parent=0 // pred_check
    _
  $region23: #{mri_meta_sequence_rnn_forward.3} parent=0 // pred_check_branch
    %26 = sbr.rel (0) target = $region25
  $region24: #{mri_meta_sequence_rnn_forward.3} parent=0 // pred_region
    _
  $region25: #{mri_meta_sequence_rnn_forward.3} parent=0 // pred_fallthru
    _
  // Predicated region
  $region26: #{mri_meta_sequence_rnn_forward.3} parent=0 // pred_check
    _
  $region27: #{mri_meta_sequence_rnn_forward.3} parent=0 // pred_check_branch
    %28 = sbr.rel (0) target = $region29
  $region28: #{mri_meta_sequence_rnn_forward.3} parent=0 // pred_region
    _
  $region29: #{mri_meta_sequence_rnn_forward.3} parent=0 // pred_fallthru
    _
  // Predicated region
  $region30: #{mri_meta_sequence_rnn_forward.3} parent=0 // pred_check
    _
  $region31: #{mri_meta_sequence_rnn_forward.3} parent=0 // pred_check_branch
    %30 = sbr.rel (0) target = $region33
  $region32: #{mri_meta_sequence_rnn_forward.3} parent=0 // pred_region
    _
  $region33: #{mri_meta_sequence_rnn_forward.3} parent=0 // pred_fallthru
    _
  // Predicated region
  $region34: #{mri_meta_sequence_rnn_forward.3} parent=0 // pred_check
    _
  $region35: #{mri_meta_sequence_rnn_forward.3} parent=0 // pred_check_branch
    %32 = sbr.rel (0) target = $region37
  $region36: #{mri_meta_sequence_rnn_forward.3} parent=0 // pred_region
    _
  $region37: #{mri_meta_sequence_rnn_forward.3} parent=0 // pred_fallthru
    _
  // Predicated region
  $region38: #{mri_meta_sequence_rnn_forward.3} parent=0 // pred_check
    _
  $region39: #{mri_meta_sequence_rnn_forward.3} parent=0 // pred_check_branch
    %34 = sbr.rel (0) target = $region41
  $region40: #{mri_meta_sequence_rnn_forward.3} parent=0 // pred_region
    _
  $region41: #{mri_meta_sequence_rnn_forward.3} parent=0 // pred_fallthru
    _
  %v36 = vld [vmem:[%s0] sm:$0xf]
  %v37 = vld [vmem:[%s0 + $0x4] sm:$0xf]
  %v38 = vld [vmem:[%s0 + $0x8] sm:$0xf]
  %v39 = vld [vmem:[%s0 + $0xc] sm:$0xf]
  %v40 = vld [vmem:[%s0 + $0x10] sm:$0xf]
  %v41 = vld [vmem:[%s0 + $0x14] sm:$0xf]
  %v42 = vld [vmem:[%s0 + $0x18] sm:$0xf]
  %v43 = vld [vmem:[%s0 + $0x1c] sm:$0xf]
  %v44 = vld [vmem:[%s1] sm:$0xff]
  %v45 = vld [vmem:[%s1 + $0x8] sm:$0xff]
  %v46 = vld [vmem:[%s1 + $0x10] sm:$0xff]
  %v47 = vld [vmem:[%s1 + $0x18] sm:$0xff]
  %v48 = vld [vmem:[%s1 + $0x20] sm:$0xff]
  %v49 = vld [vmem:[%s1 + $0x28] sm:$0xff]
  %v50 = vld [vmem:[%s1 + $0x30] sm:$0xff]
  %v51 = vld [vmem:[%s1 + $0x38] sm:$0xff]
  %v52 = vld [vmem:[%s1 + $0x40] sm:$0xff]
  %v53 = vld [vmem:[%s1 + $0x48] sm:$0xff]
  %v54 = vld [vmem:[%s1 + $0x50] sm:$0xff]
  %v55 = vld [vmem:[%s1 + $0x58] sm:$0xff]
  %v56 = vld [vmem:[%s1 + $0x60] sm:$0xff]
  %v57 = vld [vmem:[%s1 + $0x68] sm:$0xff]
  %v58 = vld [vmem:[%s1 + $0x70] sm:$0xff]
  %v59 = vld [vmem:[%s1 + $0x78] sm:$0xff]
  %v60 = vld [vmem:[%s1 + $0x80] sm:$0xff]
  %v61 = vld [vmem:[%s1 + $0x88] sm:$0xff]
  %v62 = vld [vmem:[%s1 + $0x90] sm:$0xff]
  %v63 = vld [vmem:[%s1 + $0x98] sm:$0xff]
  %v64 = vld [vmem:[%s1 + $0xa0] sm:$0xff]
  %v65 = vld [vmem:[%s1 + $0xa8] sm:$0xff]
  %v66 = vld [vmem:[%s1 + $0xb0] sm:$0xff]
  %v67 = vld [vmem:[%s1 + $0xb8] sm:$0xff]
  %v68 = vld [vmem:[%s1 + $0xc0] sm:$0xff]
  %v69 = vld [vmem:[%s1 + $0xc8] sm:$0xff]
  %v70 = vld [vmem:[%s1 + $0xd0] sm:$0xff]
  %v71 = vld [vmem:[%s1 + $0xd8] sm:$0xff]
  %v72 = vld [vmem:[%s1 + $0xe0] sm:$0xff]
  %v73 = vld [vmem:[%s1 + $0xe8] sm:$0xff]
  %v74 = vld [vmem:[%s1 + $0xf0] sm:$0xff]
  %v75 = vld [vmem:[%s1 + $0xf8] sm:$0xff]
  %v76 = vld [vmem:[%s1 + $0x100] sm:$0xff]
  %v77 = vld [vmem:[%s1 + $0x108] sm:$0xff]
  %v78 = vld [vmem:[%s1 + $0x110] sm:$0xff]
  %v79 = vld [vmem:[%s1 + $0x118] sm:$0xff]
  %v80 = vld [vmem:[%s1 + $0x120] sm:$0xff]
  %v81 = vld [vmem:[%s1 + $0x128] sm:$0xff]
  %v82 = vld [vmem:[%s1 + $0x130] sm:$0xff]
  %v83 = vld [vmem:[%s1 + $0x138] sm:$0xff]
  %v84 = vld [vmem:[%s1 + $0x140] sm:$0xff]
  %v85 = vld [vmem:[%s1 + $0x148] sm:$0xff]
  %v86 = vld [vmem:[%s1 + $0x150] sm:$0xff]
  %v87 = vld [vmem:[%s1 + $0x158] sm:$0xff]
  %v88 = vld [vmem:[%s1 + $0x160] sm:$0xff]
  %v89 = vld [vmem:[%s1 + $0x168] sm:$0xff]
  %v90 = vld [vmem:[%s1 + $0x170] sm:$0xff]
  %v91 = vld [vmem:[%s1 + $0x178] sm:$0xff]
  %v92 = vld [vmem:[%s1 + $0x180] sm:$0xff]
  %v93 = vld [vmem:[%s1 + $0x188] sm:$0xff]
  %v94 = vld [vmem:[%s1 + $0x190] sm:$0xff]
  %v95 = vld [vmem:[%s1 + $0x198] sm:$0xff]
  %v96 = vld [vmem:[%s1 + $0x1a0] sm:$0xff]
  %v97 = vld [vmem:[%s1 + $0x1a8] sm:$0xff]
  %v98 = vld [vmem:[%s1 + $0x1b0] sm:$0xff]
  %v99 = vld [vmem:[%s1 + $0x1b8] sm:$0xff]
  %v100 = vld [vmem:[%s1 + $0x1c0] sm:$0xff]
  %v101 = vld [vmem:[%s1 + $0x1c8] sm:$0xff]
  %v102 = vld [vmem:[%s1 + $0x1d0] sm:$0xff]
  %v103 = vld [vmem:[%s1 + $0x1d8] sm:$0xff]
  %v104 = vld [vmem:[%s1 + $0x1e0] sm:$0xff]
  %v105 = vld [vmem:[%s1 + $0x1e8] sm:$0xff]
  %v106 = vld [vmem:[%s1 + $0x1f0] sm:$0xff]
  %v107 = vld [vmem:[%s1 + $0x1f8] sm:$0xff]
  %v108 = vld [vmem:[%s4] sm:$0xff]
  %v110 = vlaneseq
  %v111 = vshrl.u32 %v110, 7
  %v112 = vsub.s32 0, %v111
  %v113 = vrot.slane %v108, %v112
  %v114 = vlaneseq
  %v115 = vshrl.u32 %v114, 7
  %v116 = vsub.s32 1, %v115
  %v117 = vrot.slane %v108, %v116
  %v118 = vlaneseq
  %v119 = vshrl.u32 %v118, 7
  %v120 = vsub.s32 2, %v119
  %v121 = vrot.slane %v108, %v120
  %v122 = vlaneseq
  %v123 = vshrl.u32 %v122, 7
  %v124 = vsub.s32 3, %v123
  %v125 = vrot.slane %v108, %v124
  %v126 = vlaneseq
  %v127 = vshrl.u32 %v126, 7
  %v128 = vsub.s32 4, %v127
  %v129 = vrot.slane %v108, %v128
  %v130 = vlaneseq
  %v131 = vshrl.u32 %v130, 7
  %v132 = vsub.s32 5, %v131
  %v133 = vrot.slane %v108, %v132
  %v134 = vlaneseq
  %v135 = vshrl.u32 %v134, 7
  %v136 = vsub.s32 6, %v135
  %v137 = vrot.slane %v108, %v136
  %v138 = vlaneseq
  %v139 = vshrl.u32 %v138, 7
  %v140 = vsub.s32 7, %v139
  %v141 = vrot.slane %v108, %v140
  %v158 = vunpack.c.l.b16 %v36
  %v159 = vunpack.c.l.b16 %v37
  %v160 = vunpack.c.l.b16 %v38
  %v161 = vunpack.c.l.b16 %v39
  %v162 = vunpack.c.l.b16 %v40
  %v163 = vunpack.c.l.b16 %v41
  %v164 = vunpack.c.l.b16 %v42
  %v165 = vunpack.c.l.b16 %v43
  %v166 = vpack.c.b16 %v159, %v158
  %v167 = vpack.c.b16 %v161, %v160
  %v168 = vpack.c.b16 %v163, %v162
  %v169 = vpack.c.b16 %v165, %v164
  %v238 = vunpack.c.l.b16 %v44
  %v239 = vunpack.c.h.b16 %v44
  %v240 = vunpack.c.l.b16 %v45
  %v241 = vunpack.c.h.b16 %v45
  %v242 = vunpack.c.l.b16 %v46
  %v243 = vunpack.c.h.b16 %v46
  %v244 = vunpack.c.l.b16 %v47
  %v245 = vunpack.c.h.b16 %v47
  %v246 = vunpack.c.l.b16 %v48
  %v247 = vunpack.c.h.b16 %v48
  %v248 = vunpack.c.l.b16 %v49
  %v249 = vunpack.c.h.b16 %v49
  %v250 = vunpack.c.l.b16 %v50
  %v251 = vunpack.c.h.b16 %v50
  %v252 = vunpack.c.l.b16 %v51
  %v253 = vunpack.c.h.b16 %v51
  %v254 = vunpack.c.l.b16 %v52
  %v255 = vunpack.c.h.b16 %v52
  %v256 = vunpack.c.l.b16 %v53
  %v257 = vunpack.c.h.b16 %v53
  %v258 = vunpack.c.l.b16 %v54
  %v259 = vunpack.c.h.b16 %v54
  %v260 = vunpack.c.l.b16 %v55
  %v261 = vunpack.c.h.b16 %v55
  %v262 = vunpack.c.l.b16 %v56
  %v263 = vunpack.c.h.b16 %v56
  %v264 = vunpack.c.l.b16 %v57
  %v265 = vunpack.c.h.b16 %v57
  %v266 = vunpack.c.l.b16 %v58
  %v267 = vunpack.c.h.b16 %v58
  %v268 = vunpack.c.l.b16 %v59
  %v269 = vunpack.c.h.b16 %v59
  %v270 = vunpack.c.l.b16 %v60
  %v271 = vunpack.c.h.b16 %v60
  %v272 = vunpack.c.l.b16 %v61
  %v273 = vunpack.c.h.b16 %v61
  %v274 = vunpack.c.l.b16 %v62
  %v275 = vunpack.c.h.b16 %v62
  %v276 = vunpack.c.l.b16 %v63
  %v277 = vunpack.c.h.b16 %v63
  %v278 = vunpack.c.l.b16 %v64
  %v279 = vunpack.c.h.b16 %v64
  %v280 = vunpack.c.l.b16 %v65
  %v281 = vunpack.c.h.b16 %v65
  %v282 = vunpack.c.l.b16 %v66
  %v283 = vunpack.c.h.b16 %v66
  %v284 = vunpack.c.l.b16 %v67
  %v285 = vunpack.c.h.b16 %v67
  %v286 = vunpack.c.l.b16 %v68
  %v287 = vunpack.c.h.b16 %v68
  %v288 = vunpack.c.l.b16 %v69
  %v289 = vunpack.c.h.b16 %v69
  %v290 = vunpack.c.l.b16 %v70
  %v291 = vunpack.c.h.b16 %v70
  %v292 = vunpack.c.l.b16 %v71
  %v293 = vunpack.c.h.b16 %v71
  %v294 = vunpack.c.l.b16 %v72
  %v295 = vunpack.c.h.b16 %v72
  %v296 = vunpack.c.l.b16 %v73
  %v297 = vunpack.c.h.b16 %v73
  %v298 = vunpack.c.l.b16 %v74
  %v299 = vunpack.c.h.b16 %v74
  %v300 = vunpack.c.l.b16 %v75
  %v301 = vunpack.c.h.b16 %v75
  %v302 = vunpack.c.l.b16 %v76
  %v303 = vunpack.c.h.b16 %v76
  %v304 = vunpack.c.l.b16 %v77
  %v305 = vunpack.c.h.b16 %v77
  %v306 = vunpack.c.l.b16 %v78
  %v307 = vunpack.c.h.b16 %v78
  %v308 = vunpack.c.l.b16 %v79
  %v309 = vunpack.c.h.b16 %v79
  %v310 = vunpack.c.l.b16 %v80
  %v311 = vunpack.c.h.b16 %v80
  %v312 = vunpack.c.l.b16 %v81
  %v313 = vunpack.c.h.b16 %v81
  %v314 = vunpack.c.l.b16 %v82
  %v315 = vunpack.c.h.b16 %v82
  %v316 = vunpack.c.l.b16 %v83
  %v317 = vunpack.c.h.b16 %v83
  %v318 = vunpack.c.l.b16 %v84
  %v319 = vunpack.c.h.b16 %v84
  %v320 = vunpack.c.l.b16 %v85
  %v321 = vunpack.c.h.b16 %v85
  %v322 = vunpack.c.l.b16 %v86
  %v323 = vunpack.c.h.b16 %v86
  %v324 = vunpack.c.l.b16 %v87
  %v325 = vunpack.c.h.b16 %v87
  %v326 = vunpack.c.l.b16 %v88
  %v327 = vunpack.c.h.b16 %v88
  %v328 = vunpack.c.l.b16 %v89
  %v329 = vunpack.c.h.b16 %v89
  %v330 = vunpack.c.l.b16 %v90
  %v331 = vunpack.c.h.b16 %v90
  %v332 = vunpack.c.l.b16 %v91
  %v333 = vunpack.c.h.b16 %v91
  %v334 = vunpack.c.l.b16 %v92
  %v335 = vunpack.c.h.b16 %v92
  %v336 = vunpack.c.l.b16 %v93
  %v337 = vunpack.c.h.b16 %v93
  %v338 = vunpack.c.l.b16 %v94
  %v339 = vunpack.c.h.b16 %v94
  %v340 = vunpack.c.l.b16 %v95
  %v341 = vunpack.c.h.b16 %v95
  %v342 = vunpack.c.l.b16 %v96
  %v343 = vunpack.c.h.b16 %v96
  %v344 = vunpack.c.l.b16 %v97
  %v345 = vunpack.c.h.b16 %v97
  %v346 = vunpack.c.l.b16 %v98
  %v347 = vunpack.c.h.b16 %v98
  %v348 = vunpack.c.l.b16 %v99
  %v349 = vunpack.c.h.b16 %v99
  %v350 = vunpack.c.l.b16 %v100
  %v351 = vunpack.c.h.b16 %v100
  %v352 = vunpack.c.l.b16 %v101
  %v353 = vunpack.c.h.b16 %v101
  %v354 = vunpack.c.l.b16 %v102
  %v355 = vunpack.c.h.b16 %v102
  %v356 = vunpack.c.l.b16 %v103
  %v357 = vunpack.c.h.b16 %v103
  %v358 = vunpack.c.l.b16 %v104
  %v359 = vunpack.c.h.b16 %v104
  %v360 = vunpack.c.l.b16 %v105
  %v361 = vunpack.c.h.b16 %v105
  %v362 = vunpack.c.l.b16 %v106
  %v363 = vunpack.c.h.b16 %v106
  %v364 = vunpack.c.l.b16 %v107
  %v365 = vunpack.c.h.b16 %v107
  %v366 = vpack.c.b16 %v246, %v238
  %v367 = vpack.c.b16 %v247, %v239
  %v368 = vpack.c.b16 %v248, %v240
  %v369 = vpack.c.b16 %v249, %v241
  %v370 = vpack.c.b16 %v250, %v242
  %v371 = vpack.c.b16 %v251, %v243
  %v372 = vpack.c.b16 %v252, %v244
  %v373 = vpack.c.b16 %v253, %v245
  %v374 = vpack.c.b16 %v262, %v254
  %v375 = vpack.c.b16 %v263, %v255
  %v376 = vpack.c.b16 %v264, %v256
  %v377 = vpack.c.b16 %v265, %v257
  %v378 = vpack.c.b16 %v266, %v258
  %v379 = vpack.c.b16 %v267, %v259
  %v380 = vpack.c.b16 %v268, %v260
  %v381 = vpack.c.b16 %v269, %v261
  %v382 = vpack.c.b16 %v278, %v270
  %v383 = vpack.c.b16 %v279, %v271
  %v384 = vpack.c.b16 %v280, %v272
  %v385 = vpack.c.b16 %v281, %v273
  %v386 = vpack.c.b16 %v282, %v274
  %v387 = vpack.c.b16 %v283, %v275
  %v388 = vpack.c.b16 %v284, %v276
  %v389 = vpack.c.b16 %v285, %v277
  %v390 = vpack.c.b16 %v294, %v286
  %v391 = vpack.c.b16 %v295, %v287
  %v392 = vpack.c.b16 %v296, %v288
  %v393 = vpack.c.b16 %v297, %v289
  %v394 = vpack.c.b16 %v298, %v290
  %v395 = vpack.c.b16 %v299, %v291
  %v396 = vpack.c.b16 %v300, %v292
  %v397 = vpack.c.b16 %v301, %v293
  %v398 = vpack.c.b16 %v310, %v302
  %v399 = vpack.c.b16 %v311, %v303
  %v400 = vpack.c.b16 %v312, %v304
  %v401 = vpack.c.b16 %v313, %v305
  %v402 = vpack.c.b16 %v314, %v306
  %v403 = vpack.c.b16 %v315, %v307
  %v404 = vpack.c.b16 %v316, %v308
  %v405 = vpack.c.b16 %v317, %v309
  %v406 = vpack.c.b16 %v326, %v318
  %v407 = vpack.c.b16 %v327, %v319
  %v408 = vpack.c.b16 %v328, %v320
  %v409 = vpack.c.b16 %v329, %v321
  %v410 = vpack.c.b16 %v330, %v322
  %v411 = vpack.c.b16 %v331, %v323
  %v412 = vpack.c.b16 %v332, %v324
  %v413 = vpack.c.b16 %v333, %v325
  %v414 = vpack.c.b16 %v342, %v334
  %v415 = vpack.c.b16 %v343, %v335
  %v416 = vpack.c.b16 %v344, %v336
  %v417 = vpack.c.b16 %v345, %v337
  %v418 = vpack.c.b16 %v346, %v338
  %v419 = vpack.c.b16 %v347, %v339
  %v420 = vpack.c.b16 %v348, %v340
  %v421 = vpack.c.b16 %v349, %v341
  %v422 = vpack.c.b16 %v358, %v350
  %v423 = vpack.c.b16 %v359, %v351
  %v424 = vpack.c.b16 %v360, %v352
  %v425 = vpack.c.b16 %v361, %v353
  %v426 = vpack.c.b16 %v362, %v354
  %v427 = vpack.c.b16 %v363, %v355
  %v428 = vpack.c.b16 %v364, %v356
  %v429 = vpack.c.b16 %v365, %v357
  %494 = vmatprep.subr.bf16.mxu0 %v423
  %495 = vmatpush1.bf16.msra.mxu0 %v422
  %496 = vmatprep.subr.bf16.mxu0 %v415
  %497 = vmatpush1.bf16.msra.mxu0 %v414
  %498 = vmatprep.subr.bf16.mxu0 %v407
  %499 = vmatpush1.bf16.msra.mxu0 %v406
  %500 = vmatprep.subr.bf16.mxu0 %v399
  %501 = vmatpush1.bf16.msra.mxu0 %v398
  %502 = vmatprep.subr.bf16.mxu0 %v391
  %503 = vmatpush1.bf16.msra.mxu0 %v390
  %504 = vmatprep.subr.bf16.mxu0 %v383
  %505 = vmatpush1.bf16.msra.mxu0 %v382
  %506 = vmatprep.subr.bf16.mxu0 %v375
  %507 = vmatpush1.bf16.msra.mxu0 %v374
  %508 = vmatprep.subr.bf16.mxu0 %v367
  %509 = vmatpush1.bf16.msra.mxu0 %v366
  %510 = vmatprep.subr.bf16.mxu0 0
  %511 = vmatpush2.bf16.msra.mxu0 0
  %512 = vmatprep.subr.bf16.mxu0 0
  %513 = vmatpush2.bf16.msra.mxu0 0
  %514 = vmatprep.subr.bf16.mxu0 0
  %515 = vmatpush2.bf16.msra.mxu0 0
  %516 = vmatprep.subr.bf16.mxu0 0
  %517 = vmatpush2.bf16.msra.mxu0 0
  %518 = vmatprep.subr.bf16.mxu0 0
  %519 = vmatpush2.bf16.msra.mxu0 0
  %520 = vmatprep.subr.bf16.mxu0 0
  %521 = vmatpush2.bf16.msra.mxu0 0
  %522 = vmatprep.subr.bf16.mxu0 0
  %523 = vmatpush2.bf16.msra.mxu0 0
  %524 = vmatprep.subr.bf16.mxu0 0
  %525 = vmatpush2.bf16.msra.mxu0 0
  %526 = vmatprep.mubr.bf16.mxu0 0
  %527 = vmatmul.mubr.bf16.gmra.mxu0 %v166
  %v528 = vpop.f32.mrf.mxu0
  %v529 = vadd.f32 %v113, %v528
  %v530 = vpop.f32.mrf.mxu0
  %v531 = vadd.f32 %v117, %v530
  %v532 = vpop.f32.mrf.mxu0
  %v533 = vadd.f32 %v113, %v532
  %v534 = vpop.f32.mrf.mxu0
  %v535 = vadd.f32 %v117, %v534
  %536 = vmatprep.mubr.bf16.mxu0 0
  %537 = vmatmul.mubr.bf16.gmra.mxu0 %v167
  %v538 = vpop.f32.mrf.mxu0
  %v539 = vadd.f32 %v113, %v538
  %v540 = vpop.f32.mrf.mxu0
  %v541 = vadd.f32 %v117, %v540
  %v542 = vpop.f32.mrf.mxu0
  %v543 = vadd.f32 %v113, %v542
  %v544 = vpop.f32.mrf.mxu0
  %v545 = vadd.f32 %v117, %v544
  %546 = vmatprep.mubr.bf16.mxu0 0
  %547 = vmatmul.mubr.bf16.gmra.mxu0 %v168
  %v548 = vpop.f32.mrf.mxu0
  %v549 = vadd.f32 %v113, %v548
  %v550 = vpop.f32.mrf.mxu0
  %v551 = vadd.f32 %v117, %v550
  %v552 = vpop.f32.mrf.mxu0
  %v553 = vadd.f32 %v113, %v552
  %v554 = vpop.f32.mrf.mxu0
  %v555 = vadd.f32 %v117, %v554
  %556 = vmatprep.mubr.bf16.mxu0 0
  %557 = vmatmul.mubr.bf16.gmra.mxu0 %v169
  %v558 = vpop.f32.mrf.mxu0
  %v559 = vadd.f32 %v113, %v558
  %v560 = vpop.f32.mrf.mxu0
  %v561 = vadd.f32 %v117, %v560
  %v562 = vpop.f32.mrf.mxu0
  %v563 = vadd.f32 %v113, %v562
  %v564 = vpop.f32.mrf.mxu0
  %v565 = vadd.f32 %v117, %v564
  %566 = vdwg.mxu0
  %567 = vmatprep.subr.bf16.mxu0 %v425
  %568 = vmatpush1.bf16.msra.mxu0 %v424
  %569 = vmatprep.subr.bf16.mxu0 %v417
  %570 = vmatpush1.bf16.msra.mxu0 %v416
  %571 = vmatprep.subr.bf16.mxu0 %v409
  %572 = vmatpush1.bf16.msra.mxu0 %v408
  %573 = vmatprep.subr.bf16.mxu0 %v401
  %574 = vmatpush1.bf16.msra.mxu0 %v400
  %575 = vmatprep.subr.bf16.mxu0 %v393
  %576 = vmatpush1.bf16.msra.mxu0 %v392
  %577 = vmatprep.subr.bf16.mxu0 %v385
  %578 = vmatpush1.bf16.msra.mxu0 %v384
  %579 = vmatprep.subr.bf16.mxu0 %v377
  %580 = vmatpush1.bf16.msra.mxu0 %v376
  %581 = vmatprep.subr.bf16.mxu0 %v369
  %582 = vmatpush1.bf16.msra.mxu0 %v368
  %583 = vmatprep.subr.bf16.mxu0 0
  %584 = vmatpush2.bf16.msra.mxu0 0
  %585 = vmatprep.subr.bf16.mxu0 0
  %586 = vmatpush2.bf16.msra.mxu0 0
  %587 = vmatprep.subr.bf16.mxu0 0
  %588 = vmatpush2.bf16.msra.mxu0 0
  %589 = vmatprep.subr.bf16.mxu0 0
  %590 = vmatpush2.bf16.msra.mxu0 0
  %591 = vmatprep.subr.bf16.mxu0 0
  %592 = vmatpush2.bf16.msra.mxu0 0
  %593 = vmatprep.subr.bf16.mxu0 0
  %594 = vmatpush2.bf16.msra.mxu0 0
  %595 = vmatprep.subr.bf16.mxu0 0
  %596 = vmatpush2.bf16.msra.mxu0 0
  %597 = vmatprep.subr.bf16.mxu0 0
  %598 = vmatpush2.bf16.msra.mxu0 0
  %599 = vmatprep.mubr.bf16.mxu0 0
  %600 = vmatmul.mubr.bf16.gmra.mxu0 %v166
  %v601 = vpop.f32.mrf.mxu0
  %v602 = vadd.f32 %v121, %v601
  %v603 = vpop.f32.mrf.mxu0
  %v604 = vadd.f32 %v125, %v603
  %v605 = vpop.f32.mrf.mxu0
  %v606 = vadd.f32 %v121, %v605
  %v607 = vpop.f32.mrf.mxu0
  %v608 = vadd.f32 %v125, %v607
  %609 = vmatprep.mubr.bf16.mxu0 0
  %610 = vmatmul.mubr.bf16.gmra.mxu0 %v167
  %v611 = vpop.f32.mrf.mxu0
  %v612 = vadd.f32 %v121, %v611
  %v613 = vpop.f32.mrf.mxu0
  %v614 = vadd.f32 %v125, %v613
  %v615 = vpop.f32.mrf.mxu0
  %v616 = vadd.f32 %v121, %v615
  %v617 = vpop.f32.mrf.mxu0
  %v618 = vadd.f32 %v125, %v617
  %619 = vmatprep.mubr.bf16.mxu0 0
  %620 = vmatmul.mubr.bf16.gmra.mxu0 %v168
  %v621 = vpop.f32.mrf.mxu0
  %v622 = vadd.f32 %v121, %v621
  %v623 = vpop.f32.mrf.mxu0
  %v624 = vadd.f32 %v125, %v623
  %v625 = vpop.f32.mrf.mxu0
  %v626 = vadd.f32 %v121, %v625
  %v627 = vpop.f32.mrf.mxu0
  %v628 = vadd.f32 %v125, %v627
  %629 = vmatprep.mubr.bf16.mxu0 0
  %630 = vmatmul.mubr.bf16.gmra.mxu0 %v169
  %v631 = vpop.f32.mrf.mxu0
  %v632 = vadd.f32 %v121, %v631
  %v633 = vpop.f32.mrf.mxu0
  %v634 = vadd.f32 %v125, %v633
  %v635 = vpop.f32.mrf.mxu0
  %v636 = vadd.f32 %v121, %v635
  %v637 = vpop.f32.mrf.mxu0
  %v638 = vadd.f32 %v125, %v637
  %639 = vdwg.mxu0
  %640 = vmatprep.subr.bf16.mxu0 %v427
  %641 = vmatpush1.bf16.msra.mxu0 %v426
  %642 = vmatprep.subr.bf16.mxu0 %v419
  %643 = vmatpush1.bf16.msra.mxu0 %v418
  %644 = vmatprep.subr.bf16.mxu0 %v411
  %645 = vmatpush1.bf16.msra.mxu0 %v410
  %646 = vmatprep.subr.bf16.mxu0 %v403
  %647 = vmatpush1.bf16.msra.mxu0 %v402
  %648 = vmatprep.subr.bf16.mxu0 %v395
  %649 = vmatpush1.bf16.msra.mxu0 %v394
  %650 = vmatprep.subr.bf16.mxu0 %v387
  %651 = vmatpush1.bf16.msra.mxu0 %v386
  %652 = vmatprep.subr.bf16.mxu0 %v379
  %653 = vmatpush1.bf16.msra.mxu0 %v378
  %654 = vmatprep.subr.bf16.mxu0 %v371
  %655 = vmatpush1.bf16.msra.mxu0 %v370
  %656 = vmatprep.subr.bf16.mxu0 0
  %657 = vmatpush2.bf16.msra.mxu0 0
  %658 = vmatprep.subr.bf16.mxu0 0
  %659 = vmatpush2.bf16.msra.mxu0 0
  %660 = vmatprep.subr.bf16.mxu0 0
  %661 = vmatpush2.bf16.msra.mxu0 0
  %662 = vmatprep.subr.bf16.mxu0 0
  %663 = vmatpush2.bf16.msra.mxu0 0
  %664 = vmatprep.subr.bf16.mxu0 0
  %665 = vmatpush2.bf16.msra.mxu0 0
  %666 = vmatprep.subr.bf16.mxu0 0
  %667 = vmatpush2.bf16.msra.mxu0 0
  %668 = vmatprep.subr.bf16.mxu0 0
  %669 = vmatpush2.bf16.msra.mxu0 0
  %670 = vmatprep.subr.bf16.mxu0 0
  %671 = vmatpush2.bf16.msra.mxu0 0
  %672 = vmatprep.mubr.bf16.mxu0 0
  %673 = vmatmul.mubr.bf16.gmra.mxu0 %v166
  %v674 = vpop.f32.mrf.mxu0
  %v675 = vadd.f32 %v129, %v674
  %v676 = vpop.f32.mrf.mxu0
  %v677 = vadd.f32 %v133, %v676
  %v678 = vpop.f32.mrf.mxu0
  %v679 = vadd.f32 %v129, %v678
  %v680 = vpop.f32.mrf.mxu0
  %v681 = vadd.f32 %v133, %v680
  %682 = vmatprep.mubr.bf16.mxu0 0
  %683 = vmatmul.mubr.bf16.gmra.mxu0 %v167
  %v684 = vpop.f32.mrf.mxu0
  %v685 = vadd.f32 %v129, %v684
  %v686 = vpop.f32.mrf.mxu0
  %v687 = vadd.f32 %v133, %v686
  %v688 = vpop.f32.mrf.mxu0
  %v689 = vadd.f32 %v129, %v688
  %v690 = vpop.f32.mrf.mxu0
  %v691 = vadd.f32 %v133, %v690
  %692 = vmatprep.mubr.bf16.mxu0 0
  %693 = vmatmul.mubr.bf16.gmra.mxu0 %v168
  %v694 = vpop.f32.mrf.mxu0
  %v695 = vadd.f32 %v129, %v694
  %v696 = vpop.f32.mrf.mxu0
  %v697 = vadd.f32 %v133, %v696
  %v698 = vpop.f32.mrf.mxu0
  %v699 = vadd.f32 %v129, %v698
  %v700 = vpop.f32.mrf.mxu0
  %v701 = vadd.f32 %v133, %v700
  %702 = vmatprep.mubr.bf16.mxu0 0
  %703 = vmatmul.mubr.bf16.gmra.mxu0 %v169
  %v704 = vpop.f32.mrf.mxu0
  %v705 = vadd.f32 %v129, %v704
  %v706 = vpop.f32.mrf.mxu0
  %v707 = vadd.f32 %v133, %v706
  %v708 = vpop.f32.mrf.mxu0
  %v709 = vadd.f32 %v129, %v708
  %v710 = vpop.f32.mrf.mxu0
  %v711 = vadd.f32 %v133, %v710
  %712 = vdwg.mxu0
  %713 = vmatprep.subr.bf16.mxu0 %v429
  %714 = vmatpush1.bf16.msra.mxu0 %v428
  %715 = vmatprep.subr.bf16.mxu0 %v421
  %716 = vmatpush1.bf16.msra.mxu0 %v420
  %717 = vmatprep.subr.bf16.mxu0 %v413
  %718 = vmatpush1.bf16.msra.mxu0 %v412
  %719 = vmatprep.subr.bf16.mxu0 %v405
  %720 = vmatpush1.bf16.msra.mxu0 %v404
  %721 = vmatprep.subr.bf16.mxu0 %v397
  %722 = vmatpush1.bf16.msra.mxu0 %v396
  %723 = vmatprep.subr.bf16.mxu0 %v389
  %724 = vmatpush1.bf16.msra.mxu0 %v388
  %725 = vmatprep.subr.bf16.mxu0 %v381
  %726 = vmatpush1.bf16.msra.mxu0 %v380
  %727 = vmatprep.subr.bf16.mxu0 %v373
  %728 = vmatpush1.bf16.msra.mxu0 %v372
  %729 = vmatprep.subr.bf16.mxu0 0
  %730 = vmatpush2.bf16.msra.mxu0 0
  %731 = vmatprep.subr.bf16.mxu0 0
  %732 = vmatpush2.bf16.msra.mxu0 0
  %733 = vmatprep.subr.bf16.mxu0 0
  %734 = vmatpush2.bf16.msra.mxu0 0
  %735 = vmatprep.subr.bf16.mxu0 0
  %736 = vmatpush2.bf16.msra.mxu0 0
  %737 = vmatprep.subr.bf16.mxu0 0
  %738 = vmatpush2.bf16.msra.mxu0 0
  %739 = vmatprep.subr.bf16.mxu0 0
  %740 = vmatpush2.bf16.msra.mxu0 0
  %741 = vmatprep.subr.bf16.mxu0 0
  %742 = vmatpush2.bf16.msra.mxu0 0
  %743 = vmatprep.subr.bf16.mxu0 0
  %744 = vmatpush2.bf16.msra.mxu0 0
  %745 = vmatprep.mubr.bf16.mxu0 0
  %746 = vmatmul.mubr.bf16.gmra.mxu0 %v166
  %v747 = vpop.f32.mrf.mxu0
  %v748 = vadd.f32 %v137, %v747
  %v749 = vpop.f32.mrf.mxu0
  %v750 = vadd.f32 %v141, %v749
  %v751 = vpop.f32.mrf.mxu0
  %v752 = vadd.f32 %v137, %v751
  %v753 = vpop.f32.mrf.mxu0
  %v754 = vadd.f32 %v141, %v753
  %755 = vmatprep.mubr.bf16.mxu0 0
  %756 = vmatmul.mubr.bf16.gmra.mxu0 %v167
  %v757 = vpop.f32.mrf.mxu0
  %v758 = vadd.f32 %v137, %v757
  %v759 = vpop.f32.mrf.mxu0
  %v760 = vadd.f32 %v141, %v759
  %v761 = vpop.f32.mrf.mxu0
  %v762 = vadd.f32 %v137, %v761
  %v763 = vpop.f32.mrf.mxu0
  %v764 = vadd.f32 %v141, %v763
  %765 = vmatprep.mubr.bf16.mxu0 0
  %766 = vmatmul.mubr.bf16.gmra.mxu0 %v168
  %v767 = vpop.f32.mrf.mxu0
  %v768 = vadd.f32 %v137, %v767
  %v769 = vpop.f32.mrf.mxu0
  %v770 = vadd.f32 %v141, %v769
  %v771 = vpop.f32.mrf.mxu0
  %v772 = vadd.f32 %v137, %v771
  %v773 = vpop.f32.mrf.mxu0
  %v774 = vadd.f32 %v141, %v773
  %775 = vmatprep.mubr.bf16.mxu0 0
  %776 = vmatmul.mubr.bf16.gmra.mxu0 %v169
  %v777 = vpop.f32.mrf.mxu0
  %v778 = vadd.f32 %v137, %v777
  %v779 = vpop.f32.mrf.mxu0
  %v780 = vadd.f32 %v141, %v779
  %v781 = vpop.f32.mrf.mxu0
  %v782 = vadd.f32 %v137, %v781
  %v783 = vpop.f32.mrf.mxu0
  %v784 = vadd.f32 %v141, %v783
  %785 = vdwg.mxu0
  %786 = vst [vmem:[#allocation2] sm:$0xff] %v529
  %787 = vst [vmem:[#allocation2 + $0x8] sm:$0xff] %v531
  %788 = vst [vmem:[#allocation2 + $0x10] sm:$0xff] %v602
  %789 = vst [vmem:[#allocation2 + $0x18] sm:$0xff] %v604
  %790 = vst [vmem:[#allocation2 + $0x20] sm:$0xff] %v533
  %791 = vst [vmem:[#allocation2 + $0x28] sm:$0xff] %v535
  %792 = vst [vmem:[#allocation2 + $0x30] sm:$0xff] %v606
  %793 = vst [vmem:[#allocation2 + $0x38] sm:$0xff] %v608
  %794 = vst [vmem:[#allocation2 + $0x40] sm:$0xff] %v539
  %795 = vst [vmem:[#allocation2 + $0x48] sm:$0xff] %v541
  %796 = vst [vmem:[#allocation2 + $0x50] sm:$0xff] %v612
  %797 = vst [vmem:[#allocation2 + $0x58] sm:$0xff] %v614
  %798 = vst [vmem:[#allocation2 + $0x60] sm:$0xff] %v543
  %799 = vst [vmem:[#allocation2 + $0x68] sm:$0xff] %v545
  %800 = vst [vmem:[#allocation2 + $0x70] sm:$0xff] %v616
  %801 = vst [vmem:[#allocation2 + $0x78] sm:$0xff] %v618
  %802 = vst [vmem:[#allocation2 + $0x80] sm:$0xff] %v549
  %803 = vst [vmem:[#allocation2 + $0x88] sm:$0xff] %v551
  %804 = vst [vmem:[#allocation2 + $0x90] sm:$0xff] %v622
  %805 = vst [vmem:[#allocation2 + $0x98] sm:$0xff] %v624
  %806 = vst [vmem:[#allocation2 + $0xa0] sm:$0xff] %v553
  %807 = vst [vmem:[#allocation2 + $0xa8] sm:$0xff] %v555
  %808 = vst [vmem:[#allocation2 + $0xb0] sm:$0xff] %v626
  %809 = vst [vmem:[#allocation2 + $0xb8] sm:$0xff] %v628
  %810 = vst [vmem:[#allocation2 + $0xc0] sm:$0xff] %v559
  %811 = vst [vmem:[#allocation2 + $0xc8] sm:$0xff] %v561
  %812 = vst [vmem:[#allocation2 + $0xd0] sm:$0xff] %v632
  %813 = vst [vmem:[#allocation2 + $0xd8] sm:$0xff] %v634
  %814 = vst [vmem:[#allocation2 + $0xe0] sm:$0xff] %v563
  %815 = vst [vmem:[#allocation2 + $0xe8] sm:$0xff] %v565
  %816 = vst [vmem:[#allocation2 + $0xf0] sm:$0xff] %v636
  %817 = vst [vmem:[#allocation2 + $0xf8] sm:$0xff] %v638
  %818 = vst [vmem:[#allocation3] sm:$0xff] %v675
  %819 = vst [vmem:[#allocation3 + $0x8] sm:$0xff] %v677
  %820 = vst [vmem:[#allocation3 + $0x10] sm:$0xff] %v748
  %821 = vst [vmem:[#allocation3 + $0x18] sm:$0xff] %v750
  %822 = vst [vmem:[#allocation3 + $0x20] sm:$0xff] %v679
  %823 = vst [vmem:[#allocation3 + $0x28] sm:$0xff] %v681
  %824 = vst [vmem:[#allocation3 + $0x30] sm:$0xff] %v752
  %825 = vst [vmem:[#allocation3 + $0x38] sm:$0xff] %v754
  %826 = vst [vmem:[#allocation3 + $0x40] sm:$0xff] %v685
  %827 = vst [vmem:[#allocation3 + $0x48] sm:$0xff] %v687
  %828 = vst [vmem:[#allocation3 + $0x50] sm:$0xff] %v758
  %829 = vst [vmem:[#allocation3 + $0x58] sm:$0xff] %v760
  %830 = vst [vmem:[#allocation3 + $0x60] sm:$0xff] %v689
  %831 = vst [vmem:[#allocation3 + $0x68] sm:$0xff] %v691
  %832 = vst [vmem:[#allocation3 + $0x70] sm:$0xff] %v762
  %833 = vst [vmem:[#allocation3 + $0x78] sm:$0xff] %v764
  %834 = vst [vmem:[#allocation3 + $0x80] sm:$0xff] %v695
  %835 = vst [vmem:[#allocation3 + $0x88] sm:$0xff] %v697
  %836 = vst [vmem:[#allocation3 + $0x90] sm:$0xff] %v768
  %837 = vst [vmem:[#allocation3 + $0x98] sm:$0xff] %v770
  %838 = vst [vmem:[#allocation3 + $0xa0] sm:$0xff] %v699
  %839 = vst [vmem:[#allocation3 + $0xa8] sm:$0xff] %v701
  %840 = vst [vmem:[#allocation3 + $0xb0] sm:$0xff] %v772
  %841 = vst [vmem:[#allocation3 + $0xb8] sm:$0xff] %v774
  %842 = vst [vmem:[#allocation3 + $0xc0] sm:$0xff] %v705
  %843 = vst [vmem:[#allocation3 + $0xc8] sm:$0xff] %v707
  %844 = vst [vmem:[#allocation3 + $0xd0] sm:$0xff] %v778
  %845 = vst [vmem:[#allocation3 + $0xd8] sm:$0xff] %v780
  %846 = vst [vmem:[#allocation3 + $0xe0] sm:$0xff] %v709
  %847 = vst [vmem:[#allocation3 + $0xe8] sm:$0xff] %v711
  %848 = vst [vmem:[#allocation3 + $0xf0] sm:$0xff] %v782
  %849 = vst [vmem:[#allocation3 + $0xf8] sm:$0xff] %v784
  %v850 = vld [vmem:[%s2] sm:$0xff]
  %v851 = vld [vmem:[%s2 + $0x8] sm:$0xff]
  %v852 = vld [vmem:[%s2 + $0x10] sm:$0xff]
  %v853 = vld [vmem:[%s2 + $0x18] sm:$0xff]
  %v854 = vld [vmem:[%s2 + $0x20] sm:$0xff]
  %v855 = vld [vmem:[%s2 + $0x28] sm:$0xff]
  %v856 = vld [vmem:[%s2 + $0x30] sm:$0xff]
  %v857 = vld [vmem:[%s2 + $0x38] sm:$0xff]
  %v858 = vld [vmem:[%s2 + $0x40] sm:$0xff]
  %v859 = vld [vmem:[%s2 + $0x48] sm:$0xff]
  %v860 = vld [vmem:[%s2 + $0x50] sm:$0xff]
  %v861 = vld [vmem:[%s2 + $0x58] sm:$0xff]
  %v862 = vld [vmem:[%s2 + $0x60] sm:$0xff]
  %v863 = vld [vmem:[%s2 + $0x68] sm:$0xff]
  %v864 = vld [vmem:[%s2 + $0x70] sm:$0xff]
  %v865 = vld [vmem:[%s2 + $0x78] sm:$0xff]
  %v866 = vld [vmem:[%s2 + $0x80] sm:$0xff]
  %v867 = vld [vmem:[%s2 + $0x88] sm:$0xff]
  %v868 = vld [vmem:[%s2 + $0x90] sm:$0xff]
  %v869 = vld [vmem:[%s2 + $0x98] sm:$0xff]
  %v870 = vld [vmem:[%s2 + $0xa0] sm:$0xff]
  %v871 = vld [vmem:[%s2 + $0xa8] sm:$0xff]
  %v872 = vld [vmem:[%s2 + $0xb0] sm:$0xff]
  %v873 = vld [vmem:[%s2 + $0xb8] sm:$0xff]
  %v874 = vld [vmem:[%s2 + $0xc0] sm:$0xff]
  %v875 = vld [vmem:[%s2 + $0xc8] sm:$0xff]
  %v876 = vld [vmem:[%s2 + $0xd0] sm:$0xff]
  %v877 = vld [vmem:[%s2 + $0xd8] sm:$0xff]
  %v878 = vld [vmem:[%s2 + $0xe0] sm:$0xff]
  %v879 = vld [vmem:[%s2 + $0xe8] sm:$0xff]
  %v880 = vld [vmem:[%s2 + $0xf0] sm:$0xff]
  %v881 = vld [vmem:[%s2 + $0xf8] sm:$0xff]
  %v882 = vld [vmem:[%s3] sm:$0xff]
  %v883 = vld [vmem:[%s3 + $0x8] sm:$0xff]
  %v884 = vld [vmem:[%s3 + $0x10] sm:$0xff]
  %v885 = vld [vmem:[%s3 + $0x18] sm:$0xff]
  %v886 = vld [vmem:[%s3 + $0x20] sm:$0xff]
  %v887 = vld [vmem:[%s3 + $0x28] sm:$0xff]
  %v888 = vld [vmem:[%s3 + $0x30] sm:$0xff]
  %v889 = vld [vmem:[%s3 + $0x38] sm:$0xff]
  %v890 = vld [vmem:[%s3 + $0x40] sm:$0xff]
  %v891 = vld [vmem:[%s3 + $0x48] sm:$0xff]
  %v892 = vld [vmem:[%s3 + $0x50] sm:$0xff]
  %v893 = vld [vmem:[%s3 + $0x58] sm:$0xff]
  %v894 = vld [vmem:[%s3 + $0x60] sm:$0xff]
  %v895 = vld [vmem:[%s3 + $0x68] sm:$0xff]
  %v896 = vld [vmem:[%s3 + $0x70] sm:$0xff]
  %v897 = vld [vmem:[%s3 + $0x78] sm:$0xff]
  %v898 = vld [vmem:[%s3 + $0x80] sm:$0xff]
  %v899 = vld [vmem:[%s3 + $0x88] sm:$0xff]
  %v900 = vld [vmem:[%s3 + $0x90] sm:$0xff]
  %v901 = vld [vmem:[%s3 + $0x98] sm:$0xff]
  %v902 = vld [vmem:[%s3 + $0xa0] sm:$0xff]
  %v903 = vld [vmem:[%s3 + $0xa8] sm:$0xff]
  %v904 = vld [vmem:[%s3 + $0xb0] sm:$0xff]
  %v905 = vld [vmem:[%s3 + $0xb8] sm:$0xff]
  %v906 = vld [vmem:[%s3 + $0xc0] sm:$0xff]
  %v907 = vld [vmem:[%s3 + $0xc8] sm:$0xff]
  %v908 = vld [vmem:[%s3 + $0xd0] sm:$0xff]
  %v909 = vld [vmem:[%s3 + $0xd8] sm:$0xff]
  %v910 = vld [vmem:[%s3 + $0xe0] sm:$0xff]
  %v911 = vld [vmem:[%s3 + $0xe8] sm:$0xff]
  %v912 = vld [vmem:[%s3 + $0xf0] sm:$0xff]
  %v913 = vld [vmem:[%s3 + $0xf8] sm:$0xff]
  %v914 = vld [vmem:[#allocation2] sm:$0xff]
  %v915 = vld [vmem:[#allocation2 + $0x8] sm:$0xff]
  %v916 = vld [vmem:[#allocation2 + $0x10] sm:$0xff]
  %v917 = vld [vmem:[#allocation2 + $0x18] sm:$0xff]
  %v950 = vunpack.c.l.b16 %v850
  %v951 = vunpack.c.h.b16 %v850
  %v952 = vunpack.c.l.b16 %v851
  %v953 = vunpack.c.h.b16 %v851
  %v954 = vunpack.c.l.b16 %v852
  %v955 = vunpack.c.h.b16 %v852
  %v956 = vunpack.c.l.b16 %v853
  %v957 = vunpack.c.h.b16 %v853
  %v958 = vunpack.c.l.b16 %v854
  %v959 = vunpack.c.h.b16 %v854
  %v960 = vunpack.c.l.b16 %v855
  %v961 = vunpack.c.h.b16 %v855
  %v962 = vunpack.c.l.b16 %v856
  %v963 = vunpack.c.h.b16 %v856
  %v964 = vunpack.c.l.b16 %v857
  %v965 = vunpack.c.h.b16 %v857
  %v966 = vunpack.c.l.b16 %v858
  %v967 = vunpack.c.h.b16 %v858
  %v968 = vunpack.c.l.b16 %v859
  %v969 = vunpack.c.h.b16 %v859
  %v970 = vunpack.c.l.b16 %v860
  %v971 = vunpack.c.h.b16 %v860
  %v972 = vunpack.c.l.b16 %v861
  %v973 = vunpack.c.h.b16 %v861
  %v974 = vunpack.c.l.b16 %v862
  %v975 = vunpack.c.h.b16 %v862
  %v976 = vunpack.c.l.b16 %v863
  %v977 = vunpack.c.h.b16 %v863
  %v978 = vunpack.c.l.b16 %v864
  %v979 = vunpack.c.h.b16 %v864
  %v980 = vunpack.c.l.b16 %v865
  %v981 = vunpack.c.h.b16 %v865
  %v982 = vunpack.c.l.b16 %v866
  %v983 = vunpack.c.h.b16 %v866
  %v984 = vunpack.c.l.b16 %v867
  %v985 = vunpack.c.h.b16 %v867
  %v986 = vunpack.c.l.b16 %v868
  %v987 = vunpack.c.h.b16 %v868
  %v988 = vunpack.c.l.b16 %v869
  %v989 = vunpack.c.h.b16 %v869
  %v990 = vunpack.c.l.b16 %v870
  %v991 = vunpack.c.h.b16 %v870
  %v992 = vunpack.c.l.b16 %v871
  %v993 = vunpack.c.h.b16 %v871
  %v994 = vunpack.c.l.b16 %v872
  %v995 = vunpack.c.h.b16 %v872
  %v996 = vunpack.c.l.b16 %v873
  %v997 = vunpack.c.h.b16 %v873
  %v998 = vunpack.c.l.b16 %v874
  %v999 = vunpack.c.h.b16 %v874
  %v1000 = vunpack.c.l.b16 %v875
  %v1001 = vunpack.c.h.b16 %v875
  %v1002 = vunpack.c.l.b16 %v876
  %v1003 = vunpack.c.h.b16 %v876
  %v1004 = vunpack.c.l.b16 %v877
  %v1005 = vunpack.c.h.b16 %v877
  %v1006 = vunpack.c.l.b16 %v878
  %v1007 = vunpack.c.h.b16 %v878
  %v1008 = vunpack.c.l.b16 %v879
  %v1009 = vunpack.c.h.b16 %v879
  %v1010 = vunpack.c.l.b16 %v880
  %v1011 = vunpack.c.h.b16 %v880
  %v1012 = vunpack.c.l.b16 %v881
  %v1013 = vunpack.c.h.b16 %v881
  %v1014 = vpack.c.b16 %v954, %v950
  %v1015 = vpack.c.b16 %v955, %v951
  %v1016 = vpack.c.b16 %v956, %v952
  %v1017 = vpack.c.b16 %v957, %v953
  %v1018 = vpack.c.b16 %v962, %v958
  %v1019 = vpack.c.b16 %v963, %v959
  %v1020 = vpack.c.b16 %v964, %v960
  %v1021 = vpack.c.b16 %v965, %v961
  %v1022 = vpack.c.b16 %v970, %v966
  %v1023 = vpack.c.b16 %v971, %v967
  %v1024 = vpack.c.b16 %v972, %v968
  %v1025 = vpack.c.b16 %v973, %v969
  %v1026 = vpack.c.b16 %v978, %v974
  %v1027 = vpack.c.b16 %v979, %v975
  %v1028 = vpack.c.b16 %v980, %v976
  %v1029 = vpack.c.b16 %v981, %v977
  %v1030 = vpack.c.b16 %v986, %v982
  %v1031 = vpack.c.b16 %v987, %v983
  %v1032 = vpack.c.b16 %v988, %v984
  %v1033 = vpack.c.b16 %v989, %v985
  %v1034 = vpack.c.b16 %v994, %v990
  %v1035 = vpack.c.b16 %v995, %v991
  %v1036 = vpack.c.b16 %v996, %v992
  %v1037 = vpack.c.b16 %v997, %v993
  %v1038 = vpack.c.b16 %v1002, %v998
  %v1039 = vpack.c.b16 %v1003, %v999
  %v1040 = vpack.c.b16 %v1004, %v1000
  %v1041 = vpack.c.b16 %v1005, %v1001
  %v1042 = vpack.c.b16 %v1010, %v1006
  %v1043 = vpack.c.b16 %v1011, %v1007
  %v1044 = vpack.c.b16 %v1012, %v1008
  %v1045 = vpack.c.b16 %v1013, %v1009
  %1078 = vmatprep.subr.bf16.mxu0 %v1043
  %1079 = vmatpush1.bf16.msra.mxu0 %v1042
  %1080 = vmatprep.subr.bf16.mxu0 %v1039
  %1081 = vmatpush1.bf16.msra.mxu0 %v1038
  %1082 = vmatprep.subr.bf16.mxu0 %v1035
  %1083 = vmatpush1.bf16.msra.mxu0 %v1034
  %1084 = vmatprep.subr.bf16.mxu0 %v1031
  %1085 = vmatpush1.bf16.msra.mxu0 %v1030
  %1086 = vmatprep.subr.bf16.mxu0 %v1027
  %1087 = vmatpush1.bf16.msra.mxu0 %v1026
  %1088 = vmatprep.subr.bf16.mxu0 %v1023
  %1089 = vmatpush1.bf16.msra.mxu0 %v1022
  %1090 = vmatprep.subr.bf16.mxu0 %v1019
  %1091 = vmatpush1.bf16.msra.mxu0 %v1018
  %1092 = vmatprep.subr.bf16.mxu0 %v1015
  %1093 = vmatpush1.bf16.msra.mxu0 %v1014
  %1094 = vmatprep.subr.bf16.mxu0 0
  %1095 = vmatpush2.bf16.msra.mxu0 0
  %1096 = vmatprep.subr.bf16.mxu0 0
  %1097 = vmatpush2.bf16.msra.mxu0 0
  %1098 = vmatprep.subr.bf16.mxu0 0
  %1099 = vmatpush2.bf16.msra.mxu0 0
  %1100 = vmatprep.subr.bf16.mxu0 0
  %1101 = vmatpush2.bf16.msra.mxu0 0
  %1102 = vmatprep.subr.bf16.mxu0 0
  %1103 = vmatpush2.bf16.msra.mxu0 0
  %1104 = vmatprep.subr.bf16.mxu0 0
  %1105 = vmatpush2.bf16.msra.mxu0 0
  %1106 = vmatprep.subr.bf16.mxu0 0
  %1107 = vmatpush2.bf16.msra.mxu0 0
  %1108 = vmatprep.subr.bf16.mxu0 0
  %1109 = vmatpush2.bf16.msra.mxu0 0
  %1110 = vmatprep.mubr.bf16.mxu0 0
  %1111 = vmatmul.mubr.bf16.gmra.mxu0 0
  %v1112 = vpop.f32.mrf.mxu0
  %v1113 = vadd.f32 0.0, %v1112
  %v1114 = vpop.f32.mrf.mxu0
  %v1115 = vadd.f32 0.0, %v1114
  %v1116 = vpop.f32.mrf.mxu0
  %v1117 = vpop.f32.mrf.mxu0
  %1118 = vdwg.mxu0
  %1119 = vmatprep.subr.bf16.mxu0 %v1045
  %1120 = vmatpush1.bf16.msra.mxu0 %v1044
  %1121 = vmatprep.subr.bf16.mxu0 %v1041
  %1122 = vmatpush1.bf16.msra.mxu0 %v1040
  %1123 = vmatprep.subr.bf16.mxu0 %v1037
  %1124 = vmatpush1.bf16.msra.mxu0 %v1036
  %1125 = vmatprep.subr.bf16.mxu0 %v1033
  %1126 = vmatpush1.bf16.msra.mxu0 %v1032
  %1127 = vmatprep.subr.bf16.mxu0 %v1029
  %1128 = vmatpush1.bf16.msra.mxu0 %v1028
  %1129 = vmatprep.subr.bf16.mxu0 %v1025
  %1130 = vmatpush1.bf16.msra.mxu0 %v1024
  %1131 = vmatprep.subr.bf16.mxu0 %v1021
  %1132 = vmatpush1.bf16.msra.mxu0 %v1020
  %1133 = vmatprep.subr.bf16.mxu0 %v1017
  %1134 = vmatpush1.bf16.msra.mxu0 %v1016
  %1135 = vmatprep.subr.bf16.mxu0 0
  %1136 = vmatpush2.bf16.msra.mxu0 0
  %1137 = vmatprep.subr.bf16.mxu0 0
  %1138 = vmatpush2.bf16.msra.mxu0 0
  %1139 = vmatprep.subr.bf16.mxu0 0
  %1140 = vmatpush2.bf16.msra.mxu0 0
  %1141 = vmatprep.subr.bf16.mxu0 0
  %1142 = vmatpush2.bf16.msra.mxu0 0
  %1143 = vmatprep.subr.bf16.mxu0 0
  %1144 = vmatpush2.bf16.msra.mxu0 0
  %1145 = vmatprep.subr.bf16.mxu0 0
  %1146 = vmatpush2.bf16.msra.mxu0 0
  %1147 = vmatprep.subr.bf16.mxu0 0
  %1148 = vmatpush2.bf16.msra.mxu0 0
  %1149 = vmatprep.subr.bf16.mxu0 0
  %1150 = vmatpush2.bf16.msra.mxu0 0
  %1151 = vmatprep.mubr.bf16.mxu0 0
  %1152 = vmatmul.mubr.bf16.gmra.mxu0 0
  %v1153 = vpop.f32.mrf.mxu0
  %v1154 = vadd.f32 0.0, %v1153
  %v1155 = vpop.f32.mrf.mxu0
  %v1156 = vadd.f32 0.0, %v1155
  %v1157 = vpop.f32.mrf.mxu0
  %v1158 = vpop.f32.mrf.mxu0
  %1159 = vdwg.mxu0
  %v1160 = vadd.f32 %v914, %v1113
  %v1161 = vadd.f32 %v915, %v1115
  %v1162 = vadd.f32 %v916, %v1154
  %v1163 = vadd.f32 %v917, %v1156
  %s1164 = scalar_lea.vmem [#allocation3], 224
  %v1165 = vld [vmem:[%s1164] sm:$0xff]
  %v1166 = vld [vmem:[%s1164 + $0x8] sm:$0xff]
  %v1167 = vld [vmem:[%s1164 + $0x10] sm:$0xff]
  %v1168 = vld [vmem:[%s1164 + $0x18] sm:$0xff]
  %v1201 = vunpack.c.l.b16 %v882
  %v1202 = vunpack.c.h.b16 %v882
  %v1203 = vunpack.c.l.b16 %v883
  %v1204 = vunpack.c.h.b16 %v883
  %v1205 = vunpack.c.l.b16 %v884
  %v1206 = vunpack.c.h.b16 %v884
  %v1207 = vunpack.c.l.b16 %v885
  %v1208 = vunpack.c.h.b16 %v885
  %v1209 = vunpack.c.l.b16 %v886
  %v1210 = vunpack.c.h.b16 %v886
  %v1211 = vunpack.c.l.b16 %v887
  %v1212 = vunpack.c.h.b16 %v887
  %v1213 = vunpack.c.l.b16 %v888
  %v1214 = vunpack.c.h.b16 %v888
  %v1215 = vunpack.c.l.b16 %v889
  %v1216 = vunpack.c.h.b16 %v889
  %v1217 = vunpack.c.l.b16 %v890
  %v1218 = vunpack.c.h.b16 %v890
  %v1219 = vunpack.c.l.b16 %v891
  %v1220 = vunpack.c.h.b16 %v891
  %v1221 = vunpack.c.l.b16 %v892
  %v1222 = vunpack.c.h.b16 %v892
  %v1223 = vunpack.c.l.b16 %v893
  %v1224 = vunpack.c.h.b16 %v893
  %v1225 = vunpack.c.l.b16 %v894
  %v1226 = vunpack.c.h.b16 %v894
  %v1227 = vunpack.c.l.b16 %v895
  %v1228 = vunpack.c.h.b16 %v895
  %v1229 = vunpack.c.l.b16 %v896
  %v1230 = vunpack.c.h.b16 %v896
  %v1231 = vunpack.c.l.b16 %v897
  %v1232 = vunpack.c.h.b16 %v897
  %v1233 = vunpack.c.l.b16 %v898
  %v1234 = vunpack.c.h.b16 %v898
  %v1235 = vunpack.c.l.b16 %v899
  %v1236 = vunpack.c.h.b16 %v899
  %v1237 = vunpack.c.l.b16 %v900
  %v1238 = vunpack.c.h.b16 %v900
  %v1239 = vunpack.c.l.b16 %v901
  %v1240 = vunpack.c.h.b16 %v901
  %v1241 = vunpack.c.l.b16 %v902
  %v1242 = vunpack.c.h.b16 %v902
  %v1243 = vunpack.c.l.b16 %v903
  %v1244 = vunpack.c.h.b16 %v903
  %v1245 = vunpack.c.l.b16 %v904
  %v1246 = vunpack.c.h.b16 %v904
  %v1247 = vunpack.c.l.b16 %v905
  %v1248 = vunpack.c.h.b16 %v905
  %v1249 = vunpack.c.l.b16 %v906
  %v1250 = vunpack.c.h.b16 %v906
  %v1251 = vunpack.c.l.b16 %v907
  %v1252 = vunpack.c.h.b16 %v907
  %v1253 = vunpack.c.l.b16 %v908
  %v1254 = vunpack.c.h.b16 %v908
  %v1255 = vunpack.c.l.b16 %v909
  %v1256 = vunpack.c.h.b16 %v909
  %v1257 = vunpack.c.l.b16 %v910
  %v1258 = vunpack.c.h.b16 %v910
  %v1259 = vunpack.c.l.b16 %v911
  %v1260 = vunpack.c.h.b16 %v911
  %v1261 = vunpack.c.l.b16 %v912
  %v1262 = vunpack.c.h.b16 %v912
  %v1263 = vunpack.c.l.b16 %v913
  %v1264 = vunpack.c.h.b16 %v913
  %v1265 = vpack.c.b16 %v1205, %v1201
  %v1266 = vpack.c.b16 %v1206, %v1202
  %v1267 = vpack.c.b16 %v1207, %v1203
  %v1268 = vpack.c.b16 %v1208, %v1204
  %v1269 = vpack.c.b16 %v1213, %v1209
  %v1270 = vpack.c.b16 %v1214, %v1210
  %v1271 = vpack.c.b16 %v1215, %v1211
  %v1272 = vpack.c.b16 %v1216, %v1212
  %v1273 = vpack.c.b16 %v1221, %v1217
  %v1274 = vpack.c.b16 %v1222, %v1218
  %v1275 = vpack.c.b16 %v1223, %v1219
  %v1276 = vpack.c.b16 %v1224, %v1220
  %v1277 = vpack.c.b16 %v1229, %v1225
  %v1278 = vpack.c.b16 %v1230, %v1226
  %v1279 = vpack.c.b16 %v1231, %v1227
  %v1280 = vpack.c.b16 %v1232, %v1228
  %v1281 = vpack.c.b16 %v1237, %v1233
  %v1282 = vpack.c.b16 %v1238, %v1234
  %v1283 = vpack.c.b16 %v1239, %v1235
  %v1284 = vpack.c.b16 %v1240, %v1236
  %v1285 = vpack.c.b16 %v1245, %v1241
  %v1286 = vpack.c.b16 %v1246, %v1242
  %v1287 = vpack.c.b16 %v1247, %v1243
  %v1288 = vpack.c.b16 %v1248, %v1244
  %v1289 = vpack.c.b16 %v1253, %v1249
  %v1290 = vpack.c.b16 %v1254, %v1250
  %v1291 = vpack.c.b16 %v1255, %v1251
  %v1292 = vpack.c.b16 %v1256, %v1252
  %v1293 = vpack.c.b16 %v1261, %v1257
  %v1294 = vpack.c.b16 %v1262, %v1258
  %v1295 = vpack.c.b16 %v1263, %v1259
  %v1296 = vpack.c.b16 %v1264, %v1260
  %1329 = vmatprep.subr.bf16.mxu0 %v1294
  %1330 = vmatpush1.bf16.msra.mxu0 %v1293
  %1331 = vmatprep.subr.bf16.mxu0 %v1290
  %1332 = vmatpush1.bf16.msra.mxu0 %v1289
  %1333 = vmatprep.subr.bf16.mxu0 %v1286
  %1334 = vmatpush1.bf16.msra.mxu0 %v1285
  %1335 = vmatprep.subr.bf16.mxu0 %v1282
  %1336 = vmatpush1.bf16.msra.mxu0 %v1281
  %1337 = vmatprep.subr.bf16.mxu0 %v1278
  %1338 = vmatpush1.bf16.msra.mxu0 %v1277
  %1339 = vmatprep.subr.bf16.mxu0 %v1274
  %1340 = vmatpush1.bf16.msra.mxu0 %v1273
  %1341 = vmatprep.subr.bf16.mxu0 %v1270
  %1342 = vmatpush1.bf16.msra.mxu0 %v1269
  %1343 = vmatprep.subr.bf16.mxu0 %v1266
  %1344 = vmatpush1.bf16.msra.mxu0 %v1265
  %1345 = vmatprep.subr.bf16.mxu0 0
  %1346 = vmatpush2.bf16.msra.mxu0 0
  %1347 = vmatprep.subr.bf16.mxu0 0
  %1348 = vmatpush2.bf16.msra.mxu0 0
  %1349 = vmatprep.subr.bf16.mxu0 0
  %1350 = vmatpush2.bf16.msra.mxu0 0
  %1351 = vmatprep.subr.bf16.mxu0 0
  %1352 = vmatpush2.bf16.msra.mxu0 0
  %1353 = vmatprep.subr.bf16.mxu0 0
  %1354 = vmatpush2.bf16.msra.mxu0 0
  %1355 = vmatprep.subr.bf16.mxu0 0
  %1356 = vmatpush2.bf16.msra.mxu0 0
  %1357 = vmatprep.subr.bf16.mxu0 0
  %1358 = vmatpush2.bf16.msra.mxu0 0
  %1359 = vmatprep.subr.bf16.mxu0 0
  %1360 = vmatpush2.bf16.msra.mxu0 0
  %1361 = vmatprep.mubr.bf16.mxu0 0
  %1362 = vmatmul.mubr.bf16.gmra.mxu0 0
  %v1363 = vpop.f32.mrf.mxu0
  %v1364 = vadd.f32 0.0, %v1363
  %v1365 = vpop.f32.mrf.mxu0
  %v1366 = vadd.f32 0.0, %v1365
  %v1367 = vpop.f32.mrf.mxu0
  %v1368 = vpop.f32.mrf.mxu0
  %1369 = vdwg.mxu0
  %1370 = vmatprep.subr.bf16.mxu0 %v1296
  %1371 = vmatpush1.bf16.msra.mxu0 %v1295
  %1372 = vmatprep.subr.bf16.mxu0 %v1292
  %1373 = vmatpush1.bf16.msra.mxu0 %v1291
  %1374 = vmatprep.subr.bf16.mxu0 %v1288
  %1375 = vmatpush1.bf16.msra.mxu0 %v1287
  %1376 = vmatprep.subr.bf16.mxu0 %v1284
  %1377 = vmatpush1.bf16.msra.mxu0 %v1283
  %1378 = vmatprep.subr.bf16.mxu0 %v1280
  %1379 = vmatpush1.bf16.msra.mxu0 %v1279
  %1380 = vmatprep.subr.bf16.mxu0 %v1276
  %1381 = vmatpush1.bf16.msra.mxu0 %v1275
  %1382 = vmatprep.subr.bf16.mxu0 %v1272
  %1383 = vmatpush1.bf16.msra.mxu0 %v1271
  %1384 = vmatprep.subr.bf16.mxu0 %v1268
  %1385 = vmatpush1.bf16.msra.mxu0 %v1267
  %1386 = vmatprep.subr.bf16.mxu0 0
  %1387 = vmatpush2.bf16.msra.mxu0 0
  %1388 = vmatprep.subr.bf16.mxu0 0
  %1389 = vmatpush2.bf16.msra.mxu0 0
  %1390 = vmatprep.subr.bf16.mxu0 0
  %1391 = vmatpush2.bf16.msra.mxu0 0
  %1392 = vmatprep.subr.bf16.mxu0 0
  %1393 = vmatpush2.bf16.msra.mxu0 0
  %1394 = vmatprep.subr.bf16.mxu0 0
  %1395 = vmatpush2.bf16.msra.mxu0 0
  %1396 = vmatprep.subr.bf16.mxu0 0
  %1397 = vmatpush2.bf16.msra.mxu0 0
  %1398 = vmatprep.subr.bf16.mxu0 0
  %1399 = vmatpush2.bf16.msra.mxu0 0
  %1400 = vmatprep.subr.bf16.mxu0 0
  %1401 = vmatpush2.bf16.msra.mxu0 0
  %1402 = vmatprep.mubr.bf16.mxu0 0
  %1403 = vmatmul.mubr.bf16.gmra.mxu0 0
  %v1404 = vpop.f32.mrf.mxu0
  %v1405 = vadd.f32 0.0, %v1404
  %v1406 = vpop.f32.mrf.mxu0
  %v1407 = vadd.f32 0.0, %v1406
  %v1408 = vpop.f32.mrf.mxu0
  %v1409 = vpop.f32.mrf.mxu0
  %1410 = vdwg.mxu0
  %v1411 = vadd.f32 %v1165, %v1364
  %v1412 = vadd.f32 %v1166, %v1366
  %v1413 = vadd.f32 %v1167, %v1405
  %v1414 = vadd.f32 %v1168, %v1407
  %v1415 = vxor.u32 %v1160, 2147483648
  %v1416 = vmul.f32 %v1415, 1.442695
  %v1417 = vpow.pop %v1416
  %v1418 = vadd.f32 %v1417, 1.0
  %v1419 = vrcp.pop %v1418
  %v1420 = vmul.f32 1.0, %v1419
  %v1421 = vxor.u32 %v1161, 2147483648
  %v1422 = vmul.f32 %v1421, 1.442695
  %v1423 = vpow.pop %v1422
  %v1424 = vadd.f32 %v1423, 1.0
  %v1425 = vrcp.pop %v1424
  %v1426 = vmul.f32 1.0, %v1425
  %v1427 = vtanh.pop %v1162
  %v1428 = vxor.u32 %v1163, 2147483648
  %v1429 = vmul.f32 %v1428, 1.442695
  %v1430 = vpow.pop %v1429
  %v1431 = vadd.f32 %v1430, 1.0
  %v1432 = vrcp.pop %v1431
  %v1433 = vmul.f32 1.0, %v1432
  %v1434 = vxor.u32 %v1411, 2147483648
  %v1435 = vmul.f32 %v1434, 1.442695
  %v1436 = vpow.pop %v1435
  %v1437 = vadd.f32 %v1436, 1.0
  %v1438 = vrcp.pop %v1437
  %v1439 = vmul.f32 1.0, %v1438
  %v1440 = vxor.u32 %v1412, 2147483648
  %v1441 = vmul.f32 %v1440, 1.442695
  %v1442 = vpow.pop %v1441
  %v1443 = vadd.f32 %v1442, 1.0
  %v1444 = vrcp.pop %v1443
  %v1445 = vmul.f32 1.0, %v1444
  %v1446 = vtanh.pop %v1413
  %v1447 = vxor.u32 %v1414, 2147483648
  %v1448 = vmul.f32 %v1447, 1.442695
  %v1449 = vpow.pop %v1448
  %v1450 = vadd.f32 %v1449, 1.0
  %v1451 = vrcp.pop %v1450
  %v1452 = vmul.f32 1.0, %v1451
  %v1453 = vmul.f32 %v1426, 0.0
  %v1454 = vmul.f32 %v1420, %v1427
  %v1455 = vadd.f32 %v1453, %v1454
  %v1456 = vmul.f32 %v1445, 0.0
  %v1457 = vmul.f32 %v1439, %v1446
  %v1458 = vadd.f32 %v1456, %v1457
  %v1459 = vtanh.pop %v1455
  %v1460 = vmul.f32 %v1433, %v1459
  %v1461 = vtanh.pop %v1458
  %v1462 = vmul.f32 %v1452, %v1461
  %1463 = vst [vmem:[#allocation4] sm:$0xff] %v1460
  %s1464 = scalar_lea.vmem [#allocation5], 56
  %1465 = vst [vmem:[%s1464] sm:$0xff] %v1462
  %v1466 = vpack.c.bf16 %v1460, %v1460
  %v1467 = vpack.c.bf16 %v1462, %v1462
  %s1468 = scalar_lea.vmem [#allocation2], 32
  %v1469 = vld [vmem:[%s1468] sm:$0xff]
  %v1470 = vld [vmem:[%s1468 + $0x8] sm:$0xff]
  %v1471 = vld [vmem:[%s1468 + $0x10] sm:$0xff]
  %v1472 = vld [vmem:[%s1468 + $0x18] sm:$0xff]
  %1473 = vmatprep.subr.bf16.mxu0 %v1043
  %1474 = vmatpush1.bf16.msra.mxu0 %v1042
  %1475 = vmatprep.subr.bf16.mxu0 %v1039
  %1476 = vmatpush1.bf16.msra.mxu0 %v1038
  %1477 = vmatprep.subr.bf16.mxu0 %v1035
  %1478 = vmatpush1.bf16.msra.mxu0 %v1034
  %1479 = vmatprep.subr.bf16.mxu0 %v1031
  %1480 = vmatpush1.bf16.msra.mxu0 %v1030
  %1481 = vmatprep.subr.bf16.mxu0 %v1027
  %1482 = vmatpush1.bf16.msra.mxu0 %v1026
  %1483 = vmatprep.subr.bf16.mxu0 %v1023
  %1484 = vmatpush1.bf16.msra.mxu0 %v1022
  %1485 = vmatprep.subr.bf16.mxu0 %v1019
  %1486 = vmatpush1.bf16.msra.mxu0 %v1018
  %1487 = vmatprep.subr.bf16.mxu0 %v1015
  %1488 = vmatpush1.bf16.msra.mxu0 %v1014
  %1489 = vmatprep.subr.bf16.mxu0 0
  %1490 = vmatpush2.bf16.msra.mxu0 0
  %1491 = vmatprep.subr.bf16.mxu0 0
  %1492 = vmatpush2.bf16.msra.mxu0 0
  %1493 = vmatprep.subr.bf16.mxu0 0
  %1494 = vmatpush2.bf16.msra.mxu0 0
  %1495 = vmatprep.subr.bf16.mxu0 0
  %1496 = vmatpush2.bf16.msra.mxu0 0
  %1497 = vmatprep.subr.bf16.mxu0 0
  %1498 = vmatpush2.bf16.msra.mxu0 0
  %1499 = vmatprep.subr.bf16.mxu0 0
  %1500 = vmatpush2.bf16.msra.mxu0 0
  %1501 = vmatprep.subr.bf16.mxu0 0
  %1502 = vmatpush2.bf16.msra.mxu0 0
  %1503 = vmatprep.subr.bf16.mxu0 0
  %1504 = vmatpush2.bf16.msra.mxu0 0
  %1505 = vmatprep.mubr.bf16.mxu0 0
  %1506 = vmatmul.mubr.bf16.gmra.mxu0 %v1466
  %v1507 = vpop.f32.mrf.mxu0
  %v1508 = vadd.f32 0.0, %v1507
  %v1509 = vpop.f32.mrf.mxu0
  %v1510 = vadd.f32 0.0, %v1509
  %v1511 = vpop.f32.mrf.mxu0
  %v1512 = vpop.f32.mrf.mxu0
  %1513 = vdwg.mxu0
  %1514 = vmatprep.subr.bf16.mxu0 %v1045
  %1515 = vmatpush1.bf16.msra.mxu0 %v1044
  %1516 = vmatprep.subr.bf16.mxu0 %v1041
  %1517 = vmatpush1.bf16.msra.mxu0 %v1040
  %1518 = vmatprep.subr.bf16.mxu0 %v1037
  %1519 = vmatpush1.bf16.msra.mxu0 %v1036
  %1520 = vmatprep.subr.bf16.mxu0 %v1033
  %1521 = vmatpush1.bf16.msra.mxu0 %v1032
  %1522 = vmatprep.subr.bf16.mxu0 %v1029
  %1523 = vmatpush1.bf16.msra.mxu0 %v1028
  %1524 = vmatprep.subr.bf16.mxu0 %v1025
  %1525 = vmatpush1.bf16.msra.mxu0 %v1024
  %1526 = vmatprep.subr.bf16.mxu0 %v1021
  %1527 = vmatpush1.bf16.msra.mxu0 %v1020
  %1528 = vmatprep.subr.bf16.mxu0 %v1017
  %1529 = vmatpush1.bf16.msra.mxu0 %v1016
  %1530 = vmatprep.subr.bf16.mxu0 0
  %1531 = vmatpush2.bf16.msra.mxu0 0
  %1532 = vmatprep.subr.bf16.mxu0 0
  %1533 = vmatpush2.bf16.msra.mxu0 0
  %1534 = vmatprep.subr.bf16.mxu0 0
  %1535 = vmatpush2.bf16.msra.mxu0 0
  %1536 = vmatprep.subr.bf16.mxu0 0
  %1537 = vmatpush2.bf16.msra.mxu0 0
  %1538 = vmatprep.subr.bf16.mxu0 0
  %1539 = vmatpush2.bf16.msra.mxu0 0
  %1540 = vmatprep.subr.bf16.mxu0 0
  %1541 = vmatpush2.bf16.msra.mxu0 0
  %1542 = vmatprep.subr.bf16.mxu0 0
  %1543 = vmatpush2.bf16.msra.mxu0 0
  %1544 = vmatprep.subr.bf16.mxu0 0
  %1545 = vmatpush2.bf16.msra.mxu0 0
  %1546 = vmatprep.mubr.bf16.mxu0 0
  %1547 = vmatmul.mubr.bf16.gmra.mxu0 %v1466
  %v1548 = vpop.f32.mrf.mxu0
  %v1549 = vadd.f32 0.0, %v1548
  %v1550 = vpop.f32.mrf.mxu0
  %v1551 = vadd.f32 0.0, %v1550
  %v1552 = vpop.f32.mrf.mxu0
  %v1553 = vpop.f32.mrf.mxu0
  %1554 = vdwg.mxu0
  %v1555 = vadd.f32 %v1469, %v1508
  %v1556 = vadd.f32 %v1470, %v1510
  %v1557 = vadd.f32 %v1471, %v1549
  %v1558 = vadd.f32 %v1472, %v1551
  %s1559 = scalar_lea.vmem [#allocation3], 192
  %v1560 = vld [vmem:[%s1559] sm:$0xff]
  %v1561 = vld [vmem:[%s1559 + $0x8] sm:$0xff]
  %v1562 = vld [vmem:[%s1559 + $0x10] sm:$0xff]
  %v1563 = vld [vmem:[%s1559 + $0x18] sm:$0xff]
  %1564 = vmatprep.subr.bf16.mxu0 %v1294
  %1565 = vmatpush1.bf16.msra.mxu0 %v1293
  %1566 = vmatprep.subr.bf16.mxu0 %v1290
  %1567 = vmatpush1.bf16.msra.mxu0 %v1289
  %1568 = vmatprep.subr.bf16.mxu0 %v1286
  %1569 = vmatpush1.bf16.msra.mxu0 %v1285
  %1570 = vmatprep.subr.bf16.mxu0 %v1282
  %1571 = vmatpush1.bf16.msra.mxu0 %v1281
  %1572 = vmatprep.subr.bf16.mxu0 %v1278
  %1573 = vmatpush1.bf16.msra.mxu0 %v1277
  %1574 = vmatprep.subr.bf16.mxu0 %v1274
  %1575 = vmatpush1.bf16.msra.mxu0 %v1273
  %1576 = vmatprep.subr.bf16.mxu0 %v1270
  %1577 = vmatpush1.bf16.msra.mxu0 %v1269
  %1578 = vmatprep.subr.bf16.mxu0 %v1266
  %1579 = vmatpush1.bf16.msra.mxu0 %v1265
  %1580 = vmatprep.subr.bf16.mxu0 0
  %1581 = vmatpush2.bf16.msra.mxu0 0
  %1582 = vmatprep.subr.bf16.mxu0 0
  %1583 = vmatpush2.bf16.msra.mxu0 0
  %1584 = vmatprep.subr.bf16.mxu0 0
  %1585 = vmatpush2.bf16.msra.mxu0 0
  %1586 = vmatprep.subr.bf16.mxu0 0
  %1587 = vmatpush2.bf16.msra.mxu0 0
  %1588 = vmatprep.subr.bf16.mxu0 0
  %1589 = vmatpush2.bf16.msra.mxu0 0
  %1590 = vmatprep.subr.bf16.mxu0 0
  %1591 = vmatpush2.bf16.msra.mxu0 0
  %1592 = vmatprep.subr.bf16.mxu0 0
  %1593 = vmatpush2.bf16.msra.mxu0 0
  %1594 = vmatprep.subr.bf16.mxu0 0
  %1595 = vmatpush2.bf16.msra.mxu0 0
  %1596 = vmatprep.mubr.bf16.mxu0 0
  %1597 = vmatmul.mubr.bf16.gmra.mxu0 %v1467
  %v1598 = vpop.f32.mrf.mxu0
  %v1599 = vadd.f32 0.0, %v1598
  %v1600 = vpop.f32.mrf.mxu0
  %v1601 = vadd.f32 0.0, %v1600
  %v1602 = vpop.f32.mrf.mxu0
  %v1603 = vpop.f32.mrf.mxu0
  %1604 = vdwg.mxu0
  %1605 = vmatprep.subr.bf16.mxu0 %v1296
  %1606 = vmatpush1.bf16.msra.mxu0 %v1295
  %1607 = vmatprep.subr.bf16.mxu0 %v1292
  %1608 = vmatpush1.bf16.msra.mxu0 %v1291
  %1609 = vmatprep.subr.bf16.mxu0 %v1288
  %1610 = vmatpush1.bf16.msra.mxu0 %v1287
  %1611 = vmatprep.subr.bf16.mxu0 %v1284
  %1612 = vmatpush1.bf16.msra.mxu0 %v1283
  %1613 = vmatprep.subr.bf16.mxu0 %v1280
  %1614 = vmatpush1.bf16.msra.mxu0 %v1279
  %1615 = vmatprep.subr.bf16.mxu0 %v1276
  %1616 = vmatpush1.bf16.msra.mxu0 %v1275
  %1617 = vmatprep.subr.bf16.mxu0 %v1272
  %1618 = vmatpush1.bf16.msra.mxu0 %v1271
  %1619 = vmatprep.subr.bf16.mxu0 %v1268
  %1620 = vmatpush1.bf16.msra.mxu0 %v1267
  %1621 = vmatprep.subr.bf16.mxu0 0
  %1622 = vmatpush2.bf16.msra.mxu0 0
  %1623 = vmatprep.subr.bf16.mxu0 0
  %1624 = vmatpush2.bf16.msra.mxu0 0
  %1625 = vmatprep.subr.bf16.mxu0 0
  %1626 = vmatpush2.bf16.msra.mxu0 0
  %1627 = vmatprep.subr.bf16.mxu0 0
  %1628 = vmatpush2.bf16.msra.mxu0 0
  %1629 = vmatprep.subr.bf16.mxu0 0
  %1630 = vmatpush2.bf16.msra.mxu0 0
  %1631 = vmatprep.subr.bf16.mxu0 0
  %1632 = vmatpush2.bf16.msra.mxu0 0
  %1633 = vmatprep.subr.bf16.mxu0 0
  %1634 = vmatpush2.bf16.msra.mxu0 0
  %1635 = vmatprep.subr.bf16.mxu0 0
  %1636 = vmatpush2.bf16.msra.mxu0 0
  %1637 = vmatprep.mubr.bf16.mxu0 0
  %1638 = vmatmul.mubr.bf16.gmra.mxu0 %v1467
  %v1639 = vpop.f32.mrf.mxu0
  %v1640 = vadd.f32 0.0, %v1639
  %v1641 = vpop.f32.mrf.mxu0
  %v1642 = vadd.f32 0.0, %v1641
  %v1643 = vpop.f32.mrf.mxu0
  %v1644 = vpop.f32.mrf.mxu0
  %1645 = vdwg.mxu0
  %v1646 = vadd.f32 %v1560, %v1599
  %v1647 = vadd.f32 %v1561, %v1601
  %v1648 = vadd.f32 %v1562, %v1640
  %v1649 = vadd.f32 %v1563, %v1642
  %v1650 = vxor.u32 %v1555, 2147483648
  %v1651 = vmul.f32 %v1650, 1.442695
  %v1652 = vpow.pop %v1651
  %v1653 = vadd.f32 %v1652, 1.0
  %v1654 = vrcp.pop %v1653
  %v1655 = vmul.f32 1.0, %v1654
  %v1656 = vxor.u32 %v1556, 2147483648
  %v1657 = vmul.f32 %v1656, 1.442695
  %v1658 = vpow.pop %v1657
  %v1659 = vadd.f32 %v1658, 1.0
  %v1660 = vrcp.pop %v1659
  %v1661 = vmul.f32 1.0, %v1660
  %v1662 = vtanh.pop %v1557
  %v1663 = vxor.u32 %v1558, 2147483648
  %v1664 = vmul.f32 %v1663, 1.442695
  %v1665 = vpow.pop %v1664
  %v1666 = vadd.f32 %v1665, 1.0
  %v1667 = vrcp.pop %v1666
  %v1668 = vmul.f32 1.0, %v1667
  %v1669 = vxor.u32 %v1646, 2147483648
  %v1670 = vmul.f32 %v1669, 1.442695
  %v1671 = vpow.pop %v1670
  %v1672 = vadd.f32 %v1671, 1.0
  %v1673 = vrcp.pop %v1672
  %v1674 = vmul.f32 1.0, %v1673
  %v1675 = vxor.u32 %v1647, 2147483648
  %v1676 = vmul.f32 %v1675, 1.442695
  %v1677 = vpow.pop %v1676
  %v1678 = vadd.f32 %v1677, 1.0
  %v1679 = vrcp.pop %v1678
  %v1680 = vmul.f32 1.0, %v1679
  %v1681 = vtanh.pop %v1648
  %v1682 = vxor.u32 %v1649, 2147483648
  %v1683 = vmul.f32 %v1682, 1.442695
  %v1684 = vpow.pop %v1683
  %v1685 = vadd.f32 %v1684, 1.0
  %v1686 = vrcp.pop %v1685
  %v1687 = vmul.f32 1.0, %v1686
  %v1688 = vmul.f32 %v1661, %v1455
  %v1689 = vmul.f32 %v1655, %v1662
  %v1690 = vadd.f32 %v1688, %v1689
  %v1691 = vmul.f32 %v1680, %v1458
  %v1692 = vmul.f32 %v1674, %v1681
  %v1693 = vadd.f32 %v1691, %v1692
  %v1694 = vtanh.pop %v1690
  %v1695 = vmul.f32 %v1668, %v1694
  %v1696 = vtanh.pop %v1693
  %v1697 = vmul.f32 %v1687, %v1696
  %s1698 = scalar_lea.vmem [#allocation4], 8
  %1699 = vst [vmem:[%s1698] sm:$0xff] %v1695
  %s1700 = scalar_lea.vmem [#allocation5], 48
  %1701 = vst [vmem:[%s1700] sm:$0xff] %v1697
  %v1702 = vpack.c.bf16 %v1695, %v1695
  %v1703 = vpack.c.bf16 %v1697, %v1697
  %s1704 = scalar_lea.vmem [#allocation2], 64
  %v1705 = vld [vmem:[%s1704] sm:$0xff]
  %v1706 = vld [vmem:[%s1704 + $0x8] sm:$0xff]
  %v1707 = vld [vmem:[%s1704 + $0x10] sm:$0xff]
  %v1708 = vld [vmem:[%s1704 + $0x18] sm:$0xff]
  %1709 = vmatprep.subr.bf16.mxu0 %v1043
  %1710 = vmatpush1.bf16.msra.mxu0 %v1042
  %1711 = vmatprep.subr.bf16.mxu0 %v1039
  %1712 = vmatpush1.bf16.msra.mxu0 %v1038
  %1713 = vmatprep.subr.bf16.mxu0 %v1035
  %1714 = vmatpush1.bf16.msra.mxu0 %v1034
  %1715 = vmatprep.subr.bf16.mxu0 %v1031
  %1716 = vmatpush1.bf16.msra.mxu0 %v1030
  %1717 = vmatprep.subr.bf16.mxu0 %v1027
  %1718 = vmatpush1.bf16.msra.mxu0 %v1026
  %1719 = vmatprep.subr.bf16.mxu0 %v1023
  %1720 = vmatpush1.bf16.msra.mxu0 %v1022
  %1721 = vmatprep.subr.bf16.mxu0 %v1019
  %1722 = vmatpush1.bf16.msra.mxu0 %v1018
  %1723 = vmatprep.subr.bf16.mxu0 %v1015
  %1724 = vmatpush1.bf16.msra.mxu0 %v1014
  %1725 = vmatprep.subr.bf16.mxu0 0
  %1726 = vmatpush2.bf16.msra.mxu0 0
  %1727 = vmatprep.subr.bf16.mxu0 0
  %1728 = vmatpush2.bf16.msra.mxu0 0
  %1729 = vmatprep.subr.bf16.mxu0 0
  %1730 = vmatpush2.bf16.msra.mxu0 0
  %1731 = vmatprep.subr.bf16.mxu0 0
  %1732 = vmatpush2.bf16.msra.mxu0 0
  %1733 = vmatprep.subr.bf16.mxu0 0
  %1734 = vmatpush2.bf16.msra.mxu0 0
  %1735 = vmatprep.subr.bf16.mxu0 0
  %1736 = vmatpush2.bf16.msra.mxu0 0
  %1737 = vmatprep.subr.bf16.mxu0 0
  %1738 = vmatpush2.bf16.msra.mxu0 0
  %1739 = vmatprep.subr.bf16.mxu0 0
  %1740 = vmatpush2.bf16.msra.mxu0 0
  %1741 = vmatprep.mubr.bf16.mxu0 0
  %1742 = vmatmul.mubr.bf16.gmra.mxu0 %v1702
  %v1743 = vpop.f32.mrf.mxu0
  %v1744 = vadd.f32 0.0, %v1743
  %v1745 = vpop.f32.mrf.mxu0
  %v1746 = vadd.f32 0.0, %v1745
  %v1747 = vpop.f32.mrf.mxu0
  %v1748 = vpop.f32.mrf.mxu0
  %1749 = vdwg.mxu0
  %1750 = vmatprep.subr.bf16.mxu0 %v1045
  %1751 = vmatpush1.bf16.msra.mxu0 %v1044
  %1752 = vmatprep.subr.bf16.mxu0 %v1041
  %1753 = vmatpush1.bf16.msra.mxu0 %v1040
  %1754 = vmatprep.subr.bf16.mxu0 %v1037
  %1755 = vmatpush1.bf16.msra.mxu0 %v1036
  %1756 = vmatprep.subr.bf16.mxu0 %v1033
  %1757 = vmatpush1.bf16.msra.mxu0 %v1032
  %1758 = vmatprep.subr.bf16.mxu0 %v1029
  %1759 = vmatpush1.bf16.msra.mxu0 %v1028
  %1760 = vmatprep.subr.bf16.mxu0 %v1025
  %1761 = vmatpush1.bf16.msra.mxu0 %v1024
  %1762 = vmatprep.subr.bf16.mxu0 %v1021
  %1763 = vmatpush1.bf16.msra.mxu0 %v1020
  %1764 = vmatprep.subr.bf16.mxu0 %v1017
  %1765 = vmatpush1.bf16.msra.mxu0 %v1016
  %1766 = vmatprep.subr.bf16.mxu0 0
  %1767 = vmatpush2.bf16.msra.mxu0 0
  %1768 = vmatprep.subr.bf16.mxu0 0
  %1769 = vmatpush2.bf16.msra.mxu0 0
  %1770 = vmatprep.subr.bf16.mxu0 0
  %1771 = vmatpush2.bf16.msra.mxu0 0
  %1772 = vmatprep.subr.bf16.mxu0 0
  %1773 = vmatpush2.bf16.msra.mxu0 0
  %1774 = vmatprep.subr.bf16.mxu0 0
  %1775 = vmatpush2.bf16.msra.mxu0 0
  %1776 = vmatprep.subr.bf16.mxu0 0
  %1777 = vmatpush2.bf16.msra.mxu0 0
  %1778 = vmatprep.subr.bf16.mxu0 0
  %1779 = vmatpush2.bf16.msra.mxu0 0
  %1780 = vmatprep.subr.bf16.mxu0 0
  %1781 = vmatpush2.bf16.msra.mxu0 0
  %1782 = vmatprep.mubr.bf16.mxu0 0
  %1783 = vmatmul.mubr.bf16.gmra.mxu0 %v1702
  %v1784 = vpop.f32.mrf.mxu0
  %v1785 = vadd.f32 0.0, %v1784
  %v1786 = vpop.f32.mrf.mxu0
  %v1787 = vadd.f32 0.0, %v1786
  %v1788 = vpop.f32.mrf.mxu0
  %v1789 = vpop.f32.mrf.mxu0
  %1790 = vdwg.mxu0
  %v1791 = vadd.f32 %v1705, %v1744
  %v1792 = vadd.f32 %v1706, %v1746
  %v1793 = vadd.f32 %v1707, %v1785
  %v1794 = vadd.f32 %v1708, %v1787
  %s1795 = scalar_lea.vmem [#allocation3], 160
  %v1796 = vld [vmem:[%s1795] sm:$0xff]
  %v1797 = vld [vmem:[%s1795 + $0x8] sm:$0xff]
  %v1798 = vld [vmem:[%s1795 + $0x10] sm:$0xff]
  %v1799 = vld [vmem:[%s1795 + $0x18] sm:$0xff]
  %1800 = vmatprep.subr.bf16.mxu0 %v1294
  %1801 = vmatpush1.bf16.msra.mxu0 %v1293
  %1802 = vmatprep.subr.bf16.mxu0 %v1290
  %1803 = vmatpush1.bf16.msra.mxu0 %v1289
  %1804 = vmatprep.subr.bf16.mxu0 %v1286
  %1805 = vmatpush1.bf16.msra.mxu0 %v1285
  %1806 = vmatprep.subr.bf16.mxu0 %v1282
  %1807 = vmatpush1.bf16.msra.mxu0 %v1281
  %1808 = vmatprep.subr.bf16.mxu0 %v1278
  %1809 = vmatpush1.bf16.msra.mxu0 %v1277
  %1810 = vmatprep.subr.bf16.mxu0 %v1274
  %1811 = vmatpush1.bf16.msra.mxu0 %v1273
  %1812 = vmatprep.subr.bf16.mxu0 %v1270
  %1813 = vmatpush1.bf16.msra.mxu0 %v1269
  %1814 = vmatprep.subr.bf16.mxu0 %v1266
  %1815 = vmatpush1.bf16.msra.mxu0 %v1265
  %1816 = vmatprep.subr.bf16.mxu0 0
  %1817 = vmatpush2.bf16.msra.mxu0 0
  %1818 = vmatprep.subr.bf16.mxu0 0
  %1819 = vmatpush2.bf16.msra.mxu0 0
  %1820 = vmatprep.subr.bf16.mxu0 0
  %1821 = vmatpush2.bf16.msra.mxu0 0
  %1822 = vmatprep.subr.bf16.mxu0 0
  %1823 = vmatpush2.bf16.msra.mxu0 0
  %1824 = vmatprep.subr.bf16.mxu0 0
  %1825 = vmatpush2.bf16.msra.mxu0 0
  %1826 = vmatprep.subr.bf16.mxu0 0
  %1827 = vmatpush2.bf16.msra.mxu0 0
  %1828 = vmatprep.subr.bf16.mxu0 0
  %1829 = vmatpush2.bf16.msra.mxu0 0
  %1830 = vmatprep.subr.bf16.mxu0 0
  %1831 = vmatpush2.bf16.msra.mxu0 0
  %1832 = vmatprep.mubr.bf16.mxu0 0
  %1833 = vmatmul.mubr.bf16.gmra.mxu0 %v1703
  %v1834 = vpop.f32.mrf.mxu0
  %v1835 = vadd.f32 0.0, %v1834
  %v1836 = vpop.f32.mrf.mxu0
  %v1837 = vadd.f32 0.0, %v1836
  %v1838 = vpop.f32.mrf.mxu0
  %v1839 = vpop.f32.mrf.mxu0
  %1840 = vdwg.mxu0
  %1841 = vmatprep.subr.bf16.mxu0 %v1296
  %1842 = vmatpush1.bf16.msra.mxu0 %v1295
  %1843 = vmatprep.subr.bf16.mxu0 %v1292
  %1844 = vmatpush1.bf16.msra.mxu0 %v1291
  %1845 = vmatprep.subr.bf16.mxu0 %v1288
  %1846 = vmatpush1.bf16.msra.mxu0 %v1287
  %1847 = vmatprep.subr.bf16.mxu0 %v1284
  %1848 = vmatpush1.bf16.msra.mxu0 %v1283
  %1849 = vmatprep.subr.bf16.mxu0 %v1280
  %1850 = vmatpush1.bf16.msra.mxu0 %v1279
  %1851 = vmatprep.subr.bf16.mxu0 %v1276
  %1852 = vmatpush1.bf16.msra.mxu0 %v1275
  %1853 = vmatprep.subr.bf16.mxu0 %v1272
  %1854 = vmatpush1.bf16.msra.mxu0 %v1271
  %1855 = vmatprep.subr.bf16.mxu0 %v1268
  %1856 = vmatpush1.bf16.msra.mxu0 %v1267
  %1857 = vmatprep.subr.bf16.mxu0 0
  %1858 = vmatpush2.bf16.msra.mxu0 0
  %1859 = vmatprep.subr.bf16.mxu0 0
  %1860 = vmatpush2.bf16.msra.mxu0 0
  %1861 = vmatprep.subr.bf16.mxu0 0
  %1862 = vmatpush2.bf16.msra.mxu0 0
  %1863 = vmatprep.subr.bf16.mxu0 0
  %1864 = vmatpush2.bf16.msra.mxu0 0
  %1865 = vmatprep.subr.bf16.mxu0 0
  %1866 = vmatpush2.bf16.msra.mxu0 0
  %1867 = vmatprep.subr.bf16.mxu0 0
  %1868 = vmatpush2.bf16.msra.mxu0 0
  %1869 = vmatprep.subr.bf16.mxu0 0
  %1870 = vmatpush2.bf16.msra.mxu0 0
  %1871 = vmatprep.subr.bf16.mxu0 0
  %1872 = vmatpush2.bf16.msra.mxu0 0
  %1873 = vmatprep.mubr.bf16.mxu0 0
  %1874 = vmatmul.mubr.bf16.gmra.mxu0 %v1703
  %v1875 = vpop.f32.mrf.mxu0
  %v1876 = vadd.f32 0.0, %v1875
  %v1877 = vpop.f32.mrf.mxu0
  %v1878 = vadd.f32 0.0, %v1877
  %v1879 = vpop.f32.mrf.mxu0
  %v1880 = vpop.f32.mrf.mxu0
  %1881 = vdwg.mxu0
  %v1882 = vadd.f32 %v1796, %v1835
  %v1883 = vadd.f32 %v1797, %v1837
  %v1884 = vadd.f32 %v1798, %v1876
  %v1885 = vadd.f32 %v1799, %v1878
  %v1886 = vxor.u32 %v1791, 2147483648
  %v1887 = vmul.f32 %v1886, 1.442695
  %v1888 = vpow.pop %v1887
  %v1889 = vadd.f32 %v1888, 1.0
  %v1890 = vrcp.pop %v1889
  %v1891 = vmul.f32 1.0, %v1890
  %v1892 = vxor.u32 %v1792, 2147483648
  %v1893 = vmul.f32 %v1892, 1.442695
  %v1894 = vpow.pop %v1893
  %v1895 = vadd.f32 %v1894, 1.0
  %v1896 = vrcp.pop %v1895
  %v1897 = vmul.f32 1.0, %v1896
  %v1898 = vtanh.pop %v1793
  %v1899 = vxor.u32 %v1794, 2147483648
  %v1900 = vmul.f32 %v1899, 1.442695
  %v1901 = vpow.pop %v1900
  %v1902 = vadd.f32 %v1901, 1.0
  %v1903 = vrcp.pop %v1902
  %v1904 = vmul.f32 1.0, %v1903
  %v1905 = vxor.u32 %v1882, 2147483648
  %v1906 = vmul.f32 %v1905, 1.442695
  %v1907 = vpow.pop %v1906
  %v1908 = vadd.f32 %v1907, 1.0
  %v1909 = vrcp.pop %v1908
  %v1910 = vmul.f32 1.0, %v1909
  %v1911 = vxor.u32 %v1883, 2147483648
  %v1912 = vmul.f32 %v1911, 1.442695
  %v1913 = vpow.pop %v1912
  %v1914 = vadd.f32 %v1913, 1.0
  %v1915 = vrcp.pop %v1914
  %v1916 = vmul.f32 1.0, %v1915
  %v1917 = vtanh.pop %v1884
  %v1918 = vxor.u32 %v1885, 2147483648
  %v1919 = vmul.f32 %v1918, 1.442695
  %v1920 = vpow.pop %v1919
  %v1921 = vadd.f32 %v1920, 1.0
  %v1922 = vrcp.pop %v1921
  %v1923 = vmul.f32 1.0, %v1922
  %v1924 = vmul.f32 %v1897, %v1690
  %v1925 = vmul.f32 %v1891, %v1898
  %v1926 = vadd.f32 %v1924, %v1925
  %v1927 = vmul.f32 %v1916, %v1693
  %v1928 = vmul.f32 %v1910, %v1917
  %v1929 = vadd.f32 %v1927, %v1928
  %v1930 = vtanh.pop %v1926
  %v1931 = vmul.f32 %v1904, %v1930
  %v1932 = vtanh.pop %v1929
  %v1933 = vmul.f32 %v1923, %v1932
  %s1934 = scalar_lea.vmem [#allocation4], 16
  %1935 = vst [vmem:[%s1934] sm:$0xff] %v1931
  %s1936 = scalar_lea.vmem [#allocation5], 40
  %1937 = vst [vmem:[%s1936] sm:$0xff] %v1933
  %v1938 = vpack.c.bf16 %v1931, %v1931
  %v1939 = vpack.c.bf16 %v1933, %v1933
  %s1940 = scalar_lea.vmem [#allocation2], 96
  %v1941 = vld [vmem:[%s1940] sm:$0xff]
  %v1942 = vld [vmem:[%s1940 + $0x8] sm:$0xff]
  %v1943 = vld [vmem:[%s1940 + $0x10] sm:$0xff]
  %v1944 = vld [vmem:[%s1940 + $0x18] sm:$0xff]
  %1945 = vmatprep.subr.bf16.mxu0 %v1043
  %1946 = vmatpush1.bf16.msra.mxu0 %v1042
  %1947 = vmatprep.subr.bf16.mxu0 %v1039
  %1948 = vmatpush1.bf16.msra.mxu0 %v1038
  %1949 = vmatprep.subr.bf16.mxu0 %v1035
  %1950 = vmatpush1.bf16.msra.mxu0 %v1034
  %1951 = vmatprep.subr.bf16.mxu0 %v1031
  %1952 = vmatpush1.bf16.msra.mxu0 %v1030
  %1953 = vmatprep.subr.bf16.mxu0 %v1027
  %1954 = vmatpush1.bf16.msra.mxu0 %v1026
  %1955 = vmatprep.subr.bf16.mxu0 %v1023
  %1956 = vmatpush1.bf16.msra.mxu0 %v1022
  %1957 = vmatprep.subr.bf16.mxu0 %v1019
  %1958 = vmatpush1.bf16.msra.mxu0 %v1018
  %1959 = vmatprep.subr.bf16.mxu0 %v1015
  %1960 = vmatpush1.bf16.msra.mxu0 %v1014
  %1961 = vmatprep.subr.bf16.mxu0 0
  %1962 = vmatpush2.bf16.msra.mxu0 0
  %1963 = vmatprep.subr.bf16.mxu0 0
  %1964 = vmatpush2.bf16.msra.mxu0 0
  %1965 = vmatprep.subr.bf16.mxu0 0
  %1966 = vmatpush2.bf16.msra.mxu0 0
  %1967 = vmatprep.subr.bf16.mxu0 0
  %1968 = vmatpush2.bf16.msra.mxu0 0
  %1969 = vmatprep.subr.bf16.mxu0 0
  %1970 = vmatpush2.bf16.msra.mxu0 0
  %1971 = vmatprep.subr.bf16.mxu0 0
  %1972 = vmatpush2.bf16.msra.mxu0 0
  %1973 = vmatprep.subr.bf16.mxu0 0
  %1974 = vmatpush2.bf16.msra.mxu0 0
  %1975 = vmatprep.subr.bf16.mxu0 0
  %1976 = vmatpush2.bf16.msra.mxu0 0
  %1977 = vmatprep.mubr.bf16.mxu0 0
  %1978 = vmatmul.mubr.bf16.gmra.mxu0 %v1938
  %v1979 = vpop.f32.mrf.mxu0
  %v1980 = vadd.f32 0.0, %v1979
  %v1981 = vpop.f32.mrf.mxu0
  %v1982 = vadd.f32 0.0, %v1981
  %v1983 = vpop.f32.mrf.mxu0
  %v1984 = vpop.f32.mrf.mxu0
  %1985 = vdwg.mxu0
  %1986 = vmatprep.subr.bf16.mxu0 %v1045
  %1987 = vmatpush1.bf16.msra.mxu0 %v1044
  %1988 = vmatprep.subr.bf16.mxu0 %v1041
  %1989 = vmatpush1.bf16.msra.mxu0 %v1040
  %1990 = vmatprep.subr.bf16.mxu0 %v1037
  %1991 = vmatpush1.bf16.msra.mxu0 %v1036
  %1992 = vmatprep.subr.bf16.mxu0 %v1033
  %1993 = vmatpush1.bf16.msra.mxu0 %v1032
  %1994 = vmatprep.subr.bf16.mxu0 %v1029
  %1995 = vmatpush1.bf16.msra.mxu0 %v1028
  %1996 = vmatprep.subr.bf16.mxu0 %v1025
  %1997 = vmatpush1.bf16.msra.mxu0 %v1024
  %1998 = vmatprep.subr.bf16.mxu0 %v1021
  %1999 = vmatpush1.bf16.msra.mxu0 %v1020
  %2000 = vmatprep.subr.bf16.mxu0 %v1017
  %2001 = vmatpush1.bf16.msra.mxu0 %v1016
  %2002 = vmatprep.subr.bf16.mxu0 0
  %2003 = vmatpush2.bf16.msra.mxu0 0
  %2004 = vmatprep.subr.bf16.mxu0 0
  %2005 = vmatpush2.bf16.msra.mxu0 0
  %2006 = vmatprep.subr.bf16.mxu0 0
  %2007 = vmatpush2.bf16.msra.mxu0 0
  %2008 = vmatprep.subr.bf16.mxu0 0
  %2009 = vmatpush2.bf16.msra.mxu0 0
  %2010 = vmatprep.subr.bf16.mxu0 0
  %2011 = vmatpush2.bf16.msra.mxu0 0
  %2012 = vmatprep.subr.bf16.mxu0 0
  %2013 = vmatpush2.bf16.msra.mxu0 0
  %2014 = vmatprep.subr.bf16.mxu0 0
  %2015 = vmatpush2.bf16.msra.mxu0 0
  %2016 = vmatprep.subr.bf16.mxu0 0
  %2017 = vmatpush2.bf16.msra.mxu0 0
  %2018 = vmatprep.mubr.bf16.mxu0 0
  %2019 = vmatmul.mubr.bf16.gmra.mxu0 %v1938
  %v2020 = vpop.f32.mrf.mxu0
  %v2021 = vadd.f32 0.0, %v2020
  %v2022 = vpop.f32.mrf.mxu0
  %v2023 = vadd.f32 0.0, %v2022
  %v2024 = vpop.f32.mrf.mxu0
  %v2025 = vpop.f32.mrf.mxu0
  %2026 = vdwg.mxu0
  %v2027 = vadd.f32 %v1941, %v1980
  %v2028 = vadd.f32 %v1942, %v1982
  %v2029 = vadd.f32 %v1943, %v2021
  %v2030 = vadd.f32 %v1944, %v2023
  %s2031 = scalar_lea.vmem [#allocation3], 128
  %v2032 = vld [vmem:[%s2031] sm:$0xff]
  %v2033 = vld [vmem:[%s2031 + $0x8] sm:$0xff]
  %v2034 = vld [vmem:[%s2031 + $0x10] sm:$0xff]
  %v2035 = vld [vmem:[%s2031 + $0x18] sm:$0xff]
  %2036 = vmatprep.subr.bf16.mxu0 %v1294
  %2037 = vmatpush1.bf16.msra.mxu0 %v1293
  %2038 = vmatprep.subr.bf16.mxu0 %v1290
  %2039 = vmatpush1.bf16.msra.mxu0 %v1289
  %2040 = vmatprep.subr.bf16.mxu0 %v1286
  %2041 = vmatpush1.bf16.msra.mxu0 %v1285
  %2042 = vmatprep.subr.bf16.mxu0 %v1282
  %2043 = vmatpush1.bf16.msra.mxu0 %v1281
  %2044 = vmatprep.subr.bf16.mxu0 %v1278
  %2045 = vmatpush1.bf16.msra.mxu0 %v1277
  %2046 = vmatprep.subr.bf16.mxu0 %v1274
  %2047 = vmatpush1.bf16.msra.mxu0 %v1273
  %2048 = vmatprep.subr.bf16.mxu0 %v1270
  %2049 = vmatpush1.bf16.msra.mxu0 %v1269
  %2050 = vmatprep.subr.bf16.mxu0 %v1266
  %2051 = vmatpush1.bf16.msra.mxu0 %v1265
  %2052 = vmatprep.subr.bf16.mxu0 0
  %2053 = vmatpush2.bf16.msra.mxu0 0
  %2054 = vmatprep.subr.bf16.mxu0 0
  %2055 = vmatpush2.bf16.msra.mxu0 0
  %2056 = vmatprep.subr.bf16.mxu0 0
  %2057 = vmatpush2.bf16.msra.mxu0 0
  %2058 = vmatprep.subr.bf16.mxu0 0
  %2059 = vmatpush2.bf16.msra.mxu0 0
  %2060 = vmatprep.subr.bf16.mxu0 0
  %2061 = vmatpush2.bf16.msra.mxu0 0
  %2062 = vmatprep.subr.bf16.mxu0 0
  %2063 = vmatpush2.bf16.msra.mxu0 0
  %2064 = vmatprep.subr.bf16.mxu0 0
  %2065 = vmatpush2.bf16.msra.mxu0 0
  %2066 = vmatprep.subr.bf16.mxu0 0
  %2067 = vmatpush2.bf16.msra.mxu0 0
  %2068 = vmatprep.mubr.bf16.mxu0 0
  %2069 = vmatmul.mubr.bf16.gmra.mxu0 %v1939
  %v2070 = vpop.f32.mrf.mxu0
  %v2071 = vadd.f32 0.0, %v2070
  %v2072 = vpop.f32.mrf.mxu0
  %v2073 = vadd.f32 0.0, %v2072
  %v2074 = vpop.f32.mrf.mxu0
  %v2075 = vpop.f32.mrf.mxu0
  %2076 = vdwg.mxu0
  %2077 = vmatprep.subr.bf16.mxu0 %v1296
  %2078 = vmatpush1.bf16.msra.mxu0 %v1295
  %2079 = vmatprep.subr.bf16.mxu0 %v1292
  %2080 = vmatpush1.bf16.msra.mxu0 %v1291
  %2081 = vmatprep.subr.bf16.mxu0 %v1288
  %2082 = vmatpush1.bf16.msra.mxu0 %v1287
  %2083 = vmatprep.subr.bf16.mxu0 %v1284
  %2084 = vmatpush1.bf16.msra.mxu0 %v1283
  %2085 = vmatprep.subr.bf16.mxu0 %v1280
  %2086 = vmatpush1.bf16.msra.mxu0 %v1279
  %2087 = vmatprep.subr.bf16.mxu0 %v1276
  %2088 = vmatpush1.bf16.msra.mxu0 %v1275
  %2089 = vmatprep.subr.bf16.mxu0 %v1272
  %2090 = vmatpush1.bf16.msra.mxu0 %v1271
  %2091 = vmatprep.subr.bf16.mxu0 %v1268
  %2092 = vmatpush1.bf16.msra.mxu0 %v1267
  %2093 = vmatprep.subr.bf16.mxu0 0
  %2094 = vmatpush2.bf16.msra.mxu0 0
  %2095 = vmatprep.subr.bf16.mxu0 0
  %2096 = vmatpush2.bf16.msra.mxu0 0
  %2097 = vmatprep.subr.bf16.mxu0 0
  %2098 = vmatpush2.bf16.msra.mxu0 0
  %2099 = vmatprep.subr.bf16.mxu0 0
  %2100 = vmatpush2.bf16.msra.mxu0 0
  %2101 = vmatprep.subr.bf16.mxu0 0
  %2102 = vmatpush2.bf16.msra.mxu0 0
  %2103 = vmatprep.subr.bf16.mxu0 0
  %2104 = vmatpush2.bf16.msra.mxu0 0
  %2105 = vmatprep.subr.bf16.mxu0 0
  %2106 = vmatpush2.bf16.msra.mxu0 0
  %2107 = vmatprep.subr.bf16.mxu0 0
  %2108 = vmatpush2.bf16.msra.mxu0 0
  %2109 = vmatprep.mubr.bf16.mxu0 0
  %2110 = vmatmul.mubr.bf16.gmra.mxu0 %v1939
  %v2111 = vpop.f32.mrf.mxu0
  %v2112 = vadd.f32 0.0, %v2111
  %v2113 = vpop.f32.mrf.mxu0
  %v2114 = vadd.f32 0.0, %v2113
  %v2115 = vpop.f32.mrf.mxu0
  %v2116 = vpop.f32.mrf.mxu0
  %2117 = vdwg.mxu0
  %v2118 = vadd.f32 %v2032, %v2071
  %v2119 = vadd.f32 %v2033, %v2073
  %v2120 = vadd.f32 %v2034, %v2112
  %v2121 = vadd.f32 %v2035, %v2114
  %v2122 = vxor.u32 %v2027, 2147483648
  %v2123 = vmul.f32 %v2122, 1.442695
  %v2124 = vpow.pop %v2123
  %v2125 = vadd.f32 %v2124, 1.0
  %v2126 = vrcp.pop %v2125
  %v2127 = vmul.f32 1.0, %v2126
  %v2128 = vxor.u32 %v2028, 2147483648
  %v2129 = vmul.f32 %v2128, 1.442695
  %v2130 = vpow.pop %v2129
  %v2131 = vadd.f32 %v2130, 1.0
  %v2132 = vrcp.pop %v2131
  %v2133 = vmul.f32 1.0, %v2132
  %v2134 = vtanh.pop %v2029
  %v2135 = vxor.u32 %v2030, 2147483648
  %v2136 = vmul.f32 %v2135, 1.442695
  %v2137 = vpow.pop %v2136
  %v2138 = vadd.f32 %v2137, 1.0
  %v2139 = vrcp.pop %v2138
  %v2140 = vmul.f32 1.0, %v2139
  %v2141 = vxor.u32 %v2118, 2147483648
  %v2142 = vmul.f32 %v2141, 1.442695
  %v2143 = vpow.pop %v2142
  %v2144 = vadd.f32 %v2143, 1.0
  %v2145 = vrcp.pop %v2144
  %v2146 = vmul.f32 1.0, %v2145
  %v2147 = vxor.u32 %v2119, 2147483648
  %v2148 = vmul.f32 %v2147, 1.442695
  %v2149 = vpow.pop %v2148
  %v2150 = vadd.f32 %v2149, 1.0
  %v2151 = vrcp.pop %v2150
  %v2152 = vmul.f32 1.0, %v2151
  %v2153 = vtanh.pop %v2120
  %v2154 = vxor.u32 %v2121, 2147483648
  %v2155 = vmul.f32 %v2154, 1.442695
  %v2156 = vpow.pop %v2155
  %v2157 = vadd.f32 %v2156, 1.0
  %v2158 = vrcp.pop %v2157
  %v2159 = vmul.f32 1.0, %v2158
  %v2160 = vmul.f32 %v2133, %v1926
  %v2161 = vmul.f32 %v2127, %v2134
  %v2162 = vadd.f32 %v2160, %v2161
  %v2163 = vmul.f32 %v2152, %v1929
  %v2164 = vmul.f32 %v2146, %v2153
  %v2165 = vadd.f32 %v2163, %v2164
  %v2166 = vtanh.pop %v2162
  %v2167 = vmul.f32 %v2140, %v2166
  %v2168 = vtanh.pop %v2165
  %v2169 = vmul.f32 %v2159, %v2168
  %s2170 = scalar_lea.vmem [#allocation4], 24
  %2171 = vst [vmem:[%s2170] sm:$0xff] %v2167
  %s2172 = scalar_lea.vmem [#allocation5], 32
  %2173 = vst [vmem:[%s2172] sm:$0xff] %v2169
  %v2174 = vpack.c.bf16 %v2167, %v2167
  %v2175 = vpack.c.bf16 %v2169, %v2169
  %s2176 = scalar_lea.vmem [#allocation2], 128
  %v2177 = vld [vmem:[%s2176] sm:$0xff]
  %v2178 = vld [vmem:[%s2176 + $0x8] sm:$0xff]
  %v2179 = vld [vmem:[%s2176 + $0x10] sm:$0xff]
  %v2180 = vld [vmem:[%s2176 + $0x18] sm:$0xff]
  %2181 = vmatprep.subr.bf16.mxu0 %v1043
  %2182 = vmatpush1.bf16.msra.mxu0 %v1042
  %2183 = vmatprep.subr.bf16.mxu0 %v1039
  %2184 = vmatpush1.bf16.msra.mxu0 %v1038
  %2185 = vmatprep.subr.bf16.mxu0 %v1035
  %2186 = vmatpush1.bf16.msra.mxu0 %v1034
  %2187 = vmatprep.subr.bf16.mxu0 %v1031
  %2188 = vmatpush1.bf16.msra.mxu0 %v1030
  %2189 = vmatprep.subr.bf16.mxu0 %v1027
  %2190 = vmatpush1.bf16.msra.mxu0 %v1026
  %2191 = vmatprep.subr.bf16.mxu0 %v1023
  %2192 = vmatpush1.bf16.msra.mxu0 %v1022
  %2193 = vmatprep.subr.bf16.mxu0 %v1019
  %2194 = vmatpush1.bf16.msra.mxu0 %v1018
  %2195 = vmatprep.subr.bf16.mxu0 %v1015
  %2196 = vmatpush1.bf16.msra.mxu0 %v1014
  %2197 = vmatprep.subr.bf16.mxu0 0
  %2198 = vmatpush2.bf16.msra.mxu0 0
  %2199 = vmatprep.subr.bf16.mxu0 0
  %2200 = vmatpush2.bf16.msra.mxu0 0
  %2201 = vmatprep.subr.bf16.mxu0 0
  %2202 = vmatpush2.bf16.msra.mxu0 0
  %2203 = vmatprep.subr.bf16.mxu0 0
  %2204 = vmatpush2.bf16.msra.mxu0 0
  %2205 = vmatprep.subr.bf16.mxu0 0
  %2206 = vmatpush2.bf16.msra.mxu0 0
  %2207 = vmatprep.subr.bf16.mxu0 0
  %2208 = vmatpush2.bf16.msra.mxu0 0
  %2209 = vmatprep.subr.bf16.mxu0 0
  %2210 = vmatpush2.bf16.msra.mxu0 0
  %2211 = vmatprep.subr.bf16.mxu0 0
  %2212 = vmatpush2.bf16.msra.mxu0 0
  %2213 = vmatprep.mubr.bf16.mxu0 0
  %2214 = vmatmul.mubr.bf16.gmra.mxu0 %v2174
  %v2215 = vpop.f32.mrf.mxu0
  %v2216 = vadd.f32 0.0, %v2215
  %v2217 = vpop.f32.mrf.mxu0
  %v2218 = vadd.f32 0.0, %v2217
  %v2219 = vpop.f32.mrf.mxu0
  %v2220 = vpop.f32.mrf.mxu0
  %2221 = vdwg.mxu0
  %2222 = vmatprep.subr.bf16.mxu0 %v1045
  %2223 = vmatpush1.bf16.msra.mxu0 %v1044
  %2224 = vmatprep.subr.bf16.mxu0 %v1041
  %2225 = vmatpush1.bf16.msra.mxu0 %v1040
  %2226 = vmatprep.subr.bf16.mxu0 %v1037
  %2227 = vmatpush1.bf16.msra.mxu0 %v1036
  %2228 = vmatprep.subr.bf16.mxu0 %v1033
  %2229 = vmatpush1.bf16.msra.mxu0 %v1032
  %2230 = vmatprep.subr.bf16.mxu0 %v1029
  %2231 = vmatpush1.bf16.msra.mxu0 %v1028
  %2232 = vmatprep.subr.bf16.mxu0 %v1025
  %2233 = vmatpush1.bf16.msra.mxu0 %v1024
  %2234 = vmatprep.subr.bf16.mxu0 %v1021
  %2235 = vmatpush1.bf16.msra.mxu0 %v1020
  %2236 = vmatprep.subr.bf16.mxu0 %v1017
  %2237 = vmatpush1.bf16.msra.mxu0 %v1016
  %2238 = vmatprep.subr.bf16.mxu0 0
  %2239 = vmatpush2.bf16.msra.mxu0 0
  %2240 = vmatprep.subr.bf16.mxu0 0
  %2241 = vmatpush2.bf16.msra.mxu0 0
  %2242 = vmatprep.subr.bf16.mxu0 0
  %2243 = vmatpush2.bf16.msra.mxu0 0
  %2244 = vmatprep.subr.bf16.mxu0 0
  %2245 = vmatpush2.bf16.msra.mxu0 0
  %2246 = vmatprep.subr.bf16.mxu0 0
  %2247 = vmatpush2.bf16.msra.mxu0 0
  %2248 = vmatprep.subr.bf16.mxu0 0
  %2249 = vmatpush2.bf16.msra.mxu0 0
  %2250 = vmatprep.subr.bf16.mxu0 0
  %2251 = vmatpush2.bf16.msra.mxu0 0
  %2252 = vmatprep.subr.bf16.mxu0 0
  %2253 = vmatpush2.bf16.msra.mxu0 0
  %2254 = vmatprep.mubr.bf16.mxu0 0
  %2255 = vmatmul.mubr.bf16.gmra.mxu0 %v2174
  %v2256 = vpop.f32.mrf.mxu0
  %v2257 = vadd.f32 0.0, %v2256
  %v2258 = vpop.f32.mrf.mxu0
  %v2259 = vadd.f32 0.0, %v2258
  %v2260 = vpop.f32.mrf.mxu0
  %v2261 = vpop.f32.mrf.mxu0
  %2262 = vdwg.mxu0
  %v2263 = vadd.f32 %v2177, %v2216
  %v2264 = vadd.f32 %v2178, %v2218
  %v2265 = vadd.f32 %v2179, %v2257
  %v2266 = vadd.f32 %v2180, %v2259
  %s2267 = scalar_lea.vmem [#allocation3], 96
  %v2268 = vld [vmem:[%s2267] sm:$0xff]
  %v2269 = vld [vmem:[%s2267 + $0x8] sm:$0xff]
  %v2270 = vld [vmem:[%s2267 + $0x10] sm:$0xff]
  %v2271 = vld [vmem:[%s2267 + $0x18] sm:$0xff]
  %2272 = vmatprep.subr.bf16.mxu0 %v1294
  %2273 = vmatpush1.bf16.msra.mxu0 %v1293
  %2274 = vmatprep.subr.bf16.mxu0 %v1290
  %2275 = vmatpush1.bf16.msra.mxu0 %v1289
  %2276 = vmatprep.subr.bf16.mxu0 %v1286
  %2277 = vmatpush1.bf16.msra.mxu0 %v1285
  %2278 = vmatprep.subr.bf16.mxu0 %v1282
  %2279 = vmatpush1.bf16.msra.mxu0 %v1281
  %2280 = vmatprep.subr.bf16.mxu0 %v1278
  %2281 = vmatpush1.bf16.msra.mxu0 %v1277
  %2282 = vmatprep.subr.bf16.mxu0 %v1274
  %2283 = vmatpush1.bf16.msra.mxu0 %v1273
  %2284 = vmatprep.subr.bf16.mxu0 %v1270
  %2285 = vmatpush1.bf16.msra.mxu0 %v1269
  %2286 = vmatprep.subr.bf16.mxu0 %v1266
  %2287 = vmatpush1.bf16.msra.mxu0 %v1265
  %2288 = vmatprep.subr.bf16.mxu0 0
  %2289 = vmatpush2.bf16.msra.mxu0 0
  %2290 = vmatprep.subr.bf16.mxu0 0
  %2291 = vmatpush2.bf16.msra.mxu0 0
  %2292 = vmatprep.subr.bf16.mxu0 0
  %2293 = vmatpush2.bf16.msra.mxu0 0
  %2294 = vmatprep.subr.bf16.mxu0 0
  %2295 = vmatpush2.bf16.msra.mxu0 0
  %2296 = vmatprep.subr.bf16.mxu0 0
  %2297 = vmatpush2.bf16.msra.mxu0 0
  %2298 = vmatprep.subr.bf16.mxu0 0
  %2299 = vmatpush2.bf16.msra.mxu0 0
  %2300 = vmatprep.subr.bf16.mxu0 0
  %2301 = vmatpush2.bf16.msra.mxu0 0
  %2302 = vmatprep.subr.bf16.mxu0 0
  %2303 = vmatpush2.bf16.msra.mxu0 0
  %2304 = vmatprep.mubr.bf16.mxu0 0
  %2305 = vmatmul.mubr.bf16.gmra.mxu0 %v2175
  %v2306 = vpop.f32.mrf.mxu0
  %v2307 = vadd.f32 0.0, %v2306
  %v2308 = vpop.f32.mrf.mxu0
  %v2309 = vadd.f32 0.0, %v2308
  %v2310 = vpop.f32.mrf.mxu0
  %v2311 = vpop.f32.mrf.mxu0
  %2312 = vdwg.mxu0
  %2313 = vmatprep.subr.bf16.mxu0 %v1296
  %2314 = vmatpush1.bf16.msra.mxu0 %v1295
  %2315 = vmatprep.subr.bf16.mxu0 %v1292
  %2316 = vmatpush1.bf16.msra.mxu0 %v1291
  %2317 = vmatprep.subr.bf16.mxu0 %v1288
  %2318 = vmatpush1.bf16.msra.mxu0 %v1287
  %2319 = vmatprep.subr.bf16.mxu0 %v1284
  %2320 = vmatpush1.bf16.msra.mxu0 %v1283
  %2321 = vmatprep.subr.bf16.mxu0 %v1280
  %2322 = vmatpush1.bf16.msra.mxu0 %v1279
  %2323 = vmatprep.subr.bf16.mxu0 %v1276
  %2324 = vmatpush1.bf16.msra.mxu0 %v1275
  %2325 = vmatprep.subr.bf16.mxu0 %v1272
  %2326 = vmatpush1.bf16.msra.mxu0 %v1271
  %2327 = vmatprep.subr.bf16.mxu0 %v1268
  %2328 = vmatpush1.bf16.msra.mxu0 %v1267
  %2329 = vmatprep.subr.bf16.mxu0 0
  %2330 = vmatpush2.bf16.msra.mxu0 0
  %2331 = vmatprep.subr.bf16.mxu0 0
  %2332 = vmatpush2.bf16.msra.mxu0 0
  %2333 = vmatprep.subr.bf16.mxu0 0
  %2334 = vmatpush2.bf16.msra.mxu0 0
  %2335 = vmatprep.subr.bf16.mxu0 0
  %2336 = vmatpush2.bf16.msra.mxu0 0
  %2337 = vmatprep.subr.bf16.mxu0 0
  %2338 = vmatpush2.bf16.msra.mxu0 0
  %2339 = vmatprep.subr.bf16.mxu0 0
  %2340 = vmatpush2.bf16.msra.mxu0 0
  %2341 = vmatprep.subr.bf16.mxu0 0
  %2342 = vmatpush2.bf16.msra.mxu0 0
  %2343 = vmatprep.subr.bf16.mxu0 0
  %2344 = vmatpush2.bf16.msra.mxu0 0
  %2345 = vmatprep.mubr.bf16.mxu0 0
  %2346 = vmatmul.mubr.bf16.gmra.mxu0 %v2175
  %v2347 = vpop.f32.mrf.mxu0
  %v2348 = vadd.f32 0.0, %v2347
  %v2349 = vpop.f32.mrf.mxu0
  %v2350 = vadd.f32 0.0, %v2349
  %v2351 = vpop.f32.mrf.mxu0
  %v2352 = vpop.f32.mrf.mxu0
  %2353 = vdwg.mxu0
  %v2354 = vadd.f32 %v2268, %v2307
  %v2355 = vadd.f32 %v2269, %v2309
  %v2356 = vadd.f32 %v2270, %v2348
  %v2357 = vadd.f32 %v2271, %v2350
  %v2358 = vxor.u32 %v2263, 2147483648
  %v2359 = vmul.f32 %v2358, 1.442695
  %v2360 = vpow.pop %v2359
  %v2361 = vadd.f32 %v2360, 1.0
  %v2362 = vrcp.pop %v2361
  %v2363 = vmul.f32 1.0, %v2362
  %v2364 = vxor.u32 %v2264, 2147483648
  %v2365 = vmul.f32 %v2364, 1.442695
  %v2366 = vpow.pop %v2365
  %v2367 = vadd.f32 %v2366, 1.0
  %v2368 = vrcp.pop %v2367
  %v2369 = vmul.f32 1.0, %v2368
  %v2370 = vtanh.pop %v2265
  %v2371 = vxor.u32 %v2266, 2147483648
  %v2372 = vmul.f32 %v2371, 1.442695
  %v2373 = vpow.pop %v2372
  %v2374 = vadd.f32 %v2373, 1.0
  %v2375 = vrcp.pop %v2374
  %v2376 = vmul.f32 1.0, %v2375
  %v2377 = vxor.u32 %v2354, 2147483648
  %v2378 = vmul.f32 %v2377, 1.442695
  %v2379 = vpow.pop %v2378
  %v2380 = vadd.f32 %v2379, 1.0
  %v2381 = vrcp.pop %v2380
  %v2382 = vmul.f32 1.0, %v2381
  %v2383 = vxor.u32 %v2355, 2147483648
  %v2384 = vmul.f32 %v2383, 1.442695
  %v2385 = vpow.pop %v2384
  %v2386 = vadd.f32 %v2385, 1.0
  %v2387 = vrcp.pop %v2386
  %v2388 = vmul.f32 1.0, %v2387
  %v2389 = vtanh.pop %v2356
  %v2390 = vxor.u32 %v2357, 2147483648
  %v2391 = vmul.f32 %v2390, 1.442695
  %v2392 = vpow.pop %v2391
  %v2393 = vadd.f32 %v2392, 1.0
  %v2394 = vrcp.pop %v2393
  %v2395 = vmul.f32 1.0, %v2394
  %v2396 = vmul.f32 %v2369, %v2162
  %v2397 = vmul.f32 %v2363, %v2370
  %v2398 = vadd.f32 %v2396, %v2397
  %v2399 = vmul.f32 %v2388, %v2165
  %v2400 = vmul.f32 %v2382, %v2389
  %v2401 = vadd.f32 %v2399, %v2400
  %v2402 = vtanh.pop %v2398
  %v2403 = vmul.f32 %v2376, %v2402
  %v2404 = vtanh.pop %v2401
  %v2405 = vmul.f32 %v2395, %v2404
  %s2406 = scalar_lea.vmem [#allocation4], 32
  %2407 = vst [vmem:[%s2406] sm:$0xff] %v2403
  %s2408 = scalar_lea.vmem [#allocation5], 24
  %2409 = vst [vmem:[%s2408] sm:$0xff] %v2405
  %v2410 = vpack.c.bf16 %v2403, %v2403
  %v2411 = vpack.c.bf16 %v2405, %v2405
  %s2412 = scalar_lea.vmem [#allocation2], 160
  %v2413 = vld [vmem:[%s2412] sm:$0xff]
  %v2414 = vld [vmem:[%s2412 + $0x8] sm:$0xff]
  %v2415 = vld [vmem:[%s2412 + $0x10] sm:$0xff]
  %v2416 = vld [vmem:[%s2412 + $0x18] sm:$0xff]
  %2417 = vmatprep.subr.bf16.mxu0 %v1043
  %2418 = vmatpush1.bf16.msra.mxu0 %v1042
  %2419 = vmatprep.subr.bf16.mxu0 %v1039
  %2420 = vmatpush1.bf16.msra.mxu0 %v1038
  %2421 = vmatprep.subr.bf16.mxu0 %v1035
  %2422 = vmatpush1.bf16.msra.mxu0 %v1034
  %2423 = vmatprep.subr.bf16.mxu0 %v1031
  %2424 = vmatpush1.bf16.msra.mxu0 %v1030
  %2425 = vmatprep.subr.bf16.mxu0 %v1027
  %2426 = vmatpush1.bf16.msra.mxu0 %v1026
  %2427 = vmatprep.subr.bf16.mxu0 %v1023
  %2428 = vmatpush1.bf16.msra.mxu0 %v1022
  %2429 = vmatprep.subr.bf16.mxu0 %v1019
  %2430 = vmatpush1.bf16.msra.mxu0 %v1018
  %2431 = vmatprep.subr.bf16.mxu0 %v1015
  %2432 = vmatpush1.bf16.msra.mxu0 %v1014
  %2433 = vmatprep.subr.bf16.mxu0 0
  %2434 = vmatpush2.bf16.msra.mxu0 0
  %2435 = vmatprep.subr.bf16.mxu0 0
  %2436 = vmatpush2.bf16.msra.mxu0 0
  %2437 = vmatprep.subr.bf16.mxu0 0
  %2438 = vmatpush2.bf16.msra.mxu0 0
  %2439 = vmatprep.subr.bf16.mxu0 0
  %2440 = vmatpush2.bf16.msra.mxu0 0
  %2441 = vmatprep.subr.bf16.mxu0 0
  %2442 = vmatpush2.bf16.msra.mxu0 0
  %2443 = vmatprep.subr.bf16.mxu0 0
  %2444 = vmatpush2.bf16.msra.mxu0 0
  %2445 = vmatprep.subr.bf16.mxu0 0
  %2446 = vmatpush2.bf16.msra.mxu0 0
  %2447 = vmatprep.subr.bf16.mxu0 0
  %2448 = vmatpush2.bf16.msra.mxu0 0
  %2449 = vmatprep.mubr.bf16.mxu0 0
  %2450 = vmatmul.mubr.bf16.gmra.mxu0 %v2410
  %v2451 = vpop.f32.mrf.mxu0
  %v2452 = vadd.f32 0.0, %v2451
  %v2453 = vpop.f32.mrf.mxu0
  %v2454 = vadd.f32 0.0, %v2453
  %v2455 = vpop.f32.mrf.mxu0
  %v2456 = vpop.f32.mrf.mxu0
  %2457 = vdwg.mxu0
  %2458 = vmatprep.subr.bf16.mxu0 %v1045
  %2459 = vmatpush1.bf16.msra.mxu0 %v1044
  %2460 = vmatprep.subr.bf16.mxu0 %v1041
  %2461 = vmatpush1.bf16.msra.mxu0 %v1040
  %2462 = vmatprep.subr.bf16.mxu0 %v1037
  %2463 = vmatpush1.bf16.msra.mxu0 %v1036
  %2464 = vmatprep.subr.bf16.mxu0 %v1033
  %2465 = vmatpush1.bf16.msra.mxu0 %v1032
  %2466 = vmatprep.subr.bf16.mxu0 %v1029
  %2467 = vmatpush1.bf16.msra.mxu0 %v1028
  %2468 = vmatprep.subr.bf16.mxu0 %v1025
  %2469 = vmatpush1.bf16.msra.mxu0 %v1024
  %2470 = vmatprep.subr.bf16.mxu0 %v1021
  %2471 = vmatpush1.bf16.msra.mxu0 %v1020
  %2472 = vmatprep.subr.bf16.mxu0 %v1017
  %2473 = vmatpush1.bf16.msra.mxu0 %v1016
  %2474 = vmatprep.subr.bf16.mxu0 0
  %2475 = vmatpush2.bf16.msra.mxu0 0
  %2476 = vmatprep.subr.bf16.mxu0 0
  %2477 = vmatpush2.bf16.msra.mxu0 0
  %2478 = vmatprep.subr.bf16.mxu0 0
  %2479 = vmatpush2.bf16.msra.mxu0 0
  %2480 = vmatprep.subr.bf16.mxu0 0
  %2481 = vmatpush2.bf16.msra.mxu0 0
  %2482 = vmatprep.subr.bf16.mxu0 0
  %2483 = vmatpush2.bf16.msra.mxu0 0
  %2484 = vmatprep.subr.bf16.mxu0 0
  %2485 = vmatpush2.bf16.msra.mxu0 0
  %2486 = vmatprep.subr.bf16.mxu0 0
  %2487 = vmatpush2.bf16.msra.mxu0 0
  %2488 = vmatprep.subr.bf16.mxu0 0
  %2489 = vmatpush2.bf16.msra.mxu0 0
  %2490 = vmatprep.mubr.bf16.mxu0 0
  %2491 = vmatmul.mubr.bf16.gmra.mxu0 %v2410
  %v2492 = vpop.f32.mrf.mxu0
  %v2493 = vadd.f32 0.0, %v2492
  %v2494 = vpop.f32.mrf.mxu0
  %v2495 = vadd.f32 0.0, %v2494
  %v2496 = vpop.f32.mrf.mxu0
  %v2497 = vpop.f32.mrf.mxu0
  %2498 = vdwg.mxu0
  %v2499 = vadd.f32 %v2413, %v2452
  %v2500 = vadd.f32 %v2414, %v2454
  %v2501 = vadd.f32 %v2415, %v2493
  %v2502 = vadd.f32 %v2416, %v2495
  %s2503 = scalar_lea.vmem [#allocation3], 64
  %v2504 = vld [vmem:[%s2503] sm:$0xff]
  %v2505 = vld [vmem:[%s2503 + $0x8] sm:$0xff]
  %v2506 = vld [vmem:[%s2503 + $0x10] sm:$0xff]
  %v2507 = vld [vmem:[%s2503 + $0x18] sm:$0xff]
  %2508 = vmatprep.subr.bf16.mxu0 %v1294
  %2509 = vmatpush1.bf16.msra.mxu0 %v1293
  %2510 = vmatprep.subr.bf16.mxu0 %v1290
  %2511 = vmatpush1.bf16.msra.mxu0 %v1289
  %2512 = vmatprep.subr.bf16.mxu0 %v1286
  %2513 = vmatpush1.bf16.msra.mxu0 %v1285
  %2514 = vmatprep.subr.bf16.mxu0 %v1282
  %2515 = vmatpush1.bf16.msra.mxu0 %v1281
  %2516 = vmatprep.subr.bf16.mxu0 %v1278
  %2517 = vmatpush1.bf16.msra.mxu0 %v1277
  %2518 = vmatprep.subr.bf16.mxu0 %v1274
  %2519 = vmatpush1.bf16.msra.mxu0 %v1273
  %2520 = vmatprep.subr.bf16.mxu0 %v1270
  %2521 = vmatpush1.bf16.msra.mxu0 %v1269
  %2522 = vmatprep.subr.bf16.mxu0 %v1266
  %2523 = vmatpush1.bf16.msra.mxu0 %v1265
  %2524 = vmatprep.subr.bf16.mxu0 0
  %2525 = vmatpush2.bf16.msra.mxu0 0
  %2526 = vmatprep.subr.bf16.mxu0 0
  %2527 = vmatpush2.bf16.msra.mxu0 0
  %2528 = vmatprep.subr.bf16.mxu0 0
  %2529 = vmatpush2.bf16.msra.mxu0 0
  %2530 = vmatprep.subr.bf16.mxu0 0
  %2531 = vmatpush2.bf16.msra.mxu0 0
  %2532 = vmatprep.subr.bf16.mxu0 0
  %2533 = vmatpush2.bf16.msra.mxu0 0
  %2534 = vmatprep.subr.bf16.mxu0 0
  %2535 = vmatpush2.bf16.msra.mxu0 0
  %2536 = vmatprep.subr.bf16.mxu0 0
  %2537 = vmatpush2.bf16.msra.mxu0 0
  %2538 = vmatprep.subr.bf16.mxu0 0
  %2539 = vmatpush2.bf16.msra.mxu0 0
  %2540 = vmatprep.mubr.bf16.mxu0 0
  %2541 = vmatmul.mubr.bf16.gmra.mxu0 %v2411
  %v2542 = vpop.f32.mrf.mxu0
  %v2543 = vadd.f32 0.0, %v2542
  %v2544 = vpop.f32.mrf.mxu0
  %v2545 = vadd.f32 0.0, %v2544
  %v2546 = vpop.f32.mrf.mxu0
  %v2547 = vpop.f32.mrf.mxu0
  %2548 = vdwg.mxu0
  %2549 = vmatprep.subr.bf16.mxu0 %v1296
  %2550 = vmatpush1.bf16.msra.mxu0 %v1295
  %2551 = vmatprep.subr.bf16.mxu0 %v1292
  %2552 = vmatpush1.bf16.msra.mxu0 %v1291
  %2553 = vmatprep.subr.bf16.mxu0 %v1288
  %2554 = vmatpush1.bf16.msra.mxu0 %v1287
  %2555 = vmatprep.subr.bf16.mxu0 %v1284
  %2556 = vmatpush1.bf16.msra.mxu0 %v1283
  %2557 = vmatprep.subr.bf16.mxu0 %v1280
  %2558 = vmatpush1.bf16.msra.mxu0 %v1279
  %2559 = vmatprep.subr.bf16.mxu0 %v1276
  %2560 = vmatpush1.bf16.msra.mxu0 %v1275
  %2561 = vmatprep.subr.bf16.mxu0 %v1272
  %2562 = vmatpush1.bf16.msra.mxu0 %v1271
  %2563 = vmatprep.subr.bf16.mxu0 %v1268
  %2564 = vmatpush1.bf16.msra.mxu0 %v1267
  %2565 = vmatprep.subr.bf16.mxu0 0
  %2566 = vmatpush2.bf16.msra.mxu0 0
  %2567 = vmatprep.subr.bf16.mxu0 0
  %2568 = vmatpush2.bf16.msra.mxu0 0
  %2569 = vmatprep.subr.bf16.mxu0 0
  %2570 = vmatpush2.bf16.msra.mxu0 0
  %2571 = vmatprep.subr.bf16.mxu0 0
  %2572 = vmatpush2.bf16.msra.mxu0 0
  %2573 = vmatprep.subr.bf16.mxu0 0
  %2574 = vmatpush2.bf16.msra.mxu0 0
  %2575 = vmatprep.subr.bf16.mxu0 0
  %2576 = vmatpush2.bf16.msra.mxu0 0
  %2577 = vmatprep.subr.bf16.mxu0 0
  %2578 = vmatpush2.bf16.msra.mxu0 0
  %2579 = vmatprep.subr.bf16.mxu0 0
  %2580 = vmatpush2.bf16.msra.mxu0 0
  %2581 = vmatprep.mubr.bf16.mxu0 0
  %2582 = vmatmul.mubr.bf16.gmra.mxu0 %v2411
  %v2583 = vpop.f32.mrf.mxu0
  %v2584 = vadd.f32 0.0, %v2583
  %v2585 = vpop.f32.mrf.mxu0
  %v2586 = vadd.f32 0.0, %v2585
  %v2587 = vpop.f32.mrf.mxu0
  %v2588 = vpop.f32.mrf.mxu0
  %2589 = vdwg.mxu0
  %v2590 = vadd.f32 %v2504, %v2543
  %v2591 = vadd.f32 %v2505, %v2545
  %v2592 = vadd.f32 %v2506, %v2584
  %v2593 = vadd.f32 %v2507, %v2586
  %v2594 = vxor.u32 %v2499, 2147483648
  %v2595 = vmul.f32 %v2594, 1.442695
  %v2596 = vpow.pop %v2595
  %v2597 = vadd.f32 %v2596, 1.0
  %v2598 = vrcp.pop %v2597
  %v2599 = vmul.f32 1.0, %v2598
  %v2600 = vxor.u32 %v2500, 2147483648
  %v2601 = vmul.f32 %v2600, 1.442695
  %v2602 = vpow.pop %v2601
  %v2603 = vadd.f32 %v2602, 1.0
  %v2604 = vrcp.pop %v2603
  %v2605 = vmul.f32 1.0, %v2604
  %v2606 = vtanh.pop %v2501
  %v2607 = vxor.u32 %v2502, 2147483648
  %v2608 = vmul.f32 %v2607, 1.442695
  %v2609 = vpow.pop %v2608
  %v2610 = vadd.f32 %v2609, 1.0
  %v2611 = vrcp.pop %v2610
  %v2612 = vmul.f32 1.0, %v2611
  %v2613 = vxor.u32 %v2590, 2147483648
  %v2614 = vmul.f32 %v2613, 1.442695
  %v2615 = vpow.pop %v2614
  %v2616 = vadd.f32 %v2615, 1.0
  %v2617 = vrcp.pop %v2616
  %v2618 = vmul.f32 1.0, %v2617
  %v2619 = vxor.u32 %v2591, 2147483648
  %v2620 = vmul.f32 %v2619, 1.442695
  %v2621 = vpow.pop %v2620
  %v2622 = vadd.f32 %v2621, 1.0
  %v2623 = vrcp.pop %v2622
  %v2624 = vmul.f32 1.0, %v2623
  %v2625 = vtanh.pop %v2592
  %v2626 = vxor.u32 %v2593, 2147483648
  %v2627 = vmul.f32 %v2626, 1.442695
  %v2628 = vpow.pop %v2627
  %v2629 = vadd.f32 %v2628, 1.0
  %v2630 = vrcp.pop %v2629
  %v2631 = vmul.f32 1.0, %v2630
  %v2632 = vmul.f32 %v2605, %v2398
  %v2633 = vmul.f32 %v2599, %v2606
  %v2634 = vadd.f32 %v2632, %v2633
  %v2635 = vmul.f32 %v2624, %v2401
  %v2636 = vmul.f32 %v2618, %v2625
  %v2637 = vadd.f32 %v2635, %v2636
  %v2638 = vtanh.pop %v2634
  %v2639 = vmul.f32 %v2612, %v2638
  %v2640 = vtanh.pop %v2637
  %v2641 = vmul.f32 %v2631, %v2640
  %s2642 = scalar_lea.vmem [#allocation4], 40
  %2643 = vst [vmem:[%s2642] sm:$0xff] %v2639
  %s2644 = scalar_lea.vmem [#allocation5], 16
  %2645 = vst [vmem:[%s2644] sm:$0xff] %v2641
  %v2646 = vpack.c.bf16 %v2639, %v2639
  %v2647 = vpack.c.bf16 %v2641, %v2641
  %s2648 = scalar_lea.vmem [#allocation2], 192
  %v2649 = vld [vmem:[%s2648] sm:$0xff]
  %v2650 = vld [vmem:[%s2648 + $0x8] sm:$0xff]
  %v2651 = vld [vmem:[%s2648 + $0x10] sm:$0xff]
  %v2652 = vld [vmem:[%s2648 + $0x18] sm:$0xff]
  %2653 = vmatprep.subr.bf16.mxu0 %v1043
  %2654 = vmatpush1.bf16.msra.mxu0 %v1042
  %2655 = vmatprep.subr.bf16.mxu0 %v1039
  %2656 = vmatpush1.bf16.msra.mxu0 %v1038
  %2657 = vmatprep.subr.bf16.mxu0 %v1035
  %2658 = vmatpush1.bf16.msra.mxu0 %v1034
  %2659 = vmatprep.subr.bf16.mxu0 %v1031
  %2660 = vmatpush1.bf16.msra.mxu0 %v1030
  %2661 = vmatprep.subr.bf16.mxu0 %v1027
  %2662 = vmatpush1.bf16.msra.mxu0 %v1026
  %2663 = vmatprep.subr.bf16.mxu0 %v1023
  %2664 = vmatpush1.bf16.msra.mxu0 %v1022
  %2665 = vmatprep.subr.bf16.mxu0 %v1019
  %2666 = vmatpush1.bf16.msra.mxu0 %v1018
  %2667 = vmatprep.subr.bf16.mxu0 %v1015
  %2668 = vmatpush1.bf16.msra.mxu0 %v1014
  %2669 = vmatprep.subr.bf16.mxu0 0
  %2670 = vmatpush2.bf16.msra.mxu0 0
  %2671 = vmatprep.subr.bf16.mxu0 0
  %2672 = vmatpush2.bf16.msra.mxu0 0
  %2673 = vmatprep.subr.bf16.mxu0 0
  %2674 = vmatpush2.bf16.msra.mxu0 0
  %2675 = vmatprep.subr.bf16.mxu0 0
  %2676 = vmatpush2.bf16.msra.mxu0 0
  %2677 = vmatprep.subr.bf16.mxu0 0
  %2678 = vmatpush2.bf16.msra.mxu0 0
  %2679 = vmatprep.subr.bf16.mxu0 0
  %2680 = vmatpush2.bf16.msra.mxu0 0
  %2681 = vmatprep.subr.bf16.mxu0 0
  %2682 = vmatpush2.bf16.msra.mxu0 0
  %2683 = vmatprep.subr.bf16.mxu0 0
  %2684 = vmatpush2.bf16.msra.mxu0 0
  %2685 = vmatprep.mubr.bf16.mxu0 0
  %2686 = vmatmul.mubr.bf16.gmra.mxu0 %v2646
  %v2687 = vpop.f32.mrf.mxu0
  %v2688 = vadd.f32 0.0, %v2687
  %v2689 = vpop.f32.mrf.mxu0
  %v2690 = vadd.f32 0.0, %v2689
  %v2691 = vpop.f32.mrf.mxu0
  %v2692 = vpop.f32.mrf.mxu0
  %2693 = vdwg.mxu0
  %2694 = vmatprep.subr.bf16.mxu0 %v1045
  %2695 = vmatpush1.bf16.msra.mxu0 %v1044
  %2696 = vmatprep.subr.bf16.mxu0 %v1041
  %2697 = vmatpush1.bf16.msra.mxu0 %v1040
  %2698 = vmatprep.subr.bf16.mxu0 %v1037
  %2699 = vmatpush1.bf16.msra.mxu0 %v1036
  %2700 = vmatprep.subr.bf16.mxu0 %v1033
  %2701 = vmatpush1.bf16.msra.mxu0 %v1032
  %2702 = vmatprep.subr.bf16.mxu0 %v1029
  %2703 = vmatpush1.bf16.msra.mxu0 %v1028
  %2704 = vmatprep.subr.bf16.mxu0 %v1025
  %2705 = vmatpush1.bf16.msra.mxu0 %v1024
  %2706 = vmatprep.subr.bf16.mxu0 %v1021
  %2707 = vmatpush1.bf16.msra.mxu0 %v1020
  %2708 = vmatprep.subr.bf16.mxu0 %v1017
  %2709 = vmatpush1.bf16.msra.mxu0 %v1016
  %2710 = vmatprep.subr.bf16.mxu0 0
  %2711 = vmatpush2.bf16.msra.mxu0 0
  %2712 = vmatprep.subr.bf16.mxu0 0
  %2713 = vmatpush2.bf16.msra.mxu0 0
  %2714 = vmatprep.subr.bf16.mxu0 0
  %2715 = vmatpush2.bf16.msra.mxu0 0
  %2716 = vmatprep.subr.bf16.mxu0 0
  %2717 = vmatpush2.bf16.msra.mxu0 0
  %2718 = vmatprep.subr.bf16.mxu0 0
  %2719 = vmatpush2.bf16.msra.mxu0 0
  %2720 = vmatprep.subr.bf16.mxu0 0
  %2721 = vmatpush2.bf16.msra.mxu0 0
  %2722 = vmatprep.subr.bf16.mxu0 0
  %2723 = vmatpush2.bf16.msra.mxu0 0
  %2724 = vmatprep.subr.bf16.mxu0 0
  %2725 = vmatpush2.bf16.msra.mxu0 0
  %2726 = vmatprep.mubr.bf16.mxu0 0
  %2727 = vmatmul.mubr.bf16.gmra.mxu0 %v2646
  %v2728 = vpop.f32.mrf.mxu0
  %v2729 = vadd.f32 0.0, %v2728
  %v2730 = vpop.f32.mrf.mxu0
  %v2731 = vadd.f32 0.0, %v2730
  %v2732 = vpop.f32.mrf.mxu0
  %v2733 = vpop.f32.mrf.mxu0
  %2734 = vdwg.mxu0
  %v2735 = vadd.f32 %v2649, %v2688
  %v2736 = vadd.f32 %v2650, %v2690
  %v2737 = vadd.f32 %v2651, %v2729
  %v2738 = vadd.f32 %v2652, %v2731
  %s2739 = scalar_lea.vmem [#allocation3], 32
  %v2740 = vld [vmem:[%s2739] sm:$0xff]
  %v2741 = vld [vmem:[%s2739 + $0x8] sm:$0xff]
  %v2742 = vld [vmem:[%s2739 + $0x10] sm:$0xff]
  %v2743 = vld [vmem:[%s2739 + $0x18] sm:$0xff]
  %2744 = vmatprep.subr.bf16.mxu0 %v1294
  %2745 = vmatpush1.bf16.msra.mxu0 %v1293
  %2746 = vmatprep.subr.bf16.mxu0 %v1290
  %2747 = vmatpush1.bf16.msra.mxu0 %v1289
  %2748 = vmatprep.subr.bf16.mxu0 %v1286
  %2749 = vmatpush1.bf16.msra.mxu0 %v1285
  %2750 = vmatprep.subr.bf16.mxu0 %v1282
  %2751 = vmatpush1.bf16.msra.mxu0 %v1281
  %2752 = vmatprep.subr.bf16.mxu0 %v1278
  %2753 = vmatpush1.bf16.msra.mxu0 %v1277
  %2754 = vmatprep.subr.bf16.mxu0 %v1274
  %2755 = vmatpush1.bf16.msra.mxu0 %v1273
  %2756 = vmatprep.subr.bf16.mxu0 %v1270
  %2757 = vmatpush1.bf16.msra.mxu0 %v1269
  %2758 = vmatprep.subr.bf16.mxu0 %v1266
  %2759 = vmatpush1.bf16.msra.mxu0 %v1265
  %2760 = vmatprep.subr.bf16.mxu0 0
  %2761 = vmatpush2.bf16.msra.mxu0 0
  %2762 = vmatprep.subr.bf16.mxu0 0
  %2763 = vmatpush2.bf16.msra.mxu0 0
  %2764 = vmatprep.subr.bf16.mxu0 0
  %2765 = vmatpush2.bf16.msra.mxu0 0
  %2766 = vmatprep.subr.bf16.mxu0 0
  %2767 = vmatpush2.bf16.msra.mxu0 0
  %2768 = vmatprep.subr.bf16.mxu0 0
  %2769 = vmatpush2.bf16.msra.mxu0 0
  %2770 = vmatprep.subr.bf16.mxu0 0
  %2771 = vmatpush2.bf16.msra.mxu0 0
  %2772 = vmatprep.subr.bf16.mxu0 0
  %2773 = vmatpush2.bf16.msra.mxu0 0
  %2774 = vmatprep.subr.bf16.mxu0 0
  %2775 = vmatpush2.bf16.msra.mxu0 0
  %2776 = vmatprep.mubr.bf16.mxu0 0
  %2777 = vmatmul.mubr.bf16.gmra.mxu0 %v2647
  %v2778 = vpop.f32.mrf.mxu0
  %v2779 = vadd.f32 0.0, %v2778
  %v2780 = vpop.f32.mrf.mxu0
  %v2781 = vadd.f32 0.0, %v2780
  %v2782 = vpop.f32.mrf.mxu0
  %v2783 = vpop.f32.mrf.mxu0
  %2784 = vdwg.mxu0
  %2785 = vmatprep.subr.bf16.mxu0 %v1296
  %2786 = vmatpush1.bf16.msra.mxu0 %v1295
  %2787 = vmatprep.subr.bf16.mxu0 %v1292
  %2788 = vmatpush1.bf16.msra.mxu0 %v1291
  %2789 = vmatprep.subr.bf16.mxu0 %v1288
  %2790 = vmatpush1.bf16.msra.mxu0 %v1287
  %2791 = vmatprep.subr.bf16.mxu0 %v1284
  %2792 = vmatpush1.bf16.msra.mxu0 %v1283
  %2793 = vmatprep.subr.bf16.mxu0 %v1280
  %2794 = vmatpush1.bf16.msra.mxu0 %v1279
  %2795 = vmatprep.subr.bf16.mxu0 %v1276
  %2796 = vmatpush1.bf16.msra.mxu0 %v1275
  %2797 = vmatprep.subr.bf16.mxu0 %v1272
  %2798 = vmatpush1.bf16.msra.mxu0 %v1271
  %2799 = vmatprep.subr.bf16.mxu0 %v1268
  %2800 = vmatpush1.bf16.msra.mxu0 %v1267
  %2801 = vmatprep.subr.bf16.mxu0 0
  %2802 = vmatpush2.bf16.msra.mxu0 0
  %2803 = vmatprep.subr.bf16.mxu0 0
  %2804 = vmatpush2.bf16.msra.mxu0 0
  %2805 = vmatprep.subr.bf16.mxu0 0
  %2806 = vmatpush2.bf16.msra.mxu0 0
  %2807 = vmatprep.subr.bf16.mxu0 0
  %2808 = vmatpush2.bf16.msra.mxu0 0
  %2809 = vmatprep.subr.bf16.mxu0 0
  %2810 = vmatpush2.bf16.msra.mxu0 0
  %2811 = vmatprep.subr.bf16.mxu0 0
  %2812 = vmatpush2.bf16.msra.mxu0 0
  %2813 = vmatprep.subr.bf16.mxu0 0
  %2814 = vmatpush2.bf16.msra.mxu0 0
  %2815 = vmatprep.subr.bf16.mxu0 0
  %2816 = vmatpush2.bf16.msra.mxu0 0
  %2817 = vmatprep.mubr.bf16.mxu0 0
  %2818 = vmatmul.mubr.bf16.gmra.mxu0 %v2647
  %v2819 = vpop.f32.mrf.mxu0
  %v2820 = vadd.f32 0.0, %v2819
  %v2821 = vpop.f32.mrf.mxu0
  %v2822 = vadd.f32 0.0, %v2821
  %v2823 = vpop.f32.mrf.mxu0
  %v2824 = vpop.f32.mrf.mxu0
  %2825 = vdwg.mxu0
  %v2826 = vadd.f32 %v2740, %v2779
  %v2827 = vadd.f32 %v2741, %v2781
  %v2828 = vadd.f32 %v2742, %v2820
  %v2829 = vadd.f32 %v2743, %v2822
  %v2830 = vxor.u32 %v2735, 2147483648
  %v2831 = vmul.f32 %v2830, 1.442695
  %v2832 = vpow.pop %v2831
  %v2833 = vadd.f32 %v2832, 1.0
  %v2834 = vrcp.pop %v2833
  %v2835 = vmul.f32 1.0, %v2834
  %v2836 = vxor.u32 %v2736, 2147483648
  %v2837 = vmul.f32 %v2836, 1.442695
  %v2838 = vpow.pop %v2837
  %v2839 = vadd.f32 %v2838, 1.0
  %v2840 = vrcp.pop %v2839
  %v2841 = vmul.f32 1.0, %v2840
  %v2842 = vtanh.pop %v2737
  %v2843 = vxor.u32 %v2738, 2147483648
  %v2844 = vmul.f32 %v2843, 1.442695
  %v2845 = vpow.pop %v2844
  %v2846 = vadd.f32 %v2845, 1.0
  %v2847 = vrcp.pop %v2846
  %v2848 = vmul.f32 1.0, %v2847
  %v2849 = vxor.u32 %v2826, 2147483648
  %v2850 = vmul.f32 %v2849, 1.442695
  %v2851 = vpow.pop %v2850
  %v2852 = vadd.f32 %v2851, 1.0
  %v2853 = vrcp.pop %v2852
  %v2854 = vmul.f32 1.0, %v2853
  %v2855 = vxor.u32 %v2827, 2147483648
  %v2856 = vmul.f32 %v2855, 1.442695
  %v2857 = vpow.pop %v2856
  %v2858 = vadd.f32 %v2857, 1.0
  %v2859 = vrcp.pop %v2858
  %v2860 = vmul.f32 1.0, %v2859
  %v2861 = vtanh.pop %v2828
  %v2862 = vxor.u32 %v2829, 2147483648
  %v2863 = vmul.f32 %v2862, 1.442695
  %v2864 = vpow.pop %v2863
  %v2865 = vadd.f32 %v2864, 1.0
  %v2866 = vrcp.pop %v2865
  %v2867 = vmul.f32 1.0, %v2866
  %v2868 = vmul.f32 %v2841, %v2634
  %v2869 = vmul.f32 %v2835, %v2842
  %v2870 = vadd.f32 %v2868, %v2869
  %v2871 = vmul.f32 %v2860, %v2637
  %v2872 = vmul.f32 %v2854, %v2861
  %v2873 = vadd.f32 %v2871, %v2872
  %v2874 = vtanh.pop %v2870
  %v2875 = vmul.f32 %v2848, %v2874
  %v2876 = vtanh.pop %v2873
  %v2877 = vmul.f32 %v2867, %v2876
  %s2878 = scalar_lea.vmem [#allocation4], 48
  %2879 = vst [vmem:[%s2878] sm:$0xff] %v2875
  %s2880 = scalar_lea.vmem [#allocation5], 8
  %2881 = vst [vmem:[%s2880] sm:$0xff] %v2877
  %v2882 = vpack.c.bf16 %v2875, %v2875
  %v2883 = vpack.c.bf16 %v2877, %v2877
  %s2884 = scalar_lea.vmem [#allocation2], 224
  %v2885 = vld [vmem:[%s2884] sm:$0xff]
  %v2886 = vld [vmem:[%s2884 + $0x8] sm:$0xff]
  %v2887 = vld [vmem:[%s2884 + $0x10] sm:$0xff]
  %v2888 = vld [vmem:[%s2884 + $0x18] sm:$0xff]
  %2889 = vmatprep.subr.bf16.mxu0 %v1043
  %2890 = vmatpush1.bf16.msra.mxu0 %v1042
  %2891 = vmatprep.subr.bf16.mxu0 %v1039
  %2892 = vmatpush1.bf16.msra.mxu0 %v1038
  %2893 = vmatprep.subr.bf16.mxu0 %v1035
  %2894 = vmatpush1.bf16.msra.mxu0 %v1034
  %2895 = vmatprep.subr.bf16.mxu0 %v1031
  %2896 = vmatpush1.bf16.msra.mxu0 %v1030
  %2897 = vmatprep.subr.bf16.mxu0 %v1027
  %2898 = vmatpush1.bf16.msra.mxu0 %v1026
  %2899 = vmatprep.subr.bf16.mxu0 %v1023
  %2900 = vmatpush1.bf16.msra.mxu0 %v1022
  %2901 = vmatprep.subr.bf16.mxu0 %v1019
  %2902 = vmatpush1.bf16.msra.mxu0 %v1018
  %2903 = vmatprep.subr.bf16.mxu0 %v1015
  %2904 = vmatpush1.bf16.msra.mxu0 %v1014
  %2905 = vmatprep.subr.bf16.mxu0 0
  %2906 = vmatpush2.bf16.msra.mxu0 0
  %2907 = vmatprep.subr.bf16.mxu0 0
  %2908 = vmatpush2.bf16.msra.mxu0 0
  %2909 = vmatprep.subr.bf16.mxu0 0
  %2910 = vmatpush2.bf16.msra.mxu0 0
  %2911 = vmatprep.subr.bf16.mxu0 0
  %2912 = vmatpush2.bf16.msra.mxu0 0
  %2913 = vmatprep.subr.bf16.mxu0 0
  %2914 = vmatpush2.bf16.msra.mxu0 0
  %2915 = vmatprep.subr.bf16.mxu0 0
  %2916 = vmatpush2.bf16.msra.mxu0 0
  %2917 = vmatprep.subr.bf16.mxu0 0
  %2918 = vmatpush2.bf16.msra.mxu0 0
  %2919 = vmatprep.subr.bf16.mxu0 0
  %2920 = vmatpush2.bf16.msra.mxu0 0
  %2921 = vmatprep.mubr.bf16.mxu0 0
  %2922 = vmatmul.mubr.bf16.gmra.mxu0 %v2882
  %v2923 = vpop.f32.mrf.mxu0
  %v2924 = vadd.f32 0.0, %v2923
  %v2925 = vpop.f32.mrf.mxu0
  %v2926 = vadd.f32 0.0, %v2925
  %v2927 = vpop.f32.mrf.mxu0
  %v2928 = vpop.f32.mrf.mxu0
  %2929 = vdwg.mxu0
  %2930 = vmatprep.subr.bf16.mxu0 %v1045
  %2931 = vmatpush1.bf16.msra.mxu0 %v1044
  %2932 = vmatprep.subr.bf16.mxu0 %v1041
  %2933 = vmatpush1.bf16.msra.mxu0 %v1040
  %2934 = vmatprep.subr.bf16.mxu0 %v1037
  %2935 = vmatpush1.bf16.msra.mxu0 %v1036
  %2936 = vmatprep.subr.bf16.mxu0 %v1033
  %2937 = vmatpush1.bf16.msra.mxu0 %v1032
  %2938 = vmatprep.subr.bf16.mxu0 %v1029
  %2939 = vmatpush1.bf16.msra.mxu0 %v1028
  %2940 = vmatprep.subr.bf16.mxu0 %v1025
  %2941 = vmatpush1.bf16.msra.mxu0 %v1024
  %2942 = vmatprep.subr.bf16.mxu0 %v1021
  %2943 = vmatpush1.bf16.msra.mxu0 %v1020
  %2944 = vmatprep.subr.bf16.mxu0 %v1017
  %2945 = vmatpush1.bf16.msra.mxu0 %v1016
  %2946 = vmatprep.subr.bf16.mxu0 0
  %2947 = vmatpush2.bf16.msra.mxu0 0
  %2948 = vmatprep.subr.bf16.mxu0 0
  %2949 = vmatpush2.bf16.msra.mxu0 0
  %2950 = vmatprep.subr.bf16.mxu0 0
  %2951 = vmatpush2.bf16.msra.mxu0 0
  %2952 = vmatprep.subr.bf16.mxu0 0
  %2953 = vmatpush2.bf16.msra.mxu0 0
  %2954 = vmatprep.subr.bf16.mxu0 0
  %2955 = vmatpush2.bf16.msra.mxu0 0
  %2956 = vmatprep.subr.bf16.mxu0 0
  %2957 = vmatpush2.bf16.msra.mxu0 0
  %2958 = vmatprep.subr.bf16.mxu0 0
  %2959 = vmatpush2.bf16.msra.mxu0 0
  %2960 = vmatprep.subr.bf16.mxu0 0
  %2961 = vmatpush2.bf16.msra.mxu0 0
  %2962 = vmatprep.mubr.bf16.mxu0 0
  %2963 = vmatmul.mubr.bf16.gmra.mxu0 %v2882
  %v2964 = vpop.f32.mrf.mxu0
  %v2965 = vadd.f32 0.0, %v2964
  %v2966 = vpop.f32.mrf.mxu0
  %v2967 = vadd.f32 0.0, %v2966
  %v2968 = vpop.f32.mrf.mxu0
  %v2969 = vpop.f32.mrf.mxu0
  %2970 = vdwg.mxu0
  %v2971 = vadd.f32 %v2885, %v2924
  %v2972 = vadd.f32 %v2886, %v2926
  %v2973 = vadd.f32 %v2887, %v2965
  %v2974 = vadd.f32 %v2888, %v2967
  %v2975 = vld [vmem:[#allocation3] sm:$0xff]
  %v2976 = vld [vmem:[#allocation3 + $0x8] sm:$0xff]
  %v2977 = vld [vmem:[#allocation3 + $0x10] sm:$0xff]
  %v2978 = vld [vmem:[#allocation3 + $0x18] sm:$0xff]
  %2979 = vmatprep.subr.bf16.mxu0 %v1294
  %2980 = vmatpush1.bf16.msra.mxu0 %v1293
  %2981 = vmatprep.subr.bf16.mxu0 %v1290
  %2982 = vmatpush1.bf16.msra.mxu0 %v1289
  %2983 = vmatprep.subr.bf16.mxu0 %v1286
  %2984 = vmatpush1.bf16.msra.mxu0 %v1285
  %2985 = vmatprep.subr.bf16.mxu0 %v1282
  %2986 = vmatpush1.bf16.msra.mxu0 %v1281
  %2987 = vmatprep.subr.bf16.mxu0 %v1278
  %2988 = vmatpush1.bf16.msra.mxu0 %v1277
  %2989 = vmatprep.subr.bf16.mxu0 %v1274
  %2990 = vmatpush1.bf16.msra.mxu0 %v1273
  %2991 = vmatprep.subr.bf16.mxu0 %v1270
  %2992 = vmatpush1.bf16.msra.mxu0 %v1269
  %2993 = vmatprep.subr.bf16.mxu0 %v1266
  %2994 = vmatpush1.bf16.msra.mxu0 %v1265
  %2995 = vmatprep.subr.bf16.mxu0 0
  %2996 = vmatpush2.bf16.msra.mxu0 0
  %2997 = vmatprep.subr.bf16.mxu0 0
  %2998 = vmatpush2.bf16.msra.mxu0 0
  %2999 = vmatprep.subr.bf16.mxu0 0
  %3000 = vmatpush2.bf16.msra.mxu0 0
  %3001 = vmatprep.subr.bf16.mxu0 0
  %3002 = vmatpush2.bf16.msra.mxu0 0
  %3003 = vmatprep.subr.bf16.mxu0 0
  %3004 = vmatpush2.bf16.msra.mxu0 0
  %3005 = vmatprep.subr.bf16.mxu0 0
  %3006 = vmatpush2.bf16.msra.mxu0 0
  %3007 = vmatprep.subr.bf16.mxu0 0
  %3008 = vmatpush2.bf16.msra.mxu0 0
  %3009 = vmatprep.subr.bf16.mxu0 0
  %3010 = vmatpush2.bf16.msra.mxu0 0
  %3011 = vmatprep.mubr.bf16.mxu0 0
  %3012 = vmatmul.mubr.bf16.gmra.mxu0 %v2883
  %v3013 = vpop.f32.mrf.mxu0
  %v3014 = vadd.f32 0.0, %v3013
  %v3015 = vpop.f32.mrf.mxu0
  %v3016 = vadd.f32 0.0, %v3015
  %v3017 = vpop.f32.mrf.mxu0
  %v3018 = vpop.f32.mrf.mxu0
  %3019 = vdwg.mxu0
  %3020 = vmatprep.subr.bf16.mxu0 %v1296
  %3021 = vmatpush1.bf16.msra.mxu0 %v1295
  %3022 = vmatprep.subr.bf16.mxu0 %v1292
  %3023 = vmatpush1.bf16.msra.mxu0 %v1291
  %3024 = vmatprep.subr.bf16.mxu0 %v1288
  %3025 = vmatpush1.bf16.msra.mxu0 %v1287
  %3026 = vmatprep.subr.bf16.mxu0 %v1284
  %3027 = vmatpush1.bf16.msra.mxu0 %v1283
  %3028 = vmatprep.subr.bf16.mxu0 %v1280
  %3029 = vmatpush1.bf16.msra.mxu0 %v1279
  %3030 = vmatprep.subr.bf16.mxu0 %v1276
  %3031 = vmatpush1.bf16.msra.mxu0 %v1275
  %3032 = vmatprep.subr.bf16.mxu0 %v1272
  %3033 = vmatpush1.bf16.msra.mxu0 %v1271
  %3034 = vmatprep.subr.bf16.mxu0 %v1268
  %3035 = vmatpush1.bf16.msra.mxu0 %v1267
  %3036 = vmatprep.subr.bf16.mxu0 0
  %3037 = vmatpush2.bf16.msra.mxu0 0
  %3038 = vmatprep.subr.bf16.mxu0 0
  %3039 = vmatpush2.bf16.msra.mxu0 0
  %3040 = vmatprep.subr.bf16.mxu0 0
  %3041 = vmatpush2.bf16.msra.mxu0 0
  %3042 = vmatprep.subr.bf16.mxu0 0
  %3043 = vmatpush2.bf16.msra.mxu0 0
  %3044 = vmatprep.subr.bf16.mxu0 0
  %3045 = vmatpush2.bf16.msra.mxu0 0
  %3046 = vmatprep.subr.bf16.mxu0 0
  %3047 = vmatpush2.bf16.msra.mxu0 0
  %3048 = vmatprep.subr.bf16.mxu0 0
  %3049 = vmatpush2.bf16.msra.mxu0 0
  %3050 = vmatprep.subr.bf16.mxu0 0
  %3051 = vmatpush2.bf16.msra.mxu0 0
  %3052 = vmatprep.mubr.bf16.mxu0 0
  %3053 = vmatmul.mubr.bf16.gmra.mxu0 %v2883
  %v3054 = vpop.f32.mrf.mxu0
  %v3055 = vadd.f32 0.0, %v3054
  %v3056 = vpop.f32.mrf.mxu0
  %v3057 = vadd.f32 0.0, %v3056
  %v3058 = vpop.f32.mrf.mxu0
  %v3059 = vpop.f32.mrf.mxu0
  %3060 = vdwg.mxu0
  %v3061 = vadd.f32 %v2975, %v3014
  %v3062 = vadd.f32 %v2976, %v3016
  %v3063 = vadd.f32 %v2977, %v3055
  %v3064 = vadd.f32 %v2978, %v3057
  %v3065 = vxor.u32 %v2971, 2147483648
  %v3066 = vmul.f32 %v3065, 1.442695
  %v3067 = vpow.pop %v3066
  %v3068 = vadd.f32 %v3067, 1.0
  %v3069 = vrcp.pop %v3068
  %v3070 = vmul.f32 1.0, %v3069
  %v3071 = vxor.u32 %v2972, 2147483648
  %v3072 = vmul.f32 %v3071, 1.442695
  %v3073 = vpow.pop %v3072
  %v3074 = vadd.f32 %v3073, 1.0
  %v3075 = vrcp.pop %v3074
  %v3076 = vmul.f32 1.0, %v3075
  %v3077 = vtanh.pop %v2973
  %v3078 = vxor.u32 %v2974, 2147483648
  %v3079 = vmul.f32 %v3078, 1.442695
  %v3080 = vpow.pop %v3079
  %v3081 = vadd.f32 %v3080, 1.0
  %v3082 = vrcp.pop %v3081
  %v3083 = vmul.f32 1.0, %v3082
  %v3084 = vxor.u32 %v3061, 2147483648
  %v3085 = vmul.f32 %v3084, 1.442695
  %v3086 = vpow.pop %v3085
  %v3087 = vadd.f32 %v3086, 1.0
  %v3088 = vrcp.pop %v3087
  %v3089 = vmul.f32 1.0, %v3088
  %v3090 = vxor.u32 %v3062, 2147483648
  %v3091 = vmul.f32 %v3090, 1.442695
  %v3092 = vpow.pop %v3091
  %v3093 = vadd.f32 %v3092, 1.0
  %v3094 = vrcp.pop %v3093
  %v3095 = vmul.f32 1.0, %v3094
  %v3096 = vtanh.pop %v3063
  %v3097 = vxor.u32 %v3064, 2147483648
  %v3098 = vmul.f32 %v3097, 1.442695
  %v3099 = vpow.pop %v3098
  %v3100 = vadd.f32 %v3099, 1.0
  %v3101 = vrcp.pop %v3100
  %v3102 = vmul.f32 1.0, %v3101
  %v3103 = vmul.f32 %v3076, %v2870
  %v3104 = vmul.f32 %v3070, %v3077
  %v3105 = vadd.f32 %v3103, %v3104
  %v3106 = vmul.f32 %v3095, %v2873
  %v3107 = vmul.f32 %v3089, %v3096
  %v3108 = vadd.f32 %v3106, %v3107
  %v3109 = vtanh.pop %v3105
  %v3110 = vmul.f32 %v3083, %v3109
  %v3111 = vtanh.pop %v3108
  %v3112 = vmul.f32 %v3102, %v3111
  %s3113 = scalar_lea.vmem [#allocation4], 56
  %3114 = vst [vmem:[%s3113] sm:$0xff] %v3110
  %3115 = vst [vmem:[#allocation5] sm:$0xff] %v3112
  %v3116 = vld [vmem:[#allocation4] sm:$0xff]
  %v3117 = vld [vmem:[#allocation4 + $0x8] sm:$0xff]
  %v3118 = vld [vmem:[#allocation4 + $0x10] sm:$0xff]
  %v3119 = vld [vmem:[#allocation4 + $0x18] sm:$0xff]
  %v3120 = vld [vmem:[#allocation4 + $0x20] sm:$0xff]
  %v3121 = vld [vmem:[#allocation4 + $0x28] sm:$0xff]
  %v3122 = vld [vmem:[#allocation4 + $0x30] sm:$0xff]
  %v3123 = vld [vmem:[#allocation4 + $0x38] sm:$0xff]
  %v3124 = vld [vmem:[#allocation5] sm:$0xff]
  %v3125 = vld [vmem:[#allocation5 + $0x8] sm:$0xff]
  %v3126 = vld [vmem:[#allocation5 + $0x10] sm:$0xff]
  %v3127 = vld [vmem:[#allocation5 + $0x18] sm:$0xff]
  %v3128 = vld [vmem:[#allocation5 + $0x20] sm:$0xff]
  %v3129 = vld [vmem:[#allocation5 + $0x28] sm:$0xff]
  %v3130 = vld [vmem:[#allocation5 + $0x30] sm:$0xff]
  %v3131 = vld [vmem:[#allocation5 + $0x38] sm:$0xff]
  %v3132 = vpack.c.bf16 %v3117, %v3116
  %v3133 = vpack.c.bf16 %v3125, %v3124
  %v3134 = vpack.c.bf16 %v3119, %v3118
  %v3135 = vpack.c.bf16 %v3127, %v3126
  %v3136 = vpack.c.bf16 %v3121, %v3120
  %v3137 = vpack.c.bf16 %v3129, %v3128
  %v3138 = vpack.c.bf16 %v3123, %v3122
  %v3139 = vpack.c.bf16 %v3131, %v3130
  %v3140 = vld [vmem:[%s5] sm:$0xf]
  %v3141 = vld [vmem:[%s5 + $0x4] sm:$0xf]
  %v3142 = vld [vmem:[%s5 + $0x8] sm:$0xf]
  %v3143 = vld [vmem:[%s5 + $0xc] sm:$0xf]
  %v3144 = vld [vmem:[%s5 + $0x10] sm:$0xf]
  %v3145 = vld [vmem:[%s5 + $0x14] sm:$0xf]
  %v3146 = vld [vmem:[%s5 + $0x18] sm:$0xf]
  %v3147 = vld [vmem:[%s5 + $0x1c] sm:$0xf]
  %v3148 = vld [vmem:[%s5 + $0x20] sm:$0xf]
  %v3149 = vld [vmem:[%s5 + $0x24] sm:$0xf]
  %v3150 = vld [vmem:[%s5 + $0x28] sm:$0xf]
  %v3151 = vld [vmem:[%s5 + $0x2c] sm:$0xf]
  %v3152 = vld [vmem:[%s5 + $0x30] sm:$0xf]
  %v3153 = vld [vmem:[%s5 + $0x34] sm:$0xf]
  %v3154 = vld [vmem:[%s5 + $0x38] sm:$0xf]
  %v3155 = vld [vmem:[%s5 + $0x3c] sm:$0xf]
  %v3156 = vld [vmem:[%s5 + $0x40] sm:$0xf]
  %v3157 = vld [vmem:[%s5 + $0x44] sm:$0xf]
  %v3158 = vld [vmem:[%s5 + $0x48] sm:$0xf]
  %v3159 = vld [vmem:[%s5 + $0x4c] sm:$0xf]
  %v3160 = vld [vmem:[%s5 + $0x50] sm:$0xf]
  %v3161 = vld [vmem:[%s5 + $0x54] sm:$0xf]
  %v3162 = vld [vmem:[%s5 + $0x58] sm:$0xf]
  %v3163 = vld [vmem:[%s5 + $0x5c] sm:$0xf]
  %v3164 = vld [vmem:[%s5 + $0x60] sm:$0xf]
  %v3165 = vld [vmem:[%s5 + $0x64] sm:$0xf]
  %v3166 = vld [vmem:[%s5 + $0x68] sm:$0xf]
  %v3167 = vld [vmem:[%s5 + $0x6c] sm:$0xf]
  %v3168 = vld [vmem:[%s5 + $0x70] sm:$0xf]
  %v3169 = vld [vmem:[%s5 + $0x74] sm:$0xf]
  %v3170 = vld [vmem:[%s5 + $0x78] sm:$0xf]
  %v3171 = vld [vmem:[%s5 + $0x7c] sm:$0xf]
  %v3204 = vunpack.c.l.b16 %v3140
  %v3205 = vunpack.c.l.b16 %v3141
  %v3206 = vunpack.c.l.b16 %v3142
  %v3207 = vunpack.c.l.b16 %v3143
  %v3208 = vunpack.c.l.b16 %v3144
  %v3209 = vunpack.c.l.b16 %v3145
  %v3210 = vunpack.c.l.b16 %v3146
  %v3211 = vunpack.c.l.b16 %v3147
  %v3212 = vunpack.c.l.b16 %v3148
  %v3213 = vunpack.c.l.b16 %v3149
  %v3214 = vunpack.c.l.b16 %v3150
  %v3215 = vunpack.c.l.b16 %v3151
  %v3216 = vunpack.c.l.b16 %v3152
  %v3217 = vunpack.c.l.b16 %v3153
  %v3218 = vunpack.c.l.b16 %v3154
  %v3219 = vunpack.c.l.b16 %v3155
  %v3220 = vunpack.c.l.b16 %v3156
  %v3221 = vunpack.c.l.b16 %v3157
  %v3222 = vunpack.c.l.b16 %v3158
  %v3223 = vunpack.c.l.b16 %v3159
  %v3224 = vunpack.c.l.b16 %v3160
  %v3225 = vunpack.c.l.b16 %v3161
  %v3226 = vunpack.c.l.b16 %v3162
  %v3227 = vunpack.c.l.b16 %v3163
  %v3228 = vunpack.c.l.b16 %v3164
  %v3229 = vunpack.c.l.b16 %v3165
  %v3230 = vunpack.c.l.b16 %v3166
  %v3231 = vunpack.c.l.b16 %v3167
  %v3232 = vunpack.c.l.b16 %v3168
  %v3233 = vunpack.c.l.b16 %v3169
  %v3234 = vunpack.c.l.b16 %v3170
  %v3235 = vunpack.c.l.b16 %v3171
  %v3236 = vpack.c.b16 %v3205, %v3204
  %v3237 = vpack.c.b16 %v3207, %v3206
  %v3238 = vpack.c.b16 %v3209, %v3208
  %v3239 = vpack.c.b16 %v3211, %v3210
  %v3240 = vpack.c.b16 %v3213, %v3212
  %v3241 = vpack.c.b16 %v3215, %v3214
  %v3242 = vpack.c.b16 %v3217, %v3216
  %v3243 = vpack.c.b16 %v3219, %v3218
  %v3244 = vpack.c.b16 %v3221, %v3220
  %v3245 = vpack.c.b16 %v3223, %v3222
  %v3246 = vpack.c.b16 %v3225, %v3224
  %v3247 = vpack.c.b16 %v3227, %v3226
  %v3248 = vpack.c.b16 %v3229, %v3228
  %v3249 = vpack.c.b16 %v3231, %v3230
  %v3250 = vpack.c.b16 %v3233, %v3232
  %v3251 = vpack.c.b16 %v3235, %v3234
  %3268 = vmatprep.subr.bf16.mxu0 0
  %3269 = vmatpush1.bf16.msra.mxu0 %v3243
  %3270 = vmatprep.subr.bf16.mxu0 0
  %3271 = vmatpush1.bf16.msra.mxu0 %v3242
  %3272 = vmatprep.subr.bf16.mxu0 0
  %3273 = vmatpush1.bf16.msra.mxu0 %v3241
  %3274 = vmatprep.subr.bf16.mxu0 0
  %3275 = vmatpush1.bf16.msra.mxu0 %v3240
  %3276 = vmatprep.subr.bf16.mxu0 0
  %3277 = vmatpush1.bf16.msra.mxu0 %v3239
  %3278 = vmatprep.subr.bf16.mxu0 0
  %3279 = vmatpush1.bf16.msra.mxu0 %v3238
  %3280 = vmatprep.subr.bf16.mxu0 0
  %3281 = vmatpush1.bf16.msra.mxu0 %v3237
  %3282 = vmatprep.subr.bf16.mxu0 0
  %3283 = vmatpush1.bf16.msra.mxu0 %v3236
  %3284 = vmatprep.subr.bf16.mxu0 0
  %3285 = vmatpush2.bf16.msra.mxu0 %v3251
  %3286 = vmatprep.subr.bf16.mxu0 0
  %3287 = vmatpush2.bf16.msra.mxu0 %v3250
  %3288 = vmatprep.subr.bf16.mxu0 0
  %3289 = vmatpush2.bf16.msra.mxu0 %v3249
  %3290 = vmatprep.subr.bf16.mxu0 0
  %3291 = vmatpush2.bf16.msra.mxu0 %v3248
  %3292 = vmatprep.subr.bf16.mxu0 0
  %3293 = vmatpush2.bf16.msra.mxu0 %v3247
  %3294 = vmatprep.subr.bf16.mxu0 0
  %3295 = vmatpush2.bf16.msra.mxu0 %v3246
  %3296 = vmatprep.subr.bf16.mxu0 0
  %3297 = vmatpush2.bf16.msra.mxu0 %v3245
  %3298 = vmatprep.subr.bf16.mxu0 0
  %3299 = vmatpush2.bf16.msra.mxu0 %v3244
  %3300 = vmatprep.mubr.bf16.mxu0 %v3133
  %3301 = vmatmul.mubr.bf16.gmra.mxu0 %v3132
  %v3302 = vpop.f32.mrf.mxu0
  %v3303 = vadd.f32 0.0, %v3302
  %v3304 = vpop.f32.mrf.mxu0
  %v3305 = vpop.f32.mrf.mxu0
  %v3306 = vadd.f32 0.0, %v3305
  %v3307 = vpop.f32.mrf.mxu0
  %3308 = vmatprep.mubr.bf16.mxu0 %v3135
  %3309 = vmatmul.mubr.bf16.gmra.mxu0 %v3134
  %v3310 = vpop.f32.mrf.mxu0
  %v3311 = vadd.f32 0.0, %v3310
  %v3312 = vpop.f32.mrf.mxu0
  %v3313 = vpop.f32.mrf.mxu0
  %v3314 = vadd.f32 0.0, %v3313
  %v3315 = vpop.f32.mrf.mxu0
  %3316 = vmatprep.mubr.bf16.mxu0 %v3137
  %3317 = vmatmul.mubr.bf16.gmra.mxu0 %v3136
  %v3318 = vpop.f32.mrf.mxu0
  %v3319 = vadd.f32 0.0, %v3318
  %v3320 = vpop.f32.mrf.mxu0
  %v3321 = vpop.f32.mrf.mxu0
  %v3322 = vadd.f32 0.0, %v3321
  %v3323 = vpop.f32.mrf.mxu0
  %3324 = vmatprep.mubr.bf16.mxu0 %v3139
  %3325 = vmatmul.mubr.bf16.gmra.mxu0 %v3138
  %v3326 = vpop.f32.mrf.mxu0
  %v3327 = vadd.f32 0.0, %v3326
  %v3328 = vpop.f32.mrf.mxu0
  %v3329 = vpop.f32.mrf.mxu0
  %v3330 = vadd.f32 0.0, %v3329
  %v3331 = vpop.f32.mrf.mxu0
  %3332 = vdwg.mxu0
  %vm3333 = vcmask 7168
  %v3334 = vsel %vm3333, %v3303, -inf
  %v3335 = vsel %vm3333, %v3306, -inf
  %v3336 = vsel %vm3333, %v3311, -inf
  %v3337 = vsel %vm3333, %v3314, -inf
  %v3338 = vsel %vm3333, %v3319, -inf
  %v3339 = vmax.f32 %v3334, %v3338
  %v3340 = vsel %vm3333, %v3322, -inf
  %v3341 = vmax.f32 %v3335, %v3340
  %v3342 = vsel %vm3333, %v3327, -inf
  %v3343 = vmax.f32 %v3336, %v3342
  %v3344 = vsel %vm3333, %v3330, -inf
  %v3345 = vmax.f32 %v3337, %v3344
  %v3346 = vmax.f32 %v3339, %v3341
  %v3347 = vmax.f32 %v3343, %v3345
  %v3348 = vmax.f32 %v3346, %v3347
  %v3349 = vsub.f32 %v3303, %v3348
  %v3350 = vsub.f32 %v3306, %v3348
  %v3351 = vsub.f32 %v3311, %v3348
  %v3352 = vsub.f32 %v3314, %v3348
  %v3353 = vsub.f32 %v3319, %v3348
  %v3354 = vsub.f32 %v3322, %v3348
  %v3355 = vsub.f32 %v3327, %v3348
  %v3356 = vsub.f32 %v3330, %v3348
  %v3357 = vmul.f32 %v3349, 1.442695
  %v3358 = vpow.pop %v3357
  %v3359 = vmul.f32 %v3350, 1.442695
  %v3360 = vpow.pop %v3359
  %v3361 = vmul.f32 %v3351, 1.442695
  %v3362 = vpow.pop %v3361
  %v3363 = vmul.f32 %v3352, 1.442695
  %v3364 = vpow.pop %v3363
  %v3365 = vmul.f32 %v3353, 1.442695
  %v3366 = vpow.pop %v3365
  %v3367 = vmul.f32 %v3354, 1.442695
  %v3368 = vpow.pop %v3367
  %v3369 = vmul.f32 %v3355, 1.442695
  %v3370 = vpow.pop %v3369
  %v3371 = vmul.f32 %v3356, 1.442695
  %v3372 = vpow.pop %v3371
  %v3373 = vsel %vm3333, %v3358, 0.0
  %v3374 = vsel %vm3333, %v3360, 0.0
  %v3375 = vadd.f32 %v3373, %v3374
  %v3376 = vsel %vm3333, %v3362, 0.0
  %v3377 = vadd.f32 %v3375, %v3376
  %v3378 = vsel %vm3333, %v3364, 0.0
  %v3379 = vadd.f32 %v3377, %v3378
  %v3380 = vsel %vm3333, %v3366, 0.0
  %v3381 = vadd.f32 %v3379, %v3380
  %v3382 = vsel %vm3333, %v3368, 0.0
  %v3383 = vadd.f32 %v3381, %v3382
  %v3384 = vsel %vm3333, %v3370, 0.0
  %v3385 = vadd.f32 %v3383, %v3384
  %v3386 = vsel %vm3333, %v3372, 0.0
  %v3387 = vadd.f32 %v3385, %v3386
  %v3388 = vrcp.pop %v3387
  %v3389 = vmul.f32 %v3358, %v3388
  %v3390 = vmul.f32 %v3360, %v3388
  %v3391 = vmul.f32 %v3362, %v3388
  %v3392 = vmul.f32 %v3364, %v3388
  %v3393 = vmul.f32 %v3366, %v3388
  %v3394 = vmul.f32 %v3368, %v3388
  %v3395 = vmul.f32 %v3370, %v3388
  %v3396 = vmul.f32 %v3372, %v3388
  %3398 = vset.pattern.permute.xlu0 0
  %3399 = vperm.xlu0 %3398, %v3389
  %v3400 = vpop.permute.xlu0 %3399
  %3403 = vset.pattern.permute.xlu0 0
  %3404 = vperm.xlu0 %3403, %v3390
  %v3405 = vpop.permute.xlu0 %3404
  %3408 = vset.pattern.permute.xlu0 0
  %3409 = vperm.xlu0 %3408, %v3391
  %v3410 = vpop.permute.xlu0 %3409
  %3413 = vset.pattern.permute.xlu0 0
  %3414 = vperm.xlu0 %3413, %v3392
  %v3415 = vpop.permute.xlu0 %3414
  %3418 = vset.pattern.permute.xlu0 0
  %3419 = vperm.xlu0 %3418, %v3393
  %v3420 = vpop.permute.xlu0 %3419
  %3423 = vset.pattern.permute.xlu0 0
  %3424 = vperm.xlu0 %3423, %v3394
  %v3425 = vpop.permute.xlu0 %3424
  %3428 = vset.pattern.permute.xlu0 0
  %3429 = vperm.xlu0 %3428, %v3395
  %v3430 = vpop.permute.xlu0 %3429
  %3433 = vset.pattern.permute.xlu0 0
  %3434 = vperm.xlu0 %3433, %v3396
  %v3435 = vpop.permute.xlu0 %3434
  %v3437 = vmul.f32 %v3116, %v3400
  %v3438 = vmul.f32 %v3124, %v3400
  %v3439 = vmul.f32 %v3117, %v3405
  %v3440 = vmul.f32 %v3125, %v3405
  %v3441 = vmul.f32 %v3118, %v3410
  %v3442 = vmul.f32 %v3126, %v3410
  %v3443 = vmul.f32 %v3119, %v3415
  %v3444 = vmul.f32 %v3127, %v3415
  %v3445 = vmul.f32 %v3120, %v3420
  %v3446 = vmul.f32 %v3128, %v3420
  %v3447 = vmul.f32 %v3121, %v3425
  %v3448 = vmul.f32 %v3129, %v3425
  %v3449 = vmul.f32 %v3122, %v3430
  %v3450 = vmul.f32 %v3130, %v3430
  %v3451 = vmul.f32 %v3123, %v3435
  %v3452 = vmul.f32 %v3131, %v3435
  %v3453 = vadd.f32 %v3437, %v3439
  %v3454 = vadd.f32 %v3453, %v3441
  %v3455 = vadd.f32 %v3454, %v3443
  %v3456 = vadd.f32 %v3455, %v3445
  %v3457 = vadd.f32 %v3456, %v3447
  %v3458 = vadd.f32 %v3457, %v3449
  %v3459 = vadd.f32 %v3458, %v3451
  %v3460 = vadd.f32 %v3438, %v3440
  %v3461 = vadd.f32 %v3460, %v3442
  %v3462 = vadd.f32 %v3461, %v3444
  %v3463 = vadd.f32 %v3462, %v3446
  %v3464 = vadd.f32 %v3463, %v3448
  %v3465 = vadd.f32 %v3464, %v3450
  %v3466 = vadd.f32 %v3465, %v3452
  %v3467 = vpack.c.bf16 %v3459, %v3459
  %v3468 = vpack.c.bf16 %v3466, %v3466
  %v3469 = vld [vmem:[%s7] sm:$0xf]
  %v3470 = vld [vmem:[%s7 + $0x4] sm:$0xf]
  %v3471 = vld [vmem:[%s7 + $0x8] sm:$0xf]
  %v3472 = vld [vmem:[%s7 + $0xc] sm:$0xf]
  %v3473 = vld [vmem:[%s7 + $0x10] sm:$0xf]
  %v3474 = vld [vmem:[%s7 + $0x14] sm:$0xf]
  %v3475 = vld [vmem:[%s7 + $0x18] sm:$0xf]
  %v3476 = vld [vmem:[%s7 + $0x1c] sm:$0xf]
  %v3477 = vld [vmem:[%s7 + $0x20] sm:$0xf]
  %v3478 = vld [vmem:[%s7 + $0x24] sm:$0xf]
  %v3479 = vld [vmem:[%s7 + $0x28] sm:$0xf]
  %v3480 = vld [vmem:[%s7 + $0x2c] sm:$0xf]
  %v3481 = vld [vmem:[%s7 + $0x30] sm:$0xf]
  %v3482 = vld [vmem:[%s7 + $0x34] sm:$0xf]
  %v3483 = vld [vmem:[%s7 + $0x38] sm:$0xf]
  %v3484 = vld [vmem:[%s7 + $0x3c] sm:$0xf]
  %v3485 = vld [vmem:[%s7 + $0x40] sm:$0xf]
  %v3486 = vld [vmem:[%s7 + $0x44] sm:$0xf]
  %v3487 = vld [vmem:[%s7 + $0x48] sm:$0xf]
  %v3488 = vld [vmem:[%s7 + $0x4c] sm:$0xf]
  %v3489 = vld [vmem:[%s7 + $0x50] sm:$0xf]
  %v3490 = vld [vmem:[%s7 + $0x54] sm:$0xf]
  %v3491 = vld [vmem:[%s7 + $0x58] sm:$0xf]
  %v3492 = vld [vmem:[%s7 + $0x5c] sm:$0xf]
  %v3493 = vld [vmem:[%s7 + $0x60] sm:$0xf]
  %v3494 = vld [vmem:[%s7 + $0x64] sm:$0xf]
  %v3495 = vld [vmem:[%s7 + $0x68] sm:$0xf]
  %v3496 = vld [vmem:[%s7 + $0x6c] sm:$0xf]
  %v3497 = vld [vmem:[%s7 + $0x70] sm:$0xf]
  %v3498 = vld [vmem:[%s7 + $0x74] sm:$0xf]
  %v3499 = vld [vmem:[%s7 + $0x78] sm:$0xf]
  %v3500 = vld [vmem:[%s7 + $0x7c] sm:$0xf]
  %v3501 = vld [vmem:[%s6] sm:$0xf]
  %v3502 = vld [vmem:[%s8] sm:$0x3]
  %vm3503 = vcmask 23552
  %v3505 = vsel %vm3503, %v3501, 0
  %vm3507 = vcmask 1040384
  %vm3508 = vcmask 1041408
  %v3509 = vsel %vm3507, 4294967295, 65535
  %v3510 = vsel %vm3508, %v3509, 0
  %v3512 = vand.u32 %v3502, %v3510
  %3514 = vmatprep.subr.bf16.mxu0 0
  %3515 = vmatpush1.bf16.msra.mxu0 0
  %3516 = vmatprep.subr.bf16.mxu0 0
  %3517 = vmatpush1.bf16.msra.mxu0 0
  %3518 = vmatprep.subr.bf16.mxu0 0
  %3519 = vmatpush1.bf16.msra.mxu0 0
  %3520 = vmatprep.subr.bf16.mxu0 0
  %3521 = vmatpush1.bf16.msra.mxu0 0
  %3522 = vmatprep.subr.bf16.mxu0 0
  %3523 = vmatpush1.bf16.msra.mxu0 0
  %3524 = vmatprep.subr.bf16.mxu0 0
  %3525 = vmatpush1.bf16.msra.mxu0 0
  %3526 = vmatprep.subr.bf16.mxu0 0
  %3527 = vmatpush1.bf16.msra.mxu0 0
  %3528 = vmatprep.subr.bf16.mxu0 0
  %3529 = vmatpush1.bf16.msra.mxu0 %v3512
  %3530 = vmatprep.subr.bf16.mxu0 0
  %3531 = vmatpush2.bf16.msra.mxu0 0
  %3532 = vmatprep.subr.bf16.mxu0 0
  %3533 = vmatpush2.bf16.msra.mxu0 0
  %3534 = vmatprep.subr.bf16.mxu0 0
  %3535 = vmatpush2.bf16.msra.mxu0 0
  %3536 = vmatprep.subr.bf16.mxu0 0
  %3537 = vmatpush2.bf16.msra.mxu0 0
  %3538 = vmatprep.subr.bf16.mxu0 0
  %3539 = vmatpush2.bf16.msra.mxu0 0
  %3540 = vmatprep.subr.bf16.mxu0 0
  %3541 = vmatpush2.bf16.msra.mxu0 0
  %3542 = vmatprep.subr.bf16.mxu0 0
  %3543 = vmatpush2.bf16.msra.mxu0 0
  %3544 = vmatprep.subr.bf16.mxu0 0
  %3545 = vmatpush2.bf16.msra.mxu0 0
  %3546 = vmatprep.mubr.bf16.mxu0 0
  %3547 = vmatmul.mubr.bf16.gmra.mxu0 %v3505
  %v3548 = vpop.f32.mrf.mxu0
  %v3549 = vadd.f32 0.0, %v3548
  %v3550 = vpop.f32.mrf.mxu0
  %v3551 = vpop.f32.mrf.mxu0
  %v3552 = vpop.f32.mrf.mxu0
  %3553 = vdwg.mxu0
  %v3586 = vunpack.c.l.b16 %v3469
  %v3587 = vunpack.c.l.b16 %v3470
  %v3588 = vunpack.c.l.b16 %v3471
  %v3589 = vunpack.c.l.b16 %v3472
  %v3590 = vunpack.c.l.b16 %v3473
  %v3591 = vunpack.c.l.b16 %v3474
  %v3592 = vunpack.c.l.b16 %v3475
  %v3593 = vunpack.c.l.b16 %v3476
  %v3594 = vunpack.c.l.b16 %v3477
  %v3595 = vunpack.c.l.b16 %v3478
  %v3596 = vunpack.c.l.b16 %v3479
  %v3597 = vunpack.c.l.b16 %v3480
  %v3598 = vunpack.c.l.b16 %v3481
  %v3599 = vunpack.c.l.b16 %v3482
  %v3600 = vunpack.c.l.b16 %v3483
  %v3601 = vunpack.c.l.b16 %v3484
  %v3602 = vunpack.c.l.b16 %v3485
  %v3603 = vunpack.c.l.b16 %v3486
  %v3604 = vunpack.c.l.b16 %v3487
  %v3605 = vunpack.c.l.b16 %v3488
  %v3606 = vunpack.c.l.b16 %v3489
  %v3607 = vunpack.c.l.b16 %v3490
  %v3608 = vunpack.c.l.b16 %v3491
  %v3609 = vunpack.c.l.b16 %v3492
  %v3610 = vunpack.c.l.b16 %v3493
  %v3611 = vunpack.c.l.b16 %v3494
  %v3612 = vunpack.c.l.b16 %v3495
  %v3613 = vunpack.c.l.b16 %v3496
  %v3614 = vunpack.c.l.b16 %v3497
  %v3615 = vunpack.c.l.b16 %v3498
  %v3616 = vunpack.c.l.b16 %v3499
  %v3617 = vunpack.c.l.b16 %v3500
  %v3618 = vpack.c.b16 %v3587, %v3586
  %v3619 = vpack.c.b16 %v3589, %v3588
  %v3620 = vpack.c.b16 %v3591, %v3590
  %v3621 = vpack.c.b16 %v3593, %v3592
  %v3622 = vpack.c.b16 %v3595, %v3594
  %v3623 = vpack.c.b16 %v3597, %v3596
  %v3624 = vpack.c.b16 %v3599, %v3598
  %v3625 = vpack.c.b16 %v3601, %v3600
  %v3626 = vpack.c.b16 %v3603, %v3602
  %v3627 = vpack.c.b16 %v3605, %v3604
  %v3628 = vpack.c.b16 %v3607, %v3606
  %v3629 = vpack.c.b16 %v3609, %v3608
  %v3630 = vpack.c.b16 %v3611, %v3610
  %v3631 = vpack.c.b16 %v3613, %v3612
  %v3632 = vpack.c.b16 %v3615, %v3614
  %v3633 = vpack.c.b16 %v3617, %v3616
  %3650 = vmatprep.subr.bf16.mxu0 0
  %3651 = vmatpush1.bf16.msra.mxu0 %v3625
  %3652 = vmatprep.subr.bf16.mxu0 0
  %3653 = vmatpush1.bf16.msra.mxu0 %v3624
  %3654 = vmatprep.subr.bf16.mxu0 0
  %3655 = vmatpush1.bf16.msra.mxu0 %v3623
  %3656 = vmatprep.subr.bf16.mxu0 0
  %3657 = vmatpush1.bf16.msra.mxu0 %v3622
  %3658 = vmatprep.subr.bf16.mxu0 0
  %3659 = vmatpush1.bf16.msra.mxu0 %v3621
  %3660 = vmatprep.subr.bf16.mxu0 0
  %3661 = vmatpush1.bf16.msra.mxu0 %v3620
  %3662 = vmatprep.subr.bf16.mxu0 0
  %3663 = vmatpush1.bf16.msra.mxu0 %v3619
  %3664 = vmatprep.subr.bf16.mxu0 0
  %3665 = vmatpush1.bf16.msra.mxu0 %v3618
  %3666 = vmatprep.subr.bf16.mxu0 0
  %3667 = vmatpush2.bf16.msra.mxu0 %v3633
  %3668 = vmatprep.subr.bf16.mxu0 0
  %3669 = vmatpush2.bf16.msra.mxu0 %v3632
  %3670 = vmatprep.subr.bf16.mxu0 0
  %3671 = vmatpush2.bf16.msra.mxu0 %v3631
  %3672 = vmatprep.subr.bf16.mxu0 0
  %3673 = vmatpush2.bf16.msra.mxu0 %v3630
  %3674 = vmatprep.subr.bf16.mxu0 0
  %3675 = vmatpush2.bf16.msra.mxu0 %v3629
  %3676 = vmatprep.subr.bf16.mxu0 0
  %3677 = vmatpush2.bf16.msra.mxu0 %v3628
  %3678 = vmatprep.subr.bf16.mxu0 0
  %3679 = vmatpush2.bf16.msra.mxu0 %v3627
  %3680 = vmatprep.subr.bf16.mxu0 0
  %3681 = vmatpush2.bf16.msra.mxu0 %v3626
  %3682 = vmatprep.mubr.bf16.mxu0 %v3468
  %3683 = vmatmul.mubr.bf16.gmra.mxu0 %v3467
  %v3684 = vpop.f32.mrf.mxu0
  %v3685 = vadd.f32 %v3549, %v3684
  %v3686 = vpop.f32.mrf.mxu0
  %v3687 = vpop.f32.mrf.mxu0
  %v3688 = vpop.f32.mrf.mxu0
  %3689 = vdwg.mxu0
  %v3690 = vld [vmem:[%s9] sm:$0x1]
  %v3692 = vlaneseq
  %v3693 = vshrl.u32 %v3692, 7
  %v3694 = vsub.s32 0, %v3693
  %v3695 = vrot.slane %v3690, %v3694
  %v3697 = vadd.f32 %v3685, %v3695
  %vm3698 = vcmask 15360
  %3699 = vst.msk [vmem:[%s10] sm:$0xff] %vm3698, %v3697
  // Predicated region
  $region42: #{mri_meta_sequence_rnn_forward.3} parent=0 // pred_check
    _
  $region43: #{mri_meta_sequence_rnn_forward.3} parent=0 // pred_check_branch
    %3701 = sbr.rel (0) target = $region45
  $region44: #{mri_meta_sequence_rnn_forward.3} parent=0 // pred_region
    _
  $region45: #{mri_meta_sequence_rnn_forward.3} parent=0 // pred_fallthru
    _
  // Predicated region
  $region46: #{mri_meta_sequence_rnn_forward.3} parent=0 // pred_check
    _
  $region47: #{mri_meta_sequence_rnn_forward.3} parent=0 // pred_check_branch
    %3703 = sbr.rel (0) target = $region49
  $region48: #{mri_meta_sequence_rnn_forward.3} parent=0 // pred_region
    _
  $region49: #{mri_meta_sequence_rnn_forward.3} parent=0 // pred_fallthru
    _

// kernel: mri_meta_sequence_rnn_forward.2
$region0: #{mri_meta_sequence_rnn_forward.2}
  #allocation0 [shape = 'u32[]', space=smem, size = 0x4, offset = 0x4, fixed_abs, tag = 'smem constant byte address 0x4 - core index']
  #allocation1 [shape = 'u32[144,128]{1,0:T(1,128)}', space=vmem, size = 0x12000, scoped, tag = 'internal scratch']
  %s0 = inlined_call_operand.vmem [shape: bf16[16,256,32], index: 0, kind: input, shape index: {}]
  %s1 = inlined_call_operand.vmem [shape: bf16[32,128], index: 1, kind: input, shape index: {}]
  %s2 = inlined_call_operand.vmem [shape: f32[1,128], index: 2, kind: input, shape index: {}]
  %s3 = inlined_call_operand.vmem [shape: bf16[16,128], index: 3, kind: output, shape index: {}]
  %s4 = sld [smem:[#allocation0]]
  $region22: #{mri_meta_sequence_rnn_forward.2} parent=0
    _
  %s6 = ssub.s32 1, %s4
  %s7 = scalar_select 0, %s6, %s4
  // Predicated region
  $region2: #{mri_meta_sequence_rnn_forward.2} parent=0 // pred_check
    _
  $region3: #{mri_meta_sequence_rnn_forward.2} parent=0 // pred_check_branch
    %9 = sbr.rel (0) target = $region5
  $region4: #{mri_meta_sequence_rnn_forward.2} parent=0 // pred_region
    _
  $region5: #{mri_meta_sequence_rnn_forward.2} parent=0 // pred_fallthru
    _
  // Predicated region
  $region6: #{mri_meta_sequence_rnn_forward.2} parent=0 // pred_check
    _
  $region7: #{mri_meta_sequence_rnn_forward.2} parent=0 // pred_check_branch
    %11 = sbr.rel (0) target = $region9
  $region8: #{mri_meta_sequence_rnn_forward.2} parent=0 // pred_region
    _
  $region9: #{mri_meta_sequence_rnn_forward.2} parent=0 // pred_fallthru
    _
  // Predicated region
  $region10: #{mri_meta_sequence_rnn_forward.2} parent=0 // pred_check
    _
  $region11: #{mri_meta_sequence_rnn_forward.2} parent=0 // pred_check_branch
    %13 = sbr.rel (0) target = $region13
  $region12: #{mri_meta_sequence_rnn_forward.2} parent=0 // pred_region
    _
  $region13: #{mri_meta_sequence_rnn_forward.2} parent=0 // pred_fallthru
    _
  %v15 = vld [vmem:[%s0] sm:$0xf]
  %v16 = vld [vmem:[%s0 + $0x4] sm:$0xf]
  %v17 = vld [vmem:[%s0 + $0x8] sm:$0xf]
  %v18 = vld [vmem:[%s0 + $0xc] sm:$0xf]
  %v19 = vld [vmem:[%s0 + $0x10] sm:$0xf]
  %v20 = vld [vmem:[%s0 + $0x14] sm:$0xf]
  %v21 = vld [vmem:[%s0 + $0x18] sm:$0xf]
  %v22 = vld [vmem:[%s0 + $0x1c] sm:$0xf]
  %v23 = vld [vmem:[%s0 + $0x20] sm:$0xf]
  %v24 = vld [vmem:[%s0 + $0x24] sm:$0xf]
  %v25 = vld [vmem:[%s0 + $0x28] sm:$0xf]
  %v26 = vld [vmem:[%s0 + $0x2c] sm:$0xf]
  %v27 = vld [vmem:[%s0 + $0x30] sm:$0xf]
  %v28 = vld [vmem:[%s0 + $0x34] sm:$0xf]
  %v29 = vld [vmem:[%s0 + $0x38] sm:$0xf]
  %v30 = vld [vmem:[%s0 + $0x3c] sm:$0xf]
  %v31 = vld [vmem:[%s0 + $0x40] sm:$0xf]
  %v32 = vld [vmem:[%s0 + $0x44] sm:$0xf]
  %v33 = vld [vmem:[%s0 + $0x48] sm:$0xf]
  %v34 = vld [vmem:[%s0 + $0x4c] sm:$0xf]
  %v35 = vld [vmem:[%s0 + $0x50] sm:$0xf]
  %v36 = vld [vmem:[%s0 + $0x54] sm:$0xf]
  %v37 = vld [vmem:[%s0 + $0x58] sm:$0xf]
  %v38 = vld [vmem:[%s0 + $0x5c] sm:$0xf]
  %v39 = vld [vmem:[%s0 + $0x60] sm:$0xf]
  %v40 = vld [vmem:[%s0 + $0x64] sm:$0xf]
  %v41 = vld [vmem:[%s0 + $0x68] sm:$0xf]
  %v42 = vld [vmem:[%s0 + $0x6c] sm:$0xf]
  %v43 = vld [vmem:[%s0 + $0x70] sm:$0xf]
  %v44 = vld [vmem:[%s0 + $0x74] sm:$0xf]
  %v45 = vld [vmem:[%s0 + $0x78] sm:$0xf]
  %v46 = vld [vmem:[%s0 + $0x7c] sm:$0xf]
  %v47 = vld [vmem:[%s0 + $0x80] sm:$0xf]
  %v48 = vld [vmem:[%s0 + $0x84] sm:$0xf]
  %v49 = vld [vmem:[%s0 + $0x88] sm:$0xf]
  %v50 = vld [vmem:[%s0 + $0x8c] sm:$0xf]
  %v51 = vld [vmem:[%s0 + $0x90] sm:$0xf]
  %v52 = vld [vmem:[%s0 + $0x94] sm:$0xf]
  %v53 = vld [vmem:[%s0 + $0x98] sm:$0xf]
  %v54 = vld [vmem:[%s0 + $0x9c] sm:$0xf]
  %v55 = vld [vmem:[%s0 + $0xa0] sm:$0xf]
  %v56 = vld [vmem:[%s0 + $0xa4] sm:$0xf]
  %v57 = vld [vmem:[%s0 + $0xa8] sm:$0xf]
  %v58 = vld [vmem:[%s0 + $0xac] sm:$0xf]
  %v59 = vld [vmem:[%s0 + $0xb0] sm:$0xf]
  %v60 = vld [vmem:[%s0 + $0xb4] sm:$0xf]
  %v61 = vld [vmem:[%s0 + $0xb8] sm:$0xf]
  %v62 = vld [vmem:[%s0 + $0xbc] sm:$0xf]
  %v63 = vld [vmem:[%s0 + $0xc0] sm:$0xf]
  %v64 = vld [vmem:[%s0 + $0xc4] sm:$0xf]
  %v65 = vld [vmem:[%s0 + $0xc8] sm:$0xf]
  %v66 = vld [vmem:[%s0 + $0xcc] sm:$0xf]
  %v67 = vld [vmem:[%s0 + $0xd0] sm:$0xf]
  %v68 = vld [vmem:[%s0 + $0xd4] sm:$0xf]
  %v69 = vld [vmem:[%s0 + $0xd8] sm:$0xf]
  %v70 = vld [vmem:[%s0 + $0xdc] sm:$0xf]
  %v71 = vld [vmem:[%s0 + $0xe0] sm:$0xf]
  %v72 = vld [vmem:[%s0 + $0xe4] sm:$0xf]
  %v73 = vld [vmem:[%s0 + $0xe8] sm:$0xf]
  %v74 = vld [vmem:[%s0 + $0xec] sm:$0xf]
  %v75 = vld [vmem:[%s0 + $0xf0] sm:$0xf]
  %v76 = vld [vmem:[%s0 + $0xf4] sm:$0xf]
  %v77 = vld [vmem:[%s0 + $0xf8] sm:$0xf]
  %v78 = vld [vmem:[%s0 + $0xfc] sm:$0xf]
  %v79 = vld [vmem:[%s0 + $0x100] sm:$0xf]
  %v80 = vld [vmem:[%s0 + $0x104] sm:$0xf]
  %v81 = vld [vmem:[%s0 + $0x108] sm:$0xf]
  %v82 = vld [vmem:[%s0 + $0x10c] sm:$0xf]
  %v83 = vld [vmem:[%s0 + $0x110] sm:$0xf]
  %v84 = vld [vmem:[%s0 + $0x114] sm:$0xf]
  %v85 = vld [vmem:[%s0 + $0x118] sm:$0xf]
  %v86 = vld [vmem:[%s0 + $0x11c] sm:$0xf]
  %v87 = vld [vmem:[%s0 + $0x120] sm:$0xf]
  %v88 = vld [vmem:[%s0 + $0x124] sm:$0xf]
  %v89 = vld [vmem:[%s0 + $0x128] sm:$0xf]
  %v90 = vld [vmem:[%s0 + $0x12c] sm:$0xf]
  %v91 = vld [vmem:[%s0 + $0x130] sm:$0xf]
  %v92 = vld [vmem:[%s0 + $0x134] sm:$0xf]
  %v93 = vld [vmem:[%s0 + $0x138] sm:$0xf]
  %v94 = vld [vmem:[%s0 + $0x13c] sm:$0xf]
  %v95 = vld [vmem:[%s0 + $0x140] sm:$0xf]
  %v96 = vld [vmem:[%s0 + $0x144] sm:$0xf]
  %v97 = vld [vmem:[%s0 + $0x148] sm:$0xf]
  %v98 = vld [vmem:[%s0 + $0x14c] sm:$0xf]
  %v99 = vld [vmem:[%s0 + $0x150] sm:$0xf]
  %v100 = vld [vmem:[%s0 + $0x154] sm:$0xf]
  %v101 = vld [vmem:[%s0 + $0x158] sm:$0xf]
  %v102 = vld [vmem:[%s0 + $0x15c] sm:$0xf]
  %v103 = vld [vmem:[%s0 + $0x160] sm:$0xf]
  %v104 = vld [vmem:[%s0 + $0x164] sm:$0xf]
  %v105 = vld [vmem:[%s0 + $0x168] sm:$0xf]
  %v106 = vld [vmem:[%s0 + $0x16c] sm:$0xf]
  %v107 = vld [vmem:[%s0 + $0x170] sm:$0xf]
  %v108 = vld [vmem:[%s0 + $0x174] sm:$0xf]
  %v109 = vld [vmem:[%s0 + $0x178] sm:$0xf]
  %v110 = vld [vmem:[%s0 + $0x17c] sm:$0xf]
  %v111 = vld [vmem:[%s0 + $0x180] sm:$0xf]
  %v112 = vld [vmem:[%s0 + $0x184] sm:$0xf]
  %v113 = vld [vmem:[%s0 + $0x188] sm:$0xf]
  %v114 = vld [vmem:[%s0 + $0x18c] sm:$0xf]
  %v115 = vld [vmem:[%s0 + $0x190] sm:$0xf]
  %v116 = vld [vmem:[%s0 + $0x194] sm:$0xf]
  %v117 = vld [vmem:[%s0 + $0x198] sm:$0xf]
  %v118 = vld [vmem:[%s0 + $0x19c] sm:$0xf]
  %v119 = vld [vmem:[%s0 + $0x1a0] sm:$0xf]
  %v120 = vld [vmem:[%s0 + $0x1a4] sm:$0xf]
  %v121 = vld [vmem:[%s0 + $0x1a8] sm:$0xf]
  %v122 = vld [vmem:[%s0 + $0x1ac] sm:$0xf]
  %v123 = vld [vmem:[%s0 + $0x1b0] sm:$0xf]
  %v124 = vld [vmem:[%s0 + $0x1b4] sm:$0xf]
  %v125 = vld [vmem:[%s0 + $0x1b8] sm:$0xf]
  %v126 = vld [vmem:[%s0 + $0x1bc] sm:$0xf]
  %v127 = vld [vmem:[%s0 + $0x1c0] sm:$0xf]
  %v128 = vld [vmem:[%s0 + $0x1c4] sm:$0xf]
  %v129 = vld [vmem:[%s0 + $0x1c8] sm:$0xf]
  %v130 = vld [vmem:[%s0 + $0x1cc] sm:$0xf]
  %v131 = vld [vmem:[%s0 + $0x1d0] sm:$0xf]
  %v132 = vld [vmem:[%s0 + $0x1d4] sm:$0xf]
  %v133 = vld [vmem:[%s0 + $0x1d8] sm:$0xf]
  %v134 = vld [vmem:[%s0 + $0x1dc] sm:$0xf]
  %v135 = vld [vmem:[%s0 + $0x1e0] sm:$0xf]
  %v136 = vld [vmem:[%s0 + $0x1e4] sm:$0xf]
  %v137 = vld [vmem:[%s0 + $0x1e8] sm:$0xf]
  %v138 = vld [vmem:[%s0 + $0x1ec] sm:$0xf]
  %v139 = vld [vmem:[%s0 + $0x1f0] sm:$0xf]
  %v140 = vld [vmem:[%s0 + $0x1f4] sm:$0xf]
  %v141 = vld [vmem:[%s0 + $0x1f8] sm:$0xf]
  %v142 = vld [vmem:[%s0 + $0x1fc] sm:$0xf]
  %v143 = vld [vmem:[%s0 + $0x200] sm:$0xf]
  %v144 = vld [vmem:[%s0 + $0x204] sm:$0xf]
  %v145 = vld [vmem:[%s0 + $0x208] sm:$0xf]
  %v146 = vld [vmem:[%s0 + $0x20c] sm:$0xf]
  %v147 = vld [vmem:[%s0 + $0x210] sm:$0xf]
  %v148 = vld [vmem:[%s0 + $0x214] sm:$0xf]
  %v149 = vld [vmem:[%s0 + $0x218] sm:$0xf]
  %v150 = vld [vmem:[%s0 + $0x21c] sm:$0xf]
  %v151 = vld [vmem:[%s0 + $0x220] sm:$0xf]
  %v152 = vld [vmem:[%s0 + $0x224] sm:$0xf]
  %v153 = vld [vmem:[%s0 + $0x228] sm:$0xf]
  %v154 = vld [vmem:[%s0 + $0x22c] sm:$0xf]
  %v155 = vld [vmem:[%s0 + $0x230] sm:$0xf]
  %v156 = vld [vmem:[%s0 + $0x234] sm:$0xf]
  %v157 = vld [vmem:[%s0 + $0x238] sm:$0xf]
  %v158 = vld [vmem:[%s0 + $0x23c] sm:$0xf]
  %v159 = vld [vmem:[%s0 + $0x240] sm:$0xf]
  %v160 = vld [vmem:[%s0 + $0x244] sm:$0xf]
  %v161 = vld [vmem:[%s0 + $0x248] sm:$0xf]
  %v162 = vld [vmem:[%s0 + $0x24c] sm:$0xf]
  %v163 = vld [vmem:[%s0 + $0x250] sm:$0xf]
  %v164 = vld [vmem:[%s0 + $0x254] sm:$0xf]
  %v165 = vld [vmem:[%s0 + $0x258] sm:$0xf]
  %v166 = vld [vmem:[%s0 + $0x25c] sm:$0xf]
  %v167 = vld [vmem:[%s0 + $0x260] sm:$0xf]
  %v168 = vld [vmem:[%s0 + $0x264] sm:$0xf]
  %v169 = vld [vmem:[%s0 + $0x268] sm:$0xf]
  %v170 = vld [vmem:[%s0 + $0x26c] sm:$0xf]
  %v171 = vld [vmem:[%s0 + $0x270] sm:$0xf]
  %v172 = vld [vmem:[%s0 + $0x274] sm:$0xf]
  %v173 = vld [vmem:[%s0 + $0x278] sm:$0xf]
  %v174 = vld [vmem:[%s0 + $0x27c] sm:$0xf]
  %v175 = vld [vmem:[%s0 + $0x280] sm:$0xf]
  %v176 = vld [vmem:[%s0 + $0x284] sm:$0xf]
  %v177 = vld [vmem:[%s0 + $0x288] sm:$0xf]
  %v178 = vld [vmem:[%s0 + $0x28c] sm:$0xf]
  %v179 = vld [vmem:[%s0 + $0x290] sm:$0xf]
  %v180 = vld [vmem:[%s0 + $0x294] sm:$0xf]
  %v181 = vld [vmem:[%s0 + $0x298] sm:$0xf]
  %v182 = vld [vmem:[%s0 + $0x29c] sm:$0xf]
  %v183 = vld [vmem:[%s0 + $0x2a0] sm:$0xf]
  %v184 = vld [vmem:[%s0 + $0x2a4] sm:$0xf]
  %v185 = vld [vmem:[%s0 + $0x2a8] sm:$0xf]
  %v186 = vld [vmem:[%s0 + $0x2ac] sm:$0xf]
  %v187 = vld [vmem:[%s0 + $0x2b0] sm:$0xf]
  %v188 = vld [vmem:[%s0 + $0x2b4] sm:$0xf]
  %v189 = vld [vmem:[%s0 + $0x2b8] sm:$0xf]
  %v190 = vld [vmem:[%s0 + $0x2bc] sm:$0xf]
  %v191 = vld [vmem:[%s0 + $0x2c0] sm:$0xf]
  %v192 = vld [vmem:[%s0 + $0x2c4] sm:$0xf]
  %v193 = vld [vmem:[%s0 + $0x2c8] sm:$0xf]
  %v194 = vld [vmem:[%s0 + $0x2cc] sm:$0xf]
  %v195 = vld [vmem:[%s0 + $0x2d0] sm:$0xf]
  %v196 = vld [vmem:[%s0 + $0x2d4] sm:$0xf]
  %v197 = vld [vmem:[%s0 + $0x2d8] sm:$0xf]
  %v198 = vld [vmem:[%s0 + $0x2dc] sm:$0xf]
  %v199 = vld [vmem:[%s0 + $0x2e0] sm:$0xf]
  %v200 = vld [vmem:[%s0 + $0x2e4] sm:$0xf]
  %v201 = vld [vmem:[%s0 + $0x2e8] sm:$0xf]
  %v202 = vld [vmem:[%s0 + $0x2ec] sm:$0xf]
  %v203 = vld [vmem:[%s0 + $0x2f0] sm:$0xf]
  %v204 = vld [vmem:[%s0 + $0x2f4] sm:$0xf]
  %v205 = vld [vmem:[%s0 + $0x2f8] sm:$0xf]
  %v206 = vld [vmem:[%s0 + $0x2fc] sm:$0xf]
  %v207 = vld [vmem:[%s0 + $0x300] sm:$0xf]
  %v208 = vld [vmem:[%s0 + $0x304] sm:$0xf]
  %v209 = vld [vmem:[%s0 + $0x308] sm:$0xf]
  %v210 = vld [vmem:[%s0 + $0x30c] sm:$0xf]
  %v211 = vld [vmem:[%s0 + $0x310] sm:$0xf]
  %v212 = vld [vmem:[%s0 + $0x314] sm:$0xf]
  %v213 = vld [vmem:[%s0 + $0x318] sm:$0xf]
  %v214 = vld [vmem:[%s0 + $0x31c] sm:$0xf]
  %v215 = vld [vmem:[%s0 + $0x320] sm:$0xf]
  %v216 = vld [vmem:[%s0 + $0x324] sm:$0xf]
  %v217 = vld [vmem:[%s0 + $0x328] sm:$0xf]
  %v218 = vld [vmem:[%s0 + $0x32c] sm:$0xf]
  %v219 = vld [vmem:[%s0 + $0x330] sm:$0xf]
  %v220 = vld [vmem:[%s0 + $0x334] sm:$0xf]
  %v221 = vld [vmem:[%s0 + $0x338] sm:$0xf]
  %v222 = vld [vmem:[%s0 + $0x33c] sm:$0xf]
  %v223 = vld [vmem:[%s0 + $0x340] sm:$0xf]
  %v224 = vld [vmem:[%s0 + $0x344] sm:$0xf]
  %v225 = vld [vmem:[%s0 + $0x348] sm:$0xf]
  %v226 = vld [vmem:[%s0 + $0x34c] sm:$0xf]
  %v227 = vld [vmem:[%s0 + $0x350] sm:$0xf]
  %v228 = vld [vmem:[%s0 + $0x354] sm:$0xf]
  %v229 = vld [vmem:[%s0 + $0x358] sm:$0xf]
  %v230 = vld [vmem:[%s0 + $0x35c] sm:$0xf]
  %v231 = vld [vmem:[%s0 + $0x360] sm:$0xf]
  %v232 = vld [vmem:[%s0 + $0x364] sm:$0xf]
  %v233 = vld [vmem:[%s0 + $0x368] sm:$0xf]
  %v234 = vld [vmem:[%s0 + $0x36c] sm:$0xf]
  %v235 = vld [vmem:[%s0 + $0x370] sm:$0xf]
  %v236 = vld [vmem:[%s0 + $0x374] sm:$0xf]
  %v237 = vld [vmem:[%s0 + $0x378] sm:$0xf]
  %v238 = vld [vmem:[%s0 + $0x37c] sm:$0xf]
  %v239 = vld [vmem:[%s0 + $0x380] sm:$0xf]
  %v240 = vld [vmem:[%s0 + $0x384] sm:$0xf]
  %v241 = vld [vmem:[%s0 + $0x388] sm:$0xf]
  %v242 = vld [vmem:[%s0 + $0x38c] sm:$0xf]
  %v243 = vld [vmem:[%s0 + $0x390] sm:$0xf]
  %v244 = vld [vmem:[%s0 + $0x394] sm:$0xf]
  %v245 = vld [vmem:[%s0 + $0x398] sm:$0xf]
  %v246 = vld [vmem:[%s0 + $0x39c] sm:$0xf]
  %v247 = vld [vmem:[%s0 + $0x3a0] sm:$0xf]
  %v248 = vld [vmem:[%s0 + $0x3a4] sm:$0xf]
  %v249 = vld [vmem:[%s0 + $0x3a8] sm:$0xf]
  %v250 = vld [vmem:[%s0 + $0x3ac] sm:$0xf]
  %v251 = vld [vmem:[%s0 + $0x3b0] sm:$0xf]
  %v252 = vld [vmem:[%s0 + $0x3b4] sm:$0xf]
  %v253 = vld [vmem:[%s0 + $0x3b8] sm:$0xf]
  %v254 = vld [vmem:[%s0 + $0x3bc] sm:$0xf]
  %v255 = vld [vmem:[%s0 + $0x3c0] sm:$0xf]
  %v256 = vld [vmem:[%s0 + $0x3c4] sm:$0xf]
  %v257 = vld [vmem:[%s0 + $0x3c8] sm:$0xf]
  %v258 = vld [vmem:[%s0 + $0x3cc] sm:$0xf]
  %v259 = vld [vmem:[%s0 + $0x3d0] sm:$0xf]
  %v260 = vld [vmem:[%s0 + $0x3d4] sm:$0xf]
  %v261 = vld [vmem:[%s0 + $0x3d8] sm:$0xf]
  %v262 = vld [vmem:[%s0 + $0x3dc] sm:$0xf]
  %v263 = vld [vmem:[%s0 + $0x3e0] sm:$0xf]
  %v264 = vld [vmem:[%s0 + $0x3e4] sm:$0xf]
  %v265 = vld [vmem:[%s0 + $0x3e8] sm:$0xf]
  %v266 = vld [vmem:[%s0 + $0x3ec] sm:$0xf]
  %v267 = vld [vmem:[%s0 + $0x3f0] sm:$0xf]
  %v268 = vld [vmem:[%s0 + $0x3f4] sm:$0xf]
  %v269 = vld [vmem:[%s0 + $0x3f8] sm:$0xf]
  %v270 = vld [vmem:[%s0 + $0x3fc] sm:$0xf]
  %v271 = vld [vmem:[%s0 + $0x400] sm:$0xf]
  %v272 = vld [vmem:[%s0 + $0x404] sm:$0xf]
  %v273 = vld [vmem:[%s0 + $0x408] sm:$0xf]
  %v274 = vld [vmem:[%s0 + $0x40c] sm:$0xf]
  %v275 = vld [vmem:[%s0 + $0x410] sm:$0xf]
  %v276 = vld [vmem:[%s0 + $0x414] sm:$0xf]
  %v277 = vld [vmem:[%s0 + $0x418] sm:$0xf]
  %v278 = vld [vmem:[%s0 + $0x41c] sm:$0xf]
  %v279 = vld [vmem:[%s0 + $0x420] sm:$0xf]
  %v280 = vld [vmem:[%s0 + $0x424] sm:$0xf]
  %v281 = vld [vmem:[%s0 + $0x428] sm:$0xf]
  %v282 = vld [vmem:[%s0 + $0x42c] sm:$0xf]
  %v283 = vld [vmem:[%s0 + $0x430] sm:$0xf]
  %v284 = vld [vmem:[%s0 + $0x434] sm:$0xf]
  %v285 = vld [vmem:[%s0 + $0x438] sm:$0xf]
  %v286 = vld [vmem:[%s0 + $0x43c] sm:$0xf]
  %v287 = vld [vmem:[%s0 + $0x440] sm:$0xf]
  %v288 = vld [vmem:[%s0 + $0x444] sm:$0xf]
  %v289 = vld [vmem:[%s0 + $0x448] sm:$0xf]
  %v290 = vld [vmem:[%s0 + $0x44c] sm:$0xf]
  %v291 = vld [vmem:[%s0 + $0x450] sm:$0xf]
  %v292 = vld [vmem:[%s0 + $0x454] sm:$0xf]
  %v293 = vld [vmem:[%s0 + $0x458] sm:$0xf]
  %v294 = vld [vmem:[%s0 + $0x45c] sm:$0xf]
  %v295 = vld [vmem:[%s0 + $0x460] sm:$0xf]
  %v296 = vld [vmem:[%s0 + $0x464] sm:$0xf]
  %v297 = vld [vmem:[%s0 + $0x468] sm:$0xf]
  %v298 = vld [vmem:[%s0 + $0x46c] sm:$0xf]
  %v299 = vld [vmem:[%s0 + $0x470] sm:$0xf]
  %v300 = vld [vmem:[%s0 + $0x474] sm:$0xf]
  %v301 = vld [vmem:[%s0 + $0x478] sm:$0xf]
  %v302 = vld [vmem:[%s0 + $0x47c] sm:$0xf]
  %v303 = vld [vmem:[%s0 + $0x480] sm:$0xf]
  %v304 = vld [vmem:[%s0 + $0x484] sm:$0xf]
  %v305 = vld [vmem:[%s0 + $0x488] sm:$0xf]
  %v306 = vld [vmem:[%s0 + $0x48c] sm:$0xf]
  %v307 = vld [vmem:[%s0 + $0x490] sm:$0xf]
  %v308 = vld [vmem:[%s0 + $0x494] sm:$0xf]
  %v309 = vld [vmem:[%s0 + $0x498] sm:$0xf]
  %v310 = vld [vmem:[%s0 + $0x49c] sm:$0xf]
  %v311 = vld [vmem:[%s0 + $0x4a0] sm:$0xf]
  %v312 = vld [vmem:[%s0 + $0x4a4] sm:$0xf]
  %v313 = vld [vmem:[%s0 + $0x4a8] sm:$0xf]
  %v314 = vld [vmem:[%s0 + $0x4ac] sm:$0xf]
  %v315 = vld [vmem:[%s0 + $0x4b0] sm:$0xf]
  %v316 = vld [vmem:[%s0 + $0x4b4] sm:$0xf]
  %v317 = vld [vmem:[%s0 + $0x4b8] sm:$0xf]
  %v318 = vld [vmem:[%s0 + $0x4bc] sm:$0xf]
  %v319 = vld [vmem:[%s0 + $0x4c0] sm:$0xf]
  %v320 = vld [vmem:[%s0 + $0x4c4] sm:$0xf]
  %v321 = vld [vmem:[%s0 + $0x4c8] sm:$0xf]
  %v322 = vld [vmem:[%s0 + $0x4cc] sm:$0xf]
  %v323 = vld [vmem:[%s0 + $0x4d0] sm:$0xf]
  %v324 = vld [vmem:[%s0 + $0x4d4] sm:$0xf]
  %v325 = vld [vmem:[%s0 + $0x4d8] sm:$0xf]
  %v326 = vld [vmem:[%s0 + $0x4dc] sm:$0xf]
  %v327 = vld [vmem:[%s0 + $0x4e0] sm:$0xf]
  %v328 = vld [vmem:[%s0 + $0x4e4] sm:$0xf]
  %v329 = vld [vmem:[%s0 + $0x4e8] sm:$0xf]
  %v330 = vld [vmem:[%s0 + $0x4ec] sm:$0xf]
  %v331 = vld [vmem:[%s0 + $0x4f0] sm:$0xf]
  %v332 = vld [vmem:[%s0 + $0x4f4] sm:$0xf]
  %v333 = vld [vmem:[%s0 + $0x4f8] sm:$0xf]
  %v334 = vld [vmem:[%s0 + $0x4fc] sm:$0xf]
  %v335 = vld [vmem:[%s0 + $0x500] sm:$0xf]
  %v336 = vld [vmem:[%s0 + $0x504] sm:$0xf]
  %v337 = vld [vmem:[%s0 + $0x508] sm:$0xf]
  %v338 = vld [vmem:[%s0 + $0x50c] sm:$0xf]
  %v339 = vld [vmem:[%s0 + $0x510] sm:$0xf]
  %v340 = vld [vmem:[%s0 + $0x514] sm:$0xf]
  %v341 = vld [vmem:[%s0 + $0x518] sm:$0xf]
  %v342 = vld [vmem:[%s0 + $0x51c] sm:$0xf]
  %v343 = vld [vmem:[%s0 + $0x520] sm:$0xf]
  %v344 = vld [vmem:[%s0 + $0x524] sm:$0xf]
  %v345 = vld [vmem:[%s0 + $0x528] sm:$0xf]
  %v346 = vld [vmem:[%s0 + $0x52c] sm:$0xf]
  %v347 = vld [vmem:[%s0 + $0x530] sm:$0xf]
  %v348 = vld [vmem:[%s0 + $0x534] sm:$0xf]
  %v349 = vld [vmem:[%s0 + $0x538] sm:$0xf]
  %v350 = vld [vmem:[%s0 + $0x53c] sm:$0xf]
  %v351 = vld [vmem:[%s0 + $0x540] sm:$0xf]
  %v352 = vld [vmem:[%s0 + $0x544] sm:$0xf]
  %v353 = vld [vmem:[%s0 + $0x548] sm:$0xf]
  %v354 = vld [vmem:[%s0 + $0x54c] sm:$0xf]
  %v355 = vld [vmem:[%s0 + $0x550] sm:$0xf]
  %v356 = vld [vmem:[%s0 + $0x554] sm:$0xf]
  %v357 = vld [vmem:[%s0 + $0x558] sm:$0xf]
  %v358 = vld [vmem:[%s0 + $0x55c] sm:$0xf]
  %v359 = vld [vmem:[%s0 + $0x560] sm:$0xf]
  %v360 = vld [vmem:[%s0 + $0x564] sm:$0xf]
  %v361 = vld [vmem:[%s0 + $0x568] sm:$0xf]
  %v362 = vld [vmem:[%s0 + $0x56c] sm:$0xf]
  %v363 = vld [vmem:[%s0 + $0x570] sm:$0xf]
  %v364 = vld [vmem:[%s0 + $0x574] sm:$0xf]
  %v365 = vld [vmem:[%s0 + $0x578] sm:$0xf]
  %v366 = vld [vmem:[%s0 + $0x57c] sm:$0xf]
  %v367 = vld [vmem:[%s0 + $0x580] sm:$0xf]
  %v368 = vld [vmem:[%s0 + $0x584] sm:$0xf]
  %v369 = vld [vmem:[%s0 + $0x588] sm:$0xf]
  %v370 = vld [vmem:[%s0 + $0x58c] sm:$0xf]
  %v371 = vld [vmem:[%s0 + $0x590] sm:$0xf]
  %v372 = vld [vmem:[%s0 + $0x594] sm:$0xf]
  %v373 = vld [vmem:[%s0 + $0x598] sm:$0xf]
  %v374 = vld [vmem:[%s0 + $0x59c] sm:$0xf]
  %v375 = vld [vmem:[%s0 + $0x5a0] sm:$0xf]
  %v376 = vld [vmem:[%s0 + $0x5a4] sm:$0xf]
  %v377 = vld [vmem:[%s0 + $0x5a8] sm:$0xf]
  %v378 = vld [vmem:[%s0 + $0x5ac] sm:$0xf]
  %v379 = vld [vmem:[%s0 + $0x5b0] sm:$0xf]
  %v380 = vld [vmem:[%s0 + $0x5b4] sm:$0xf]
  %v381 = vld [vmem:[%s0 + $0x5b8] sm:$0xf]
  %v382 = vld [vmem:[%s0 + $0x5bc] sm:$0xf]
  %v383 = vld [vmem:[%s0 + $0x5c0] sm:$0xf]
  %v384 = vld [vmem:[%s0 + $0x5c4] sm:$0xf]
  %v385 = vld [vmem:[%s0 + $0x5c8] sm:$0xf]
  %v386 = vld [vmem:[%s0 + $0x5cc] sm:$0xf]
  %v387 = vld [vmem:[%s0 + $0x5d0] sm:$0xf]
  %v388 = vld [vmem:[%s0 + $0x5d4] sm:$0xf]
  %v389 = vld [vmem:[%s0 + $0x5d8] sm:$0xf]
  %v390 = vld [vmem:[%s0 + $0x5dc] sm:$0xf]
  %v391 = vld [vmem:[%s0 + $0x5e0] sm:$0xf]
  %v392 = vld [vmem:[%s0 + $0x5e4] sm:$0xf]
  %v393 = vld [vmem:[%s0 + $0x5e8] sm:$0xf]
  %v394 = vld [vmem:[%s0 + $0x5ec] sm:$0xf]
  %v395 = vld [vmem:[%s0 + $0x5f0] sm:$0xf]
  %v396 = vld [vmem:[%s0 + $0x5f4] sm:$0xf]
  %v397 = vld [vmem:[%s0 + $0x5f8] sm:$0xf]
  %v398 = vld [vmem:[%s0 + $0x5fc] sm:$0xf]
  %v399 = vld [vmem:[%s0 + $0x600] sm:$0xf]
  %v400 = vld [vmem:[%s0 + $0x604] sm:$0xf]
  %v401 = vld [vmem:[%s0 + $0x608] sm:$0xf]
  %v402 = vld [vmem:[%s0 + $0x60c] sm:$0xf]
  %v403 = vld [vmem:[%s0 + $0x610] sm:$0xf]
  %v404 = vld [vmem:[%s0 + $0x614] sm:$0xf]
  %v405 = vld [vmem:[%s0 + $0x618] sm:$0xf]
  %v406 = vld [vmem:[%s0 + $0x61c] sm:$0xf]
  %v407 = vld [vmem:[%s0 + $0x620] sm:$0xf]
  %v408 = vld [vmem:[%s0 + $0x624] sm:$0xf]
  %v409 = vld [vmem:[%s0 + $0x628] sm:$0xf]
  %v410 = vld [vmem:[%s0 + $0x62c] sm:$0xf]
  %v411 = vld [vmem:[%s0 + $0x630] sm:$0xf]
  %v412 = vld [vmem:[%s0 + $0x634] sm:$0xf]
  %v413 = vld [vmem:[%s0 + $0x638] sm:$0xf]
  %v414 = vld [vmem:[%s0 + $0x63c] sm:$0xf]
  %v415 = vld [vmem:[%s0 + $0x640] sm:$0xf]
  %v416 = vld [vmem:[%s0 + $0x644] sm:$0xf]
  %v417 = vld [vmem:[%s0 + $0x648] sm:$0xf]
  %v418 = vld [vmem:[%s0 + $0x64c] sm:$0xf]
  %v419 = vld [vmem:[%s0 + $0x650] sm:$0xf]
  %v420 = vld [vmem:[%s0 + $0x654] sm:$0xf]
  %v421 = vld [vmem:[%s0 + $0x658] sm:$0xf]
  %v422 = vld [vmem:[%s0 + $0x65c] sm:$0xf]
  %v423 = vld [vmem:[%s0 + $0x660] sm:$0xf]
  %v424 = vld [vmem:[%s0 + $0x664] sm:$0xf]
  %v425 = vld [vmem:[%s0 + $0x668] sm:$0xf]
  %v426 = vld [vmem:[%s0 + $0x66c] sm:$0xf]
  %v427 = vld [vmem:[%s0 + $0x670] sm:$0xf]
  %v428 = vld [vmem:[%s0 + $0x674] sm:$0xf]
  %v429 = vld [vmem:[%s0 + $0x678] sm:$0xf]
  %v430 = vld [vmem:[%s0 + $0x67c] sm:$0xf]
  %v431 = vld [vmem:[%s0 + $0x680] sm:$0xf]
  %v432 = vld [vmem:[%s0 + $0x684] sm:$0xf]
  %v433 = vld [vmem:[%s0 + $0x688] sm:$0xf]
  %v434 = vld [vmem:[%s0 + $0x68c] sm:$0xf]
  %v435 = vld [vmem:[%s0 + $0x690] sm:$0xf]
  %v436 = vld [vmem:[%s0 + $0x694] sm:$0xf]
  %v437 = vld [vmem:[%s0 + $0x698] sm:$0xf]
  %v438 = vld [vmem:[%s0 + $0x69c] sm:$0xf]
  %v439 = vld [vmem:[%s0 + $0x6a0] sm:$0xf]
  %v440 = vld [vmem:[%s0 + $0x6a4] sm:$0xf]
  %v441 = vld [vmem:[%s0 + $0x6a8] sm:$0xf]
  %v442 = vld [vmem:[%s0 + $0x6ac] sm:$0xf]
  %v443 = vld [vmem:[%s0 + $0x6b0] sm:$0xf]
  %v444 = vld [vmem:[%s0 + $0x6b4] sm:$0xf]
  %v445 = vld [vmem:[%s0 + $0x6b8] sm:$0xf]
  %v446 = vld [vmem:[%s0 + $0x6bc] sm:$0xf]
  %v447 = vld [vmem:[%s0 + $0x6c0] sm:$0xf]
  %v448 = vld [vmem:[%s0 + $0x6c4] sm:$0xf]
  %v449 = vld [vmem:[%s0 + $0x6c8] sm:$0xf]
  %v450 = vld [vmem:[%s0 + $0x6cc] sm:$0xf]
  %v451 = vld [vmem:[%s0 + $0x6d0] sm:$0xf]
  %v452 = vld [vmem:[%s0 + $0x6d4] sm:$0xf]
  %v453 = vld [vmem:[%s0 + $0x6d8] sm:$0xf]
  %v454 = vld [vmem:[%s0 + $0x6dc] sm:$0xf]
  %v455 = vld [vmem:[%s0 + $0x6e0] sm:$0xf]
  %v456 = vld [vmem:[%s0 + $0x6e4] sm:$0xf]
  %v457 = vld [vmem:[%s0 + $0x6e8] sm:$0xf]
  %v458 = vld [vmem:[%s0 + $0x6ec] sm:$0xf]
  %v459 = vld [vmem:[%s0 + $0x6f0] sm:$0xf]
  %v460 = vld [vmem:[%s0 + $0x6f4] sm:$0xf]
  %v461 = vld [vmem:[%s0 + $0x6f8] sm:$0xf]
  %v462 = vld [vmem:[%s0 + $0x6fc] sm:$0xf]
  %v463 = vld [vmem:[%s0 + $0x700] sm:$0xf]
  %v464 = vld [vmem:[%s0 + $0x704] sm:$0xf]
  %v465 = vld [vmem:[%s0 + $0x708] sm:$0xf]
  %v466 = vld [vmem:[%s0 + $0x70c] sm:$0xf]
  %v467 = vld [vmem:[%s0 + $0x710] sm:$0xf]
  %v468 = vld [vmem:[%s0 + $0x714] sm:$0xf]
  %v469 = vld [vmem:[%s0 + $0x718] sm:$0xf]
  %v470 = vld [vmem:[%s0 + $0x71c] sm:$0xf]
  %v471 = vld [vmem:[%s0 + $0x720] sm:$0xf]
  %v472 = vld [vmem:[%s0 + $0x724] sm:$0xf]
  %v473 = vld [vmem:[%s0 + $0x728] sm:$0xf]
  %v474 = vld [vmem:[%s0 + $0x72c] sm:$0xf]
  %v475 = vld [vmem:[%s0 + $0x730] sm:$0xf]
  %v476 = vld [vmem:[%s0 + $0x734] sm:$0xf]
  %v477 = vld [vmem:[%s0 + $0x738] sm:$0xf]
  %v478 = vld [vmem:[%s0 + $0x73c] sm:$0xf]
  %v479 = vld [vmem:[%s0 + $0x740] sm:$0xf]
  %v480 = vld [vmem:[%s0 + $0x744] sm:$0xf]
  %v481 = vld [vmem:[%s0 + $0x748] sm:$0xf]
  %v482 = vld [vmem:[%s0 + $0x74c] sm:$0xf]
  %v483 = vld [vmem:[%s0 + $0x750] sm:$0xf]
  %v484 = vld [vmem:[%s0 + $0x754] sm:$0xf]
  %v485 = vld [vmem:[%s0 + $0x758] sm:$0xf]
  %v486 = vld [vmem:[%s0 + $0x75c] sm:$0xf]
  %v487 = vld [vmem:[%s0 + $0x760] sm:$0xf]
  %v488 = vld [vmem:[%s0 + $0x764] sm:$0xf]
  %v489 = vld [vmem:[%s0 + $0x768] sm:$0xf]
  %v490 = vld [vmem:[%s0 + $0x76c] sm:$0xf]
  %v491 = vld [vmem:[%s0 + $0x770] sm:$0xf]
  %v492 = vld [vmem:[%s0 + $0x774] sm:$0xf]
  %v493 = vld [vmem:[%s0 + $0x778] sm:$0xf]
  %v494 = vld [vmem:[%s0 + $0x77c] sm:$0xf]
  %v495 = vld [vmem:[%s0 + $0x780] sm:$0xf]
  %v496 = vld [vmem:[%s0 + $0x784] sm:$0xf]
  %v497 = vld [vmem:[%s0 + $0x788] sm:$0xf]
  %v498 = vld [vmem:[%s0 + $0x78c] sm:$0xf]
  %v499 = vld [vmem:[%s0 + $0x790] sm:$0xf]
  %v500 = vld [vmem:[%s0 + $0x794] sm:$0xf]
  %v501 = vld [vmem:[%s0 + $0x798] sm:$0xf]
  %v502 = vld [vmem:[%s0 + $0x79c] sm:$0xf]
  %v503 = vld [vmem:[%s0 + $0x7a0] sm:$0xf]
  %v504 = vld [vmem:[%s0 + $0x7a4] sm:$0xf]
  %v505 = vld [vmem:[%s0 + $0x7a8] sm:$0xf]
  %v506 = vld [vmem:[%s0 + $0x7ac] sm:$0xf]
  %v507 = vld [vmem:[%s0 + $0x7b0] sm:$0xf]
  %v508 = vld [vmem:[%s0 + $0x7b4] sm:$0xf]
  %v509 = vld [vmem:[%s0 + $0x7b8] sm:$0xf]
  %v510 = vld [vmem:[%s0 + $0x7bc] sm:$0xf]
  %v511 = vld [vmem:[%s0 + $0x7c0] sm:$0xf]
  %v512 = vld [vmem:[%s0 + $0x7c4] sm:$0xf]
  %v513 = vld [vmem:[%s0 + $0x7c8] sm:$0xf]
  %v514 = vld [vmem:[%s0 + $0x7cc] sm:$0xf]
  %v515 = vld [vmem:[%s0 + $0x7d0] sm:$0xf]
  %v516 = vld [vmem:[%s0 + $0x7d4] sm:$0xf]
  %v517 = vld [vmem:[%s0 + $0x7d8] sm:$0xf]
  %v518 = vld [vmem:[%s0 + $0x7dc] sm:$0xf]
  %v519 = vld [vmem:[%s0 + $0x7e0] sm:$0xf]
  %v520 = vld [vmem:[%s0 + $0x7e4] sm:$0xf]
  %v521 = vld [vmem:[%s0 + $0x7e8] sm:$0xf]
  %v522 = vld [vmem:[%s0 + $0x7ec] sm:$0xf]
  %v523 = vld [vmem:[%s0 + $0x7f0] sm:$0xf]
  %v524 = vld [vmem:[%s0 + $0x7f4] sm:$0xf]
  %v525 = vld [vmem:[%s0 + $0x7f8] sm:$0xf]
  %v526 = vld [vmem:[%s0 + $0x7fc] sm:$0xf]
  %v527 = vld [vmem:[%s1] sm:$0xf]
  %v528 = vld [vmem:[%s1 + $0x4] sm:$0xf]
  %v529 = vld [vmem:[%s1 + $0x8] sm:$0xf]
  %v530 = vld [vmem:[%s1 + $0xc] sm:$0xf]
  %v531 = vld [vmem:[%s2] sm:$0x1]
  %v533 = vlaneseq
  %v534 = vshrl.u32 %v533, 7
  %v535 = vsub.s32 0, %v534
  %v536 = vrot.slane %v531, %v535
  %v1050 = vunpack.c.l.b16 %v15
  %v1051 = vunpack.c.l.b16 %v16
  %v1052 = vunpack.c.l.b16 %v17
  %v1053 = vunpack.c.l.b16 %v18
  %v1054 = vunpack.c.l.b16 %v19
  %v1055 = vunpack.c.l.b16 %v20
  %v1056 = vunpack.c.l.b16 %v21
  %v1057 = vunpack.c.l.b16 %v22
  %v1058 = vunpack.c.l.b16 %v23
  %v1059 = vunpack.c.l.b16 %v24
  %v1060 = vunpack.c.l.b16 %v25
  %v1061 = vunpack.c.l.b16 %v26
  %v1062 = vunpack.c.l.b16 %v27
  %v1063 = vunpack.c.l.b16 %v28
  %v1064 = vunpack.c.l.b16 %v29
  %v1065 = vunpack.c.l.b16 %v30
  %v1066 = vunpack.c.l.b16 %v31
  %v1067 = vunpack.c.l.b16 %v32
  %v1068 = vunpack.c.l.b16 %v33
  %v1069 = vunpack.c.l.b16 %v34
  %v1070 = vunpack.c.l.b16 %v35
  %v1071 = vunpack.c.l.b16 %v36
  %v1072 = vunpack.c.l.b16 %v37
  %v1073 = vunpack.c.l.b16 %v38
  %v1074 = vunpack.c.l.b16 %v39
  %v1075 = vunpack.c.l.b16 %v40
  %v1076 = vunpack.c.l.b16 %v41
  %v1077 = vunpack.c.l.b16 %v42
  %v1078 = vunpack.c.l.b16 %v43
  %v1079 = vunpack.c.l.b16 %v44
  %v1080 = vunpack.c.l.b16 %v45
  %v1081 = vunpack.c.l.b16 %v46
  %v1082 = vunpack.c.l.b16 %v47
  %v1083 = vunpack.c.l.b16 %v48
  %v1084 = vunpack.c.l.b16 %v49
  %v1085 = vunpack.c.l.b16 %v50
  %v1086 = vunpack.c.l.b16 %v51
  %v1087 = vunpack.c.l.b16 %v52
  %v1088 = vunpack.c.l.b16 %v53
  %v1089 = vunpack.c.l.b16 %v54
  %v1090 = vunpack.c.l.b16 %v55
  %v1091 = vunpack.c.l.b16 %v56
  %v1092 = vunpack.c.l.b16 %v57
  %v1093 = vunpack.c.l.b16 %v58
  %v1094 = vunpack.c.l.b16 %v59
  %v1095 = vunpack.c.l.b16 %v60
  %v1096 = vunpack.c.l.b16 %v61
  %v1097 = vunpack.c.l.b16 %v62
  %v1098 = vunpack.c.l.b16 %v63
  %v1099 = vunpack.c.l.b16 %v64
  %v1100 = vunpack.c.l.b16 %v65
  %v1101 = vunpack.c.l.b16 %v66
  %v1102 = vunpack.c.l.b16 %v67
  %v1103 = vunpack.c.l.b16 %v68
  %v1104 = vunpack.c.l.b16 %v69
  %v1105 = vunpack.c.l.b16 %v70
  %v1106 = vunpack.c.l.b16 %v71
  %v1107 = vunpack.c.l.b16 %v72
  %v1108 = vunpack.c.l.b16 %v73
  %v1109 = vunpack.c.l.b16 %v74
  %v1110 = vunpack.c.l.b16 %v75
  %v1111 = vunpack.c.l.b16 %v76
  %v1112 = vunpack.c.l.b16 %v77
  %v1113 = vunpack.c.l.b16 %v78
  %v1114 = vunpack.c.l.b16 %v79
  %v1115 = vunpack.c.l.b16 %v80
  %v1116 = vunpack.c.l.b16 %v81
  %v1117 = vunpack.c.l.b16 %v82
  %v1118 = vunpack.c.l.b16 %v83
  %v1119 = vunpack.c.l.b16 %v84
  %v1120 = vunpack.c.l.b16 %v85
  %v1121 = vunpack.c.l.b16 %v86
  %v1122 = vunpack.c.l.b16 %v87
  %v1123 = vunpack.c.l.b16 %v88
  %v1124 = vunpack.c.l.b16 %v89
  %v1125 = vunpack.c.l.b16 %v90
  %v1126 = vunpack.c.l.b16 %v91
  %v1127 = vunpack.c.l.b16 %v92
  %v1128 = vunpack.c.l.b16 %v93
  %v1129 = vunpack.c.l.b16 %v94
  %v1130 = vunpack.c.l.b16 %v95
  %v1131 = vunpack.c.l.b16 %v96
  %v1132 = vunpack.c.l.b16 %v97
  %v1133 = vunpack.c.l.b16 %v98
  %v1134 = vunpack.c.l.b16 %v99
  %v1135 = vunpack.c.l.b16 %v100
  %v1136 = vunpack.c.l.b16 %v101
  %v1137 = vunpack.c.l.b16 %v102
  %v1138 = vunpack.c.l.b16 %v103
  %v1139 = vunpack.c.l.b16 %v104
  %v1140 = vunpack.c.l.b16 %v105
  %v1141 = vunpack.c.l.b16 %v106
  %v1142 = vunpack.c.l.b16 %v107
  %v1143 = vunpack.c.l.b16 %v108
  %v1144 = vunpack.c.l.b16 %v109
  %v1145 = vunpack.c.l.b16 %v110
  %v1146 = vunpack.c.l.b16 %v111
  %v1147 = vunpack.c.l.b16 %v112
  %v1148 = vunpack.c.l.b16 %v113
  %v1149 = vunpack.c.l.b16 %v114
  %v1150 = vunpack.c.l.b16 %v115
  %v1151 = vunpack.c.l.b16 %v116
  %v1152 = vunpack.c.l.b16 %v117
  %v1153 = vunpack.c.l.b16 %v118
  %v1154 = vunpack.c.l.b16 %v119
  %v1155 = vunpack.c.l.b16 %v120
  %v1156 = vunpack.c.l.b16 %v121
  %v1157 = vunpack.c.l.b16 %v122
  %v1158 = vunpack.c.l.b16 %v123
  %v1159 = vunpack.c.l.b16 %v124
  %v1160 = vunpack.c.l.b16 %v125
  %v1161 = vunpack.c.l.b16 %v126
  %v1162 = vunpack.c.l.b16 %v127
  %v1163 = vunpack.c.l.b16 %v128
  %v1164 = vunpack.c.l.b16 %v129
  %v1165 = vunpack.c.l.b16 %v130
  %v1166 = vunpack.c.l.b16 %v131
  %v1167 = vunpack.c.l.b16 %v132
  %v1168 = vunpack.c.l.b16 %v133
  %v1169 = vunpack.c.l.b16 %v134
  %v1170 = vunpack.c.l.b16 %v135
  %v1171 = vunpack.c.l.b16 %v136
  %v1172 = vunpack.c.l.b16 %v137
  %v1173 = vunpack.c.l.b16 %v138
  %v1174 = vunpack.c.l.b16 %v139
  %v1175 = vunpack.c.l.b16 %v140
  %v1176 = vunpack.c.l.b16 %v141
  %v1177 = vunpack.c.l.b16 %v142
  %v1178 = vunpack.c.l.b16 %v143
  %v1179 = vunpack.c.l.b16 %v144
  %v1180 = vunpack.c.l.b16 %v145
  %v1181 = vunpack.c.l.b16 %v146
  %v1182 = vunpack.c.l.b16 %v147
  %v1183 = vunpack.c.l.b16 %v148
  %v1184 = vunpack.c.l.b16 %v149
  %v1185 = vunpack.c.l.b16 %v150
  %v1186 = vunpack.c.l.b16 %v151
  %v1187 = vunpack.c.l.b16 %v152
  %v1188 = vunpack.c.l.b16 %v153
  %v1189 = vunpack.c.l.b16 %v154
  %v1190 = vunpack.c.l.b16 %v155
  %v1191 = vunpack.c.l.b16 %v156
  %v1192 = vunpack.c.l.b16 %v157
  %v1193 = vunpack.c.l.b16 %v158
  %v1194 = vunpack.c.l.b16 %v159
  %v1195 = vunpack.c.l.b16 %v160
  %v1196 = vunpack.c.l.b16 %v161
  %v1197 = vunpack.c.l.b16 %v162
  %v1198 = vunpack.c.l.b16 %v163
  %v1199 = vunpack.c.l.b16 %v164
  %v1200 = vunpack.c.l.b16 %v165
  %v1201 = vunpack.c.l.b16 %v166
  %v1202 = vunpack.c.l.b16 %v167
  %v1203 = vunpack.c.l.b16 %v168
  %v1204 = vunpack.c.l.b16 %v169
  %v1205 = vunpack.c.l.b16 %v170
  %v1206 = vunpack.c.l.b16 %v171
  %v1207 = vunpack.c.l.b16 %v172
  %v1208 = vunpack.c.l.b16 %v173
  %v1209 = vunpack.c.l.b16 %v174
  %v1210 = vunpack.c.l.b16 %v175
  %v1211 = vunpack.c.l.b16 %v176
  %v1212 = vunpack.c.l.b16 %v177
  %v1213 = vunpack.c.l.b16 %v178
  %v1214 = vunpack.c.l.b16 %v179
  %v1215 = vunpack.c.l.b16 %v180
  %v1216 = vunpack.c.l.b16 %v181
  %v1217 = vunpack.c.l.b16 %v182
  %v1218 = vunpack.c.l.b16 %v183
  %v1219 = vunpack.c.l.b16 %v184
  %v1220 = vunpack.c.l.b16 %v185
  %v1221 = vunpack.c.l.b16 %v186
  %v1222 = vunpack.c.l.b16 %v187
  %v1223 = vunpack.c.l.b16 %v188
  %v1224 = vunpack.c.l.b16 %v189
  %v1225 = vunpack.c.l.b16 %v190
  %v1226 = vunpack.c.l.b16 %v191
  %v1227 = vunpack.c.l.b16 %v192
  %v1228 = vunpack.c.l.b16 %v193
  %v1229 = vunpack.c.l.b16 %v194
  %v1230 = vunpack.c.l.b16 %v195
  %v1231 = vunpack.c.l.b16 %v196
  %v1232 = vunpack.c.l.b16 %v197
  %v1233 = vunpack.c.l.b16 %v198
  %v1234 = vunpack.c.l.b16 %v199
  %v1235 = vunpack.c.l.b16 %v200
  %v1236 = vunpack.c.l.b16 %v201
  %v1237 = vunpack.c.l.b16 %v202
  %v1238 = vunpack.c.l.b16 %v203
  %v1239 = vunpack.c.l.b16 %v204
  %v1240 = vunpack.c.l.b16 %v205
  %v1241 = vunpack.c.l.b16 %v206
  %v1242 = vunpack.c.l.b16 %v207
  %v1243 = vunpack.c.l.b16 %v208
  %v1244 = vunpack.c.l.b16 %v209
  %v1245 = vunpack.c.l.b16 %v210
  %v1246 = vunpack.c.l.b16 %v211
  %v1247 = vunpack.c.l.b16 %v212
  %v1248 = vunpack.c.l.b16 %v213
  %v1249 = vunpack.c.l.b16 %v214
  %v1250 = vunpack.c.l.b16 %v215
  %v1251 = vunpack.c.l.b16 %v216
  %v1252 = vunpack.c.l.b16 %v217
  %v1253 = vunpack.c.l.b16 %v218
  %v1254 = vunpack.c.l.b16 %v219
  %v1255 = vunpack.c.l.b16 %v220
  %v1256 = vunpack.c.l.b16 %v221
  %v1257 = vunpack.c.l.b16 %v222
  %v1258 = vunpack.c.l.b16 %v223
  %v1259 = vunpack.c.l.b16 %v224
  %v1260 = vunpack.c.l.b16 %v225
  %v1261 = vunpack.c.l.b16 %v226
  %v1262 = vunpack.c.l.b16 %v227
  %v1263 = vunpack.c.l.b16 %v228
  %v1264 = vunpack.c.l.b16 %v229
  %v1265 = vunpack.c.l.b16 %v230
  %v1266 = vunpack.c.l.b16 %v231
  %v1267 = vunpack.c.l.b16 %v232
  %v1268 = vunpack.c.l.b16 %v233
  %v1269 = vunpack.c.l.b16 %v234
  %v1270 = vunpack.c.l.b16 %v235
  %v1271 = vunpack.c.l.b16 %v236
  %v1272 = vunpack.c.l.b16 %v237
  %v1273 = vunpack.c.l.b16 %v238
  %v1274 = vunpack.c.l.b16 %v239
  %v1275 = vunpack.c.l.b16 %v240
  %v1276 = vunpack.c.l.b16 %v241
  %v1277 = vunpack.c.l.b16 %v242
  %v1278 = vunpack.c.l.b16 %v243
  %v1279 = vunpack.c.l.b16 %v244
  %v1280 = vunpack.c.l.b16 %v245
  %v1281 = vunpack.c.l.b16 %v246
  %v1282 = vunpack.c.l.b16 %v247
  %v1283 = vunpack.c.l.b16 %v248
  %v1284 = vunpack.c.l.b16 %v249
  %v1285 = vunpack.c.l.b16 %v250
  %v1286 = vunpack.c.l.b16 %v251
  %v1287 = vunpack.c.l.b16 %v252
  %v1288 = vunpack.c.l.b16 %v253
  %v1289 = vunpack.c.l.b16 %v254
  %v1290 = vunpack.c.l.b16 %v255
  %v1291 = vunpack.c.l.b16 %v256
  %v1292 = vunpack.c.l.b16 %v257
  %v1293 = vunpack.c.l.b16 %v258
  %v1294 = vunpack.c.l.b16 %v259
  %v1295 = vunpack.c.l.b16 %v260
  %v1296 = vunpack.c.l.b16 %v261
  %v1297 = vunpack.c.l.b16 %v262
  %v1298 = vunpack.c.l.b16 %v263
  %v1299 = vunpack.c.l.b16 %v264
  %v1300 = vunpack.c.l.b16 %v265
  %v1301 = vunpack.c.l.b16 %v266
  %v1302 = vunpack.c.l.b16 %v267
  %v1303 = vunpack.c.l.b16 %v268
  %v1304 = vunpack.c.l.b16 %v269
  %v1305 = vunpack.c.l.b16 %v270
  %v1306 = vunpack.c.l.b16 %v271
  %v1307 = vunpack.c.l.b16 %v272
  %v1308 = vunpack.c.l.b16 %v273
  %v1309 = vunpack.c.l.b16 %v274
  %v1310 = vunpack.c.l.b16 %v275
  %v1311 = vunpack.c.l.b16 %v276
  %v1312 = vunpack.c.l.b16 %v277
  %v1313 = vunpack.c.l.b16 %v278
  %v1314 = vunpack.c.l.b16 %v279
  %v1315 = vunpack.c.l.b16 %v280
  %v1316 = vunpack.c.l.b16 %v281
  %v1317 = vunpack.c.l.b16 %v282
  %v1318 = vunpack.c.l.b16 %v283
  %v1319 = vunpack.c.l.b16 %v284
  %v1320 = vunpack.c.l.b16 %v285
  %v1321 = vunpack.c.l.b16 %v286
  %v1322 = vunpack.c.l.b16 %v287
  %v1323 = vunpack.c.l.b16 %v288
  %v1324 = vunpack.c.l.b16 %v289
  %v1325 = vunpack.c.l.b16 %v290
  %v1326 = vunpack.c.l.b16 %v291
  %v1327 = vunpack.c.l.b16 %v292
  %v1328 = vunpack.c.l.b16 %v293
  %v1329 = vunpack.c.l.b16 %v294
  %v1330 = vunpack.c.l.b16 %v295
  %v1331 = vunpack.c.l.b16 %v296
  %v1332 = vunpack.c.l.b16 %v297
  %v1333 = vunpack.c.l.b16 %v298
  %v1334 = vunpack.c.l.b16 %v299
  %v1335 = vunpack.c.l.b16 %v300
  %v1336 = vunpack.c.l.b16 %v301
  %v1337 = vunpack.c.l.b16 %v302
  %v1338 = vunpack.c.l.b16 %v303
  %v1339 = vunpack.c.l.b16 %v304
  %v1340 = vunpack.c.l.b16 %v305
  %v1341 = vunpack.c.l.b16 %v306
  %v1342 = vunpack.c.l.b16 %v307
  %v1343 = vunpack.c.l.b16 %v308
  %v1344 = vunpack.c.l.b16 %v309
  %v1345 = vunpack.c.l.b16 %v310
  %v1346 = vunpack.c.l.b16 %v311
  %v1347 = vunpack.c.l.b16 %v312
  %v1348 = vunpack.c.l.b16 %v313
  %v1349 = vunpack.c.l.b16 %v314
  %v1350 = vunpack.c.l.b16 %v315
  %v1351 = vunpack.c.l.b16 %v316
  %v1352 = vunpack.c.l.b16 %v317
  %v1353 = vunpack.c.l.b16 %v318
  %v1354 = vunpack.c.l.b16 %v319
  %v1355 = vunpack.c.l.b16 %v320
  %v1356 = vunpack.c.l.b16 %v321
  %v1357 = vunpack.c.l.b16 %v322
  %v1358 = vunpack.c.l.b16 %v323
  %v1359 = vunpack.c.l.b16 %v324
  %v1360 = vunpack.c.l.b16 %v325
  %v1361 = vunpack.c.l.b16 %v326
  %v1362 = vunpack.c.l.b16 %v327
  %v1363 = vunpack.c.l.b16 %v328
  %v1364 = vunpack.c.l.b16 %v329
  %v1365 = vunpack.c.l.b16 %v330
  %v1366 = vunpack.c.l.b16 %v331
  %v1367 = vunpack.c.l.b16 %v332
  %v1368 = vunpack.c.l.b16 %v333
  %v1369 = vunpack.c.l.b16 %v334
  %v1370 = vunpack.c.l.b16 %v335
  %v1371 = vunpack.c.l.b16 %v336
  %v1372 = vunpack.c.l.b16 %v337
  %v1373 = vunpack.c.l.b16 %v338
  %v1374 = vunpack.c.l.b16 %v339
  %v1375 = vunpack.c.l.b16 %v340
  %v1376 = vunpack.c.l.b16 %v341
  %v1377 = vunpack.c.l.b16 %v342
  %v1378 = vunpack.c.l.b16 %v343
  %v1379 = vunpack.c.l.b16 %v344
  %v1380 = vunpack.c.l.b16 %v345
  %v1381 = vunpack.c.l.b16 %v346
  %v1382 = vunpack.c.l.b16 %v347
  %v1383 = vunpack.c.l.b16 %v348
  %v1384 = vunpack.c.l.b16 %v349
  %v1385 = vunpack.c.l.b16 %v350
  %v1386 = vunpack.c.l.b16 %v351
  %v1387 = vunpack.c.l.b16 %v352
  %v1388 = vunpack.c.l.b16 %v353
  %v1389 = vunpack.c.l.b16 %v354
  %v1390 = vunpack.c.l.b16 %v355
  %v1391 = vunpack.c.l.b16 %v356
  %v1392 = vunpack.c.l.b16 %v357
  %v1393 = vunpack.c.l.b16 %v358
  %v1394 = vunpack.c.l.b16 %v359
  %v1395 = vunpack.c.l.b16 %v360
  %v1396 = vunpack.c.l.b16 %v361
  %v1397 = vunpack.c.l.b16 %v362
  %v1398 = vunpack.c.l.b16 %v363
  %v1399 = vunpack.c.l.b16 %v364
  %v1400 = vunpack.c.l.b16 %v365
  %v1401 = vunpack.c.l.b16 %v366
  %v1402 = vunpack.c.l.b16 %v367
  %v1403 = vunpack.c.l.b16 %v368
  %v1404 = vunpack.c.l.b16 %v369
  %v1405 = vunpack.c.l.b16 %v370
  %v1406 = vunpack.c.l.b16 %v371
  %v1407 = vunpack.c.l.b16 %v372
  %v1408 = vunpack.c.l.b16 %v373
  %v1409 = vunpack.c.l.b16 %v374
  %v1410 = vunpack.c.l.b16 %v375
  %v1411 = vunpack.c.l.b16 %v376
  %v1412 = vunpack.c.l.b16 %v377
  %v1413 = vunpack.c.l.b16 %v378
  %v1414 = vunpack.c.l.b16 %v379
  %v1415 = vunpack.c.l.b16 %v380
  %v1416 = vunpack.c.l.b16 %v381
  %v1417 = vunpack.c.l.b16 %v382
  %v1418 = vunpack.c.l.b16 %v383
  %v1419 = vunpack.c.l.b16 %v384
  %v1420 = vunpack.c.l.b16 %v385
  %v1421 = vunpack.c.l.b16 %v386
  %v1422 = vunpack.c.l.b16 %v387
  %v1423 = vunpack.c.l.b16 %v388
  %v1424 = vunpack.c.l.b16 %v389
  %v1425 = vunpack.c.l.b16 %v390
  %v1426 = vunpack.c.l.b16 %v391
  %v1427 = vunpack.c.l.b16 %v392
  %v1428 = vunpack.c.l.b16 %v393
  %v1429 = vunpack.c.l.b16 %v394
  %v1430 = vunpack.c.l.b16 %v395
  %v1431 = vunpack.c.l.b16 %v396
  %v1432 = vunpack.c.l.b16 %v397
  %v1433 = vunpack.c.l.b16 %v398
  %v1434 = vunpack.c.l.b16 %v399
  %v1435 = vunpack.c.l.b16 %v400
  %v1436 = vunpack.c.l.b16 %v401
  %v1437 = vunpack.c.l.b16 %v402
  %v1438 = vunpack.c.l.b16 %v403
  %v1439 = vunpack.c.l.b16 %v404
  %v1440 = vunpack.c.l.b16 %v405
  %v1441 = vunpack.c.l.b16 %v406
  %v1442 = vunpack.c.l.b16 %v407
  %v1443 = vunpack.c.l.b16 %v408
  %v1444 = vunpack.c.l.b16 %v409
  %v1445 = vunpack.c.l.b16 %v410
  %v1446 = vunpack.c.l.b16 %v411
  %v1447 = vunpack.c.l.b16 %v412
  %v1448 = vunpack.c.l.b16 %v413
  %v1449 = vunpack.c.l.b16 %v414
  %v1450 = vunpack.c.l.b16 %v415
  %v1451 = vunpack.c.l.b16 %v416
  %v1452 = vunpack.c.l.b16 %v417
  %v1453 = vunpack.c.l.b16 %v418
  %v1454 = vunpack.c.l.b16 %v419
  %v1455 = vunpack.c.l.b16 %v420
  %v1456 = vunpack.c.l.b16 %v421
  %v1457 = vunpack.c.l.b16 %v422
  %v1458 = vunpack.c.l.b16 %v423
  %v1459 = vunpack.c.l.b16 %v424
  %v1460 = vunpack.c.l.b16 %v425
  %v1461 = vunpack.c.l.b16 %v426
  %v1462 = vunpack.c.l.b16 %v427
  %v1463 = vunpack.c.l.b16 %v428
  %v1464 = vunpack.c.l.b16 %v429
  %v1465 = vunpack.c.l.b16 %v430
  %v1466 = vunpack.c.l.b16 %v431
  %v1467 = vunpack.c.l.b16 %v432
  %v1468 = vunpack.c.l.b16 %v433
  %v1469 = vunpack.c.l.b16 %v434
  %v1470 = vunpack.c.l.b16 %v435
  %v1471 = vunpack.c.l.b16 %v436
  %v1472 = vunpack.c.l.b16 %v437
  %v1473 = vunpack.c.l.b16 %v438
  %v1474 = vunpack.c.l.b16 %v439
  %v1475 = vunpack.c.l.b16 %v440
  %v1476 = vunpack.c.l.b16 %v441
  %v1477 = vunpack.c.l.b16 %v442
  %v1478 = vunpack.c.l.b16 %v443
  %v1479 = vunpack.c.l.b16 %v444
  %v1480 = vunpack.c.l.b16 %v445
  %v1481 = vunpack.c.l.b16 %v446
  %v1482 = vunpack.c.l.b16 %v447
  %v1483 = vunpack.c.l.b16 %v448
  %v1484 = vunpack.c.l.b16 %v449
  %v1485 = vunpack.c.l.b16 %v450
  %v1486 = vunpack.c.l.b16 %v451
  %v1487 = vunpack.c.l.b16 %v452
  %v1488 = vunpack.c.l.b16 %v453
  %v1489 = vunpack.c.l.b16 %v454
  %v1490 = vunpack.c.l.b16 %v455
  %v1491 = vunpack.c.l.b16 %v456
  %v1492 = vunpack.c.l.b16 %v457
  %v1493 = vunpack.c.l.b16 %v458
  %v1494 = vunpack.c.l.b16 %v459
  %v1495 = vunpack.c.l.b16 %v460
  %v1496 = vunpack.c.l.b16 %v461
  %v1497 = vunpack.c.l.b16 %v462
  %v1498 = vunpack.c.l.b16 %v463
  %v1499 = vunpack.c.l.b16 %v464
  %v1500 = vunpack.c.l.b16 %v465
  %v1501 = vunpack.c.l.b16 %v466
  %v1502 = vunpack.c.l.b16 %v467
  %v1503 = vunpack.c.l.b16 %v468
  %v1504 = vunpack.c.l.b16 %v469
  %v1505 = vunpack.c.l.b16 %v470
  %v1506 = vunpack.c.l.b16 %v471
  %v1507 = vunpack.c.l.b16 %v472
  %v1508 = vunpack.c.l.b16 %v473
  %v1509 = vunpack.c.l.b16 %v474
  %v1510 = vunpack.c.l.b16 %v475
  %v1511 = vunpack.c.l.b16 %v476
  %v1512 = vunpack.c.l.b16 %v477
  %v1513 = vunpack.c.l.b16 %v478
  %v1514 = vunpack.c.l.b16 %v479
  %v1515 = vunpack.c.l.b16 %v480
  %v1516 = vunpack.c.l.b16 %v481
  %v1517 = vunpack.c.l.b16 %v482
  %v1518 = vunpack.c.l.b16 %v483
  %v1519 = vunpack.c.l.b16 %v484
  %v1520 = vunpack.c.l.b16 %v485
  %v1521 = vunpack.c.l.b16 %v486
  %v1522 = vunpack.c.l.b16 %v487
  %v1523 = vunpack.c.l.b16 %v488
  %v1524 = vunpack.c.l.b16 %v489
  %v1525 = vunpack.c.l.b16 %v490
  %v1526 = vunpack.c.l.b16 %v491
  %v1527 = vunpack.c.l.b16 %v492
  %v1528 = vunpack.c.l.b16 %v493
  %v1529 = vunpack.c.l.b16 %v494
  %v1530 = vunpack.c.l.b16 %v495
  %v1531 = vunpack.c.l.b16 %v496
  %v1532 = vunpack.c.l.b16 %v497
  %v1533 = vunpack.c.l.b16 %v498
  %v1534 = vunpack.c.l.b16 %v499
  %v1535 = vunpack.c.l.b16 %v500
  %v1536 = vunpack.c.l.b16 %v501
  %v1537 = vunpack.c.l.b16 %v502
  %v1538 = vunpack.c.l.b16 %v503
  %v1539 = vunpack.c.l.b16 %v504
  %v1540 = vunpack.c.l.b16 %v505
  %v1541 = vunpack.c.l.b16 %v506
  %v1542 = vunpack.c.l.b16 %v507
  %v1543 = vunpack.c.l.b16 %v508
  %v1544 = vunpack.c.l.b16 %v509
  %v1545 = vunpack.c.l.b16 %v510
  %v1546 = vunpack.c.l.b16 %v511
  %v1547 = vunpack.c.l.b16 %v512
  %v1548 = vunpack.c.l.b16 %v513
  %v1549 = vunpack.c.l.b16 %v514
  %v1550 = vunpack.c.l.b16 %v515
  %v1551 = vunpack.c.l.b16 %v516
  %v1552 = vunpack.c.l.b16 %v517
  %v1553 = vunpack.c.l.b16 %v518
  %v1554 = vunpack.c.l.b16 %v519
  %v1555 = vunpack.c.l.b16 %v520
  %v1556 = vunpack.c.l.b16 %v521
  %v1557 = vunpack.c.l.b16 %v522
  %v1558 = vunpack.c.l.b16 %v523
  %v1559 = vunpack.c.l.b16 %v524
  %v1560 = vunpack.c.l.b16 %v525
  %v1561 = vunpack.c.l.b16 %v526
  %v1562 = vpack.c.b16 %v1051, %v1050
  %v1563 = vpack.c.b16 %v1053, %v1052
  %v1564 = vpack.c.b16 %v1055, %v1054
  %v1565 = vpack.c.b16 %v1057, %v1056
  %v1566 = vpack.c.b16 %v1059, %v1058
  %v1567 = vpack.c.b16 %v1061, %v1060
  %v1568 = vpack.c.b16 %v1063, %v1062
  %v1569 = vpack.c.b16 %v1065, %v1064
  %v1570 = vpack.c.b16 %v1067, %v1066
  %v1571 = vpack.c.b16 %v1069, %v1068
  %v1572 = vpack.c.b16 %v1071, %v1070
  %v1573 = vpack.c.b16 %v1073, %v1072
  %v1574 = vpack.c.b16 %v1075, %v1074
  %v1575 = vpack.c.b16 %v1077, %v1076
  %v1576 = vpack.c.b16 %v1079, %v1078
  %v1577 = vpack.c.b16 %v1081, %v1080
  %v1578 = vpack.c.b16 %v1083, %v1082
  %v1579 = vpack.c.b16 %v1085, %v1084
  %v1580 = vpack.c.b16 %v1087, %v1086
  %v1581 = vpack.c.b16 %v1089, %v1088
  %v1582 = vpack.c.b16 %v1091, %v1090
  %v1583 = vpack.c.b16 %v1093, %v1092
  %v1584 = vpack.c.b16 %v1095, %v1094
  %v1585 = vpack.c.b16 %v1097, %v1096
  %v1586 = vpack.c.b16 %v1099, %v1098
  %v1587 = vpack.c.b16 %v1101, %v1100
  %v1588 = vpack.c.b16 %v1103, %v1102
  %v1589 = vpack.c.b16 %v1105, %v1104
  %v1590 = vpack.c.b16 %v1107, %v1106
  %v1591 = vpack.c.b16 %v1109, %v1108
  %v1592 = vpack.c.b16 %v1111, %v1110
  %v1593 = vpack.c.b16 %v1113, %v1112
  %v1594 = vpack.c.b16 %v1115, %v1114
  %v1595 = vpack.c.b16 %v1117, %v1116
  %v1596 = vpack.c.b16 %v1119, %v1118
  %v1597 = vpack.c.b16 %v1121, %v1120
  %v1598 = vpack.c.b16 %v1123, %v1122
  %v1599 = vpack.c.b16 %v1125, %v1124
  %v1600 = vpack.c.b16 %v1127, %v1126
  %v1601 = vpack.c.b16 %v1129, %v1128
  %v1602 = vpack.c.b16 %v1131, %v1130
  %v1603 = vpack.c.b16 %v1133, %v1132
  %v1604 = vpack.c.b16 %v1135, %v1134
  %v1605 = vpack.c.b16 %v1137, %v1136
  %v1606 = vpack.c.b16 %v1139, %v1138
  %v1607 = vpack.c.b16 %v1141, %v1140
  %v1608 = vpack.c.b16 %v1143, %v1142
  %v1609 = vpack.c.b16 %v1145, %v1144
  %v1610 = vpack.c.b16 %v1147, %v1146
  %v1611 = vpack.c.b16 %v1149, %v1148
  %v1612 = vpack.c.b16 %v1151, %v1150
  %v1613 = vpack.c.b16 %v1153, %v1152
  %v1614 = vpack.c.b16 %v1155, %v1154
  %v1615 = vpack.c.b16 %v1157, %v1156
  %v1616 = vpack.c.b16 %v1159, %v1158
  %v1617 = vpack.c.b16 %v1161, %v1160
  %v1618 = vpack.c.b16 %v1163, %v1162
  %v1619 = vpack.c.b16 %v1165, %v1164
  %v1620 = vpack.c.b16 %v1167, %v1166
  %v1621 = vpack.c.b16 %v1169, %v1168
  %v1622 = vpack.c.b16 %v1171, %v1170
  %v1623 = vpack.c.b16 %v1173, %v1172
  %v1624 = vpack.c.b16 %v1175, %v1174
  %v1625 = vpack.c.b16 %v1177, %v1176
  %v1626 = vpack.c.b16 %v1179, %v1178
  %v1627 = vpack.c.b16 %v1181, %v1180
  %v1628 = vpack.c.b16 %v1183, %v1182
  %v1629 = vpack.c.b16 %v1185, %v1184
  %v1630 = vpack.c.b16 %v1187, %v1186
  %v1631 = vpack.c.b16 %v1189, %v1188
  %v1632 = vpack.c.b16 %v1191, %v1190
  %v1633 = vpack.c.b16 %v1193, %v1192
  %v1634 = vpack.c.b16 %v1195, %v1194
  %v1635 = vpack.c.b16 %v1197, %v1196
  %v1636 = vpack.c.b16 %v1199, %v1198
  %v1637 = vpack.c.b16 %v1201, %v1200
  %v1638 = vpack.c.b16 %v1203, %v1202
  %v1639 = vpack.c.b16 %v1205, %v1204
  %v1640 = vpack.c.b16 %v1207, %v1206
  %v1641 = vpack.c.b16 %v1209, %v1208
  %v1642 = vpack.c.b16 %v1211, %v1210
  %v1643 = vpack.c.b16 %v1213, %v1212
  %v1644 = vpack.c.b16 %v1215, %v1214
  %v1645 = vpack.c.b16 %v1217, %v1216
  %v1646 = vpack.c.b16 %v1219, %v1218
  %v1647 = vpack.c.b16 %v1221, %v1220
  %v1648 = vpack.c.b16 %v1223, %v1222
  %v1649 = vpack.c.b16 %v1225, %v1224
  %v1650 = vpack.c.b16 %v1227, %v1226
  %v1651 = vpack.c.b16 %v1229, %v1228
  %v1652 = vpack.c.b16 %v1231, %v1230
  %v1653 = vpack.c.b16 %v1233, %v1232
  %v1654 = vpack.c.b16 %v1235, %v1234
  %v1655 = vpack.c.b16 %v1237, %v1236
  %v1656 = vpack.c.b16 %v1239, %v1238
  %v1657 = vpack.c.b16 %v1241, %v1240
  %v1658 = vpack.c.b16 %v1243, %v1242
  %v1659 = vpack.c.b16 %v1245, %v1244
  %v1660 = vpack.c.b16 %v1247, %v1246
  %v1661 = vpack.c.b16 %v1249, %v1248
  %v1662 = vpack.c.b16 %v1251, %v1250
  %v1663 = vpack.c.b16 %v1253, %v1252
  %v1664 = vpack.c.b16 %v1255, %v1254
  %v1665 = vpack.c.b16 %v1257, %v1256
  %v1666 = vpack.c.b16 %v1259, %v1258
  %v1667 = vpack.c.b16 %v1261, %v1260
  %v1668 = vpack.c.b16 %v1263, %v1262
  %v1669 = vpack.c.b16 %v1265, %v1264
  %v1670 = vpack.c.b16 %v1267, %v1266
  %v1671 = vpack.c.b16 %v1269, %v1268
  %v1672 = vpack.c.b16 %v1271, %v1270
  %v1673 = vpack.c.b16 %v1273, %v1272
  %v1674 = vpack.c.b16 %v1275, %v1274
  %v1675 = vpack.c.b16 %v1277, %v1276
  %v1676 = vpack.c.b16 %v1279, %v1278
  %v1677 = vpack.c.b16 %v1281, %v1280
  %v1678 = vpack.c.b16 %v1283, %v1282
  %v1679 = vpack.c.b16 %v1285, %v1284
  %v1680 = vpack.c.b16 %v1287, %v1286
  %v1681 = vpack.c.b16 %v1289, %v1288
  %v1682 = vpack.c.b16 %v1291, %v1290
  %v1683 = vpack.c.b16 %v1293, %v1292
  %v1684 = vpack.c.b16 %v1295, %v1294
  %v1685 = vpack.c.b16 %v1297, %v1296
  %v1686 = vpack.c.b16 %v1299, %v1298
  %v1687 = vpack.c.b16 %v1301, %v1300
  %v1688 = vpack.c.b16 %v1303, %v1302
  %v1689 = vpack.c.b16 %v1305, %v1304
  %v1690 = vpack.c.b16 %v1307, %v1306
  %v1691 = vpack.c.b16 %v1309, %v1308
  %v1692 = vpack.c.b16 %v1311, %v1310
  %v1693 = vpack.c.b16 %v1313, %v1312
  %v1694 = vpack.c.b16 %v1315, %v1314
  %v1695 = vpack.c.b16 %v1317, %v1316
  %v1696 = vpack.c.b16 %v1319, %v1318
  %v1697 = vpack.c.b16 %v1321, %v1320
  %v1698 = vpack.c.b16 %v1323, %v1322
  %v1699 = vpack.c.b16 %v1325, %v1324
  %v1700 = vpack.c.b16 %v1327, %v1326
  %v1701 = vpack.c.b16 %v1329, %v1328
  %v1702 = vpack.c.b16 %v1331, %v1330
  %v1703 = vpack.c.b16 %v1333, %v1332
  %v1704 = vpack.c.b16 %v1335, %v1334
  %v1705 = vpack.c.b16 %v1337, %v1336
  %v1706 = vpack.c.b16 %v1339, %v1338
  %v1707 = vpack.c.b16 %v1341, %v1340
  %v1708 = vpack.c.b16 %v1343, %v1342
  %v1709 = vpack.c.b16 %v1345, %v1344
  %v1710 = vpack.c.b16 %v1347, %v1346
  %v1711 = vpack.c.b16 %v1349, %v1348
  %v1712 = vpack.c.b16 %v1351, %v1350
  %v1713 = vpack.c.b16 %v1353, %v1352
  %v1714 = vpack.c.b16 %v1355, %v1354
  %v1715 = vpack.c.b16 %v1357, %v1356
  %v1716 = vpack.c.b16 %v1359, %v1358
  %v1717 = vpack.c.b16 %v1361, %v1360
  %v1718 = vpack.c.b16 %v1363, %v1362
  %v1719 = vpack.c.b16 %v1365, %v1364
  %v1720 = vpack.c.b16 %v1367, %v1366
  %v1721 = vpack.c.b16 %v1369, %v1368
  %v1722 = vpack.c.b16 %v1371, %v1370
  %v1723 = vpack.c.b16 %v1373, %v1372
  %v1724 = vpack.c.b16 %v1375, %v1374
  %v1725 = vpack.c.b16 %v1377, %v1376
  %v1726 = vpack.c.b16 %v1379, %v1378
  %v1727 = vpack.c.b16 %v1381, %v1380
  %v1728 = vpack.c.b16 %v1383, %v1382
  %v1729 = vpack.c.b16 %v1385, %v1384
  %v1730 = vpack.c.b16 %v1387, %v1386
  %v1731 = vpack.c.b16 %v1389, %v1388
  %v1732 = vpack.c.b16 %v1391, %v1390
  %v1733 = vpack.c.b16 %v1393, %v1392
  %v1734 = vpack.c.b16 %v1395, %v1394
  %v1735 = vpack.c.b16 %v1397, %v1396
  %v1736 = vpack.c.b16 %v1399, %v1398
  %v1737 = vpack.c.b16 %v1401, %v1400
  %v1738 = vpack.c.b16 %v1403, %v1402
  %v1739 = vpack.c.b16 %v1405, %v1404
  %v1740 = vpack.c.b16 %v1407, %v1406
  %v1741 = vpack.c.b16 %v1409, %v1408
  %v1742 = vpack.c.b16 %v1411, %v1410
  %v1743 = vpack.c.b16 %v1413, %v1412
  %v1744 = vpack.c.b16 %v1415, %v1414
  %v1745 = vpack.c.b16 %v1417, %v1416
  %v1746 = vpack.c.b16 %v1419, %v1418
  %v1747 = vpack.c.b16 %v1421, %v1420
  %v1748 = vpack.c.b16 %v1423, %v1422
  %v1749 = vpack.c.b16 %v1425, %v1424
  %v1750 = vpack.c.b16 %v1427, %v1426
  %v1751 = vpack.c.b16 %v1429, %v1428
  %v1752 = vpack.c.b16 %v1431, %v1430
  %v1753 = vpack.c.b16 %v1433, %v1432
  %v1754 = vpack.c.b16 %v1435, %v1434
  %v1755 = vpack.c.b16 %v1437, %v1436
  %v1756 = vpack.c.b16 %v1439, %v1438
  %v1757 = vpack.c.b16 %v1441, %v1440
  %v1758 = vpack.c.b16 %v1443, %v1442
  %v1759 = vpack.c.b16 %v1445, %v1444
  %v1760 = vpack.c.b16 %v1447, %v1446
  %v1761 = vpack.c.b16 %v1449, %v1448
  %v1762 = vpack.c.b16 %v1451, %v1450
  %v1763 = vpack.c.b16 %v1453, %v1452
  %v1764 = vpack.c.b16 %v1455, %v1454
  %v1765 = vpack.c.b16 %v1457, %v1456
  %v1766 = vpack.c.b16 %v1459, %v1458
  %v1767 = vpack.c.b16 %v1461, %v1460
  %v1768 = vpack.c.b16 %v1463, %v1462
  %v1769 = vpack.c.b16 %v1465, %v1464
  %v1770 = vpack.c.b16 %v1467, %v1466
  %v1771 = vpack.c.b16 %v1469, %v1468
  %v1772 = vpack.c.b16 %v1471, %v1470
  %v1773 = vpack.c.b16 %v1473, %v1472
  %v1774 = vpack.c.b16 %v1475, %v1474
  %v1775 = vpack.c.b16 %v1477, %v1476
  %v1776 = vpack.c.b16 %v1479, %v1478
  %v1777 = vpack.c.b16 %v1481, %v1480
  %v1778 = vpack.c.b16 %v1483, %v1482
  %v1779 = vpack.c.b16 %v1485, %v1484
  %v1780 = vpack.c.b16 %v1487, %v1486
  %v1781 = vpack.c.b16 %v1489, %v1488
  %v1782 = vpack.c.b16 %v1491, %v1490
  %v1783 = vpack.c.b16 %v1493, %v1492
  %v1784 = vpack.c.b16 %v1495, %v1494
  %v1785 = vpack.c.b16 %v1497, %v1496
  %v1786 = vpack.c.b16 %v1499, %v1498
  %v1787 = vpack.c.b16 %v1501, %v1500
  %v1788 = vpack.c.b16 %v1503, %v1502
  %v1789 = vpack.c.b16 %v1505, %v1504
  %v1790 = vpack.c.b16 %v1507, %v1506
  %v1791 = vpack.c.b16 %v1509, %v1508
  %v1792 = vpack.c.b16 %v1511, %v1510
  %v1793 = vpack.c.b16 %v1513, %v1512
  %v1794 = vpack.c.b16 %v1515, %v1514
  %v1795 = vpack.c.b16 %v1517, %v1516
  %v1796 = vpack.c.b16 %v1519, %v1518
  %v1797 = vpack.c.b16 %v1521, %v1520
  %v1798 = vpack.c.b16 %v1523, %v1522
  %v1799 = vpack.c.b16 %v1525, %v1524
  %v1800 = vpack.c.b16 %v1527, %v1526
  %v1801 = vpack.c.b16 %v1529, %v1528
  %v1802 = vpack.c.b16 %v1531, %v1530
  %v1803 = vpack.c.b16 %v1533, %v1532
  %v1804 = vpack.c.b16 %v1535, %v1534
  %v1805 = vpack.c.b16 %v1537, %v1536
  %v1806 = vpack.c.b16 %v1539, %v1538
  %v1807 = vpack.c.b16 %v1541, %v1540
  %v1808 = vpack.c.b16 %v1543, %v1542
  %v1809 = vpack.c.b16 %v1545, %v1544
  %v1810 = vpack.c.b16 %v1547, %v1546
  %v1811 = vpack.c.b16 %v1549, %v1548
  %v1812 = vpack.c.b16 %v1551, %v1550
  %v1813 = vpack.c.b16 %v1553, %v1552
  %v1814 = vpack.c.b16 %v1555, %v1554
  %v1815 = vpack.c.b16 %v1557, %v1556
  %v1816 = vpack.c.b16 %v1559, %v1558
  %v1817 = vpack.c.b16 %v1561, %v1560
  %v1822 = vunpack.c.l.b16 %v527
  %v1823 = vunpack.c.l.b16 %v528
  %v1824 = vunpack.c.l.b16 %v529
  %v1825 = vunpack.c.l.b16 %v530
  %v1826 = vpack.c.b16 %v1823, %v1822
  %v1827 = vpack.c.b16 %v1825, %v1824
  %vm1830 = vcmask 261120
  %v1832 = vsel %vm1830, %v1562, 0
  %v1835 = vsel %vm1830, %v1563, 0
  %v1838 = vsel %vm1830, %v1564, 0
  %v1841 = vsel %vm1830, %v1565, 0
  %v1844 = vsel %vm1830, %v1566, 0
  %v1847 = vsel %vm1830, %v1567, 0
  %v1850 = vsel %vm1830, %v1568, 0
  %v1853 = vsel %vm1830, %v1569, 0
  %v1856 = vsel %vm1830, %v1570, 0
  %v1859 = vsel %vm1830, %v1571, 0
  %v1862 = vsel %vm1830, %v1572, 0
  %v1865 = vsel %vm1830, %v1573, 0
  %v1868 = vsel %vm1830, %v1574, 0
  %v1871 = vsel %vm1830, %v1575, 0
  %v1874 = vsel %vm1830, %v1576, 0
  %v1877 = vsel %vm1830, %v1577, 0
  %v1880 = vsel %vm1830, %v1578, 0
  %v1883 = vsel %vm1830, %v1579, 0
  %v1886 = vsel %vm1830, %v1580, 0
  %v1889 = vsel %vm1830, %v1581, 0
  %v1892 = vsel %vm1830, %v1582, 0
  %v1895 = vsel %vm1830, %v1583, 0
  %v1898 = vsel %vm1830, %v1584, 0
  %v1901 = vsel %vm1830, %v1585, 0
  %v1904 = vsel %vm1830, %v1586, 0
  %v1907 = vsel %vm1830, %v1587, 0
  %v1910 = vsel %vm1830, %v1588, 0
  %v1913 = vsel %vm1830, %v1589, 0
  %v1916 = vsel %vm1830, %v1590, 0
  %v1919 = vsel %vm1830, %v1591, 0
  %v1922 = vsel %vm1830, %v1592, 0
  %v1925 = vsel %vm1830, %v1593, 0
  %v1928 = vsel %vm1830, %v1594, 0
  %v1931 = vsel %vm1830, %v1595, 0
  %v1934 = vsel %vm1830, %v1596, 0
  %v1937 = vsel %vm1830, %v1597, 0
  %v1940 = vsel %vm1830, %v1598, 0
  %v1943 = vsel %vm1830, %v1599, 0
  %v1946 = vsel %vm1830, %v1600, 0
  %v1949 = vsel %vm1830, %v1601, 0
  %v1952 = vsel %vm1830, %v1602, 0
  %v1955 = vsel %vm1830, %v1603, 0
  %v1958 = vsel %vm1830, %v1604, 0
  %v1961 = vsel %vm1830, %v1605, 0
  %v1964 = vsel %vm1830, %v1606, 0
  %v1967 = vsel %vm1830, %v1607, 0
  %v1970 = vsel %vm1830, %v1608, 0
  %v1973 = vsel %vm1830, %v1609, 0
  %v1976 = vsel %vm1830, %v1610, 0
  %v1979 = vsel %vm1830, %v1611, 0
  %v1982 = vsel %vm1830, %v1612, 0
  %v1985 = vsel %vm1830, %v1613, 0
  %v1988 = vsel %vm1830, %v1614, 0
  %v1991 = vsel %vm1830, %v1615, 0
  %v1994 = vsel %vm1830, %v1616, 0
  %v1997 = vsel %vm1830, %v1617, 0
  %v2000 = vsel %vm1830, %v1618, 0
  %v2003 = vsel %vm1830, %v1619, 0
  %v2006 = vsel %vm1830, %v1620, 0
  %v2009 = vsel %vm1830, %v1621, 0
  %v2012 = vsel %vm1830, %v1622, 0
  %v2015 = vsel %vm1830, %v1623, 0
  %v2018 = vsel %vm1830, %v1624, 0
  %v2021 = vsel %vm1830, %v1625, 0
  %v2024 = vsel %vm1830, %v1626, 0
  %v2027 = vsel %vm1830, %v1627, 0
  %v2030 = vsel %vm1830, %v1628, 0
  %v2033 = vsel %vm1830, %v1629, 0
  %v2036 = vsel %vm1830, %v1630, 0
  %v2039 = vsel %vm1830, %v1631, 0
  %v2042 = vsel %vm1830, %v1632, 0
  %v2045 = vsel %vm1830, %v1633, 0
  %v2048 = vsel %vm1830, %v1634, 0
  %v2051 = vsel %vm1830, %v1635, 0
  %v2054 = vsel %vm1830, %v1636, 0
  %v2057 = vsel %vm1830, %v1637, 0
  %v2060 = vsel %vm1830, %v1638, 0
  %v2063 = vsel %vm1830, %v1639, 0
  %v2066 = vsel %vm1830, %v1640, 0
  %v2069 = vsel %vm1830, %v1641, 0
  %v2072 = vsel %vm1830, %v1642, 0
  %v2075 = vsel %vm1830, %v1643, 0
  %v2078 = vsel %vm1830, %v1644, 0
  %v2081 = vsel %vm1830, %v1645, 0
  %v2084 = vsel %vm1830, %v1646, 0
  %v2087 = vsel %vm1830, %v1647, 0
  %v2090 = vsel %vm1830, %v1648, 0
  %v2093 = vsel %vm1830, %v1649, 0
  %v2096 = vsel %vm1830, %v1650, 0
  %v2099 = vsel %vm1830, %v1651, 0
  %v2102 = vsel %vm1830, %v1652, 0
  %v2105 = vsel %vm1830, %v1653, 0
  %v2108 = vsel %vm1830, %v1654, 0
  %v2111 = vsel %vm1830, %v1655, 0
  %v2114 = vsel %vm1830, %v1656, 0
  %v2117 = vsel %vm1830, %v1657, 0
  %v2120 = vsel %vm1830, %v1658, 0
  %v2123 = vsel %vm1830, %v1659, 0
  %v2126 = vsel %vm1830, %v1660, 0
  %v2129 = vsel %vm1830, %v1661, 0
  %v2132 = vsel %vm1830, %v1662, 0
  %v2135 = vsel %vm1830, %v1663, 0
  %v2138 = vsel %vm1830, %v1664, 0
  %v2141 = vsel %vm1830, %v1665, 0
  %v2144 = vsel %vm1830, %v1666, 0
  %v2147 = vsel %vm1830, %v1667, 0
  %v2150 = vsel %vm1830, %v1668, 0
  %v2153 = vsel %vm1830, %v1669, 0
  %v2156 = vsel %vm1830, %v1670, 0
  %v2159 = vsel %vm1830, %v1671, 0
  %v2162 = vsel %vm1830, %v1672, 0
  %v2165 = vsel %vm1830, %v1673, 0
  %v2168 = vsel %vm1830, %v1674, 0
  %v2171 = vsel %vm1830, %v1675, 0
  %v2174 = vsel %vm1830, %v1676, 0
  %v2177 = vsel %vm1830, %v1677, 0
  %v2180 = vsel %vm1830, %v1678, 0
  %v2183 = vsel %vm1830, %v1679, 0
  %v2186 = vsel %vm1830, %v1680, 0
  %v2189 = vsel %vm1830, %v1681, 0
  %v2192 = vsel %vm1830, %v1682, 0
  %v2195 = vsel %vm1830, %v1683, 0
  %v2198 = vsel %vm1830, %v1684, 0
  %v2201 = vsel %vm1830, %v1685, 0
  %v2204 = vsel %vm1830, %v1686, 0
  %v2207 = vsel %vm1830, %v1687, 0
  %v2210 = vsel %vm1830, %v1688, 0
  %v2213 = vsel %vm1830, %v1689, 0
  %v2216 = vsel %vm1830, %v1690, 0
  %v2219 = vsel %vm1830, %v1691, 0
  %v2222 = vsel %vm1830, %v1692, 0
  %v2225 = vsel %vm1830, %v1693, 0
  %v2228 = vsel %vm1830, %v1694, 0
  %v2231 = vsel %vm1830, %v1695, 0
  %v2234 = vsel %vm1830, %v1696, 0
  %v2237 = vsel %vm1830, %v1697, 0
  %v2240 = vsel %vm1830, %v1698, 0
  %v2243 = vsel %vm1830, %v1699, 0
  %v2246 = vsel %vm1830, %v1700, 0
  %v2249 = vsel %vm1830, %v1701, 0
  %v2252 = vsel %vm1830, %v1702, 0
  %v2255 = vsel %vm1830, %v1703, 0
  %v2258 = vsel %vm1830, %v1704, 0
  %v2261 = vsel %vm1830, %v1705, 0
  %v2264 = vsel %vm1830, %v1706, 0
  %v2267 = vsel %vm1830, %v1707, 0
  %v2270 = vsel %vm1830, %v1708, 0
  %v2273 = vsel %vm1830, %v1709, 0
  %v2276 = vsel %vm1830, %v1710, 0
  %v2279 = vsel %vm1830, %v1711, 0
  %v2282 = vsel %vm1830, %v1712, 0
  %v2285 = vsel %vm1830, %v1713, 0
  %v2288 = vsel %vm1830, %v1714, 0
  %v2291 = vsel %vm1830, %v1715, 0
  %v2294 = vsel %vm1830, %v1716, 0
  %v2297 = vsel %vm1830, %v1717, 0
  %v2300 = vsel %vm1830, %v1718, 0
  %v2303 = vsel %vm1830, %v1719, 0
  %v2306 = vsel %vm1830, %v1720, 0
  %v2309 = vsel %vm1830, %v1721, 0
  %v2312 = vsel %vm1830, %v1722, 0
  %v2315 = vsel %vm1830, %v1723, 0
  %v2318 = vsel %vm1830, %v1724, 0
  %v2321 = vsel %vm1830, %v1725, 0
  %v2324 = vsel %vm1830, %v1726, 0
  %v2327 = vsel %vm1830, %v1727, 0
  %v2330 = vsel %vm1830, %v1728, 0
  %v2333 = vsel %vm1830, %v1729, 0
  %v2336 = vsel %vm1830, %v1730, 0
  %v2339 = vsel %vm1830, %v1731, 0
  %v2342 = vsel %vm1830, %v1732, 0
  %v2345 = vsel %vm1830, %v1733, 0
  %v2348 = vsel %vm1830, %v1734, 0
  %v2351 = vsel %vm1830, %v1735, 0
  %v2354 = vsel %vm1830, %v1736, 0
  %v2357 = vsel %vm1830, %v1737, 0
  %v2360 = vsel %vm1830, %v1738, 0
  %v2363 = vsel %vm1830, %v1739, 0
  %v2366 = vsel %vm1830, %v1740, 0
  %v2369 = vsel %vm1830, %v1741, 0
  %v2372 = vsel %vm1830, %v1742, 0
  %v2375 = vsel %vm1830, %v1743, 0
  %v2378 = vsel %vm1830, %v1744, 0
  %v2381 = vsel %vm1830, %v1745, 0
  %v2384 = vsel %vm1830, %v1746, 0
  %v2387 = vsel %vm1830, %v1747, 0
  %v2390 = vsel %vm1830, %v1748, 0
  %v2393 = vsel %vm1830, %v1749, 0
  %v2396 = vsel %vm1830, %v1750, 0
  %v2399 = vsel %vm1830, %v1751, 0
  %v2402 = vsel %vm1830, %v1752, 0
  %v2405 = vsel %vm1830, %v1753, 0
  %v2408 = vsel %vm1830, %v1754, 0
  %v2411 = vsel %vm1830, %v1755, 0
  %v2414 = vsel %vm1830, %v1756, 0
  %v2417 = vsel %vm1830, %v1757, 0
  %v2420 = vsel %vm1830, %v1758, 0
  %v2423 = vsel %vm1830, %v1759, 0
  %v2426 = vsel %vm1830, %v1760, 0
  %v2429 = vsel %vm1830, %v1761, 0
  %v2432 = vsel %vm1830, %v1762, 0
  %v2435 = vsel %vm1830, %v1763, 0
  %v2438 = vsel %vm1830, %v1764, 0
  %v2441 = vsel %vm1830, %v1765, 0
  %v2444 = vsel %vm1830, %v1766, 0
  %v2447 = vsel %vm1830, %v1767, 0
  %v2450 = vsel %vm1830, %v1768, 0
  %v2453 = vsel %vm1830, %v1769, 0
  %v2456 = vsel %vm1830, %v1770, 0
  %v2459 = vsel %vm1830, %v1771, 0
  %v2462 = vsel %vm1830, %v1772, 0
  %v2465 = vsel %vm1830, %v1773, 0
  %v2468 = vsel %vm1830, %v1774, 0
  %v2471 = vsel %vm1830, %v1775, 0
  %v2474 = vsel %vm1830, %v1776, 0
  %v2477 = vsel %vm1830, %v1777, 0
  %v2480 = vsel %vm1830, %v1778, 0
  %v2483 = vsel %vm1830, %v1779, 0
  %v2486 = vsel %vm1830, %v1780, 0
  %v2489 = vsel %vm1830, %v1781, 0
  %v2492 = vsel %vm1830, %v1782, 0
  %v2495 = vsel %vm1830, %v1783, 0
  %v2498 = vsel %vm1830, %v1784, 0
  %v2501 = vsel %vm1830, %v1785, 0
  %v2504 = vsel %vm1830, %v1786, 0
  %v2507 = vsel %vm1830, %v1787, 0
  %v2510 = vsel %vm1830, %v1788, 0
  %v2513 = vsel %vm1830, %v1789, 0
  %v2516 = vsel %vm1830, %v1790, 0
  %v2519 = vsel %vm1830, %v1791, 0
  %v2522 = vsel %vm1830, %v1792, 0
  %v2525 = vsel %vm1830, %v1793, 0
  %v2528 = vsel %vm1830, %v1794, 0
  %v2531 = vsel %vm1830, %v1795, 0
  %v2534 = vsel %vm1830, %v1796, 0
  %v2537 = vsel %vm1830, %v1797, 0
  %v2540 = vsel %vm1830, %v1798, 0
  %v2543 = vsel %vm1830, %v1799, 0
  %v2546 = vsel %vm1830, %v1800, 0
  %v2549 = vsel %vm1830, %v1801, 0
  %v2552 = vsel %vm1830, %v1802, 0
  %v2555 = vsel %vm1830, %v1803, 0
  %v2558 = vsel %vm1830, %v1804, 0
  %v2561 = vsel %vm1830, %v1805, 0
  %v2564 = vsel %vm1830, %v1806, 0
  %v2567 = vsel %vm1830, %v1807, 0
  %v2570 = vsel %vm1830, %v1808, 0
  %v2573 = vsel %vm1830, %v1809, 0
  %v2576 = vsel %vm1830, %v1810, 0
  %v2579 = vsel %vm1830, %v1811, 0
  %v2582 = vsel %vm1830, %v1812, 0
  %v2585 = vsel %vm1830, %v1813, 0
  %v2588 = vsel %vm1830, %v1814, 0
  %v2591 = vsel %vm1830, %v1815, 0
  %v2594 = vsel %vm1830, %v1816, 0
  %v2597 = vsel %vm1830, %v1817, 0
  %2599 = vmatprep.subr.bf16.mxu0 0
  %2600 = vmatpush1.bf16.msra.mxu0 0
  %2601 = vmatprep.subr.bf16.mxu0 0
  %2602 = vmatpush1.bf16.msra.mxu0 0
  %2603 = vmatprep.subr.bf16.mxu0 0
  %2604 = vmatpush1.bf16.msra.mxu0 0
  %2605 = vmatprep.subr.bf16.mxu0 0
  %2606 = vmatpush1.bf16.msra.mxu0 0
  %2607 = vmatprep.subr.bf16.mxu0 0
  %2608 = vmatpush1.bf16.msra.mxu0 0
  %2609 = vmatprep.subr.bf16.mxu0 0
  %2610 = vmatpush1.bf16.msra.mxu0 0
  %2611 = vmatprep.subr.bf16.mxu0 0
  %2612 = vmatpush1.bf16.msra.mxu0 %v1827
  %2613 = vmatprep.subr.bf16.mxu0 0
  %2614 = vmatpush1.bf16.msra.mxu0 %v1826
  %2615 = vmatprep.subr.bf16.mxu0 0
  %2616 = vmatpush2.bf16.msra.mxu0 0
  %2617 = vmatprep.subr.bf16.mxu0 0
  %2618 = vmatpush2.bf16.msra.mxu0 0
  %2619 = vmatprep.subr.bf16.mxu0 0
  %2620 = vmatpush2.bf16.msra.mxu0 0
  %2621 = vmatprep.subr.bf16.mxu0 0
  %2622 = vmatpush2.bf16.msra.mxu0 0
  %2623 = vmatprep.subr.bf16.mxu0 0
  %2624 = vmatpush2.bf16.msra.mxu0 0
  %2625 = vmatprep.subr.bf16.mxu0 0
  %2626 = vmatpush2.bf16.msra.mxu0 0
  %2627 = vmatprep.subr.bf16.mxu0 0
  %2628 = vmatpush2.bf16.msra.mxu0 0
  %2629 = vmatprep.subr.bf16.mxu0 0
  %2630 = vmatpush2.bf16.msra.mxu0 0
  %2631 = vmatprep.mubr.bf16.mxu0 0
  %2632 = vmatmul.mubr.bf16.gmra.mxu0 %v1832
  %v2633 = vpop.f32.mrf.mxu0
  %v2634 = vadd.f32 %v536, %v2633
  %v2635 = vpop.f32.mrf.mxu0
  %v2636 = vpop.f32.mrf.mxu0
  %v2637 = vadd.f32 %v536, %v2636
  %v2638 = vpop.f32.mrf.mxu0
  %2639 = vmatprep.mubr.bf16.mxu0 0
  %2640 = vmatmul.mubr.bf16.gmra.mxu0 %v1835
  %v2641 = vpop.f32.mrf.mxu0
  %v2642 = vadd.f32 %v536, %v2641
  %v2643 = vpop.f32.mrf.mxu0
  %v2644 = vpop.f32.mrf.mxu0
  %v2645 = vadd.f32 %v536, %v2644
  %v2646 = vpop.f32.mrf.mxu0
  %2647 = vmatprep.mubr.bf16.mxu0 0
  %2648 = vmatmul.mubr.bf16.gmra.mxu0 %v1838
  %v2649 = vpop.f32.mrf.mxu0
  %v2650 = vadd.f32 %v536, %v2649
  %v2651 = vpop.f32.mrf.mxu0
  %v2652 = vpop.f32.mrf.mxu0
  %v2653 = vadd.f32 %v536, %v2652
  %v2654 = vpop.f32.mrf.mxu0
  %2655 = vmatprep.mubr.bf16.mxu0 0
  %2656 = vmatmul.mubr.bf16.gmra.mxu0 %v1841
  %v2657 = vpop.f32.mrf.mxu0
  %v2658 = vadd.f32 %v536, %v2657
  %v2659 = vpop.f32.mrf.mxu0
  %v2660 = vpop.f32.mrf.mxu0
  %v2661 = vadd.f32 %v536, %v2660
  %v2662 = vpop.f32.mrf.mxu0
  %2663 = vmatprep.mubr.bf16.mxu0 0
  %2664 = vmatmul.mubr.bf16.gmra.mxu0 %v1844
  %v2665 = vpop.f32.mrf.mxu0
  %v2666 = vadd.f32 %v536, %v2665
  %v2667 = vpop.f32.mrf.mxu0
  %v2668 = vpop.f32.mrf.mxu0
  %v2669 = vadd.f32 %v536, %v2668
  %v2670 = vpop.f32.mrf.mxu0
  %2671 = vmatprep.mubr.bf16.mxu0 0
  %2672 = vmatmul.mubr.bf16.gmra.mxu0 %v1847
  %v2673 = vpop.f32.mrf.mxu0
  %v2674 = vadd.f32 %v536, %v2673
  %v2675 = vpop.f32.mrf.mxu0
  %v2676 = vpop.f32.mrf.mxu0
  %v2677 = vadd.f32 %v536, %v2676
  %v2678 = vpop.f32.mrf.mxu0
  %2679 = vmatprep.mubr.bf16.mxu0 0
  %2680 = vmatmul.mubr.bf16.gmra.mxu0 %v1850
  %v2681 = vpop.f32.mrf.mxu0
  %v2682 = vadd.f32 %v536, %v2681
  %v2683 = vpop.f32.mrf.mxu0
  %v2684 = vpop.f32.mrf.mxu0
  %v2685 = vadd.f32 %v536, %v2684
  %v2686 = vpop.f32.mrf.mxu0
  %2687 = vmatprep.mubr.bf16.mxu0 0
  %2688 = vmatmul.mubr.bf16.gmra.mxu0 %v1853
  %v2689 = vpop.f32.mrf.mxu0
  %v2690 = vadd.f32 %v536, %v2689
  %v2691 = vpop.f32.mrf.mxu0
  %v2692 = vpop.f32.mrf.mxu0
  %v2693 = vadd.f32 %v536, %v2692
  %v2694 = vpop.f32.mrf.mxu0
  %2695 = vmatprep.mubr.bf16.mxu0 0
  %2696 = vmatmul.mubr.bf16.gmra.mxu0 %v1856
  %v2697 = vpop.f32.mrf.mxu0
  %v2698 = vadd.f32 %v536, %v2697
  %v2699 = vpop.f32.mrf.mxu0
  %v2700 = vpop.f32.mrf.mxu0
  %v2701 = vadd.f32 %v536, %v2700
  %v2702 = vpop.f32.mrf.mxu0
  %2703 = vmatprep.mubr.bf16.mxu0 0
  %2704 = vmatmul.mubr.bf16.gmra.mxu0 %v1859
  %v2705 = vpop.f32.mrf.mxu0
  %v2706 = vadd.f32 %v536, %v2705
  %v2707 = vpop.f32.mrf.mxu0
  %v2708 = vpop.f32.mrf.mxu0
  %v2709 = vadd.f32 %v536, %v2708
  %v2710 = vpop.f32.mrf.mxu0
  %2711 = vmatprep.mubr.bf16.mxu0 0
  %2712 = vmatmul.mubr.bf16.gmra.mxu0 %v1862
  %v2713 = vpop.f32.mrf.mxu0
  %v2714 = vadd.f32 %v536, %v2713
  %v2715 = vpop.f32.mrf.mxu0
  %v2716 = vpop.f32.mrf.mxu0
  %v2717 = vadd.f32 %v536, %v2716
  %v2718 = vpop.f32.mrf.mxu0
  %2719 = vmatprep.mubr.bf16.mxu0 0
  %2720 = vmatmul.mubr.bf16.gmra.mxu0 %v1865
  %v2721 = vpop.f32.mrf.mxu0
  %v2722 = vadd.f32 %v536, %v2721
  %v2723 = vpop.f32.mrf.mxu0
  %v2724 = vpop.f32.mrf.mxu0
  %v2725 = vadd.f32 %v536, %v2724
  %v2726 = vpop.f32.mrf.mxu0
  %2727 = vmatprep.mubr.bf16.mxu0 0
  %2728 = vmatmul.mubr.bf16.gmra.mxu0 %v1868
  %v2729 = vpop.f32.mrf.mxu0
  %v2730 = vadd.f32 %v536, %v2729
  %v2731 = vpop.f32.mrf.mxu0
  %v2732 = vpop.f32.mrf.mxu0
  %v2733 = vadd.f32 %v536, %v2732
  %v2734 = vpop.f32.mrf.mxu0
  %2735 = vmatprep.mubr.bf16.mxu0 0
  %2736 = vmatmul.mubr.bf16.gmra.mxu0 %v1871
  %v2737 = vpop.f32.mrf.mxu0
  %v2738 = vadd.f32 %v536, %v2737
  %v2739 = vpop.f32.mrf.mxu0
  %v2740 = vpop.f32.mrf.mxu0
  %v2741 = vadd.f32 %v536, %v2740
  %v2742 = vpop.f32.mrf.mxu0
  %2743 = vmatprep.mubr.bf16.mxu0 0
  %2744 = vmatmul.mubr.bf16.gmra.mxu0 %v1874
  %v2745 = vpop.f32.mrf.mxu0
  %v2746 = vadd.f32 %v536, %v2745
  %v2747 = vpop.f32.mrf.mxu0
  %v2748 = vpop.f32.mrf.mxu0
  %v2749 = vadd.f32 %v536, %v2748
  %v2750 = vpop.f32.mrf.mxu0
  %2751 = vmatprep.mubr.bf16.mxu0 0
  %2752 = vmatmul.mubr.bf16.gmra.mxu0 %v1877
  %v2753 = vpop.f32.mrf.mxu0
  %v2754 = vadd.f32 %v536, %v2753
  %v2755 = vpop.f32.mrf.mxu0
  %v2756 = vpop.f32.mrf.mxu0
  %v2757 = vadd.f32 %v536, %v2756
  %v2758 = vpop.f32.mrf.mxu0
  %2759 = vmatprep.mubr.bf16.mxu0 0
  %2760 = vmatmul.mubr.bf16.gmra.mxu0 %v1880
  %v2761 = vpop.f32.mrf.mxu0
  %v2762 = vadd.f32 %v536, %v2761
  %v2763 = vpop.f32.mrf.mxu0
  %v2764 = vpop.f32.mrf.mxu0
  %v2765 = vadd.f32 %v536, %v2764
  %v2766 = vpop.f32.mrf.mxu0
  %2767 = vmatprep.mubr.bf16.mxu0 0
  %2768 = vmatmul.mubr.bf16.gmra.mxu0 %v1883
  %v2769 = vpop.f32.mrf.mxu0
  %v2770 = vadd.f32 %v536, %v2769
  %v2771 = vpop.f32.mrf.mxu0
  %v2772 = vpop.f32.mrf.mxu0
  %v2773 = vadd.f32 %v536, %v2772
  %v2774 = vpop.f32.mrf.mxu0
  %2775 = vmatprep.mubr.bf16.mxu0 0
  %2776 = vmatmul.mubr.bf16.gmra.mxu0 %v1886
  %v2777 = vpop.f32.mrf.mxu0
  %v2778 = vadd.f32 %v536, %v2777
  %v2779 = vpop.f32.mrf.mxu0
  %v2780 = vpop.f32.mrf.mxu0
  %v2781 = vadd.f32 %v536, %v2780
  %v2782 = vpop.f32.mrf.mxu0
  %2783 = vmatprep.mubr.bf16.mxu0 0
  %2784 = vmatmul.mubr.bf16.gmra.mxu0 %v1889
  %v2785 = vpop.f32.mrf.mxu0
  %v2786 = vadd.f32 %v536, %v2785
  %v2787 = vpop.f32.mrf.mxu0
  %v2788 = vpop.f32.mrf.mxu0
  %v2789 = vadd.f32 %v536, %v2788
  %v2790 = vpop.f32.mrf.mxu0
  %2791 = vmatprep.mubr.bf16.mxu0 0
  %2792 = vmatmul.mubr.bf16.gmra.mxu0 %v1892
  %v2793 = vpop.f32.mrf.mxu0
  %v2794 = vadd.f32 %v536, %v2793
  %v2795 = vpop.f32.mrf.mxu0
  %v2796 = vpop.f32.mrf.mxu0
  %v2797 = vadd.f32 %v536, %v2796
  %v2798 = vpop.f32.mrf.mxu0
  %2799 = vmatprep.mubr.bf16.mxu0 0
  %2800 = vmatmul.mubr.bf16.gmra.mxu0 %v1895
  %v2801 = vpop.f32.mrf.mxu0
  %v2802 = vadd.f32 %v536, %v2801
  %v2803 = vpop.f32.mrf.mxu0
  %v2804 = vpop.f32.mrf.mxu0
  %v2805 = vadd.f32 %v536, %v2804
  %v2806 = vpop.f32.mrf.mxu0
  %2807 = vmatprep.mubr.bf16.mxu0 0
  %2808 = vmatmul.mubr.bf16.gmra.mxu0 %v1898
  %v2809 = vpop.f32.mrf.mxu0
  %v2810 = vadd.f32 %v536, %v2809
  %v2811 = vpop.f32.mrf.mxu0
  %v2812 = vpop.f32.mrf.mxu0
  %v2813 = vadd.f32 %v536, %v2812
  %v2814 = vpop.f32.mrf.mxu0
  %2815 = vmatprep.mubr.bf16.mxu0 0
  %2816 = vmatmul.mubr.bf16.gmra.mxu0 %v1901
  %v2817 = vpop.f32.mrf.mxu0
  %v2818 = vadd.f32 %v536, %v2817
  %v2819 = vpop.f32.mrf.mxu0
  %v2820 = vpop.f32.mrf.mxu0
  %v2821 = vadd.f32 %v536, %v2820
  %v2822 = vpop.f32.mrf.mxu0
  %2823 = vmatprep.mubr.bf16.mxu0 0
  %2824 = vmatmul.mubr.bf16.gmra.mxu0 %v1904
  %v2825 = vpop.f32.mrf.mxu0
  %v2826 = vadd.f32 %v536, %v2825
  %v2827 = vpop.f32.mrf.mxu0
  %v2828 = vpop.f32.mrf.mxu0
  %v2829 = vadd.f32 %v536, %v2828
  %v2830 = vpop.f32.mrf.mxu0
  %2831 = vmatprep.mubr.bf16.mxu0 0
  %2832 = vmatmul.mubr.bf16.gmra.mxu0 %v1907
  %v2833 = vpop.f32.mrf.mxu0
  %v2834 = vadd.f32 %v536, %v2833
  %v2835 = vpop.f32.mrf.mxu0
  %v2836 = vpop.f32.mrf.mxu0
  %v2837 = vadd.f32 %v536, %v2836
  %v2838 = vpop.f32.mrf.mxu0
  %2839 = vmatprep.mubr.bf16.mxu0 0
  %2840 = vmatmul.mubr.bf16.gmra.mxu0 %v1910
  %v2841 = vpop.f32.mrf.mxu0
  %v2842 = vadd.f32 %v536, %v2841
  %v2843 = vpop.f32.mrf.mxu0
  %v2844 = vpop.f32.mrf.mxu0
  %v2845 = vadd.f32 %v536, %v2844
  %v2846 = vpop.f32.mrf.mxu0
  %2847 = vmatprep.mubr.bf16.mxu0 0
  %2848 = vmatmul.mubr.bf16.gmra.mxu0 %v1913
  %v2849 = vpop.f32.mrf.mxu0
  %v2850 = vadd.f32 %v536, %v2849
  %v2851 = vpop.f32.mrf.mxu0
  %v2852 = vpop.f32.mrf.mxu0
  %v2853 = vadd.f32 %v536, %v2852
  %v2854 = vpop.f32.mrf.mxu0
  %2855 = vmatprep.mubr.bf16.mxu0 0
  %2856 = vmatmul.mubr.bf16.gmra.mxu0 %v1916
  %v2857 = vpop.f32.mrf.mxu0
  %v2858 = vadd.f32 %v536, %v2857
  %v2859 = vpop.f32.mrf.mxu0
  %v2860 = vpop.f32.mrf.mxu0
  %v2861 = vadd.f32 %v536, %v2860
  %v2862 = vpop.f32.mrf.mxu0
  %2863 = vmatprep.mubr.bf16.mxu0 0
  %2864 = vmatmul.mubr.bf16.gmra.mxu0 %v1919
  %v2865 = vpop.f32.mrf.mxu0
  %v2866 = vadd.f32 %v536, %v2865
  %v2867 = vpop.f32.mrf.mxu0
  %v2868 = vpop.f32.mrf.mxu0
  %v2869 = vadd.f32 %v536, %v2868
  %v2870 = vpop.f32.mrf.mxu0
  %2871 = vmatprep.mubr.bf16.mxu0 0
  %2872 = vmatmul.mubr.bf16.gmra.mxu0 %v1922
  %v2873 = vpop.f32.mrf.mxu0
  %v2874 = vadd.f32 %v536, %v2873
  %v2875 = vpop.f32.mrf.mxu0
  %v2876 = vpop.f32.mrf.mxu0
  %v2877 = vadd.f32 %v536, %v2876
  %v2878 = vpop.f32.mrf.mxu0
  %2879 = vmatprep.mubr.bf16.mxu0 0
  %2880 = vmatmul.mubr.bf16.gmra.mxu0 %v1925
  %v2881 = vpop.f32.mrf.mxu0
  %v2882 = vadd.f32 %v536, %v2881
  %v2883 = vpop.f32.mrf.mxu0
  %v2884 = vpop.f32.mrf.mxu0
  %v2885 = vadd.f32 %v536, %v2884
  %v2886 = vpop.f32.mrf.mxu0
  %2887 = vmatprep.mubr.bf16.mxu0 0
  %2888 = vmatmul.mubr.bf16.gmra.mxu0 %v1928
  %v2889 = vpop.f32.mrf.mxu0
  %v2890 = vadd.f32 %v536, %v2889
  %v2891 = vpop.f32.mrf.mxu0
  %v2892 = vpop.f32.mrf.mxu0
  %v2893 = vadd.f32 %v536, %v2892
  %v2894 = vpop.f32.mrf.mxu0
  %2895 = vmatprep.mubr.bf16.mxu0 0
  %2896 = vmatmul.mubr.bf16.gmra.mxu0 %v1931
  %v2897 = vpop.f32.mrf.mxu0
  %v2898 = vadd.f32 %v536, %v2897
  %v2899 = vpop.f32.mrf.mxu0
  %v2900 = vpop.f32.mrf.mxu0
  %v2901 = vadd.f32 %v536, %v2900
  %v2902 = vpop.f32.mrf.mxu0
  %2903 = vmatprep.mubr.bf16.mxu0 0
  %2904 = vmatmul.mubr.bf16.gmra.mxu0 %v1934
  %v2905 = vpop.f32.mrf.mxu0
  %v2906 = vadd.f32 %v536, %v2905
  %v2907 = vpop.f32.mrf.mxu0
  %v2908 = vpop.f32.mrf.mxu0
  %v2909 = vadd.f32 %v536, %v2908
  %v2910 = vpop.f32.mrf.mxu0
  %2911 = vmatprep.mubr.bf16.mxu0 0
  %2912 = vmatmul.mubr.bf16.gmra.mxu0 %v1937
  %v2913 = vpop.f32.mrf.mxu0
  %v2914 = vadd.f32 %v536, %v2913
  %v2915 = vpop.f32.mrf.mxu0
  %v2916 = vpop.f32.mrf.mxu0
  %v2917 = vadd.f32 %v536, %v2916
  %v2918 = vpop.f32.mrf.mxu0
  %2919 = vmatprep.mubr.bf16.mxu0 0
  %2920 = vmatmul.mubr.bf16.gmra.mxu0 %v1940
  %v2921 = vpop.f32.mrf.mxu0
  %v2922 = vadd.f32 %v536, %v2921
  %v2923 = vpop.f32.mrf.mxu0
  %v2924 = vpop.f32.mrf.mxu0
  %v2925 = vadd.f32 %v536, %v2924
  %v2926 = vpop.f32.mrf.mxu0
  %2927 = vmatprep.mubr.bf16.mxu0 0
  %2928 = vmatmul.mubr.bf16.gmra.mxu0 %v1943
  %v2929 = vpop.f32.mrf.mxu0
  %v2930 = vadd.f32 %v536, %v2929
  %v2931 = vpop.f32.mrf.mxu0
  %v2932 = vpop.f32.mrf.mxu0
  %v2933 = vadd.f32 %v536, %v2932
  %v2934 = vpop.f32.mrf.mxu0
  %2935 = vmatprep.mubr.bf16.mxu0 0
  %2936 = vmatmul.mubr.bf16.gmra.mxu0 %v1946
  %v2937 = vpop.f32.mrf.mxu0
  %v2938 = vadd.f32 %v536, %v2937
  %v2939 = vpop.f32.mrf.mxu0
  %v2940 = vpop.f32.mrf.mxu0
  %v2941 = vadd.f32 %v536, %v2940
  %v2942 = vpop.f32.mrf.mxu0
  %2943 = vmatprep.mubr.bf16.mxu0 0
  %2944 = vmatmul.mubr.bf16.gmra.mxu0 %v1949
  %v2945 = vpop.f32.mrf.mxu0
  %v2946 = vadd.f32 %v536, %v2945
  %v2947 = vpop.f32.mrf.mxu0
  %v2948 = vpop.f32.mrf.mxu0
  %v2949 = vadd.f32 %v536, %v2948
  %v2950 = vpop.f32.mrf.mxu0
  %2951 = vmatprep.mubr.bf16.mxu0 0
  %2952 = vmatmul.mubr.bf16.gmra.mxu0 %v1952
  %v2953 = vpop.f32.mrf.mxu0
  %v2954 = vadd.f32 %v536, %v2953
  %v2955 = vpop.f32.mrf.mxu0
  %v2956 = vpop.f32.mrf.mxu0
  %v2957 = vadd.f32 %v536, %v2956
  %v2958 = vpop.f32.mrf.mxu0
  %2959 = vmatprep.mubr.bf16.mxu0 0
  %2960 = vmatmul.mubr.bf16.gmra.mxu0 %v1955
  %v2961 = vpop.f32.mrf.mxu0
  %v2962 = vadd.f32 %v536, %v2961
  %v2963 = vpop.f32.mrf.mxu0
  %v2964 = vpop.f32.mrf.mxu0
  %v2965 = vadd.f32 %v536, %v2964
  %v2966 = vpop.f32.mrf.mxu0
  %2967 = vmatprep.mubr.bf16.mxu0 0
  %2968 = vmatmul.mubr.bf16.gmra.mxu0 %v1958
  %v2969 = vpop.f32.mrf.mxu0
  %v2970 = vadd.f32 %v536, %v2969
  %v2971 = vpop.f32.mrf.mxu0
  %v2972 = vpop.f32.mrf.mxu0
  %v2973 = vadd.f32 %v536, %v2972
  %v2974 = vpop.f32.mrf.mxu0
  %2975 = vmatprep.mubr.bf16.mxu0 0
  %2976 = vmatmul.mubr.bf16.gmra.mxu0 %v1961
  %v2977 = vpop.f32.mrf.mxu0
  %v2978 = vadd.f32 %v536, %v2977
  %v2979 = vpop.f32.mrf.mxu0
  %v2980 = vpop.f32.mrf.mxu0
  %v2981 = vadd.f32 %v536, %v2980
  %v2982 = vpop.f32.mrf.mxu0
  %2983 = vmatprep.mubr.bf16.mxu0 0
  %2984 = vmatmul.mubr.bf16.gmra.mxu0 %v1964
  %v2985 = vpop.f32.mrf.mxu0
  %v2986 = vadd.f32 %v536, %v2985
  %v2987 = vpop.f32.mrf.mxu0
  %v2988 = vpop.f32.mrf.mxu0
  %v2989 = vadd.f32 %v536, %v2988
  %v2990 = vpop.f32.mrf.mxu0
  %2991 = vmatprep.mubr.bf16.mxu0 0
  %2992 = vmatmul.mubr.bf16.gmra.mxu0 %v1967
  %v2993 = vpop.f32.mrf.mxu0
  %v2994 = vadd.f32 %v536, %v2993
  %v2995 = vpop.f32.mrf.mxu0
  %v2996 = vpop.f32.mrf.mxu0
  %v2997 = vadd.f32 %v536, %v2996
  %v2998 = vpop.f32.mrf.mxu0
  %2999 = vmatprep.mubr.bf16.mxu0 0
  %3000 = vmatmul.mubr.bf16.gmra.mxu0 %v1970
  %v3001 = vpop.f32.mrf.mxu0
  %v3002 = vadd.f32 %v536, %v3001
  %v3003 = vpop.f32.mrf.mxu0
  %v3004 = vpop.f32.mrf.mxu0
  %v3005 = vadd.f32 %v536, %v3004
  %v3006 = vpop.f32.mrf.mxu0
  %3007 = vmatprep.mubr.bf16.mxu0 0
  %3008 = vmatmul.mubr.bf16.gmra.mxu0 %v1973
  %v3009 = vpop.f32.mrf.mxu0
  %v3010 = vadd.f32 %v536, %v3009
  %v3011 = vpop.f32.mrf.mxu0
  %v3012 = vpop.f32.mrf.mxu0
  %v3013 = vadd.f32 %v536, %v3012
  %v3014 = vpop.f32.mrf.mxu0
  %3015 = vmatprep.mubr.bf16.mxu0 0
  %3016 = vmatmul.mubr.bf16.gmra.mxu0 %v1976
  %v3017 = vpop.f32.mrf.mxu0
  %v3018 = vadd.f32 %v536, %v3017
  %v3019 = vpop.f32.mrf.mxu0
  %v3020 = vpop.f32.mrf.mxu0
  %v3021 = vadd.f32 %v536, %v3020
  %v3022 = vpop.f32.mrf.mxu0
  %3023 = vmatprep.mubr.bf16.mxu0 0
  %3024 = vmatmul.mubr.bf16.gmra.mxu0 %v1979
  %v3025 = vpop.f32.mrf.mxu0
  %v3026 = vadd.f32 %v536, %v3025
  %v3027 = vpop.f32.mrf.mxu0
  %v3028 = vpop.f32.mrf.mxu0
  %v3029 = vadd.f32 %v536, %v3028
  %v3030 = vpop.f32.mrf.mxu0
  %3031 = vmatprep.mubr.bf16.mxu0 0
  %3032 = vmatmul.mubr.bf16.gmra.mxu0 %v1982
  %v3033 = vpop.f32.mrf.mxu0
  %v3034 = vadd.f32 %v536, %v3033
  %v3035 = vpop.f32.mrf.mxu0
  %v3036 = vpop.f32.mrf.mxu0
  %v3037 = vadd.f32 %v536, %v3036
  %v3038 = vpop.f32.mrf.mxu0
  %3039 = vmatprep.mubr.bf16.mxu0 0
  %3040 = vmatmul.mubr.bf16.gmra.mxu0 %v1985
  %v3041 = vpop.f32.mrf.mxu0
  %v3042 = vadd.f32 %v536, %v3041
  %v3043 = vpop.f32.mrf.mxu0
  %v3044 = vpop.f32.mrf.mxu0
  %v3045 = vadd.f32 %v536, %v3044
  %v3046 = vpop.f32.mrf.mxu0
  %3047 = vmatprep.mubr.bf16.mxu0 0
  %3048 = vmatmul.mubr.bf16.gmra.mxu0 %v1988
  %v3049 = vpop.f32.mrf.mxu0
  %v3050 = vadd.f32 %v536, %v3049
  %v3051 = vpop.f32.mrf.mxu0
  %v3052 = vpop.f32.mrf.mxu0
  %v3053 = vadd.f32 %v536, %v3052
  %v3054 = vpop.f32.mrf.mxu0
  %3055 = vmatprep.mubr.bf16.mxu0 0
  %3056 = vmatmul.mubr.bf16.gmra.mxu0 %v1991
  %v3057 = vpop.f32.mrf.mxu0
  %v3058 = vadd.f32 %v536, %v3057
  %v3059 = vpop.f32.mrf.mxu0
  %v3060 = vpop.f32.mrf.mxu0
  %v3061 = vadd.f32 %v536, %v3060
  %v3062 = vpop.f32.mrf.mxu0
  %3063 = vmatprep.mubr.bf16.mxu0 0
  %3064 = vmatmul.mubr.bf16.gmra.mxu0 %v1994
  %v3065 = vpop.f32.mrf.mxu0
  %v3066 = vadd.f32 %v536, %v3065
  %v3067 = vpop.f32.mrf.mxu0
  %v3068 = vpop.f32.mrf.mxu0
  %v3069 = vadd.f32 %v536, %v3068
  %v3070 = vpop.f32.mrf.mxu0
  %3071 = vmatprep.mubr.bf16.mxu0 0
  %3072 = vmatmul.mubr.bf16.gmra.mxu0 %v1997
  %v3073 = vpop.f32.mrf.mxu0
  %v3074 = vadd.f32 %v536, %v3073
  %v3075 = vpop.f32.mrf.mxu0
  %v3076 = vpop.f32.mrf.mxu0
  %v3077 = vadd.f32 %v536, %v3076
  %v3078 = vpop.f32.mrf.mxu0
  %3079 = vmatprep.mubr.bf16.mxu0 0
  %3080 = vmatmul.mubr.bf16.gmra.mxu0 %v2000
  %v3081 = vpop.f32.mrf.mxu0
  %v3082 = vadd.f32 %v536, %v3081
  %v3083 = vpop.f32.mrf.mxu0
  %v3084 = vpop.f32.mrf.mxu0
  %v3085 = vadd.f32 %v536, %v3084
  %v3086 = vpop.f32.mrf.mxu0
  %3087 = vmatprep.mubr.bf16.mxu0 0
  %3088 = vmatmul.mubr.bf16.gmra.mxu0 %v2003
  %v3089 = vpop.f32.mrf.mxu0
  %v3090 = vadd.f32 %v536, %v3089
  %v3091 = vpop.f32.mrf.mxu0
  %v3092 = vpop.f32.mrf.mxu0
  %v3093 = vadd.f32 %v536, %v3092
  %v3094 = vpop.f32.mrf.mxu0
  %3095 = vmatprep.mubr.bf16.mxu0 0
  %3096 = vmatmul.mubr.bf16.gmra.mxu0 %v2006
  %v3097 = vpop.f32.mrf.mxu0
  %v3098 = vadd.f32 %v536, %v3097
  %v3099 = vpop.f32.mrf.mxu0
  %v3100 = vpop.f32.mrf.mxu0
  %v3101 = vadd.f32 %v536, %v3100
  %v3102 = vpop.f32.mrf.mxu0
  %3103 = vmatprep.mubr.bf16.mxu0 0
  %3104 = vmatmul.mubr.bf16.gmra.mxu0 %v2009
  %v3105 = vpop.f32.mrf.mxu0
  %v3106 = vadd.f32 %v536, %v3105
  %v3107 = vpop.f32.mrf.mxu0
  %v3108 = vpop.f32.mrf.mxu0
  %v3109 = vadd.f32 %v536, %v3108
  %v3110 = vpop.f32.mrf.mxu0
  %3111 = vmatprep.mubr.bf16.mxu0 0
  %3112 = vmatmul.mubr.bf16.gmra.mxu0 %v2012
  %v3113 = vpop.f32.mrf.mxu0
  %v3114 = vadd.f32 %v536, %v3113
  %v3115 = vpop.f32.mrf.mxu0
  %v3116 = vpop.f32.mrf.mxu0
  %v3117 = vadd.f32 %v536, %v3116
  %v3118 = vpop.f32.mrf.mxu0
  %3119 = vmatprep.mubr.bf16.mxu0 0
  %3120 = vmatmul.mubr.bf16.gmra.mxu0 %v2015
  %v3121 = vpop.f32.mrf.mxu0
  %v3122 = vadd.f32 %v536, %v3121
  %v3123 = vpop.f32.mrf.mxu0
  %v3124 = vpop.f32.mrf.mxu0
  %v3125 = vadd.f32 %v536, %v3124
  %v3126 = vpop.f32.mrf.mxu0
  %3127 = vmatprep.mubr.bf16.mxu0 0
  %3128 = vmatmul.mubr.bf16.gmra.mxu0 %v2018
  %v3129 = vpop.f32.mrf.mxu0
  %v3130 = vadd.f32 %v536, %v3129
  %v3131 = vpop.f32.mrf.mxu0
  %v3132 = vpop.f32.mrf.mxu0
  %v3133 = vadd.f32 %v536, %v3132
  %v3134 = vpop.f32.mrf.mxu0
  %3135 = vmatprep.mubr.bf16.mxu0 0
  %3136 = vmatmul.mubr.bf16.gmra.mxu0 %v2021
  %v3137 = vpop.f32.mrf.mxu0
  %v3138 = vadd.f32 %v536, %v3137
  %v3139 = vpop.f32.mrf.mxu0
  %v3140 = vpop.f32.mrf.mxu0
  %v3141 = vadd.f32 %v536, %v3140
  %v3142 = vpop.f32.mrf.mxu0
  %3143 = vmatprep.mubr.bf16.mxu0 0
  %3144 = vmatmul.mubr.bf16.gmra.mxu0 %v2024
  %v3145 = vpop.f32.mrf.mxu0
  %v3146 = vadd.f32 %v536, %v3145
  %v3147 = vpop.f32.mrf.mxu0
  %v3148 = vpop.f32.mrf.mxu0
  %v3149 = vadd.f32 %v536, %v3148
  %v3150 = vpop.f32.mrf.mxu0
  %3151 = vmatprep.mubr.bf16.mxu0 0
  %3152 = vmatmul.mubr.bf16.gmra.mxu0 %v2027
  %v3153 = vpop.f32.mrf.mxu0
  %v3154 = vadd.f32 %v536, %v3153
  %v3155 = vpop.f32.mrf.mxu0
  %v3156 = vpop.f32.mrf.mxu0
  %v3157 = vadd.f32 %v536, %v3156
  %v3158 = vpop.f32.mrf.mxu0
  %3159 = vmatprep.mubr.bf16.mxu0 0
  %3160 = vmatmul.mubr.bf16.gmra.mxu0 %v2030
  %v3161 = vpop.f32.mrf.mxu0
  %v3162 = vadd.f32 %v536, %v3161
  %v3163 = vpop.f32.mrf.mxu0
  %v3164 = vpop.f32.mrf.mxu0
  %v3165 = vadd.f32 %v536, %v3164
  %v3166 = vpop.f32.mrf.mxu0
  %3167 = vmatprep.mubr.bf16.mxu0 0
  %3168 = vmatmul.mubr.bf16.gmra.mxu0 %v2033
  %v3169 = vpop.f32.mrf.mxu0
  %v3170 = vadd.f32 %v536, %v3169
  %v3171 = vpop.f32.mrf.mxu0
  %v3172 = vpop.f32.mrf.mxu0
  %v3173 = vadd.f32 %v536, %v3172
  %v3174 = vpop.f32.mrf.mxu0
  %3175 = vmatprep.mubr.bf16.mxu0 0
  %3176 = vmatmul.mubr.bf16.gmra.mxu0 %v2036
  %v3177 = vpop.f32.mrf.mxu0
  %v3178 = vadd.f32 %v536, %v3177
  %v3179 = vpop.f32.mrf.mxu0
  %v3180 = vpop.f32.mrf.mxu0
  %v3181 = vadd.f32 %v536, %v3180
  %v3182 = vpop.f32.mrf.mxu0
  %3183 = vmatprep.mubr.bf16.mxu0 0
  %3184 = vmatmul.mubr.bf16.gmra.mxu0 %v2039
  %v3185 = vpop.f32.mrf.mxu0
  %v3186 = vadd.f32 %v536, %v3185
  %v3187 = vpop.f32.mrf.mxu0
  %v3188 = vpop.f32.mrf.mxu0
  %v3189 = vadd.f32 %v536, %v3188
  %v3190 = vpop.f32.mrf.mxu0
  %3191 = vmatprep.mubr.bf16.mxu0 0
  %3192 = vmatmul.mubr.bf16.gmra.mxu0 %v2042
  %v3193 = vpop.f32.mrf.mxu0
  %v3194 = vadd.f32 %v536, %v3193
  %v3195 = vpop.f32.mrf.mxu0
  %v3196 = vpop.f32.mrf.mxu0
  %v3197 = vadd.f32 %v536, %v3196
  %v3198 = vpop.f32.mrf.mxu0
  %3199 = vmatprep.mubr.bf16.mxu0 0
  %3200 = vmatmul.mubr.bf16.gmra.mxu0 %v2045
  %v3201 = vpop.f32.mrf.mxu0
  %v3202 = vadd.f32 %v536, %v3201
  %v3203 = vpop.f32.mrf.mxu0
  %v3204 = vpop.f32.mrf.mxu0
  %v3205 = vadd.f32 %v536, %v3204
  %v3206 = vpop.f32.mrf.mxu0
  %3207 = vmatprep.mubr.bf16.mxu0 0
  %3208 = vmatmul.mubr.bf16.gmra.mxu0 %v2048
  %v3209 = vpop.f32.mrf.mxu0
  %v3210 = vadd.f32 %v536, %v3209
  %v3211 = vpop.f32.mrf.mxu0
  %v3212 = vpop.f32.mrf.mxu0
  %v3213 = vadd.f32 %v536, %v3212
  %v3214 = vpop.f32.mrf.mxu0
  %3215 = vmatprep.mubr.bf16.mxu0 0
  %3216 = vmatmul.mubr.bf16.gmra.mxu0 %v2051
  %v3217 = vpop.f32.mrf.mxu0
  %v3218 = vadd.f32 %v536, %v3217
  %v3219 = vpop.f32.mrf.mxu0
  %v3220 = vpop.f32.mrf.mxu0
  %v3221 = vadd.f32 %v536, %v3220
  %v3222 = vpop.f32.mrf.mxu0
  %3223 = vmatprep.mubr.bf16.mxu0 0
  %3224 = vmatmul.mubr.bf16.gmra.mxu0 %v2054
  %v3225 = vpop.f32.mrf.mxu0
  %v3226 = vadd.f32 %v536, %v3225
  %v3227 = vpop.f32.mrf.mxu0
  %v3228 = vpop.f32.mrf.mxu0
  %v3229 = vadd.f32 %v536, %v3228
  %v3230 = vpop.f32.mrf.mxu0
  %3231 = vmatprep.mubr.bf16.mxu0 0
  %3232 = vmatmul.mubr.bf16.gmra.mxu0 %v2057
  %v3233 = vpop.f32.mrf.mxu0
  %v3234 = vadd.f32 %v536, %v3233
  %v3235 = vpop.f32.mrf.mxu0
  %v3236 = vpop.f32.mrf.mxu0
  %v3237 = vadd.f32 %v536, %v3236
  %v3238 = vpop.f32.mrf.mxu0
  %3239 = vmatprep.mubr.bf16.mxu0 0
  %3240 = vmatmul.mubr.bf16.gmra.mxu0 %v2060
  %v3241 = vpop.f32.mrf.mxu0
  %v3242 = vadd.f32 %v536, %v3241
  %v3243 = vpop.f32.mrf.mxu0
  %v3244 = vpop.f32.mrf.mxu0
  %v3245 = vadd.f32 %v536, %v3244
  %v3246 = vpop.f32.mrf.mxu0
  %3247 = vmatprep.mubr.bf16.mxu0 0
  %3248 = vmatmul.mubr.bf16.gmra.mxu0 %v2063
  %v3249 = vpop.f32.mrf.mxu0
  %v3250 = vadd.f32 %v536, %v3249
  %v3251 = vpop.f32.mrf.mxu0
  %v3252 = vpop.f32.mrf.mxu0
  %v3253 = vadd.f32 %v536, %v3252
  %v3254 = vpop.f32.mrf.mxu0
  %3255 = vmatprep.mubr.bf16.mxu0 0
  %3256 = vmatmul.mubr.bf16.gmra.mxu0 %v2066
  %v3257 = vpop.f32.mrf.mxu0
  %v3258 = vadd.f32 %v536, %v3257
  %v3259 = vpop.f32.mrf.mxu0
  %v3260 = vpop.f32.mrf.mxu0
  %v3261 = vadd.f32 %v536, %v3260
  %v3262 = vpop.f32.mrf.mxu0
  %3263 = vmatprep.mubr.bf16.mxu0 0
  %3264 = vmatmul.mubr.bf16.gmra.mxu0 %v2069
  %v3265 = vpop.f32.mrf.mxu0
  %v3266 = vadd.f32 %v536, %v3265
  %v3267 = vpop.f32.mrf.mxu0
  %v3268 = vpop.f32.mrf.mxu0
  %v3269 = vadd.f32 %v536, %v3268
  %v3270 = vpop.f32.mrf.mxu0
  %3271 = vmatprep.mubr.bf16.mxu0 0
  %3272 = vmatmul.mubr.bf16.gmra.mxu0 %v2072
  %v3273 = vpop.f32.mrf.mxu0
  %v3274 = vadd.f32 %v536, %v3273
  %v3275 = vpop.f32.mrf.mxu0
  %v3276 = vpop.f32.mrf.mxu0
  %v3277 = vadd.f32 %v536, %v3276
  %v3278 = vpop.f32.mrf.mxu0
  %3279 = vmatprep.mubr.bf16.mxu0 0
  %3280 = vmatmul.mubr.bf16.gmra.mxu0 %v2075
  %v3281 = vpop.f32.mrf.mxu0
  %v3282 = vadd.f32 %v536, %v3281
  %v3283 = vpop.f32.mrf.mxu0
  %v3284 = vpop.f32.mrf.mxu0
  %v3285 = vadd.f32 %v536, %v3284
  %v3286 = vpop.f32.mrf.mxu0
  %3287 = vmatprep.mubr.bf16.mxu0 0
  %3288 = vmatmul.mubr.bf16.gmra.mxu0 %v2078
  %v3289 = vpop.f32.mrf.mxu0
  %v3290 = vadd.f32 %v536, %v3289
  %v3291 = vpop.f32.mrf.mxu0
  %v3292 = vpop.f32.mrf.mxu0
  %v3293 = vadd.f32 %v536, %v3292
  %v3294 = vpop.f32.mrf.mxu0
  %3295 = vmatprep.mubr.bf16.mxu0 0
  %3296 = vmatmul.mubr.bf16.gmra.mxu0 %v2081
  %v3297 = vpop.f32.mrf.mxu0
  %v3298 = vadd.f32 %v536, %v3297
  %v3299 = vpop.f32.mrf.mxu0
  %v3300 = vpop.f32.mrf.mxu0
  %v3301 = vadd.f32 %v536, %v3300
  %v3302 = vpop.f32.mrf.mxu0
  %3303 = vmatprep.mubr.bf16.mxu0 0
  %3304 = vmatmul.mubr.bf16.gmra.mxu0 %v2084
  %v3305 = vpop.f32.mrf.mxu0
  %v3306 = vadd.f32 %v536, %v3305
  %v3307 = vpop.f32.mrf.mxu0
  %v3308 = vpop.f32.mrf.mxu0
  %v3309 = vadd.f32 %v536, %v3308
  %v3310 = vpop.f32.mrf.mxu0
  %3311 = vmatprep.mubr.bf16.mxu0 0
  %3312 = vmatmul.mubr.bf16.gmra.mxu0 %v2087
  %v3313 = vpop.f32.mrf.mxu0
  %v3314 = vadd.f32 %v536, %v3313
  %v3315 = vpop.f32.mrf.mxu0
  %v3316 = vpop.f32.mrf.mxu0
  %v3317 = vadd.f32 %v536, %v3316
  %v3318 = vpop.f32.mrf.mxu0
  %3319 = vmatprep.mubr.bf16.mxu0 0
  %3320 = vmatmul.mubr.bf16.gmra.mxu0 %v2090
  %v3321 = vpop.f32.mrf.mxu0
  %v3322 = vadd.f32 %v536, %v3321
  %v3323 = vpop.f32.mrf.mxu0
  %v3324 = vpop.f32.mrf.mxu0
  %v3325 = vadd.f32 %v536, %v3324
  %v3326 = vpop.f32.mrf.mxu0
  %3327 = vmatprep.mubr.bf16.mxu0 0
  %3328 = vmatmul.mubr.bf16.gmra.mxu0 %v2093
  %v3329 = vpop.f32.mrf.mxu0
  %v3330 = vadd.f32 %v536, %v3329
  %v3331 = vpop.f32.mrf.mxu0
  %v3332 = vpop.f32.mrf.mxu0
  %v3333 = vadd.f32 %v536, %v3332
  %v3334 = vpop.f32.mrf.mxu0
  %3335 = vmatprep.mubr.bf16.mxu0 0
  %3336 = vmatmul.mubr.bf16.gmra.mxu0 %v2096
  %v3337 = vpop.f32.mrf.mxu0
  %v3338 = vadd.f32 %v536, %v3337
  %v3339 = vpop.f32.mrf.mxu0
  %v3340 = vpop.f32.mrf.mxu0
  %v3341 = vadd.f32 %v536, %v3340
  %v3342 = vpop.f32.mrf.mxu0
  %3343 = vmatprep.mubr.bf16.mxu0 0
  %3344 = vmatmul.mubr.bf16.gmra.mxu0 %v2099
  %v3345 = vpop.f32.mrf.mxu0
  %v3346 = vadd.f32 %v536, %v3345
  %v3347 = vpop.f32.mrf.mxu0
  %v3348 = vpop.f32.mrf.mxu0
  %v3349 = vadd.f32 %v536, %v3348
  %v3350 = vpop.f32.mrf.mxu0
  %3351 = vmatprep.mubr.bf16.mxu0 0
  %3352 = vmatmul.mubr.bf16.gmra.mxu0 %v2102
  %v3353 = vpop.f32.mrf.mxu0
  %v3354 = vadd.f32 %v536, %v3353
  %v3355 = vpop.f32.mrf.mxu0
  %v3356 = vpop.f32.mrf.mxu0
  %v3357 = vadd.f32 %v536, %v3356
  %v3358 = vpop.f32.mrf.mxu0
  %3359 = vmatprep.mubr.bf16.mxu0 0
  %3360 = vmatmul.mubr.bf16.gmra.mxu0 %v2105
  %v3361 = vpop.f32.mrf.mxu0
  %v3362 = vadd.f32 %v536, %v3361
  %v3363 = vpop.f32.mrf.mxu0
  %v3364 = vpop.f32.mrf.mxu0
  %v3365 = vadd.f32 %v536, %v3364
  %v3366 = vpop.f32.mrf.mxu0
  %3367 = vmatprep.mubr.bf16.mxu0 0
  %3368 = vmatmul.mubr.bf16.gmra.mxu0 %v2108
  %v3369 = vpop.f32.mrf.mxu0
  %v3370 = vadd.f32 %v536, %v3369
  %v3371 = vpop.f32.mrf.mxu0
  %v3372 = vpop.f32.mrf.mxu0
  %v3373 = vadd.f32 %v536, %v3372
  %v3374 = vpop.f32.mrf.mxu0
  %3375 = vmatprep.mubr.bf16.mxu0 0
  %3376 = vmatmul.mubr.bf16.gmra.mxu0 %v2111
  %v3377 = vpop.f32.mrf.mxu0
  %v3378 = vadd.f32 %v536, %v3377
  %v3379 = vpop.f32.mrf.mxu0
  %v3380 = vpop.f32.mrf.mxu0
  %v3381 = vadd.f32 %v536, %v3380
  %v3382 = vpop.f32.mrf.mxu0
  %3383 = vmatprep.mubr.bf16.mxu0 0
  %3384 = vmatmul.mubr.bf16.gmra.mxu0 %v2114
  %v3385 = vpop.f32.mrf.mxu0
  %v3386 = vadd.f32 %v536, %v3385
  %v3387 = vpop.f32.mrf.mxu0
  %v3388 = vpop.f32.mrf.mxu0
  %v3389 = vadd.f32 %v536, %v3388
  %v3390 = vpop.f32.mrf.mxu0
  %3391 = vmatprep.mubr.bf16.mxu0 0
  %3392 = vmatmul.mubr.bf16.gmra.mxu0 %v2117
  %v3393 = vpop.f32.mrf.mxu0
  %v3394 = vadd.f32 %v536, %v3393
  %v3395 = vpop.f32.mrf.mxu0
  %v3396 = vpop.f32.mrf.mxu0
  %v3397 = vadd.f32 %v536, %v3396
  %v3398 = vpop.f32.mrf.mxu0
  %3399 = vmatprep.mubr.bf16.mxu0 0
  %3400 = vmatmul.mubr.bf16.gmra.mxu0 %v2120
  %v3401 = vpop.f32.mrf.mxu0
  %v3402 = vadd.f32 %v536, %v3401
  %v3403 = vpop.f32.mrf.mxu0
  %v3404 = vpop.f32.mrf.mxu0
  %v3405 = vadd.f32 %v536, %v3404
  %v3406 = vpop.f32.mrf.mxu0
  %3407 = vmatprep.mubr.bf16.mxu0 0
  %3408 = vmatmul.mubr.bf16.gmra.mxu0 %v2123
  %v3409 = vpop.f32.mrf.mxu0
  %v3410 = vadd.f32 %v536, %v3409
  %v3411 = vpop.f32.mrf.mxu0
  %v3412 = vpop.f32.mrf.mxu0
  %v3413 = vadd.f32 %v536, %v3412
  %v3414 = vpop.f32.mrf.mxu0
  %3415 = vmatprep.mubr.bf16.mxu0 0
  %3416 = vmatmul.mubr.bf16.gmra.mxu0 %v2126
  %v3417 = vpop.f32.mrf.mxu0
  %v3418 = vadd.f32 %v536, %v3417
  %v3419 = vpop.f32.mrf.mxu0
  %v3420 = vpop.f32.mrf.mxu0
  %v3421 = vadd.f32 %v536, %v3420
  %v3422 = vpop.f32.mrf.mxu0
  %3423 = vmatprep.mubr.bf16.mxu0 0
  %3424 = vmatmul.mubr.bf16.gmra.mxu0 %v2129
  %v3425 = vpop.f32.mrf.mxu0
  %v3426 = vadd.f32 %v536, %v3425
  %v3427 = vpop.f32.mrf.mxu0
  %v3428 = vpop.f32.mrf.mxu0
  %v3429 = vadd.f32 %v536, %v3428
  %v3430 = vpop.f32.mrf.mxu0
  %3431 = vmatprep.mubr.bf16.mxu0 0
  %3432 = vmatmul.mubr.bf16.gmra.mxu0 %v2132
  %v3433 = vpop.f32.mrf.mxu0
  %v3434 = vadd.f32 %v536, %v3433
  %v3435 = vpop.f32.mrf.mxu0
  %v3436 = vpop.f32.mrf.mxu0
  %v3437 = vadd.f32 %v536, %v3436
  %v3438 = vpop.f32.mrf.mxu0
  %3439 = vmatprep.mubr.bf16.mxu0 0
  %3440 = vmatmul.mubr.bf16.gmra.mxu0 %v2135
  %v3441 = vpop.f32.mrf.mxu0
  %v3442 = vadd.f32 %v536, %v3441
  %v3443 = vpop.f32.mrf.mxu0
  %v3444 = vpop.f32.mrf.mxu0
  %v3445 = vadd.f32 %v536, %v3444
  %v3446 = vpop.f32.mrf.mxu0
  %3447 = vmatprep.mubr.bf16.mxu0 0
  %3448 = vmatmul.mubr.bf16.gmra.mxu0 %v2138
  %v3449 = vpop.f32.mrf.mxu0
  %v3450 = vadd.f32 %v536, %v3449
  %v3451 = vpop.f32.mrf.mxu0
  %v3452 = vpop.f32.mrf.mxu0
  %v3453 = vadd.f32 %v536, %v3452
  %v3454 = vpop.f32.mrf.mxu0
  %3455 = vmatprep.mubr.bf16.mxu0 0
  %3456 = vmatmul.mubr.bf16.gmra.mxu0 %v2141
  %v3457 = vpop.f32.mrf.mxu0
  %v3458 = vadd.f32 %v536, %v3457
  %v3459 = vpop.f32.mrf.mxu0
  %v3460 = vpop.f32.mrf.mxu0
  %v3461 = vadd.f32 %v536, %v3460
  %v3462 = vpop.f32.mrf.mxu0
  %3463 = vmatprep.mubr.bf16.mxu0 0
  %3464 = vmatmul.mubr.bf16.gmra.mxu0 %v2144
  %v3465 = vpop.f32.mrf.mxu0
  %v3466 = vadd.f32 %v536, %v3465
  %v3467 = vpop.f32.mrf.mxu0
  %v3468 = vpop.f32.mrf.mxu0
  %v3469 = vadd.f32 %v536, %v3468
  %v3470 = vpop.f32.mrf.mxu0
  %3471 = vmatprep.mubr.bf16.mxu0 0
  %3472 = vmatmul.mubr.bf16.gmra.mxu0 %v2147
  %v3473 = vpop.f32.mrf.mxu0
  %v3474 = vadd.f32 %v536, %v3473
  %v3475 = vpop.f32.mrf.mxu0
  %v3476 = vpop.f32.mrf.mxu0
  %v3477 = vadd.f32 %v536, %v3476
  %v3478 = vpop.f32.mrf.mxu0
  %3479 = vmatprep.mubr.bf16.mxu0 0
  %3480 = vmatmul.mubr.bf16.gmra.mxu0 %v2150
  %v3481 = vpop.f32.mrf.mxu0
  %v3482 = vadd.f32 %v536, %v3481
  %v3483 = vpop.f32.mrf.mxu0
  %v3484 = vpop.f32.mrf.mxu0
  %v3485 = vadd.f32 %v536, %v3484
  %v3486 = vpop.f32.mrf.mxu0
  %3487 = vmatprep.mubr.bf16.mxu0 0
  %3488 = vmatmul.mubr.bf16.gmra.mxu0 %v2153
  %v3489 = vpop.f32.mrf.mxu0
  %v3490 = vadd.f32 %v536, %v3489
  %v3491 = vpop.f32.mrf.mxu0
  %v3492 = vpop.f32.mrf.mxu0
  %v3493 = vadd.f32 %v536, %v3492
  %v3494 = vpop.f32.mrf.mxu0
  %3495 = vmatprep.mubr.bf16.mxu0 0
  %3496 = vmatmul.mubr.bf16.gmra.mxu0 %v2156
  %v3497 = vpop.f32.mrf.mxu0
  %v3498 = vadd.f32 %v536, %v3497
  %v3499 = vpop.f32.mrf.mxu0
  %v3500 = vpop.f32.mrf.mxu0
  %v3501 = vadd.f32 %v536, %v3500
  %v3502 = vpop.f32.mrf.mxu0
  %3503 = vmatprep.mubr.bf16.mxu0 0
  %3504 = vmatmul.mubr.bf16.gmra.mxu0 %v2159
  %v3505 = vpop.f32.mrf.mxu0
  %v3506 = vadd.f32 %v536, %v3505
  %v3507 = vpop.f32.mrf.mxu0
  %v3508 = vpop.f32.mrf.mxu0
  %v3509 = vadd.f32 %v536, %v3508
  %v3510 = vpop.f32.mrf.mxu0
  %3511 = vmatprep.mubr.bf16.mxu0 0
  %3512 = vmatmul.mubr.bf16.gmra.mxu0 %v2162
  %v3513 = vpop.f32.mrf.mxu0
  %v3514 = vadd.f32 %v536, %v3513
  %v3515 = vpop.f32.mrf.mxu0
  %v3516 = vpop.f32.mrf.mxu0
  %v3517 = vadd.f32 %v536, %v3516
  %v3518 = vpop.f32.mrf.mxu0
  %3519 = vmatprep.mubr.bf16.mxu0 0
  %3520 = vmatmul.mubr.bf16.gmra.mxu0 %v2165
  %v3521 = vpop.f32.mrf.mxu0
  %v3522 = vadd.f32 %v536, %v3521
  %v3523 = vpop.f32.mrf.mxu0
  %v3524 = vpop.f32.mrf.mxu0
  %v3525 = vadd.f32 %v536, %v3524
  %v3526 = vpop.f32.mrf.mxu0
  %3527 = vmatprep.mubr.bf16.mxu0 0
  %3528 = vmatmul.mubr.bf16.gmra.mxu0 %v2168
  %v3529 = vpop.f32.mrf.mxu0
  %v3530 = vadd.f32 %v536, %v3529
  %v3531 = vpop.f32.mrf.mxu0
  %v3532 = vpop.f32.mrf.mxu0
  %v3533 = vadd.f32 %v536, %v3532
  %v3534 = vpop.f32.mrf.mxu0
  %3535 = vmatprep.mubr.bf16.mxu0 0
  %3536 = vmatmul.mubr.bf16.gmra.mxu0 %v2171
  %v3537 = vpop.f32.mrf.mxu0
  %v3538 = vadd.f32 %v536, %v3537
  %v3539 = vpop.f32.mrf.mxu0
  %v3540 = vpop.f32.mrf.mxu0
  %v3541 = vadd.f32 %v536, %v3540
  %v3542 = vpop.f32.mrf.mxu0
  %3543 = vmatprep.mubr.bf16.mxu0 0
  %3544 = vmatmul.mubr.bf16.gmra.mxu0 %v2174
  %v3545 = vpop.f32.mrf.mxu0
  %v3546 = vadd.f32 %v536, %v3545
  %v3547 = vpop.f32.mrf.mxu0
  %v3548 = vpop.f32.mrf.mxu0
  %v3549 = vadd.f32 %v536, %v3548
  %v3550 = vpop.f32.mrf.mxu0
  %3551 = vmatprep.mubr.bf16.mxu0 0
  %3552 = vmatmul.mubr.bf16.gmra.mxu0 %v2177
  %v3553 = vpop.f32.mrf.mxu0
  %v3554 = vadd.f32 %v536, %v3553
  %v3555 = vpop.f32.mrf.mxu0
  %v3556 = vpop.f32.mrf.mxu0
  %v3557 = vadd.f32 %v536, %v3556
  %v3558 = vpop.f32.mrf.mxu0
  %3559 = vmatprep.mubr.bf16.mxu0 0
  %3560 = vmatmul.mubr.bf16.gmra.mxu0 %v2180
  %v3561 = vpop.f32.mrf.mxu0
  %v3562 = vadd.f32 %v536, %v3561
  %v3563 = vpop.f32.mrf.mxu0
  %v3564 = vpop.f32.mrf.mxu0
  %v3565 = vadd.f32 %v536, %v3564
  %v3566 = vpop.f32.mrf.mxu0
  %3567 = vmatprep.mubr.bf16.mxu0 0
  %3568 = vmatmul.mubr.bf16.gmra.mxu0 %v2183
  %v3569 = vpop.f32.mrf.mxu0
  %v3570 = vadd.f32 %v536, %v3569
  %v3571 = vpop.f32.mrf.mxu0
  %v3572 = vpop.f32.mrf.mxu0
  %v3573 = vadd.f32 %v536, %v3572
  %v3574 = vpop.f32.mrf.mxu0
  %3575 = vmatprep.mubr.bf16.mxu0 0
  %3576 = vmatmul.mubr.bf16.gmra.mxu0 %v2186
  %v3577 = vpop.f32.mrf.mxu0
  %v3578 = vadd.f32 %v536, %v3577
  %v3579 = vpop.f32.mrf.mxu0
  %v3580 = vpop.f32.mrf.mxu0
  %v3581 = vadd.f32 %v536, %v3580
  %v3582 = vpop.f32.mrf.mxu0
  %3583 = vmatprep.mubr.bf16.mxu0 0
  %3584 = vmatmul.mubr.bf16.gmra.mxu0 %v2189
  %v3585 = vpop.f32.mrf.mxu0
  %v3586 = vadd.f32 %v536, %v3585
  %v3587 = vpop.f32.mrf.mxu0
  %v3588 = vpop.f32.mrf.mxu0
  %v3589 = vadd.f32 %v536, %v3588
  %v3590 = vpop.f32.mrf.mxu0
  %3591 = vmatprep.mubr.bf16.mxu0 0
  %3592 = vmatmul.mubr.bf16.gmra.mxu0 %v2192
  %v3593 = vpop.f32.mrf.mxu0
  %v3594 = vadd.f32 %v536, %v3593
  %v3595 = vpop.f32.mrf.mxu0
  %v3596 = vpop.f32.mrf.mxu0
  %v3597 = vadd.f32 %v536, %v3596
  %v3598 = vpop.f32.mrf.mxu0
  %3599 = vmatprep.mubr.bf16.mxu0 0
  %3600 = vmatmul.mubr.bf16.gmra.mxu0 %v2195
  %v3601 = vpop.f32.mrf.mxu0
  %v3602 = vadd.f32 %v536, %v3601
  %v3603 = vpop.f32.mrf.mxu0
  %v3604 = vpop.f32.mrf.mxu0
  %v3605 = vadd.f32 %v536, %v3604
  %v3606 = vpop.f32.mrf.mxu0
  %3607 = vmatprep.mubr.bf16.mxu0 0
  %3608 = vmatmul.mubr.bf16.gmra.mxu0 %v2198
  %v3609 = vpop.f32.mrf.mxu0
  %v3610 = vadd.f32 %v536, %v3609
  %v3611 = vpop.f32.mrf.mxu0
  %v3612 = vpop.f32.mrf.mxu0
  %v3613 = vadd.f32 %v536, %v3612
  %v3614 = vpop.f32.mrf.mxu0
  %3615 = vmatprep.mubr.bf16.mxu0 0
  %3616 = vmatmul.mubr.bf16.gmra.mxu0 %v2201
  %v3617 = vpop.f32.mrf.mxu0
  %v3618 = vadd.f32 %v536, %v3617
  %v3619 = vpop.f32.mrf.mxu0
  %v3620 = vpop.f32.mrf.mxu0
  %v3621 = vadd.f32 %v536, %v3620
  %v3622 = vpop.f32.mrf.mxu0
  %3623 = vmatprep.mubr.bf16.mxu0 0
  %3624 = vmatmul.mubr.bf16.gmra.mxu0 %v2204
  %v3625 = vpop.f32.mrf.mxu0
  %v3626 = vadd.f32 %v536, %v3625
  %v3627 = vpop.f32.mrf.mxu0
  %v3628 = vpop.f32.mrf.mxu0
  %v3629 = vadd.f32 %v536, %v3628
  %v3630 = vpop.f32.mrf.mxu0
  %3631 = vmatprep.mubr.bf16.mxu0 0
  %3632 = vmatmul.mubr.bf16.gmra.mxu0 %v2207
  %v3633 = vpop.f32.mrf.mxu0
  %v3634 = vadd.f32 %v536, %v3633
  %v3635 = vpop.f32.mrf.mxu0
  %v3636 = vpop.f32.mrf.mxu0
  %v3637 = vadd.f32 %v536, %v3636
  %v3638 = vpop.f32.mrf.mxu0
  %3639 = vmatprep.mubr.bf16.mxu0 0
  %3640 = vmatmul.mubr.bf16.gmra.mxu0 %v2210
  %v3641 = vpop.f32.mrf.mxu0
  %v3642 = vadd.f32 %v536, %v3641
  %v3643 = vpop.f32.mrf.mxu0
  %v3644 = vpop.f32.mrf.mxu0
  %v3645 = vadd.f32 %v536, %v3644
  %v3646 = vpop.f32.mrf.mxu0
  %3647 = vmatprep.mubr.bf16.mxu0 0
  %3648 = vmatmul.mubr.bf16.gmra.mxu0 %v2213
  %v3649 = vpop.f32.mrf.mxu0
  %v3650 = vadd.f32 %v536, %v3649
  %v3651 = vpop.f32.mrf.mxu0
  %v3652 = vpop.f32.mrf.mxu0
  %v3653 = vadd.f32 %v536, %v3652
  %v3654 = vpop.f32.mrf.mxu0
  %3655 = vmatprep.mubr.bf16.mxu0 0
  %3656 = vmatmul.mubr.bf16.gmra.mxu0 %v2216
  %v3657 = vpop.f32.mrf.mxu0
  %v3658 = vadd.f32 %v536, %v3657
  %v3659 = vpop.f32.mrf.mxu0
  %v3660 = vpop.f32.mrf.mxu0
  %v3661 = vadd.f32 %v536, %v3660
  %v3662 = vpop.f32.mrf.mxu0
  %3663 = vmatprep.mubr.bf16.mxu0 0
  %3664 = vmatmul.mubr.bf16.gmra.mxu0 %v2219
  %v3665 = vpop.f32.mrf.mxu0
  %v3666 = vadd.f32 %v536, %v3665
  %v3667 = vpop.f32.mrf.mxu0
  %v3668 = vpop.f32.mrf.mxu0
  %v3669 = vadd.f32 %v536, %v3668
  %v3670 = vpop.f32.mrf.mxu0
  %3671 = vmatprep.mubr.bf16.mxu0 0
  %3672 = vmatmul.mubr.bf16.gmra.mxu0 %v2222
  %v3673 = vpop.f32.mrf.mxu0
  %v3674 = vadd.f32 %v536, %v3673
  %v3675 = vpop.f32.mrf.mxu0
  %v3676 = vpop.f32.mrf.mxu0
  %v3677 = vadd.f32 %v536, %v3676
  %v3678 = vpop.f32.mrf.mxu0
  %3679 = vmatprep.mubr.bf16.mxu0 0
  %3680 = vmatmul.mubr.bf16.gmra.mxu0 %v2225
  %v3681 = vpop.f32.mrf.mxu0
  %v3682 = vadd.f32 %v536, %v3681
  %v3683 = vpop.f32.mrf.mxu0
  %v3684 = vpop.f32.mrf.mxu0
  %v3685 = vadd.f32 %v536, %v3684
  %v3686 = vpop.f32.mrf.mxu0
  %3687 = vmatprep.mubr.bf16.mxu0 0
  %3688 = vmatmul.mubr.bf16.gmra.mxu0 %v2228
  %v3689 = vpop.f32.mrf.mxu0
  %v3690 = vadd.f32 %v536, %v3689
  %v3691 = vpop.f32.mrf.mxu0
  %v3692 = vpop.f32.mrf.mxu0
  %v3693 = vadd.f32 %v536, %v3692
  %v3694 = vpop.f32.mrf.mxu0
  %3695 = vmatprep.mubr.bf16.mxu0 0
  %3696 = vmatmul.mubr.bf16.gmra.mxu0 %v2231
  %v3697 = vpop.f32.mrf.mxu0
  %v3698 = vadd.f32 %v536, %v3697
  %v3699 = vpop.f32.mrf.mxu0
  %v3700 = vpop.f32.mrf.mxu0
  %v3701 = vadd.f32 %v536, %v3700
  %v3702 = vpop.f32.mrf.mxu0
  %3703 = vmatprep.mubr.bf16.mxu0 0
  %3704 = vmatmul.mubr.bf16.gmra.mxu0 %v2234
  %v3705 = vpop.f32.mrf.mxu0
  %v3706 = vadd.f32 %v536, %v3705
  %v3707 = vpop.f32.mrf.mxu0
  %v3708 = vpop.f32.mrf.mxu0
  %v3709 = vadd.f32 %v536, %v3708
  %v3710 = vpop.f32.mrf.mxu0
  %3711 = vmatprep.mubr.bf16.mxu0 0
  %3712 = vmatmul.mubr.bf16.gmra.mxu0 %v2237
  %v3713 = vpop.f32.mrf.mxu0
  %v3714 = vadd.f32 %v536, %v3713
  %v3715 = vpop.f32.mrf.mxu0
  %v3716 = vpop.f32.mrf.mxu0
  %v3717 = vadd.f32 %v536, %v3716
  %v3718 = vpop.f32.mrf.mxu0
  %3719 = vmatprep.mubr.bf16.mxu0 0
  %3720 = vmatmul.mubr.bf16.gmra.mxu0 %v2240
  %v3721 = vpop.f32.mrf.mxu0
  %v3722 = vadd.f32 %v536, %v3721
  %v3723 = vpop.f32.mrf.mxu0
  %v3724 = vpop.f32.mrf.mxu0
  %v3725 = vadd.f32 %v536, %v3724
  %v3726 = vpop.f32.mrf.mxu0
  %3727 = vmatprep.mubr.bf16.mxu0 0
  %3728 = vmatmul.mubr.bf16.gmra.mxu0 %v2243
  %v3729 = vpop.f32.mrf.mxu0
  %v3730 = vadd.f32 %v536, %v3729
  %v3731 = vpop.f32.mrf.mxu0
  %v3732 = vpop.f32.mrf.mxu0
  %v3733 = vadd.f32 %v536, %v3732
  %v3734 = vpop.f32.mrf.mxu0
  %3735 = vmatprep.mubr.bf16.mxu0 0
  %3736 = vmatmul.mubr.bf16.gmra.mxu0 %v2246
  %v3737 = vpop.f32.mrf.mxu0
  %v3738 = vadd.f32 %v536, %v3737
  %v3739 = vpop.f32.mrf.mxu0
  %v3740 = vpop.f32.mrf.mxu0
  %v3741 = vadd.f32 %v536, %v3740
  %v3742 = vpop.f32.mrf.mxu0
  %3743 = vmatprep.mubr.bf16.mxu0 0
  %3744 = vmatmul.mubr.bf16.gmra.mxu0 %v2249
  %v3745 = vpop.f32.mrf.mxu0
  %v3746 = vadd.f32 %v536, %v3745
  %v3747 = vpop.f32.mrf.mxu0
  %v3748 = vpop.f32.mrf.mxu0
  %v3749 = vadd.f32 %v536, %v3748
  %v3750 = vpop.f32.mrf.mxu0
  %3751 = vmatprep.mubr.bf16.mxu0 0
  %3752 = vmatmul.mubr.bf16.gmra.mxu0 %v2252
  %v3753 = vpop.f32.mrf.mxu0
  %v3754 = vadd.f32 %v536, %v3753
  %v3755 = vpop.f32.mrf.mxu0
  %v3756 = vpop.f32.mrf.mxu0
  %v3757 = vadd.f32 %v536, %v3756
  %v3758 = vpop.f32.mrf.mxu0
  %3759 = vmatprep.mubr.bf16.mxu0 0
  %3760 = vmatmul.mubr.bf16.gmra.mxu0 %v2255
  %v3761 = vpop.f32.mrf.mxu0
  %v3762 = vadd.f32 %v536, %v3761
  %v3763 = vpop.f32.mrf.mxu0
  %v3764 = vpop.f32.mrf.mxu0
  %v3765 = vadd.f32 %v536, %v3764
  %v3766 = vpop.f32.mrf.mxu0
  %3767 = vmatprep.mubr.bf16.mxu0 0
  %3768 = vmatmul.mubr.bf16.gmra.mxu0 %v2258
  %v3769 = vpop.f32.mrf.mxu0
  %v3770 = vadd.f32 %v536, %v3769
  %v3771 = vpop.f32.mrf.mxu0
  %v3772 = vpop.f32.mrf.mxu0
  %v3773 = vadd.f32 %v536, %v3772
  %v3774 = vpop.f32.mrf.mxu0
  %3775 = vmatprep.mubr.bf16.mxu0 0
  %3776 = vmatmul.mubr.bf16.gmra.mxu0 %v2261
  %v3777 = vpop.f32.mrf.mxu0
  %v3778 = vadd.f32 %v536, %v3777
  %v3779 = vpop.f32.mrf.mxu0
  %v3780 = vpop.f32.mrf.mxu0
  %v3781 = vadd.f32 %v536, %v3780
  %v3782 = vpop.f32.mrf.mxu0
  %3783 = vmatprep.mubr.bf16.mxu0 0
  %3784 = vmatmul.mubr.bf16.gmra.mxu0 %v2264
  %v3785 = vpop.f32.mrf.mxu0
  %v3786 = vadd.f32 %v536, %v3785
  %v3787 = vpop.f32.mrf.mxu0
  %v3788 = vpop.f32.mrf.mxu0
  %v3789 = vadd.f32 %v536, %v3788
  %v3790 = vpop.f32.mrf.mxu0
  %3791 = vmatprep.mubr.bf16.mxu0 0
  %3792 = vmatmul.mubr.bf16.gmra.mxu0 %v2267
  %v3793 = vpop.f32.mrf.mxu0
  %v3794 = vadd.f32 %v536, %v3793
  %v3795 = vpop.f32.mrf.mxu0
  %v3796 = vpop.f32.mrf.mxu0
  %v3797 = vadd.f32 %v536, %v3796
  %v3798 = vpop.f32.mrf.mxu0
  %3799 = vmatprep.mubr.bf16.mxu0 0
  %3800 = vmatmul.mubr.bf16.gmra.mxu0 %v2270
  %v3801 = vpop.f32.mrf.mxu0
  %v3802 = vadd.f32 %v536, %v3801
  %v3803 = vpop.f32.mrf.mxu0
  %v3804 = vpop.f32.mrf.mxu0
  %v3805 = vadd.f32 %v536, %v3804
  %v3806 = vpop.f32.mrf.mxu0
  %3807 = vmatprep.mubr.bf16.mxu0 0
  %3808 = vmatmul.mubr.bf16.gmra.mxu0 %v2273
  %v3809 = vpop.f32.mrf.mxu0
  %v3810 = vadd.f32 %v536, %v3809
  %v3811 = vpop.f32.mrf.mxu0
  %v3812 = vpop.f32.mrf.mxu0
  %v3813 = vadd.f32 %v536, %v3812
  %v3814 = vpop.f32.mrf.mxu0
  %3815 = vmatprep.mubr.bf16.mxu0 0
  %3816 = vmatmul.mubr.bf16.gmra.mxu0 %v2276
  %v3817 = vpop.f32.mrf.mxu0
  %v3818 = vadd.f32 %v536, %v3817
  %v3819 = vpop.f32.mrf.mxu0
  %v3820 = vpop.f32.mrf.mxu0
  %v3821 = vadd.f32 %v536, %v3820
  %v3822 = vpop.f32.mrf.mxu0
  %3823 = vmatprep.mubr.bf16.mxu0 0
  %3824 = vmatmul.mubr.bf16.gmra.mxu0 %v2279
  %v3825 = vpop.f32.mrf.mxu0
  %v3826 = vadd.f32 %v536, %v3825
  %v3827 = vpop.f32.mrf.mxu0
  %v3828 = vpop.f32.mrf.mxu0
  %v3829 = vadd.f32 %v536, %v3828
  %v3830 = vpop.f32.mrf.mxu0
  %3831 = vmatprep.mubr.bf16.mxu0 0
  %3832 = vmatmul.mubr.bf16.gmra.mxu0 %v2282
  %v3833 = vpop.f32.mrf.mxu0
  %v3834 = vadd.f32 %v536, %v3833
  %v3835 = vpop.f32.mrf.mxu0
  %v3836 = vpop.f32.mrf.mxu0
  %v3837 = vadd.f32 %v536, %v3836
  %v3838 = vpop.f32.mrf.mxu0
  %3839 = vmatprep.mubr.bf16.mxu0 0
  %3840 = vmatmul.mubr.bf16.gmra.mxu0 %v2285
  %v3841 = vpop.f32.mrf.mxu0
  %v3842 = vadd.f32 %v536, %v3841
  %v3843 = vpop.f32.mrf.mxu0
  %v3844 = vpop.f32.mrf.mxu0
  %v3845 = vadd.f32 %v536, %v3844
  %v3846 = vpop.f32.mrf.mxu0
  %3847 = vmatprep.mubr.bf16.mxu0 0
  %3848 = vmatmul.mubr.bf16.gmra.mxu0 %v2288
  %v3849 = vpop.f32.mrf.mxu0
  %v3850 = vadd.f32 %v536, %v3849
  %v3851 = vpop.f32.mrf.mxu0
  %v3852 = vpop.f32.mrf.mxu0
  %v3853 = vadd.f32 %v536, %v3852
  %v3854 = vpop.f32.mrf.mxu0
  %3855 = vmatprep.mubr.bf16.mxu0 0
  %3856 = vmatmul.mubr.bf16.gmra.mxu0 %v2291
  %v3857 = vpop.f32.mrf.mxu0
  %v3858 = vadd.f32 %v536, %v3857
  %v3859 = vpop.f32.mrf.mxu0
  %v3860 = vpop.f32.mrf.mxu0
  %v3861 = vadd.f32 %v536, %v3860
  %v3862 = vpop.f32.mrf.mxu0
  %3863 = vmatprep.mubr.bf16.mxu0 0
  %3864 = vmatmul.mubr.bf16.gmra.mxu0 %v2294
  %v3865 = vpop.f32.mrf.mxu0
  %v3866 = vadd.f32 %v536, %v3865
  %v3867 = vpop.f32.mrf.mxu0
  %v3868 = vpop.f32.mrf.mxu0
  %v3869 = vadd.f32 %v536, %v3868
  %v3870 = vpop.f32.mrf.mxu0
  %3871 = vmatprep.mubr.bf16.mxu0 0
  %3872 = vmatmul.mubr.bf16.gmra.mxu0 %v2297
  %v3873 = vpop.f32.mrf.mxu0
  %v3874 = vadd.f32 %v536, %v3873
  %v3875 = vpop.f32.mrf.mxu0
  %v3876 = vpop.f32.mrf.mxu0
  %v3877 = vadd.f32 %v536, %v3876
  %v3878 = vpop.f32.mrf.mxu0
  %3879 = vmatprep.mubr.bf16.mxu0 0
  %3880 = vmatmul.mubr.bf16.gmra.mxu0 %v2300
  %v3881 = vpop.f32.mrf.mxu0
  %v3882 = vadd.f32 %v536, %v3881
  %v3883 = vpop.f32.mrf.mxu0
  %v3884 = vpop.f32.mrf.mxu0
  %v3885 = vadd.f32 %v536, %v3884
  %v3886 = vpop.f32.mrf.mxu0
  %3887 = vmatprep.mubr.bf16.mxu0 0
  %3888 = vmatmul.mubr.bf16.gmra.mxu0 %v2303
  %v3889 = vpop.f32.mrf.mxu0
  %v3890 = vadd.f32 %v536, %v3889
  %v3891 = vpop.f32.mrf.mxu0
  %v3892 = vpop.f32.mrf.mxu0
  %v3893 = vadd.f32 %v536, %v3892
  %v3894 = vpop.f32.mrf.mxu0
  %3895 = vmatprep.mubr.bf16.mxu0 0
  %3896 = vmatmul.mubr.bf16.gmra.mxu0 %v2306
  %v3897 = vpop.f32.mrf.mxu0
  %v3898 = vadd.f32 %v536, %v3897
  %v3899 = vpop.f32.mrf.mxu0
  %v3900 = vpop.f32.mrf.mxu0
  %v3901 = vadd.f32 %v536, %v3900
  %v3902 = vpop.f32.mrf.mxu0
  %3903 = vmatprep.mubr.bf16.mxu0 0
  %3904 = vmatmul.mubr.bf16.gmra.mxu0 %v2309
  %v3905 = vpop.f32.mrf.mxu0
  %v3906 = vadd.f32 %v536, %v3905
  %v3907 = vpop.f32.mrf.mxu0
  %v3908 = vpop.f32.mrf.mxu0
  %v3909 = vadd.f32 %v536, %v3908
  %v3910 = vpop.f32.mrf.mxu0
  %3911 = vmatprep.mubr.bf16.mxu0 0
  %3912 = vmatmul.mubr.bf16.gmra.mxu0 %v2312
  %v3913 = vpop.f32.mrf.mxu0
  %v3914 = vadd.f32 %v536, %v3913
  %v3915 = vpop.f32.mrf.mxu0
  %v3916 = vpop.f32.mrf.mxu0
  %v3917 = vadd.f32 %v536, %v3916
  %v3918 = vpop.f32.mrf.mxu0
  %3919 = vmatprep.mubr.bf16.mxu0 0
  %3920 = vmatmul.mubr.bf16.gmra.mxu0 %v2315
  %v3921 = vpop.f32.mrf.mxu0
  %v3922 = vadd.f32 %v536, %v3921
  %v3923 = vpop.f32.mrf.mxu0
  %v3924 = vpop.f32.mrf.mxu0
  %v3925 = vadd.f32 %v536, %v3924
  %v3926 = vpop.f32.mrf.mxu0
  %3927 = vmatprep.mubr.bf16.mxu0 0
  %3928 = vmatmul.mubr.bf16.gmra.mxu0 %v2318
  %v3929 = vpop.f32.mrf.mxu0
  %v3930 = vadd.f32 %v536, %v3929
  %v3931 = vpop.f32.mrf.mxu0
  %v3932 = vpop.f32.mrf.mxu0
  %v3933 = vadd.f32 %v536, %v3932
  %v3934 = vpop.f32.mrf.mxu0
  %3935 = vmatprep.mubr.bf16.mxu0 0
  %3936 = vmatmul.mubr.bf16.gmra.mxu0 %v2321
  %v3937 = vpop.f32.mrf.mxu0
  %v3938 = vadd.f32 %v536, %v3937
  %v3939 = vpop.f32.mrf.mxu0
  %v3940 = vpop.f32.mrf.mxu0
  %v3941 = vadd.f32 %v536, %v3940
  %v3942 = vpop.f32.mrf.mxu0
  %3943 = vmatprep.mubr.bf16.mxu0 0
  %3944 = vmatmul.mubr.bf16.gmra.mxu0 %v2324
  %v3945 = vpop.f32.mrf.mxu0
  %v3946 = vadd.f32 %v536, %v3945
  %v3947 = vpop.f32.mrf.mxu0
  %v3948 = vpop.f32.mrf.mxu0
  %v3949 = vadd.f32 %v536, %v3948
  %v3950 = vpop.f32.mrf.mxu0
  %3951 = vmatprep.mubr.bf16.mxu0 0
  %3952 = vmatmul.mubr.bf16.gmra.mxu0 %v2327
  %v3953 = vpop.f32.mrf.mxu0
  %v3954 = vadd.f32 %v536, %v3953
  %v3955 = vpop.f32.mrf.mxu0
  %v3956 = vpop.f32.mrf.mxu0
  %v3957 = vadd.f32 %v536, %v3956
  %v3958 = vpop.f32.mrf.mxu0
  %3959 = vmatprep.mubr.bf16.mxu0 0
  %3960 = vmatmul.mubr.bf16.gmra.mxu0 %v2330
  %v3961 = vpop.f32.mrf.mxu0
  %v3962 = vadd.f32 %v536, %v3961
  %v3963 = vpop.f32.mrf.mxu0
  %v3964 = vpop.f32.mrf.mxu0
  %v3965 = vadd.f32 %v536, %v3964
  %v3966 = vpop.f32.mrf.mxu0
  %3967 = vmatprep.mubr.bf16.mxu0 0
  %3968 = vmatmul.mubr.bf16.gmra.mxu0 %v2333
  %v3969 = vpop.f32.mrf.mxu0
  %v3970 = vadd.f32 %v536, %v3969
  %v3971 = vpop.f32.mrf.mxu0
  %v3972 = vpop.f32.mrf.mxu0
  %v3973 = vadd.f32 %v536, %v3972
  %v3974 = vpop.f32.mrf.mxu0
  %3975 = vmatprep.mubr.bf16.mxu0 0
  %3976 = vmatmul.mubr.bf16.gmra.mxu0 %v2336
  %v3977 = vpop.f32.mrf.mxu0
  %v3978 = vadd.f32 %v536, %v3977
  %v3979 = vpop.f32.mrf.mxu0
  %v3980 = vpop.f32.mrf.mxu0
  %v3981 = vadd.f32 %v536, %v3980
  %v3982 = vpop.f32.mrf.mxu0
  %3983 = vmatprep.mubr.bf16.mxu0 0
  %3984 = vmatmul.mubr.bf16.gmra.mxu0 %v2339
  %v3985 = vpop.f32.mrf.mxu0
  %v3986 = vadd.f32 %v536, %v3985
  %v3987 = vpop.f32.mrf.mxu0
  %v3988 = vpop.f32.mrf.mxu0
  %v3989 = vadd.f32 %v536, %v3988
  %v3990 = vpop.f32.mrf.mxu0
  %3991 = vmatprep.mubr.bf16.mxu0 0
  %3992 = vmatmul.mubr.bf16.gmra.mxu0 %v2342
  %v3993 = vpop.f32.mrf.mxu0
  %v3994 = vadd.f32 %v536, %v3993
  %v3995 = vpop.f32.mrf.mxu0
  %v3996 = vpop.f32.mrf.mxu0
  %v3997 = vadd.f32 %v536, %v3996
  %v3998 = vpop.f32.mrf.mxu0
  %3999 = vmatprep.mubr.bf16.mxu0 0
  %4000 = vmatmul.mubr.bf16.gmra.mxu0 %v2345
  %v4001 = vpop.f32.mrf.mxu0
  %v4002 = vadd.f32 %v536, %v4001
  %v4003 = vpop.f32.mrf.mxu0
  %v4004 = vpop.f32.mrf.mxu0
  %v4005 = vadd.f32 %v536, %v4004
  %v4006 = vpop.f32.mrf.mxu0
  %4007 = vmatprep.mubr.bf16.mxu0 0
  %4008 = vmatmul.mubr.bf16.gmra.mxu0 %v2348
  %v4009 = vpop.f32.mrf.mxu0
  %v4010 = vadd.f32 %v536, %v4009
  %v4011 = vpop.f32.mrf.mxu0
  %v4012 = vpop.f32.mrf.mxu0
  %v4013 = vadd.f32 %v536, %v4012
  %v4014 = vpop.f32.mrf.mxu0
  %4015 = vmatprep.mubr.bf16.mxu0 0
  %4016 = vmatmul.mubr.bf16.gmra.mxu0 %v2351
  %v4017 = vpop.f32.mrf.mxu0
  %v4018 = vadd.f32 %v536, %v4017
  %v4019 = vpop.f32.mrf.mxu0
  %v4020 = vpop.f32.mrf.mxu0
  %v4021 = vadd.f32 %v536, %v4020
  %v4022 = vpop.f32.mrf.mxu0
  %4023 = vmatprep.mubr.bf16.mxu0 0
  %4024 = vmatmul.mubr.bf16.gmra.mxu0 %v2354
  %v4025 = vpop.f32.mrf.mxu0
  %v4026 = vadd.f32 %v536, %v4025
  %v4027 = vpop.f32.mrf.mxu0
  %v4028 = vpop.f32.mrf.mxu0
  %v4029 = vadd.f32 %v536, %v4028
  %v4030 = vpop.f32.mrf.mxu0
  %4031 = vmatprep.mubr.bf16.mxu0 0
  %4032 = vmatmul.mubr.bf16.gmra.mxu0 %v2357
  %v4033 = vpop.f32.mrf.mxu0
  %v4034 = vadd.f32 %v536, %v4033
  %v4035 = vpop.f32.mrf.mxu0
  %v4036 = vpop.f32.mrf.mxu0
  %v4037 = vadd.f32 %v536, %v4036
  %v4038 = vpop.f32.mrf.mxu0
  %4039 = vmatprep.mubr.bf16.mxu0 0
  %4040 = vmatmul.mubr.bf16.gmra.mxu0 %v2360
  %v4041 = vpop.f32.mrf.mxu0
  %v4042 = vadd.f32 %v536, %v4041
  %v4043 = vpop.f32.mrf.mxu0
  %v4044 = vpop.f32.mrf.mxu0
  %v4045 = vadd.f32 %v536, %v4044
  %v4046 = vpop.f32.mrf.mxu0
  %4047 = vmatprep.mubr.bf16.mxu0 0
  %4048 = vmatmul.mubr.bf16.gmra.mxu0 %v2363
  %v4049 = vpop.f32.mrf.mxu0
  %v4050 = vadd.f32 %v536, %v4049
  %v4051 = vpop.f32.mrf.mxu0
  %v4052 = vpop.f32.mrf.mxu0
  %v4053 = vadd.f32 %v536, %v4052
  %v4054 = vpop.f32.mrf.mxu0
  %4055 = vmatprep.mubr.bf16.mxu0 0
  %4056 = vmatmul.mubr.bf16.gmra.mxu0 %v2366
  %v4057 = vpop.f32.mrf.mxu0
  %v4058 = vadd.f32 %v536, %v4057
  %v4059 = vpop.f32.mrf.mxu0
  %v4060 = vpop.f32.mrf.mxu0
  %v4061 = vadd.f32 %v536, %v4060
  %v4062 = vpop.f32.mrf.mxu0
  %4063 = vmatprep.mubr.bf16.mxu0 0
  %4064 = vmatmul.mubr.bf16.gmra.mxu0 %v2369
  %v4065 = vpop.f32.mrf.mxu0
  %v4066 = vadd.f32 %v536, %v4065
  %v4067 = vpop.f32.mrf.mxu0
  %v4068 = vpop.f32.mrf.mxu0
  %v4069 = vadd.f32 %v536, %v4068
  %v4070 = vpop.f32.mrf.mxu0
  %4071 = vmatprep.mubr.bf16.mxu0 0
  %4072 = vmatmul.mubr.bf16.gmra.mxu0 %v2372
  %v4073 = vpop.f32.mrf.mxu0
  %v4074 = vadd.f32 %v536, %v4073
  %v4075 = vpop.f32.mrf.mxu0
  %v4076 = vpop.f32.mrf.mxu0
  %v4077 = vadd.f32 %v536, %v4076
  %v4078 = vpop.f32.mrf.mxu0
  %4079 = vmatprep.mubr.bf16.mxu0 0
  %4080 = vmatmul.mubr.bf16.gmra.mxu0 %v2375
  %v4081 = vpop.f32.mrf.mxu0
  %v4082 = vadd.f32 %v536, %v4081
  %v4083 = vpop.f32.mrf.mxu0
  %v4084 = vpop.f32.mrf.mxu0
  %v4085 = vadd.f32 %v536, %v4084
  %v4086 = vpop.f32.mrf.mxu0
  %4087 = vmatprep.mubr.bf16.mxu0 0
  %4088 = vmatmul.mubr.bf16.gmra.mxu0 %v2378
  %v4089 = vpop.f32.mrf.mxu0
  %v4090 = vadd.f32 %v536, %v4089
  %v4091 = vpop.f32.mrf.mxu0
  %v4092 = vpop.f32.mrf.mxu0
  %v4093 = vadd.f32 %v536, %v4092
  %v4094 = vpop.f32.mrf.mxu0
  %4095 = vmatprep.mubr.bf16.mxu0 0
  %4096 = vmatmul.mubr.bf16.gmra.mxu0 %v2381
  %v4097 = vpop.f32.mrf.mxu0
  %v4098 = vadd.f32 %v536, %v4097
  %v4099 = vpop.f32.mrf.mxu0
  %v4100 = vpop.f32.mrf.mxu0
  %v4101 = vadd.f32 %v536, %v4100
  %v4102 = vpop.f32.mrf.mxu0
  %4103 = vmatprep.mubr.bf16.mxu0 0
  %4104 = vmatmul.mubr.bf16.gmra.mxu0 %v2384
  %v4105 = vpop.f32.mrf.mxu0
  %v4106 = vadd.f32 %v536, %v4105
  %v4107 = vpop.f32.mrf.mxu0
  %v4108 = vpop.f32.mrf.mxu0
  %v4109 = vadd.f32 %v536, %v4108
  %v4110 = vpop.f32.mrf.mxu0
  %4111 = vmatprep.mubr.bf16.mxu0 0
  %4112 = vmatmul.mubr.bf16.gmra.mxu0 %v2387
  %v4113 = vpop.f32.mrf.mxu0
  %v4114 = vadd.f32 %v536, %v4113
  %v4115 = vpop.f32.mrf.mxu0
  %v4116 = vpop.f32.mrf.mxu0
  %v4117 = vadd.f32 %v536, %v4116
  %v4118 = vpop.f32.mrf.mxu0
  %4119 = vmatprep.mubr.bf16.mxu0 0
  %4120 = vmatmul.mubr.bf16.gmra.mxu0 %v2390
  %v4121 = vpop.f32.mrf.mxu0
  %v4122 = vadd.f32 %v536, %v4121
  %v4123 = vpop.f32.mrf.mxu0
  %v4124 = vpop.f32.mrf.mxu0
  %v4125 = vadd.f32 %v536, %v4124
  %v4126 = vpop.f32.mrf.mxu0
  %4127 = vmatprep.mubr.bf16.mxu0 0
  %4128 = vmatmul.mubr.bf16.gmra.mxu0 %v2393
  %v4129 = vpop.f32.mrf.mxu0
  %v4130 = vadd.f32 %v536, %v4129
  %v4131 = vpop.f32.mrf.mxu0
  %v4132 = vpop.f32.mrf.mxu0
  %v4133 = vadd.f32 %v536, %v4132
  %v4134 = vpop.f32.mrf.mxu0
  %4135 = vmatprep.mubr.bf16.mxu0 0
  %4136 = vmatmul.mubr.bf16.gmra.mxu0 %v2396
  %v4137 = vpop.f32.mrf.mxu0
  %v4138 = vadd.f32 %v536, %v4137
  %v4139 = vpop.f32.mrf.mxu0
  %v4140 = vpop.f32.mrf.mxu0
  %v4141 = vadd.f32 %v536, %v4140
  %v4142 = vpop.f32.mrf.mxu0
  %4143 = vmatprep.mubr.bf16.mxu0 0
  %4144 = vmatmul.mubr.bf16.gmra.mxu0 %v2399
  %v4145 = vpop.f32.mrf.mxu0
  %v4146 = vadd.f32 %v536, %v4145
  %v4147 = vpop.f32.mrf.mxu0
  %v4148 = vpop.f32.mrf.mxu0
  %v4149 = vadd.f32 %v536, %v4148
  %v4150 = vpop.f32.mrf.mxu0
  %4151 = vmatprep.mubr.bf16.mxu0 0
  %4152 = vmatmul.mubr.bf16.gmra.mxu0 %v2402
  %v4153 = vpop.f32.mrf.mxu0
  %v4154 = vadd.f32 %v536, %v4153
  %v4155 = vpop.f32.mrf.mxu0
  %v4156 = vpop.f32.mrf.mxu0
  %v4157 = vadd.f32 %v536, %v4156
  %v4158 = vpop.f32.mrf.mxu0
  %4159 = vmatprep.mubr.bf16.mxu0 0
  %4160 = vmatmul.mubr.bf16.gmra.mxu0 %v2405
  %v4161 = vpop.f32.mrf.mxu0
  %v4162 = vadd.f32 %v536, %v4161
  %v4163 = vpop.f32.mrf.mxu0
  %v4164 = vpop.f32.mrf.mxu0
  %v4165 = vadd.f32 %v536, %v4164
  %v4166 = vpop.f32.mrf.mxu0
  %4167 = vmatprep.mubr.bf16.mxu0 0
  %4168 = vmatmul.mubr.bf16.gmra.mxu0 %v2408
  %v4169 = vpop.f32.mrf.mxu0
  %v4170 = vadd.f32 %v536, %v4169
  %v4171 = vpop.f32.mrf.mxu0
  %v4172 = vpop.f32.mrf.mxu0
  %v4173 = vadd.f32 %v536, %v4172
  %v4174 = vpop.f32.mrf.mxu0
  %4175 = vmatprep.mubr.bf16.mxu0 0
  %4176 = vmatmul.mubr.bf16.gmra.mxu0 %v2411
  %v4177 = vpop.f32.mrf.mxu0
  %v4178 = vadd.f32 %v536, %v4177
  %v4179 = vpop.f32.mrf.mxu0
  %v4180 = vpop.f32.mrf.mxu0
  %v4181 = vadd.f32 %v536, %v4180
  %v4182 = vpop.f32.mrf.mxu0
  %4183 = vmatprep.mubr.bf16.mxu0 0
  %4184 = vmatmul.mubr.bf16.gmra.mxu0 %v2414
  %v4185 = vpop.f32.mrf.mxu0
  %v4186 = vadd.f32 %v536, %v4185
  %v4187 = vpop.f32.mrf.mxu0
  %v4188 = vpop.f32.mrf.mxu0
  %v4189 = vadd.f32 %v536, %v4188
  %v4190 = vpop.f32.mrf.mxu0
  %4191 = vmatprep.mubr.bf16.mxu0 0
  %4192 = vmatmul.mubr.bf16.gmra.mxu0 %v2417
  %v4193 = vpop.f32.mrf.mxu0
  %v4194 = vadd.f32 %v536, %v4193
  %v4195 = vpop.f32.mrf.mxu0
  %v4196 = vpop.f32.mrf.mxu0
  %v4197 = vadd.f32 %v536, %v4196
  %v4198 = vpop.f32.mrf.mxu0
  %4199 = vmatprep.mubr.bf16.mxu0 0
  %4200 = vmatmul.mubr.bf16.gmra.mxu0 %v2420
  %v4201 = vpop.f32.mrf.mxu0
  %v4202 = vadd.f32 %v536, %v4201
  %v4203 = vpop.f32.mrf.mxu0
  %v4204 = vpop.f32.mrf.mxu0
  %v4205 = vadd.f32 %v536, %v4204
  %v4206 = vpop.f32.mrf.mxu0
  %4207 = vmatprep.mubr.bf16.mxu0 0
  %4208 = vmatmul.mubr.bf16.gmra.mxu0 %v2423
  %v4209 = vpop.f32.mrf.mxu0
  %v4210 = vadd.f32 %v536, %v4209
  %v4211 = vpop.f32.mrf.mxu0
  %v4212 = vpop.f32.mrf.mxu0
  %v4213 = vadd.f32 %v536, %v4212
  %v4214 = vpop.f32.mrf.mxu0
  %4215 = vmatprep.mubr.bf16.mxu0 0
  %4216 = vmatmul.mubr.bf16.gmra.mxu0 %v2426
  %v4217 = vpop.f32.mrf.mxu0
  %v4218 = vadd.f32 %v536, %v4217
  %v4219 = vpop.f32.mrf.mxu0
  %v4220 = vpop.f32.mrf.mxu0
  %v4221 = vadd.f32 %v536, %v4220
  %v4222 = vpop.f32.mrf.mxu0
  %4223 = vmatprep.mubr.bf16.mxu0 0
  %4224 = vmatmul.mubr.bf16.gmra.mxu0 %v2429
  %v4225 = vpop.f32.mrf.mxu0
  %v4226 = vadd.f32 %v536, %v4225
  %v4227 = vpop.f32.mrf.mxu0
  %v4228 = vpop.f32.mrf.mxu0
  %v4229 = vadd.f32 %v536, %v4228
  %v4230 = vpop.f32.mrf.mxu0
  %4231 = vmatprep.mubr.bf16.mxu0 0
  %4232 = vmatmul.mubr.bf16.gmra.mxu0 %v2432
  %v4233 = vpop.f32.mrf.mxu0
  %v4234 = vadd.f32 %v536, %v4233
  %v4235 = vpop.f32.mrf.mxu0
  %v4236 = vpop.f32.mrf.mxu0
  %v4237 = vadd.f32 %v536, %v4236
  %v4238 = vpop.f32.mrf.mxu0
  %4239 = vmatprep.mubr.bf16.mxu0 0
  %4240 = vmatmul.mubr.bf16.gmra.mxu0 %v2435
  %v4241 = vpop.f32.mrf.mxu0
  %v4242 = vadd.f32 %v536, %v4241
  %v4243 = vpop.f32.mrf.mxu0
  %v4244 = vpop.f32.mrf.mxu0
  %v4245 = vadd.f32 %v536, %v4244
  %v4246 = vpop.f32.mrf.mxu0
  %4247 = vmatprep.mubr.bf16.mxu0 0
  %4248 = vmatmul.mubr.bf16.gmra.mxu0 %v2438
  %v4249 = vpop.f32.mrf.mxu0
  %v4250 = vadd.f32 %v536, %v4249
  %v4251 = vpop.f32.mrf.mxu0
  %v4252 = vpop.f32.mrf.mxu0
  %v4253 = vadd.f32 %v536, %v4252
  %v4254 = vpop.f32.mrf.mxu0
  %4255 = vmatprep.mubr.bf16.mxu0 0
  %4256 = vmatmul.mubr.bf16.gmra.mxu0 %v2441
  %v4257 = vpop.f32.mrf.mxu0
  %v4258 = vadd.f32 %v536, %v4257
  %v4259 = vpop.f32.mrf.mxu0
  %v4260 = vpop.f32.mrf.mxu0
  %v4261 = vadd.f32 %v536, %v4260
  %v4262 = vpop.f32.mrf.mxu0
  %4263 = vmatprep.mubr.bf16.mxu0 0
  %4264 = vmatmul.mubr.bf16.gmra.mxu0 %v2444
  %v4265 = vpop.f32.mrf.mxu0
  %v4266 = vadd.f32 %v536, %v4265
  %v4267 = vpop.f32.mrf.mxu0
  %v4268 = vpop.f32.mrf.mxu0
  %v4269 = vadd.f32 %v536, %v4268
  %v4270 = vpop.f32.mrf.mxu0
  %4271 = vmatprep.mubr.bf16.mxu0 0
  %4272 = vmatmul.mubr.bf16.gmra.mxu0 %v2447
  %v4273 = vpop.f32.mrf.mxu0
  %v4274 = vadd.f32 %v536, %v4273
  %v4275 = vpop.f32.mrf.mxu0
  %v4276 = vpop.f32.mrf.mxu0
  %v4277 = vadd.f32 %v536, %v4276
  %v4278 = vpop.f32.mrf.mxu0
  %4279 = vmatprep.mubr.bf16.mxu0 0
  %4280 = vmatmul.mubr.bf16.gmra.mxu0 %v2450
  %v4281 = vpop.f32.mrf.mxu0
  %v4282 = vadd.f32 %v536, %v4281
  %v4283 = vpop.f32.mrf.mxu0
  %v4284 = vpop.f32.mrf.mxu0
  %v4285 = vadd.f32 %v536, %v4284
  %v4286 = vpop.f32.mrf.mxu0
  %4287 = vmatprep.mubr.bf16.mxu0 0
  %4288 = vmatmul.mubr.bf16.gmra.mxu0 %v2453
  %v4289 = vpop.f32.mrf.mxu0
  %v4290 = vadd.f32 %v536, %v4289
  %v4291 = vpop.f32.mrf.mxu0
  %v4292 = vpop.f32.mrf.mxu0
  %v4293 = vadd.f32 %v536, %v4292
  %v4294 = vpop.f32.mrf.mxu0
  %4295 = vmatprep.mubr.bf16.mxu0 0
  %4296 = vmatmul.mubr.bf16.gmra.mxu0 %v2456
  %v4297 = vpop.f32.mrf.mxu0
  %v4298 = vadd.f32 %v536, %v4297
  %v4299 = vpop.f32.mrf.mxu0
  %v4300 = vpop.f32.mrf.mxu0
  %v4301 = vadd.f32 %v536, %v4300
  %v4302 = vpop.f32.mrf.mxu0
  %4303 = vmatprep.mubr.bf16.mxu0 0
  %4304 = vmatmul.mubr.bf16.gmra.mxu0 %v2459
  %v4305 = vpop.f32.mrf.mxu0
  %v4306 = vadd.f32 %v536, %v4305
  %v4307 = vpop.f32.mrf.mxu0
  %v4308 = vpop.f32.mrf.mxu0
  %v4309 = vadd.f32 %v536, %v4308
  %v4310 = vpop.f32.mrf.mxu0
  %4311 = vmatprep.mubr.bf16.mxu0 0
  %4312 = vmatmul.mubr.bf16.gmra.mxu0 %v2462
  %v4313 = vpop.f32.mrf.mxu0
  %v4314 = vadd.f32 %v536, %v4313
  %v4315 = vpop.f32.mrf.mxu0
  %v4316 = vpop.f32.mrf.mxu0
  %v4317 = vadd.f32 %v536, %v4316
  %v4318 = vpop.f32.mrf.mxu0
  %4319 = vmatprep.mubr.bf16.mxu0 0
  %4320 = vmatmul.mubr.bf16.gmra.mxu0 %v2465
  %v4321 = vpop.f32.mrf.mxu0
  %v4322 = vadd.f32 %v536, %v4321
  %v4323 = vpop.f32.mrf.mxu0
  %v4324 = vpop.f32.mrf.mxu0
  %v4325 = vadd.f32 %v536, %v4324
  %v4326 = vpop.f32.mrf.mxu0
  %4327 = vmatprep.mubr.bf16.mxu0 0
  %4328 = vmatmul.mubr.bf16.gmra.mxu0 %v2468
  %v4329 = vpop.f32.mrf.mxu0
  %v4330 = vadd.f32 %v536, %v4329
  %v4331 = vpop.f32.mrf.mxu0
  %v4332 = vpop.f32.mrf.mxu0
  %v4333 = vadd.f32 %v536, %v4332
  %v4334 = vpop.f32.mrf.mxu0
  %4335 = vmatprep.mubr.bf16.mxu0 0
  %4336 = vmatmul.mubr.bf16.gmra.mxu0 %v2471
  %v4337 = vpop.f32.mrf.mxu0
  %v4338 = vadd.f32 %v536, %v4337
  %v4339 = vpop.f32.mrf.mxu0
  %v4340 = vpop.f32.mrf.mxu0
  %v4341 = vadd.f32 %v536, %v4340
  %v4342 = vpop.f32.mrf.mxu0
  %4343 = vmatprep.mubr.bf16.mxu0 0
  %4344 = vmatmul.mubr.bf16.gmra.mxu0 %v2474
  %v4345 = vpop.f32.mrf.mxu0
  %v4346 = vadd.f32 %v536, %v4345
  %v4347 = vpop.f32.mrf.mxu0
  %v4348 = vpop.f32.mrf.mxu0
  %v4349 = vadd.f32 %v536, %v4348
  %v4350 = vpop.f32.mrf.mxu0
  %4351 = vmatprep.mubr.bf16.mxu0 0
  %4352 = vmatmul.mubr.bf16.gmra.mxu0 %v2477
  %v4353 = vpop.f32.mrf.mxu0
  %v4354 = vadd.f32 %v536, %v4353
  %v4355 = vpop.f32.mrf.mxu0
  %v4356 = vpop.f32.mrf.mxu0
  %v4357 = vadd.f32 %v536, %v4356
  %v4358 = vpop.f32.mrf.mxu0
  %4359 = vmatprep.mubr.bf16.mxu0 0
  %4360 = vmatmul.mubr.bf16.gmra.mxu0 %v2480
  %v4361 = vpop.f32.mrf.mxu0
  %v4362 = vadd.f32 %v536, %v4361
  %v4363 = vpop.f32.mrf.mxu0
  %v4364 = vpop.f32.mrf.mxu0
  %v4365 = vadd.f32 %v536, %v4364
  %v4366 = vpop.f32.mrf.mxu0
  %4367 = vmatprep.mubr.bf16.mxu0 0
  %4368 = vmatmul.mubr.bf16.gmra.mxu0 %v2483
  %v4369 = vpop.f32.mrf.mxu0
  %v4370 = vadd.f32 %v536, %v4369
  %v4371 = vpop.f32.mrf.mxu0
  %v4372 = vpop.f32.mrf.mxu0
  %v4373 = vadd.f32 %v536, %v4372
  %v4374 = vpop.f32.mrf.mxu0
  %4375 = vmatprep.mubr.bf16.mxu0 0
  %4376 = vmatmul.mubr.bf16.gmra.mxu0 %v2486
  %v4377 = vpop.f32.mrf.mxu0
  %v4378 = vadd.f32 %v536, %v4377
  %v4379 = vpop.f32.mrf.mxu0
  %v4380 = vpop.f32.mrf.mxu0
  %v4381 = vadd.f32 %v536, %v4380
  %v4382 = vpop.f32.mrf.mxu0
  %4383 = vmatprep.mubr.bf16.mxu0 0
  %4384 = vmatmul.mubr.bf16.gmra.mxu0 %v2489
  %v4385 = vpop.f32.mrf.mxu0
  %v4386 = vadd.f32 %v536, %v4385
  %v4387 = vpop.f32.mrf.mxu0
  %v4388 = vpop.f32.mrf.mxu0
  %v4389 = vadd.f32 %v536, %v4388
  %v4390 = vpop.f32.mrf.mxu0
  %4391 = vmatprep.mubr.bf16.mxu0 0
  %4392 = vmatmul.mubr.bf16.gmra.mxu0 %v2492
  %v4393 = vpop.f32.mrf.mxu0
  %v4394 = vadd.f32 %v536, %v4393
  %v4395 = vpop.f32.mrf.mxu0
  %v4396 = vpop.f32.mrf.mxu0
  %v4397 = vadd.f32 %v536, %v4396
  %v4398 = vpop.f32.mrf.mxu0
  %4399 = vmatprep.mubr.bf16.mxu0 0
  %4400 = vmatmul.mubr.bf16.gmra.mxu0 %v2495
  %v4401 = vpop.f32.mrf.mxu0
  %v4402 = vadd.f32 %v536, %v4401
  %v4403 = vpop.f32.mrf.mxu0
  %v4404 = vpop.f32.mrf.mxu0
  %v4405 = vadd.f32 %v536, %v4404
  %v4406 = vpop.f32.mrf.mxu0
  %4407 = vmatprep.mubr.bf16.mxu0 0
  %4408 = vmatmul.mubr.bf16.gmra.mxu0 %v2498
  %v4409 = vpop.f32.mrf.mxu0
  %v4410 = vadd.f32 %v536, %v4409
  %v4411 = vpop.f32.mrf.mxu0
  %v4412 = vpop.f32.mrf.mxu0
  %v4413 = vadd.f32 %v536, %v4412
  %v4414 = vpop.f32.mrf.mxu0
  %4415 = vmatprep.mubr.bf16.mxu0 0
  %4416 = vmatmul.mubr.bf16.gmra.mxu0 %v2501
  %v4417 = vpop.f32.mrf.mxu0
  %v4418 = vadd.f32 %v536, %v4417
  %v4419 = vpop.f32.mrf.mxu0
  %v4420 = vpop.f32.mrf.mxu0
  %v4421 = vadd.f32 %v536, %v4420
  %v4422 = vpop.f32.mrf.mxu0
  %4423 = vmatprep.mubr.bf16.mxu0 0
  %4424 = vmatmul.mubr.bf16.gmra.mxu0 %v2504
  %v4425 = vpop.f32.mrf.mxu0
  %v4426 = vadd.f32 %v536, %v4425
  %v4427 = vpop.f32.mrf.mxu0
  %v4428 = vpop.f32.mrf.mxu0
  %v4429 = vadd.f32 %v536, %v4428
  %v4430 = vpop.f32.mrf.mxu0
  %4431 = vmatprep.mubr.bf16.mxu0 0
  %4432 = vmatmul.mubr.bf16.gmra.mxu0 %v2507
  %v4433 = vpop.f32.mrf.mxu0
  %v4434 = vadd.f32 %v536, %v4433
  %v4435 = vpop.f32.mrf.mxu0
  %v4436 = vpop.f32.mrf.mxu0
  %v4437 = vadd.f32 %v536, %v4436
  %v4438 = vpop.f32.mrf.mxu0
  %4439 = vmatprep.mubr.bf16.mxu0 0
  %4440 = vmatmul.mubr.bf16.gmra.mxu0 %v2510
  %v4441 = vpop.f32.mrf.mxu0
  %v4442 = vadd.f32 %v536, %v4441
  %v4443 = vpop.f32.mrf.mxu0
  %v4444 = vpop.f32.mrf.mxu0
  %v4445 = vadd.f32 %v536, %v4444
  %v4446 = vpop.f32.mrf.mxu0
  %4447 = vmatprep.mubr.bf16.mxu0 0
  %4448 = vmatmul.mubr.bf16.gmra.mxu0 %v2513
  %v4449 = vpop.f32.mrf.mxu0
  %v4450 = vadd.f32 %v536, %v4449
  %v4451 = vpop.f32.mrf.mxu0
  %v4452 = vpop.f32.mrf.mxu0
  %v4453 = vadd.f32 %v536, %v4452
  %v4454 = vpop.f32.mrf.mxu0
  %4455 = vmatprep.mubr.bf16.mxu0 0
  %4456 = vmatmul.mubr.bf16.gmra.mxu0 %v2516
  %v4457 = vpop.f32.mrf.mxu0
  %v4458 = vadd.f32 %v536, %v4457
  %v4459 = vpop.f32.mrf.mxu0
  %v4460 = vpop.f32.mrf.mxu0
  %v4461 = vadd.f32 %v536, %v4460
  %v4462 = vpop.f32.mrf.mxu0
  %4463 = vmatprep.mubr.bf16.mxu0 0
  %4464 = vmatmul.mubr.bf16.gmra.mxu0 %v2519
  %v4465 = vpop.f32.mrf.mxu0
  %v4466 = vadd.f32 %v536, %v4465
  %v4467 = vpop.f32.mrf.mxu0
  %v4468 = vpop.f32.mrf.mxu0
  %v4469 = vadd.f32 %v536, %v4468
  %v4470 = vpop.f32.mrf.mxu0
  %4471 = vmatprep.mubr.bf16.mxu0 0
  %4472 = vmatmul.mubr.bf16.gmra.mxu0 %v2522
  %v4473 = vpop.f32.mrf.mxu0
  %v4474 = vadd.f32 %v536, %v4473
  %v4475 = vpop.f32.mrf.mxu0
  %v4476 = vpop.f32.mrf.mxu0
  %v4477 = vadd.f32 %v536, %v4476
  %v4478 = vpop.f32.mrf.mxu0
  %4479 = vmatprep.mubr.bf16.mxu0 0
  %4480 = vmatmul.mubr.bf16.gmra.mxu0 %v2525
  %v4481 = vpop.f32.mrf.mxu0
  %v4482 = vadd.f32 %v536, %v4481
  %v4483 = vpop.f32.mrf.mxu0
  %v4484 = vpop.f32.mrf.mxu0
  %v4485 = vadd.f32 %v536, %v4484
  %v4486 = vpop.f32.mrf.mxu0
  %4487 = vmatprep.mubr.bf16.mxu0 0
  %4488 = vmatmul.mubr.bf16.gmra.mxu0 %v2528
  %v4489 = vpop.f32.mrf.mxu0
  %v4490 = vadd.f32 %v536, %v4489
  %v4491 = vpop.f32.mrf.mxu0
  %v4492 = vpop.f32.mrf.mxu0
  %v4493 = vadd.f32 %v536, %v4492
  %v4494 = vpop.f32.mrf.mxu0
  %4495 = vmatprep.mubr.bf16.mxu0 0
  %4496 = vmatmul.mubr.bf16.gmra.mxu0 %v2531
  %v4497 = vpop.f32.mrf.mxu0
  %v4498 = vadd.f32 %v536, %v4497
  %v4499 = vpop.f32.mrf.mxu0
  %v4500 = vpop.f32.mrf.mxu0
  %v4501 = vadd.f32 %v536, %v4500
  %v4502 = vpop.f32.mrf.mxu0
  %4503 = vmatprep.mubr.bf16.mxu0 0
  %4504 = vmatmul.mubr.bf16.gmra.mxu0 %v2534
  %v4505 = vpop.f32.mrf.mxu0
  %v4506 = vadd.f32 %v536, %v4505
  %v4507 = vpop.f32.mrf.mxu0
  %v4508 = vpop.f32.mrf.mxu0
  %v4509 = vadd.f32 %v536, %v4508
  %v4510 = vpop.f32.mrf.mxu0
  %4511 = vmatprep.mubr.bf16.mxu0 0
  %4512 = vmatmul.mubr.bf16.gmra.mxu0 %v2537
  %v4513 = vpop.f32.mrf.mxu0
  %v4514 = vadd.f32 %v536, %v4513
  %v4515 = vpop.f32.mrf.mxu0
  %v4516 = vpop.f32.mrf.mxu0
  %v4517 = vadd.f32 %v536, %v4516
  %v4518 = vpop.f32.mrf.mxu0
  %4519 = vmatprep.mubr.bf16.mxu0 0
  %4520 = vmatmul.mubr.bf16.gmra.mxu0 %v2540
  %v4521 = vpop.f32.mrf.mxu0
  %v4522 = vadd.f32 %v536, %v4521
  %v4523 = vpop.f32.mrf.mxu0
  %v4524 = vpop.f32.mrf.mxu0
  %v4525 = vadd.f32 %v536, %v4524
  %v4526 = vpop.f32.mrf.mxu0
  %4527 = vmatprep.mubr.bf16.mxu0 0
  %4528 = vmatmul.mubr.bf16.gmra.mxu0 %v2543
  %v4529 = vpop.f32.mrf.mxu0
  %v4530 = vadd.f32 %v536, %v4529
  %v4531 = vpop.f32.mrf.mxu0
  %v4532 = vpop.f32.mrf.mxu0
  %v4533 = vadd.f32 %v536, %v4532
  %v4534 = vpop.f32.mrf.mxu0
  %4535 = vmatprep.mubr.bf16.mxu0 0
  %4536 = vmatmul.mubr.bf16.gmra.mxu0 %v2546
  %v4537 = vpop.f32.mrf.mxu0
  %v4538 = vadd.f32 %v536, %v4537
  %v4539 = vpop.f32.mrf.mxu0
  %v4540 = vpop.f32.mrf.mxu0
  %v4541 = vadd.f32 %v536, %v4540
  %v4542 = vpop.f32.mrf.mxu0
  %4543 = vmatprep.mubr.bf16.mxu0 0
  %4544 = vmatmul.mubr.bf16.gmra.mxu0 %v2549
  %v4545 = vpop.f32.mrf.mxu0
  %v4546 = vadd.f32 %v536, %v4545
  %v4547 = vpop.f32.mrf.mxu0
  %v4548 = vpop.f32.mrf.mxu0
  %v4549 = vadd.f32 %v536, %v4548
  %v4550 = vpop.f32.mrf.mxu0
  %4551 = vmatprep.mubr.bf16.mxu0 0
  %4552 = vmatmul.mubr.bf16.gmra.mxu0 %v2552
  %v4553 = vpop.f32.mrf.mxu0
  %v4554 = vadd.f32 %v536, %v4553
  %v4555 = vpop.f32.mrf.mxu0
  %v4556 = vpop.f32.mrf.mxu0
  %v4557 = vadd.f32 %v536, %v4556
  %v4558 = vpop.f32.mrf.mxu0
  %4559 = vmatprep.mubr.bf16.mxu0 0
  %4560 = vmatmul.mubr.bf16.gmra.mxu0 %v2555
  %v4561 = vpop.f32.mrf.mxu0
  %v4562 = vadd.f32 %v536, %v4561
  %v4563 = vpop.f32.mrf.mxu0
  %v4564 = vpop.f32.mrf.mxu0
  %v4565 = vadd.f32 %v536, %v4564
  %v4566 = vpop.f32.mrf.mxu0
  %4567 = vmatprep.mubr.bf16.mxu0 0
  %4568 = vmatmul.mubr.bf16.gmra.mxu0 %v2558
  %v4569 = vpop.f32.mrf.mxu0
  %v4570 = vadd.f32 %v536, %v4569
  %v4571 = vpop.f32.mrf.mxu0
  %v4572 = vpop.f32.mrf.mxu0
  %v4573 = vadd.f32 %v536, %v4572
  %v4574 = vpop.f32.mrf.mxu0
  %4575 = vmatprep.mubr.bf16.mxu0 0
  %4576 = vmatmul.mubr.bf16.gmra.mxu0 %v2561
  %v4577 = vpop.f32.mrf.mxu0
  %v4578 = vadd.f32 %v536, %v4577
  %v4579 = vpop.f32.mrf.mxu0
  %v4580 = vpop.f32.mrf.mxu0
  %v4581 = vadd.f32 %v536, %v4580
  %v4582 = vpop.f32.mrf.mxu0
  %4583 = vmatprep.mubr.bf16.mxu0 0
  %4584 = vmatmul.mubr.bf16.gmra.mxu0 %v2564
  %v4585 = vpop.f32.mrf.mxu0
  %v4586 = vadd.f32 %v536, %v4585
  %v4587 = vpop.f32.mrf.mxu0
  %v4588 = vpop.f32.mrf.mxu0
  %v4589 = vadd.f32 %v536, %v4588
  %v4590 = vpop.f32.mrf.mxu0
  %4591 = vmatprep.mubr.bf16.mxu0 0
  %4592 = vmatmul.mubr.bf16.gmra.mxu0 %v2567
  %v4593 = vpop.f32.mrf.mxu0
  %v4594 = vadd.f32 %v536, %v4593
  %v4595 = vpop.f32.mrf.mxu0
  %v4596 = vpop.f32.mrf.mxu0
  %v4597 = vadd.f32 %v536, %v4596
  %v4598 = vpop.f32.mrf.mxu0
  %4599 = vmatprep.mubr.bf16.mxu0 0
  %4600 = vmatmul.mubr.bf16.gmra.mxu0 %v2570
  %v4601 = vpop.f32.mrf.mxu0
  %v4602 = vadd.f32 %v536, %v4601
  %v4603 = vpop.f32.mrf.mxu0
  %v4604 = vpop.f32.mrf.mxu0
  %v4605 = vadd.f32 %v536, %v4604
  %v4606 = vpop.f32.mrf.mxu0
  %4607 = vmatprep.mubr.bf16.mxu0 0
  %4608 = vmatmul.mubr.bf16.gmra.mxu0 %v2573
  %v4609 = vpop.f32.mrf.mxu0
  %v4610 = vadd.f32 %v536, %v4609
  %v4611 = vpop.f32.mrf.mxu0
  %v4612 = vpop.f32.mrf.mxu0
  %v4613 = vadd.f32 %v536, %v4612
  %v4614 = vpop.f32.mrf.mxu0
  %4615 = vmatprep.mubr.bf16.mxu0 0
  %4616 = vmatmul.mubr.bf16.gmra.mxu0 %v2576
  %v4617 = vpop.f32.mrf.mxu0
  %v4618 = vadd.f32 %v536, %v4617
  %v4619 = vpop.f32.mrf.mxu0
  %v4620 = vpop.f32.mrf.mxu0
  %v4621 = vadd.f32 %v536, %v4620
  %v4622 = vpop.f32.mrf.mxu0
  %4623 = vmatprep.mubr.bf16.mxu0 0
  %4624 = vmatmul.mubr.bf16.gmra.mxu0 %v2579
  %v4625 = vpop.f32.mrf.mxu0
  %v4626 = vadd.f32 %v536, %v4625
  %v4627 = vpop.f32.mrf.mxu0
  %v4628 = vpop.f32.mrf.mxu0
  %v4629 = vadd.f32 %v536, %v4628
  %v4630 = vpop.f32.mrf.mxu0
  %4631 = vmatprep.mubr.bf16.mxu0 0
  %4632 = vmatmul.mubr.bf16.gmra.mxu0 %v2582
  %v4633 = vpop.f32.mrf.mxu0
  %v4634 = vadd.f32 %v536, %v4633
  %v4635 = vpop.f32.mrf.mxu0
  %v4636 = vpop.f32.mrf.mxu0
  %v4637 = vadd.f32 %v536, %v4636
  %v4638 = vpop.f32.mrf.mxu0
  %4639 = vmatprep.mubr.bf16.mxu0 0
  %4640 = vmatmul.mubr.bf16.gmra.mxu0 %v2585
  %v4641 = vpop.f32.mrf.mxu0
  %v4642 = vadd.f32 %v536, %v4641
  %v4643 = vpop.f32.mrf.mxu0
  %v4644 = vpop.f32.mrf.mxu0
  %v4645 = vadd.f32 %v536, %v4644
  %v4646 = vpop.f32.mrf.mxu0
  %4647 = vmatprep.mubr.bf16.mxu0 0
  %4648 = vmatmul.mubr.bf16.gmra.mxu0 %v2588
  %v4649 = vpop.f32.mrf.mxu0
  %v4650 = vadd.f32 %v536, %v4649
  %v4651 = vpop.f32.mrf.mxu0
  %v4652 = vpop.f32.mrf.mxu0
  %v4653 = vadd.f32 %v536, %v4652
  %v4654 = vpop.f32.mrf.mxu0
  %4655 = vmatprep.mubr.bf16.mxu0 0
  %4656 = vmatmul.mubr.bf16.gmra.mxu0 %v2591
  %v4657 = vpop.f32.mrf.mxu0
  %v4658 = vadd.f32 %v536, %v4657
  %v4659 = vpop.f32.mrf.mxu0
  %v4660 = vpop.f32.mrf.mxu0
  %v4661 = vadd.f32 %v536, %v4660
  %v4662 = vpop.f32.mrf.mxu0
  %4663 = vmatprep.mubr.bf16.mxu0 0
  %4664 = vmatmul.mubr.bf16.gmra.mxu0 %v2594
  %v4665 = vpop.f32.mrf.mxu0
  %v4666 = vadd.f32 %v536, %v4665
  %v4667 = vpop.f32.mrf.mxu0
  %v4668 = vpop.f32.mrf.mxu0
  %v4669 = vadd.f32 %v536, %v4668
  %v4670 = vpop.f32.mrf.mxu0
  %4671 = vmatprep.mubr.bf16.mxu0 0
  %4672 = vmatmul.mubr.bf16.gmra.mxu0 %v2597
  %v4673 = vpop.f32.mrf.mxu0
  %v4674 = vadd.f32 %v536, %v4673
  %v4675 = vpop.f32.mrf.mxu0
  %v4676 = vpop.f32.mrf.mxu0
  %v4677 = vadd.f32 %v536, %v4676
  %v4678 = vpop.f32.mrf.mxu0
  %4679 = vdwg.mxu0
  %v4680 = vmax.f32 %v2634, 0.0
  %v4681 = vmax.f32 %v2637, 0.0
  %v4682 = vmax.f32 %v2642, 0.0
  %v4683 = vmax.f32 %v2645, 0.0
  %v4684 = vmax.f32 %v2650, 0.0
  %v4685 = vmax.f32 %v2653, 0.0
  %v4686 = vmax.f32 %v2658, 0.0
  %v4687 = vmax.f32 %v2661, 0.0
  %v4688 = vmax.f32 %v2666, 0.0
  %v4689 = vmax.f32 %v2669, 0.0
  %v4690 = vmax.f32 %v2674, 0.0
  %v4691 = vmax.f32 %v2677, 0.0
  %v4692 = vmax.f32 %v2682, 0.0
  %v4693 = vmax.f32 %v2685, 0.0
  %v4694 = vmax.f32 %v2690, 0.0
  %v4695 = vmax.f32 %v2693, 0.0
  %v4696 = vmax.f32 %v2698, 0.0
  %v4697 = vmax.f32 %v2701, 0.0
  %v4698 = vmax.f32 %v2706, 0.0
  %v4699 = vmax.f32 %v2709, 0.0
  %v4700 = vmax.f32 %v2714, 0.0
  %v4701 = vmax.f32 %v2717, 0.0
  %v4702 = vmax.f32 %v2722, 0.0
  %v4703 = vmax.f32 %v2725, 0.0
  %v4704 = vmax.f32 %v2730, 0.0
  %v4705 = vmax.f32 %v2733, 0.0
  %v4706 = vmax.f32 %v2738, 0.0
  %v4707 = vmax.f32 %v2741, 0.0
  %v4708 = vmax.f32 %v2746, 0.0
  %v4709 = vmax.f32 %v2749, 0.0
  %v4710 = vmax.f32 %v2754, 0.0
  %v4711 = vmax.f32 %v2757, 0.0
  %v4712 = vmax.f32 %v2762, 0.0
  %v4713 = vmax.f32 %v2765, 0.0
  %v4714 = vmax.f32 %v2770, 0.0
  %v4715 = vmax.f32 %v2773, 0.0
  %v4716 = vmax.f32 %v2778, 0.0
  %v4717 = vmax.f32 %v2781, 0.0
  %v4718 = vmax.f32 %v2786, 0.0
  %v4719 = vmax.f32 %v2789, 0.0
  %v4720 = vmax.f32 %v2794, 0.0
  %v4721 = vmax.f32 %v2797, 0.0
  %v4722 = vmax.f32 %v2802, 0.0
  %v4723 = vmax.f32 %v2805, 0.0
  %v4724 = vmax.f32 %v2810, 0.0
  %v4725 = vmax.f32 %v2813, 0.0
  %v4726 = vmax.f32 %v2818, 0.0
  %v4727 = vmax.f32 %v2821, 0.0
  %v4728 = vmax.f32 %v2826, 0.0
  %v4729 = vmax.f32 %v2829, 0.0
  %v4730 = vmax.f32 %v2834, 0.0
  %v4731 = vmax.f32 %v2837, 0.0
  %v4732 = vmax.f32 %v2842, 0.0
  %v4733 = vmax.f32 %v2845, 0.0
  %v4734 = vmax.f32 %v2850, 0.0
  %v4735 = vmax.f32 %v2853, 0.0
  %v4736 = vmax.f32 %v2858, 0.0
  %v4737 = vmax.f32 %v2861, 0.0
  %v4738 = vmax.f32 %v2866, 0.0
  %v4739 = vmax.f32 %v2869, 0.0
  %v4740 = vmax.f32 %v2874, 0.0
  %v4741 = vmax.f32 %v2877, 0.0
  %v4742 = vmax.f32 %v2882, 0.0
  %v4743 = vmax.f32 %v2885, 0.0
  %v4744 = vmax.f32 %v2890, 0.0
  %v4745 = vmax.f32 %v2893, 0.0
  %v4746 = vmax.f32 %v2898, 0.0
  %v4747 = vmax.f32 %v2901, 0.0
  %v4748 = vmax.f32 %v2906, 0.0
  %v4749 = vmax.f32 %v2909, 0.0
  %v4750 = vmax.f32 %v2914, 0.0
  %v4751 = vmax.f32 %v2917, 0.0
  %v4752 = vmax.f32 %v2922, 0.0
  %v4753 = vmax.f32 %v2925, 0.0
  %v4754 = vmax.f32 %v2930, 0.0
  %v4755 = vmax.f32 %v2933, 0.0
  %v4756 = vmax.f32 %v2938, 0.0
  %v4757 = vmax.f32 %v2941, 0.0
  %v4758 = vmax.f32 %v2946, 0.0
  %v4759 = vmax.f32 %v2949, 0.0
  %v4760 = vmax.f32 %v2954, 0.0
  %v4761 = vmax.f32 %v2957, 0.0
  %v4762 = vmax.f32 %v2962, 0.0
  %v4763 = vmax.f32 %v2965, 0.0
  %v4764 = vmax.f32 %v2970, 0.0
  %v4765 = vmax.f32 %v2973, 0.0
  %v4766 = vmax.f32 %v2978, 0.0
  %v4767 = vmax.f32 %v2981, 0.0
  %v4768 = vmax.f32 %v2986, 0.0
  %v4769 = vmax.f32 %v2989, 0.0
  %v4770 = vmax.f32 %v2994, 0.0
  %v4771 = vmax.f32 %v2997, 0.0
  %v4772 = vmax.f32 %v3002, 0.0
  %v4773 = vmax.f32 %v3005, 0.0
  %v4774 = vmax.f32 %v3010, 0.0
  %v4775 = vmax.f32 %v3013, 0.0
  %v4776 = vmax.f32 %v3018, 0.0
  %v4777 = vmax.f32 %v3021, 0.0
  %v4778 = vmax.f32 %v3026, 0.0
  %v4779 = vmax.f32 %v3029, 0.0
  %v4780 = vmax.f32 %v3034, 0.0
  %v4781 = vmax.f32 %v3037, 0.0
  %v4782 = vmax.f32 %v3042, 0.0
  %v4783 = vmax.f32 %v3045, 0.0
  %v4784 = vmax.f32 %v3050, 0.0
  %v4785 = vmax.f32 %v3053, 0.0
  %v4786 = vmax.f32 %v3058, 0.0
  %v4787 = vmax.f32 %v3061, 0.0
  %v4788 = vmax.f32 %v3066, 0.0
  %v4789 = vmax.f32 %v3069, 0.0
  %v4790 = vmax.f32 %v3074, 0.0
  %v4791 = vmax.f32 %v3077, 0.0
  %v4792 = vmax.f32 %v3082, 0.0
  %v4793 = vmax.f32 %v3085, 0.0
  %v4794 = vmax.f32 %v3090, 0.0
  %v4795 = vmax.f32 %v3093, 0.0
  %v4796 = vmax.f32 %v3098, 0.0
  %v4797 = vmax.f32 %v3101, 0.0
  %v4798 = vmax.f32 %v3106, 0.0
  %v4799 = vmax.f32 %v3109, 0.0
  %v4800 = vmax.f32 %v3114, 0.0
  %v4801 = vmax.f32 %v3117, 0.0
  %v4802 = vmax.f32 %v3122, 0.0
  %v4803 = vmax.f32 %v3125, 0.0
  %v4804 = vmax.f32 %v3130, 0.0
  %v4805 = vmax.f32 %v3133, 0.0
  %v4806 = vmax.f32 %v3138, 0.0
  %v4807 = vmax.f32 %v3141, 0.0
  %v4808 = vmax.f32 %v3146, 0.0
  %v4809 = vmax.f32 %v3149, 0.0
  %v4810 = vmax.f32 %v3154, 0.0
  %v4811 = vmax.f32 %v3157, 0.0
  %v4812 = vmax.f32 %v3162, 0.0
  %v4813 = vmax.f32 %v3165, 0.0
  %v4814 = vmax.f32 %v3170, 0.0
  %v4815 = vmax.f32 %v3173, 0.0
  %v4816 = vmax.f32 %v3178, 0.0
  %v4817 = vmax.f32 %v3181, 0.0
  %v4818 = vmax.f32 %v3186, 0.0
  %v4819 = vmax.f32 %v3189, 0.0
  %v4820 = vmax.f32 %v3194, 0.0
  %v4821 = vmax.f32 %v3197, 0.0
  %v4822 = vmax.f32 %v3202, 0.0
  %v4823 = vmax.f32 %v3205, 0.0
  %v4824 = vmax.f32 %v3210, 0.0
  %v4825 = vmax.f32 %v3213, 0.0
  %v4826 = vmax.f32 %v3218, 0.0
  %v4827 = vmax.f32 %v3221, 0.0
  %v4828 = vmax.f32 %v3226, 0.0
  %v4829 = vmax.f32 %v3229, 0.0
  %v4830 = vmax.f32 %v3234, 0.0
  %v4831 = vmax.f32 %v3237, 0.0
  %v4832 = vmax.f32 %v3242, 0.0
  %v4833 = vmax.f32 %v3245, 0.0
  %v4834 = vmax.f32 %v3250, 0.0
  %v4835 = vmax.f32 %v3253, 0.0
  %v4836 = vmax.f32 %v3258, 0.0
  %v4837 = vmax.f32 %v3261, 0.0
  %v4838 = vmax.f32 %v3266, 0.0
  %v4839 = vmax.f32 %v3269, 0.0
  %v4840 = vmax.f32 %v3274, 0.0
  %v4841 = vmax.f32 %v3277, 0.0
  %v4842 = vmax.f32 %v3282, 0.0
  %v4843 = vmax.f32 %v3285, 0.0
  %v4844 = vmax.f32 %v3290, 0.0
  %v4845 = vmax.f32 %v3293, 0.0
  %v4846 = vmax.f32 %v3298, 0.0
  %v4847 = vmax.f32 %v3301, 0.0
  %v4848 = vmax.f32 %v3306, 0.0
  %v4849 = vmax.f32 %v3309, 0.0
  %v4850 = vmax.f32 %v3314, 0.0
  %v4851 = vmax.f32 %v3317, 0.0
  %v4852 = vmax.f32 %v3322, 0.0
  %v4853 = vmax.f32 %v3325, 0.0
  %v4854 = vmax.f32 %v3330, 0.0
  %v4855 = vmax.f32 %v3333, 0.0
  %v4856 = vmax.f32 %v3338, 0.0
  %v4857 = vmax.f32 %v3341, 0.0
  %v4858 = vmax.f32 %v3346, 0.0
  %v4859 = vmax.f32 %v3349, 0.0
  %v4860 = vmax.f32 %v3354, 0.0
  %v4861 = vmax.f32 %v3357, 0.0
  %v4862 = vmax.f32 %v3362, 0.0
  %v4863 = vmax.f32 %v3365, 0.0
  %v4864 = vmax.f32 %v3370, 0.0
  %v4865 = vmax.f32 %v3373, 0.0
  %v4866 = vmax.f32 %v3378, 0.0
  %v4867 = vmax.f32 %v3381, 0.0
  %v4868 = vmax.f32 %v3386, 0.0
  %v4869 = vmax.f32 %v3389, 0.0
  %v4870 = vmax.f32 %v3394, 0.0
  %v4871 = vmax.f32 %v3397, 0.0
  %v4872 = vmax.f32 %v3402, 0.0
  %v4873 = vmax.f32 %v3405, 0.0
  %v4874 = vmax.f32 %v3410, 0.0
  %v4875 = vmax.f32 %v3413, 0.0
  %v4876 = vmax.f32 %v3418, 0.0
  %v4877 = vmax.f32 %v3421, 0.0
  %v4878 = vmax.f32 %v3426, 0.0
  %v4879 = vmax.f32 %v3429, 0.0
  %v4880 = vmax.f32 %v3434, 0.0
  %v4881 = vmax.f32 %v3437, 0.0
  %v4882 = vmax.f32 %v3442, 0.0
  %v4883 = vmax.f32 %v3445, 0.0
  %v4884 = vmax.f32 %v3450, 0.0
  %v4885 = vmax.f32 %v3453, 0.0
  %v4886 = vmax.f32 %v3458, 0.0
  %v4887 = vmax.f32 %v3461, 0.0
  %v4888 = vmax.f32 %v3466, 0.0
  %v4889 = vmax.f32 %v3469, 0.0
  %v4890 = vmax.f32 %v3474, 0.0
  %v4891 = vmax.f32 %v3477, 0.0
  %v4892 = vmax.f32 %v3482, 0.0
  %v4893 = vmax.f32 %v3485, 0.0
  %v4894 = vmax.f32 %v3490, 0.0
  %v4895 = vmax.f32 %v3493, 0.0
  %v4896 = vmax.f32 %v3498, 0.0
  %v4897 = vmax.f32 %v3501, 0.0
  %v4898 = vmax.f32 %v3506, 0.0
  %v4899 = vmax.f32 %v3509, 0.0
  %v4900 = vmax.f32 %v3514, 0.0
  %v4901 = vmax.f32 %v3517, 0.0
  %v4902 = vmax.f32 %v3522, 0.0
  %v4903 = vmax.f32 %v3525, 0.0
  %v4904 = vmax.f32 %v3530, 0.0
  %v4905 = vmax.f32 %v3533, 0.0
  %v4906 = vmax.f32 %v3538, 0.0
  %v4907 = vmax.f32 %v3541, 0.0
  %v4908 = vmax.f32 %v3546, 0.0
  %v4909 = vmax.f32 %v3549, 0.0
  %v4910 = vmax.f32 %v3554, 0.0
  %v4911 = vmax.f32 %v3557, 0.0
  %v4912 = vmax.f32 %v3562, 0.0
  %v4913 = vmax.f32 %v3565, 0.0
  %v4914 = vmax.f32 %v3570, 0.0
  %v4915 = vmax.f32 %v3573, 0.0
  %v4916 = vmax.f32 %v3578, 0.0
  %v4917 = vmax.f32 %v3581, 0.0
  %v4918 = vmax.f32 %v3586, 0.0
  %v4919 = vmax.f32 %v3589, 0.0
  %v4920 = vmax.f32 %v3594, 0.0
  %v4921 = vmax.f32 %v3597, 0.0
  %v4922 = vmax.f32 %v3602, 0.0
  %v4923 = vmax.f32 %v3605, 0.0
  %v4924 = vmax.f32 %v3610, 0.0
  %v4925 = vmax.f32 %v3613, 0.0
  %v4926 = vmax.f32 %v3618, 0.0
  %v4927 = vmax.f32 %v3621, 0.0
  %v4928 = vmax.f32 %v3626, 0.0
  %v4929 = vmax.f32 %v3629, 0.0
  %v4930 = vmax.f32 %v3634, 0.0
  %v4931 = vmax.f32 %v3637, 0.0
  %v4932 = vmax.f32 %v3642, 0.0
  %v4933 = vmax.f32 %v3645, 0.0
  %v4934 = vmax.f32 %v3650, 0.0
  %v4935 = vmax.f32 %v3653, 0.0
  %v4936 = vmax.f32 %v3658, 0.0
  %v4937 = vmax.f32 %v3661, 0.0
  %v4938 = vmax.f32 %v3666, 0.0
  %v4939 = vmax.f32 %v3669, 0.0
  %v4940 = vmax.f32 %v3674, 0.0
  %v4941 = vmax.f32 %v3677, 0.0
  %v4942 = vmax.f32 %v3682, 0.0
  %v4943 = vmax.f32 %v3685, 0.0
  %v4944 = vmax.f32 %v3690, 0.0
  %v4945 = vmax.f32 %v3693, 0.0
  %v4946 = vmax.f32 %v3698, 0.0
  %v4947 = vmax.f32 %v3701, 0.0
  %v4948 = vmax.f32 %v3706, 0.0
  %v4949 = vmax.f32 %v3709, 0.0
  %v4950 = vmax.f32 %v3714, 0.0
  %v4951 = vmax.f32 %v3717, 0.0
  %v4952 = vmax.f32 %v3722, 0.0
  %v4953 = vmax.f32 %v3725, 0.0
  %v4954 = vmax.f32 %v3730, 0.0
  %v4955 = vmax.f32 %v3733, 0.0
  %v4956 = vmax.f32 %v3738, 0.0
  %v4957 = vmax.f32 %v3741, 0.0
  %v4958 = vmax.f32 %v3746, 0.0
  %v4959 = vmax.f32 %v3749, 0.0
  %v4960 = vmax.f32 %v3754, 0.0
  %v4961 = vmax.f32 %v3757, 0.0
  %v4962 = vmax.f32 %v3762, 0.0
  %v4963 = vmax.f32 %v3765, 0.0
  %v4964 = vmax.f32 %v3770, 0.0
  %v4965 = vmax.f32 %v3773, 0.0
  %v4966 = vmax.f32 %v3778, 0.0
  %v4967 = vmax.f32 %v3781, 0.0
  %v4968 = vmax.f32 %v3786, 0.0
  %v4969 = vmax.f32 %v3789, 0.0
  %v4970 = vmax.f32 %v3794, 0.0
  %v4971 = vmax.f32 %v3797, 0.0
  %v4972 = vmax.f32 %v3802, 0.0
  %v4973 = vmax.f32 %v3805, 0.0
  %v4974 = vmax.f32 %v3810, 0.0
  %v4975 = vmax.f32 %v3813, 0.0
  %v4976 = vmax.f32 %v3818, 0.0
  %v4977 = vmax.f32 %v3821, 0.0
  %v4978 = vmax.f32 %v3826, 0.0
  %v4979 = vmax.f32 %v3829, 0.0
  %v4980 = vmax.f32 %v3834, 0.0
  %v4981 = vmax.f32 %v3837, 0.0
  %v4982 = vmax.f32 %v3842, 0.0
  %v4983 = vmax.f32 %v3845, 0.0
  %v4984 = vmax.f32 %v3850, 0.0
  %v4985 = vmax.f32 %v3853, 0.0
  %v4986 = vmax.f32 %v3858, 0.0
  %v4987 = vmax.f32 %v3861, 0.0
  %v4988 = vmax.f32 %v3866, 0.0
  %v4989 = vmax.f32 %v3869, 0.0
  %v4990 = vmax.f32 %v3874, 0.0
  %v4991 = vmax.f32 %v3877, 0.0
  %v4992 = vmax.f32 %v3882, 0.0
  %v4993 = vmax.f32 %v3885, 0.0
  %v4994 = vmax.f32 %v3890, 0.0
  %v4995 = vmax.f32 %v3893, 0.0
  %v4996 = vmax.f32 %v3898, 0.0
  %v4997 = vmax.f32 %v3901, 0.0
  %v4998 = vmax.f32 %v3906, 0.0
  %v4999 = vmax.f32 %v3909, 0.0
  %v5000 = vmax.f32 %v3914, 0.0
  %v5001 = vmax.f32 %v3917, 0.0
  %v5002 = vmax.f32 %v3922, 0.0
  %v5003 = vmax.f32 %v3925, 0.0
  %v5004 = vmax.f32 %v3930, 0.0
  %v5005 = vmax.f32 %v3933, 0.0
  %v5006 = vmax.f32 %v3938, 0.0
  %v5007 = vmax.f32 %v3941, 0.0
  %v5008 = vmax.f32 %v3946, 0.0
  %v5009 = vmax.f32 %v3949, 0.0
  %v5010 = vmax.f32 %v3954, 0.0
  %v5011 = vmax.f32 %v3957, 0.0
  %v5012 = vmax.f32 %v3962, 0.0
  %v5013 = vmax.f32 %v3965, 0.0
  %v5014 = vmax.f32 %v3970, 0.0
  %v5015 = vmax.f32 %v3973, 0.0
  %v5016 = vmax.f32 %v3978, 0.0
  %v5017 = vmax.f32 %v3981, 0.0
  %v5018 = vmax.f32 %v3986, 0.0
  %v5019 = vmax.f32 %v3989, 0.0
  %v5020 = vmax.f32 %v3994, 0.0
  %v5021 = vmax.f32 %v3997, 0.0
  %v5022 = vmax.f32 %v4002, 0.0
  %v5023 = vmax.f32 %v4005, 0.0
  %v5024 = vmax.f32 %v4010, 0.0
  %v5025 = vmax.f32 %v4013, 0.0
  %v5026 = vmax.f32 %v4018, 0.0
  %v5027 = vmax.f32 %v4021, 0.0
  %v5028 = vmax.f32 %v4026, 0.0
  %v5029 = vmax.f32 %v4029, 0.0
  %v5030 = vmax.f32 %v4034, 0.0
  %v5031 = vmax.f32 %v4037, 0.0
  %v5032 = vmax.f32 %v4042, 0.0
  %v5033 = vmax.f32 %v4045, 0.0
  %v5034 = vmax.f32 %v4050, 0.0
  %v5035 = vmax.f32 %v4053, 0.0
  %v5036 = vmax.f32 %v4058, 0.0
  %v5037 = vmax.f32 %v4061, 0.0
  %v5038 = vmax.f32 %v4066, 0.0
  %v5039 = vmax.f32 %v4069, 0.0
  %v5040 = vmax.f32 %v4074, 0.0
  %v5041 = vmax.f32 %v4077, 0.0
  %v5042 = vmax.f32 %v4082, 0.0
  %v5043 = vmax.f32 %v4085, 0.0
  %v5044 = vmax.f32 %v4090, 0.0
  %v5045 = vmax.f32 %v4093, 0.0
  %v5046 = vmax.f32 %v4098, 0.0
  %v5047 = vmax.f32 %v4101, 0.0
  %v5048 = vmax.f32 %v4106, 0.0
  %v5049 = vmax.f32 %v4109, 0.0
  %v5050 = vmax.f32 %v4114, 0.0
  %v5051 = vmax.f32 %v4117, 0.0
  %v5052 = vmax.f32 %v4122, 0.0
  %v5053 = vmax.f32 %v4125, 0.0
  %v5054 = vmax.f32 %v4130, 0.0
  %v5055 = vmax.f32 %v4133, 0.0
  %v5056 = vmax.f32 %v4138, 0.0
  %v5057 = vmax.f32 %v4141, 0.0
  %v5058 = vmax.f32 %v4146, 0.0
  %v5059 = vmax.f32 %v4149, 0.0
  %v5060 = vmax.f32 %v4154, 0.0
  %v5061 = vmax.f32 %v4157, 0.0
  %v5062 = vmax.f32 %v4162, 0.0
  %v5063 = vmax.f32 %v4165, 0.0
  %v5064 = vmax.f32 %v4170, 0.0
  %v5065 = vmax.f32 %v4173, 0.0
  %v5066 = vmax.f32 %v4178, 0.0
  %v5067 = vmax.f32 %v4181, 0.0
  %v5068 = vmax.f32 %v4186, 0.0
  %v5069 = vmax.f32 %v4189, 0.0
  %v5070 = vmax.f32 %v4194, 0.0
  %v5071 = vmax.f32 %v4197, 0.0
  %v5072 = vmax.f32 %v4202, 0.0
  %v5073 = vmax.f32 %v4205, 0.0
  %v5074 = vmax.f32 %v4210, 0.0
  %v5075 = vmax.f32 %v4213, 0.0
  %v5076 = vmax.f32 %v4218, 0.0
  %v5077 = vmax.f32 %v4221, 0.0
  %v5078 = vmax.f32 %v4226, 0.0
  %v5079 = vmax.f32 %v4229, 0.0
  %v5080 = vmax.f32 %v4234, 0.0
  %v5081 = vmax.f32 %v4237, 0.0
  %v5082 = vmax.f32 %v4242, 0.0
  %v5083 = vmax.f32 %v4245, 0.0
  %v5084 = vmax.f32 %v4250, 0.0
  %v5085 = vmax.f32 %v4253, 0.0
  %v5086 = vmax.f32 %v4258, 0.0
  %v5087 = vmax.f32 %v4261, 0.0
  %v5088 = vmax.f32 %v4266, 0.0
  %v5089 = vmax.f32 %v4269, 0.0
  %v5090 = vmax.f32 %v4274, 0.0
  %v5091 = vmax.f32 %v4277, 0.0
  %v5092 = vmax.f32 %v4282, 0.0
  %v5093 = vmax.f32 %v4285, 0.0
  %v5094 = vmax.f32 %v4290, 0.0
  %v5095 = vmax.f32 %v4293, 0.0
  %v5096 = vmax.f32 %v4298, 0.0
  %v5097 = vmax.f32 %v4301, 0.0
  %v5098 = vmax.f32 %v4306, 0.0
  %v5099 = vmax.f32 %v4309, 0.0
  %v5100 = vmax.f32 %v4314, 0.0
  %v5101 = vmax.f32 %v4317, 0.0
  %v5102 = vmax.f32 %v4322, 0.0
  %v5103 = vmax.f32 %v4325, 0.0
  %v5104 = vmax.f32 %v4330, 0.0
  %v5105 = vmax.f32 %v4333, 0.0
  %v5106 = vmax.f32 %v4338, 0.0
  %v5107 = vmax.f32 %v4341, 0.0
  %v5108 = vmax.f32 %v4346, 0.0
  %v5109 = vmax.f32 %v4349, 0.0
  %v5110 = vmax.f32 %v4354, 0.0
  %v5111 = vmax.f32 %v4357, 0.0
  %v5112 = vmax.f32 %v4362, 0.0
  %v5113 = vmax.f32 %v4365, 0.0
  %v5114 = vmax.f32 %v4370, 0.0
  %v5115 = vmax.f32 %v4373, 0.0
  %v5116 = vmax.f32 %v4378, 0.0
  %v5117 = vmax.f32 %v4381, 0.0
  %v5118 = vmax.f32 %v4386, 0.0
  %v5119 = vmax.f32 %v4389, 0.0
  %v5120 = vmax.f32 %v4394, 0.0
  %v5121 = vmax.f32 %v4397, 0.0
  %v5122 = vmax.f32 %v4402, 0.0
  %v5123 = vmax.f32 %v4405, 0.0
  %v5124 = vmax.f32 %v4410, 0.0
  %v5125 = vmax.f32 %v4413, 0.0
  %v5126 = vmax.f32 %v4418, 0.0
  %v5127 = vmax.f32 %v4421, 0.0
  %v5128 = vmax.f32 %v4426, 0.0
  %v5129 = vmax.f32 %v4429, 0.0
  %v5130 = vmax.f32 %v4434, 0.0
  %v5131 = vmax.f32 %v4437, 0.0
  %v5132 = vmax.f32 %v4442, 0.0
  %v5133 = vmax.f32 %v4445, 0.0
  %v5134 = vmax.f32 %v4450, 0.0
  %v5135 = vmax.f32 %v4453, 0.0
  %v5136 = vmax.f32 %v4458, 0.0
  %v5137 = vmax.f32 %v4461, 0.0
  %v5138 = vmax.f32 %v4466, 0.0
  %v5139 = vmax.f32 %v4469, 0.0
  %v5140 = vmax.f32 %v4474, 0.0
  %v5141 = vmax.f32 %v4477, 0.0
  %v5142 = vmax.f32 %v4482, 0.0
  %v5143 = vmax.f32 %v4485, 0.0
  %v5144 = vmax.f32 %v4490, 0.0
  %v5145 = vmax.f32 %v4493, 0.0
  %v5146 = vmax.f32 %v4498, 0.0
  %v5147 = vmax.f32 %v4501, 0.0
  %v5148 = vmax.f32 %v4506, 0.0
  %v5149 = vmax.f32 %v4509, 0.0
  %v5150 = vmax.f32 %v4514, 0.0
  %v5151 = vmax.f32 %v4517, 0.0
  %v5152 = vmax.f32 %v4522, 0.0
  %v5153 = vmax.f32 %v4525, 0.0
  %v5154 = vmax.f32 %v4530, 0.0
  %v5155 = vmax.f32 %v4533, 0.0
  %v5156 = vmax.f32 %v4538, 0.0
  %v5157 = vmax.f32 %v4541, 0.0
  %v5158 = vmax.f32 %v4546, 0.0
  %v5159 = vmax.f32 %v4549, 0.0
  %v5160 = vmax.f32 %v4554, 0.0
  %v5161 = vmax.f32 %v4557, 0.0
  %v5162 = vmax.f32 %v4562, 0.0
  %v5163 = vmax.f32 %v4565, 0.0
  %v5164 = vmax.f32 %v4570, 0.0
  %v5165 = vmax.f32 %v4573, 0.0
  %v5166 = vmax.f32 %v4578, 0.0
  %v5167 = vmax.f32 %v4581, 0.0
  %v5168 = vmax.f32 %v4586, 0.0
  %v5169 = vmax.f32 %v4589, 0.0
  %v5170 = vmax.f32 %v4594, 0.0
  %v5171 = vmax.f32 %v4597, 0.0
  %v5172 = vmax.f32 %v4602, 0.0
  %v5173 = vmax.f32 %v4605, 0.0
  %v5174 = vmax.f32 %v4610, 0.0
  %v5175 = vmax.f32 %v4613, 0.0
  %v5176 = vmax.f32 %v4618, 0.0
  %v5177 = vmax.f32 %v4621, 0.0
  %v5178 = vmax.f32 %v4626, 0.0
  %v5179 = vmax.f32 %v4629, 0.0
  %v5180 = vmax.f32 %v4634, 0.0
  %v5181 = vmax.f32 %v4637, 0.0
  %v5182 = vmax.f32 %v4642, 0.0
  %v5183 = vmax.f32 %v4645, 0.0
  %v5184 = vmax.f32 %v4650, 0.0
  %v5185 = vmax.f32 %v4653, 0.0
  %v5186 = vmax.f32 %v4658, 0.0
  %v5187 = vmax.f32 %v4661, 0.0
  %v5188 = vmax.f32 %v4666, 0.0
  %v5189 = vmax.f32 %v4669, 0.0
  %v5190 = vmax.f32 %v4674, 0.0
  %v5191 = vmax.f32 %v4677, 0.0
  %v5192 = vadd.f32 %v4680, %v4681
  %v5193 = vadd.f32 %v5192, %v4682
  %v5194 = vadd.f32 %v5193, %v4683
  %v5195 = vadd.f32 %v5194, %v4684
  %v5196 = vadd.f32 %v5195, %v4685
  %v5197 = vadd.f32 %v5196, %v4686
  %v5198 = vadd.f32 %v5197, %v4687
  %v5199 = vadd.f32 %v5198, %v4688
  %v5200 = vadd.f32 %v5199, %v4689
  %v5201 = vadd.f32 %v5200, %v4690
  %v5202 = vadd.f32 %v5201, %v4691
  %v5203 = vadd.f32 %v5202, %v4692
  %v5204 = vadd.f32 %v5203, %v4693
  %v5205 = vadd.f32 %v5204, %v4694
  %v5206 = vadd.f32 %v5205, %v4695
  %v5207 = vadd.f32 %v5206, %v4696
  %v5208 = vadd.f32 %v5207, %v4697
  %v5209 = vadd.f32 %v5208, %v4698
  %v5210 = vadd.f32 %v5209, %v4699
  %v5211 = vadd.f32 %v5210, %v4700
  %v5212 = vadd.f32 %v5211, %v4701
  %v5213 = vadd.f32 %v5212, %v4702
  %v5214 = vadd.f32 %v5213, %v4703
  %v5215 = vadd.f32 %v5214, %v4704
  %v5216 = vadd.f32 %v5215, %v4705
  %v5217 = vadd.f32 %v5216, %v4706
  %v5218 = vadd.f32 %v5217, %v4707
  %v5219 = vadd.f32 %v5218, %v4708
  %v5220 = vadd.f32 %v5219, %v4709
  %v5221 = vadd.f32 %v5220, %v4710
  %v5222 = vadd.f32 %v5221, %v4711
  %v5223 = vrot.slane %v5222, 4
  %v5224 = vadd.f32 %v5222, %v5223
  %v5225 = vrot.slane %v5224, 2
  %v5226 = vadd.f32 %v5224, %v5225
  %v5227 = vrot.slane %v5226, 1
  %v5228 = vadd.f32 %v5226, %v5227
  %v5229 = vadd.f32 %v4712, %v4713
  %v5230 = vadd.f32 %v5229, %v4714
  %v5231 = vadd.f32 %v5230, %v4715
  %v5232 = vadd.f32 %v5231, %v4716
  %v5233 = vadd.f32 %v5232, %v4717
  %v5234 = vadd.f32 %v5233, %v4718
  %v5235 = vadd.f32 %v5234, %v4719
  %v5236 = vadd.f32 %v5235, %v4720
  %v5237 = vadd.f32 %v5236, %v4721
  %v5238 = vadd.f32 %v5237, %v4722
  %v5239 = vadd.f32 %v5238, %v4723
  %v5240 = vadd.f32 %v5239, %v4724
  %v5241 = vadd.f32 %v5240, %v4725
  %v5242 = vadd.f32 %v5241, %v4726
  %v5243 = vadd.f32 %v5242, %v4727
  %v5244 = vadd.f32 %v5243, %v4728
  %v5245 = vadd.f32 %v5244, %v4729
  %v5246 = vadd.f32 %v5245, %v4730
  %v5247 = vadd.f32 %v5246, %v4731
  %v5248 = vadd.f32 %v5247, %v4732
  %v5249 = vadd.f32 %v5248, %v4733
  %v5250 = vadd.f32 %v5249, %v4734
  %v5251 = vadd.f32 %v5250, %v4735
  %v5252 = vadd.f32 %v5251, %v4736
  %v5253 = vadd.f32 %v5252, %v4737
  %v5254 = vadd.f32 %v5253, %v4738
  %v5255 = vadd.f32 %v5254, %v4739
  %v5256 = vadd.f32 %v5255, %v4740
  %v5257 = vadd.f32 %v5256, %v4741
  %v5258 = vadd.f32 %v5257, %v4742
  %v5259 = vadd.f32 %v5258, %v4743
  %v5260 = vrot.slane %v5259, 4
  %v5261 = vadd.f32 %v5259, %v5260
  %v5262 = vrot.slane %v5261, 2
  %v5263 = vadd.f32 %v5261, %v5262
  %v5264 = vrot.slane %v5263, 1
  %v5265 = vadd.f32 %v5263, %v5264
  %v5266 = vadd.f32 %v4744, %v4745
  %v5267 = vadd.f32 %v5266, %v4746
  %v5268 = vadd.f32 %v5267, %v4747
  %v5269 = vadd.f32 %v5268, %v4748
  %v5270 = vadd.f32 %v5269, %v4749
  %v5271 = vadd.f32 %v5270, %v4750
  %v5272 = vadd.f32 %v5271, %v4751
  %v5273 = vadd.f32 %v5272, %v4752
  %v5274 = vadd.f32 %v5273, %v4753
  %v5275 = vadd.f32 %v5274, %v4754
  %v5276 = vadd.f32 %v5275, %v4755
  %v5277 = vadd.f32 %v5276, %v4756
  %v5278 = vadd.f32 %v5277, %v4757
  %v5279 = vadd.f32 %v5278, %v4758
  %v5280 = vadd.f32 %v5279, %v4759
  %v5281 = vadd.f32 %v5280, %v4760
  %v5282 = vadd.f32 %v5281, %v4761
  %v5283 = vadd.f32 %v5282, %v4762
  %v5284 = vadd.f32 %v5283, %v4763
  %v5285 = vadd.f32 %v5284, %v4764
  %v5286 = vadd.f32 %v5285, %v4765
  %v5287 = vadd.f32 %v5286, %v4766
  %v5288 = vadd.f32 %v5287, %v4767
  %v5289 = vadd.f32 %v5288, %v4768
  %v5290 = vadd.f32 %v5289, %v4769
  %v5291 = vadd.f32 %v5290, %v4770
  %v5292 = vadd.f32 %v5291, %v4771
  %v5293 = vadd.f32 %v5292, %v4772
  %v5294 = vadd.f32 %v5293, %v4773
  %v5295 = vadd.f32 %v5294, %v4774
  %v5296 = vadd.f32 %v5295, %v4775
  %v5297 = vrot.slane %v5296, 4
  %v5298 = vadd.f32 %v5296, %v5297
  %v5299 = vrot.slane %v5298, 2
  %v5300 = vadd.f32 %v5298, %v5299
  %v5301 = vrot.slane %v5300, 1
  %v5302 = vadd.f32 %v5300, %v5301
  %v5303 = vadd.f32 %v4776, %v4777
  %v5304 = vadd.f32 %v5303, %v4778
  %v5305 = vadd.f32 %v5304, %v4779
  %v5306 = vadd.f32 %v5305, %v4780
  %v5307 = vadd.f32 %v5306, %v4781
  %v5308 = vadd.f32 %v5307, %v4782
  %v5309 = vadd.f32 %v5308, %v4783
  %v5310 = vadd.f32 %v5309, %v4784
  %v5311 = vadd.f32 %v5310, %v4785
  %v5312 = vadd.f32 %v5311, %v4786
  %v5313 = vadd.f32 %v5312, %v4787
  %v5314 = vadd.f32 %v5313, %v4788
  %v5315 = vadd.f32 %v5314, %v4789
  %v5316 = vadd.f32 %v5315, %v4790
  %v5317 = vadd.f32 %v5316, %v4791
  %v5318 = vadd.f32 %v5317, %v4792
  %v5319 = vadd.f32 %v5318, %v4793
  %v5320 = vadd.f32 %v5319, %v4794
  %v5321 = vadd.f32 %v5320, %v4795
  %v5322 = vadd.f32 %v5321, %v4796
  %v5323 = vadd.f32 %v5322, %v4797
  %v5324 = vadd.f32 %v5323, %v4798
  %v5325 = vadd.f32 %v5324, %v4799
  %v5326 = vadd.f32 %v5325, %v4800
  %v5327 = vadd.f32 %v5326, %v4801
  %v5328 = vadd.f32 %v5327, %v4802
  %v5329 = vadd.f32 %v5328, %v4803
  %v5330 = vadd.f32 %v5329, %v4804
  %v5331 = vadd.f32 %v5330, %v4805
  %v5332 = vadd.f32 %v5331, %v4806
  %v5333 = vadd.f32 %v5332, %v4807
  %v5334 = vrot.slane %v5333, 4
  %v5335 = vadd.f32 %v5333, %v5334
  %v5336 = vrot.slane %v5335, 2
  %v5337 = vadd.f32 %v5335, %v5336
  %v5338 = vrot.slane %v5337, 1
  %v5339 = vadd.f32 %v5337, %v5338
  %v5340 = vadd.f32 %v4808, %v4809
  %v5341 = vadd.f32 %v5340, %v4810
  %v5342 = vadd.f32 %v5341, %v4811
  %v5343 = vadd.f32 %v5342, %v4812
  %v5344 = vadd.f32 %v5343, %v4813
  %v5345 = vadd.f32 %v5344, %v4814
  %v5346 = vadd.f32 %v5345, %v4815
  %v5347 = vadd.f32 %v5346, %v4816
  %v5348 = vadd.f32 %v5347, %v4817
  %v5349 = vadd.f32 %v5348, %v4818
  %v5350 = vadd.f32 %v5349, %v4819
  %v5351 = vadd.f32 %v5350, %v4820
  %v5352 = vadd.f32 %v5351, %v4821
  %v5353 = vadd.f32 %v5352, %v4822
  %v5354 = vadd.f32 %v5353, %v4823
  %v5355 = vadd.f32 %v5354, %v4824
  %v5356 = vadd.f32 %v5355, %v4825
  %v5357 = vadd.f32 %v5356, %v4826
  %v5358 = vadd.f32 %v5357, %v4827
  %v5359 = vadd.f32 %v5358, %v4828
  %v5360 = vadd.f32 %v5359, %v4829
  %v5361 = vadd.f32 %v5360, %v4830
  %v5362 = vadd.f32 %v5361, %v4831
  %v5363 = vadd.f32 %v5362, %v4832
  %v5364 = vadd.f32 %v5363, %v4833
  %v5365 = vadd.f32 %v5364, %v4834
  %v5366 = vadd.f32 %v5365, %v4835
  %v5367 = vadd.f32 %v5366, %v4836
  %v5368 = vadd.f32 %v5367, %v4837
  %v5369 = vadd.f32 %v5368, %v4838
  %v5370 = vadd.f32 %v5369, %v4839
  %v5371 = vrot.slane %v5370, 4
  %v5372 = vadd.f32 %v5370, %v5371
  %v5373 = vrot.slane %v5372, 2
  %v5374 = vadd.f32 %v5372, %v5373
  %v5375 = vrot.slane %v5374, 1
  %v5376 = vadd.f32 %v5374, %v5375
  %v5377 = vadd.f32 %v4840, %v4841
  %v5378 = vadd.f32 %v5377, %v4842
  %v5379 = vadd.f32 %v5378, %v4843
  %v5380 = vadd.f32 %v5379, %v4844
  %v5381 = vadd.f32 %v5380, %v4845
  %v5382 = vadd.f32 %v5381, %v4846
  %v5383 = vadd.f32 %v5382, %v4847
  %v5384 = vadd.f32 %v5383, %v4848
  %v5385 = vadd.f32 %v5384, %v4849
  %v5386 = vadd.f32 %v5385, %v4850
  %v5387 = vadd.f32 %v5386, %v4851
  %v5388 = vadd.f32 %v5387, %v4852
  %v5389 = vadd.f32 %v5388, %v4853
  %v5390 = vadd.f32 %v5389, %v4854
  %v5391 = vadd.f32 %v5390, %v4855
  %v5392 = vadd.f32 %v5391, %v4856
  %v5393 = vadd.f32 %v5392, %v4857
  %v5394 = vadd.f32 %v5393, %v4858
  %v5395 = vadd.f32 %v5394, %v4859
  %v5396 = vadd.f32 %v5395, %v4860
  %v5397 = vadd.f32 %v5396, %v4861
  %v5398 = vadd.f32 %v5397, %v4862
  %v5399 = vadd.f32 %v5398, %v4863
  %v5400 = vadd.f32 %v5399, %v4864
  %v5401 = vadd.f32 %v5400, %v4865
  %v5402 = vadd.f32 %v5401, %v4866
  %v5403 = vadd.f32 %v5402, %v4867
  %v5404 = vadd.f32 %v5403, %v4868
  %v5405 = vadd.f32 %v5404, %v4869
  %v5406 = vadd.f32 %v5405, %v4870
  %v5407 = vadd.f32 %v5406, %v4871
  %v5408 = vrot.slane %v5407, 4
  %v5409 = vadd.f32 %v5407, %v5408
  %v5410 = vrot.slane %v5409, 2
  %v5411 = vadd.f32 %v5409, %v5410
  %v5412 = vrot.slane %v5411, 1
  %v5413 = vadd.f32 %v5411, %v5412
  %v5414 = vadd.f32 %v4872, %v4873
  %v5415 = vadd.f32 %v5414, %v4874
  %v5416 = vadd.f32 %v5415, %v4875
  %v5417 = vadd.f32 %v5416, %v4876
  %v5418 = vadd.f32 %v5417, %v4877
  %v5419 = vadd.f32 %v5418, %v4878
  %v5420 = vadd.f32 %v5419, %v4879
  %v5421 = vadd.f32 %v5420, %v4880
  %v5422 = vadd.f32 %v5421, %v4881
  %v5423 = vadd.f32 %v5422, %v4882
  %v5424 = vadd.f32 %v5423, %v4883
  %v5425 = vadd.f32 %v5424, %v4884
  %v5426 = vadd.f32 %v5425, %v4885
  %v5427 = vadd.f32 %v5426, %v4886
  %v5428 = vadd.f32 %v5427, %v4887
  %v5429 = vadd.f32 %v5428, %v4888
  %v5430 = vadd.f32 %v5429, %v4889
  %v5431 = vadd.f32 %v5430, %v4890
  %v5432 = vadd.f32 %v5431, %v4891
  %v5433 = vadd.f32 %v5432, %v4892
  %v5434 = vadd.f32 %v5433, %v4893
  %v5435 = vadd.f32 %v5434, %v4894
  %v5436 = vadd.f32 %v5435, %v4895
  %v5437 = vadd.f32 %v5436, %v4896
  %v5438 = vadd.f32 %v5437, %v4897
  %v5439 = vadd.f32 %v5438, %v4898
  %v5440 = vadd.f32 %v5439, %v4899
  %v5441 = vadd.f32 %v5440, %v4900
  %v5442 = vadd.f32 %v5441, %v4901
  %v5443 = vadd.f32 %v5442, %v4902
  %v5444 = vadd.f32 %v5443, %v4903
  %v5445 = vrot.slane %v5444, 4
  %v5446 = vadd.f32 %v5444, %v5445
  %v5447 = vrot.slane %v5446, 2
  %v5448 = vadd.f32 %v5446, %v5447
  %v5449 = vrot.slane %v5448, 1
  %v5450 = vadd.f32 %v5448, %v5449
  %v5451 = vadd.f32 %v4904, %v4905
  %v5452 = vadd.f32 %v5451, %v4906
  %v5453 = vadd.f32 %v5452, %v4907
  %v5454 = vadd.f32 %v5453, %v4908
  %v5455 = vadd.f32 %v5454, %v4909
  %v5456 = vadd.f32 %v5455, %v4910
  %v5457 = vadd.f32 %v5456, %v4911
  %v5458 = vadd.f32 %v5457, %v4912
  %v5459 = vadd.f32 %v5458, %v4913
  %v5460 = vadd.f32 %v5459, %v4914
  %v5461 = vadd.f32 %v5460, %v4915
  %v5462 = vadd.f32 %v5461, %v4916
  %v5463 = vadd.f32 %v5462, %v4917
  %v5464 = vadd.f32 %v5463, %v4918
  %v5465 = vadd.f32 %v5464, %v4919
  %v5466 = vadd.f32 %v5465, %v4920
  %v5467 = vadd.f32 %v5466, %v4921
  %v5468 = vadd.f32 %v5467, %v4922
  %v5469 = vadd.f32 %v5468, %v4923
  %v5470 = vadd.f32 %v5469, %v4924
  %v5471 = vadd.f32 %v5470, %v4925
  %v5472 = vadd.f32 %v5471, %v4926
  %v5473 = vadd.f32 %v5472, %v4927
  %v5474 = vadd.f32 %v5473, %v4928
  %v5475 = vadd.f32 %v5474, %v4929
  %v5476 = vadd.f32 %v5475, %v4930
  %v5477 = vadd.f32 %v5476, %v4931
  %v5478 = vadd.f32 %v5477, %v4932
  %v5479 = vadd.f32 %v5478, %v4933
  %v5480 = vadd.f32 %v5479, %v4934
  %v5481 = vadd.f32 %v5480, %v4935
  %v5482 = vrot.slane %v5481, 4
  %v5483 = vadd.f32 %v5481, %v5482
  %v5484 = vrot.slane %v5483, 2
  %v5485 = vadd.f32 %v5483, %v5484
  %v5486 = vrot.slane %v5485, 1
  %v5487 = vadd.f32 %v5485, %v5486
  %v5488 = vadd.f32 %v4936, %v4937
  %v5489 = vadd.f32 %v5488, %v4938
  %v5490 = vadd.f32 %v5489, %v4939
  %v5491 = vadd.f32 %v5490, %v4940
  %v5492 = vadd.f32 %v5491, %v4941
  %v5493 = vadd.f32 %v5492, %v4942
  %v5494 = vadd.f32 %v5493, %v4943
  %v5495 = vadd.f32 %v5494, %v4944
  %v5496 = vadd.f32 %v5495, %v4945
  %v5497 = vadd.f32 %v5496, %v4946
  %v5498 = vadd.f32 %v5497, %v4947
  %v5499 = vadd.f32 %v5498, %v4948
  %v5500 = vadd.f32 %v5499, %v4949
  %v5501 = vadd.f32 %v5500, %v4950
  %v5502 = vadd.f32 %v5501, %v4951
  %v5503 = vadd.f32 %v5502, %v4952
  %v5504 = vadd.f32 %v5503, %v4953
  %v5505 = vadd.f32 %v5504, %v4954
  %v5506 = vadd.f32 %v5505, %v4955
  %v5507 = vadd.f32 %v5506, %v4956
  %v5508 = vadd.f32 %v5507, %v4957
  %v5509 = vadd.f32 %v5508, %v4958
  %v5510 = vadd.f32 %v5509, %v4959
  %v5511 = vadd.f32 %v5510, %v4960
  %v5512 = vadd.f32 %v5511, %v4961
  %v5513 = vadd.f32 %v5512, %v4962
  %v5514 = vadd.f32 %v5513, %v4963
  %v5515 = vadd.f32 %v5514, %v4964
  %v5516 = vadd.f32 %v5515, %v4965
  %v5517 = vadd.f32 %v5516, %v4966
  %v5518 = vadd.f32 %v5517, %v4967
  %v5519 = vrot.slane %v5518, 4
  %v5520 = vadd.f32 %v5518, %v5519
  %v5521 = vrot.slane %v5520, 2
  %v5522 = vadd.f32 %v5520, %v5521
  %v5523 = vrot.slane %v5522, 1
  %v5524 = vadd.f32 %v5522, %v5523
  %v5525 = vadd.f32 %v4968, %v4969
  %v5526 = vadd.f32 %v5525, %v4970
  %v5527 = vadd.f32 %v5526, %v4971
  %v5528 = vadd.f32 %v5527, %v4972
  %v5529 = vadd.f32 %v5528, %v4973
  %v5530 = vadd.f32 %v5529, %v4974
  %v5531 = vadd.f32 %v5530, %v4975
  %v5532 = vadd.f32 %v5531, %v4976
  %v5533 = vadd.f32 %v5532, %v4977
  %v5534 = vadd.f32 %v5533, %v4978
  %v5535 = vadd.f32 %v5534, %v4979
  %v5536 = vadd.f32 %v5535, %v4980
  %v5537 = vadd.f32 %v5536, %v4981
  %v5538 = vadd.f32 %v5537, %v4982
  %v5539 = vadd.f32 %v5538, %v4983
  %v5540 = vadd.f32 %v5539, %v4984
  %v5541 = vadd.f32 %v5540, %v4985
  %v5542 = vadd.f32 %v5541, %v4986
  %v5543 = vadd.f32 %v5542, %v4987
  %v5544 = vadd.f32 %v5543, %v4988
  %v5545 = vadd.f32 %v5544, %v4989
  %v5546 = vadd.f32 %v5545, %v4990
  %v5547 = vadd.f32 %v5546, %v4991
  %v5548 = vadd.f32 %v5547, %v4992
  %v5549 = vadd.f32 %v5548, %v4993
  %v5550 = vadd.f32 %v5549, %v4994
  %v5551 = vadd.f32 %v5550, %v4995
  %v5552 = vadd.f32 %v5551, %v4996
  %v5553 = vadd.f32 %v5552, %v4997
  %v5554 = vadd.f32 %v5553, %v4998
  %v5555 = vadd.f32 %v5554, %v4999
  %v5556 = vrot.slane %v5555, 4
  %v5557 = vadd.f32 %v5555, %v5556
  %v5558 = vrot.slane %v5557, 2
  %v5559 = vadd.f32 %v5557, %v5558
  %v5560 = vrot.slane %v5559, 1
  %v5561 = vadd.f32 %v5559, %v5560
  %v5562 = vadd.f32 %v5000, %v5001
  %v5563 = vadd.f32 %v5562, %v5002
  %v5564 = vadd.f32 %v5563, %v5003
  %v5565 = vadd.f32 %v5564, %v5004
  %v5566 = vadd.f32 %v5565, %v5005
  %v5567 = vadd.f32 %v5566, %v5006
  %v5568 = vadd.f32 %v5567, %v5007
  %v5569 = vadd.f32 %v5568, %v5008
  %v5570 = vadd.f32 %v5569, %v5009
  %v5571 = vadd.f32 %v5570, %v5010
  %v5572 = vadd.f32 %v5571, %v5011
  %v5573 = vadd.f32 %v5572, %v5012
  %v5574 = vadd.f32 %v5573, %v5013
  %v5575 = vadd.f32 %v5574, %v5014
  %v5576 = vadd.f32 %v5575, %v5015
  %v5577 = vadd.f32 %v5576, %v5016
  %v5578 = vadd.f32 %v5577, %v5017
  %v5579 = vadd.f32 %v5578, %v5018
  %v5580 = vadd.f32 %v5579, %v5019
  %v5581 = vadd.f32 %v5580, %v5020
  %v5582 = vadd.f32 %v5581, %v5021
  %v5583 = vadd.f32 %v5582, %v5022
  %v5584 = vadd.f32 %v5583, %v5023
  %v5585 = vadd.f32 %v5584, %v5024
  %v5586 = vadd.f32 %v5585, %v5025
  %v5587 = vadd.f32 %v5586, %v5026
  %v5588 = vadd.f32 %v5587, %v5027
  %v5589 = vadd.f32 %v5588, %v5028
  %v5590 = vadd.f32 %v5589, %v5029
  %v5591 = vadd.f32 %v5590, %v5030
  %v5592 = vadd.f32 %v5591, %v5031
  %v5593 = vrot.slane %v5592, 4
  %v5594 = vadd.f32 %v5592, %v5593
  %v5595 = vrot.slane %v5594, 2
  %v5596 = vadd.f32 %v5594, %v5595
  %v5597 = vrot.slane %v5596, 1
  %v5598 = vadd.f32 %v5596, %v5597
  %v5599 = vadd.f32 %v5032, %v5033
  %v5600 = vadd.f32 %v5599, %v5034
  %v5601 = vadd.f32 %v5600, %v5035
  %v5602 = vadd.f32 %v5601, %v5036
  %v5603 = vadd.f32 %v5602, %v5037
  %v5604 = vadd.f32 %v5603, %v5038
  %v5605 = vadd.f32 %v5604, %v5039
  %v5606 = vadd.f32 %v5605, %v5040
  %v5607 = vadd.f32 %v5606, %v5041
  %v5608 = vadd.f32 %v5607, %v5042
  %v5609 = vadd.f32 %v5608, %v5043
  %v5610 = vadd.f32 %v5609, %v5044
  %v5611 = vadd.f32 %v5610, %v5045
  %v5612 = vadd.f32 %v5611, %v5046
  %v5613 = vadd.f32 %v5612, %v5047
  %v5614 = vadd.f32 %v5613, %v5048
  %v5615 = vadd.f32 %v5614, %v5049
  %v5616 = vadd.f32 %v5615, %v5050
  %v5617 = vadd.f32 %v5616, %v5051
  %v5618 = vadd.f32 %v5617, %v5052
  %v5619 = vadd.f32 %v5618, %v5053
  %v5620 = vadd.f32 %v5619, %v5054
  %v5621 = vadd.f32 %v5620, %v5055
  %v5622 = vadd.f32 %v5621, %v5056
  %v5623 = vadd.f32 %v5622, %v5057
  %v5624 = vadd.f32 %v5623, %v5058
  %v5625 = vadd.f32 %v5624, %v5059
  %v5626 = vadd.f32 %v5625, %v5060
  %v5627 = vadd.f32 %v5626, %v5061
  %v5628 = vadd.f32 %v5627, %v5062
  %v5629 = vadd.f32 %v5628, %v5063
  %v5630 = vrot.slane %v5629, 4
  %v5631 = vadd.f32 %v5629, %v5630
  %v5632 = vrot.slane %v5631, 2
  %v5633 = vadd.f32 %v5631, %v5632
  %v5634 = vrot.slane %v5633, 1
  %v5635 = vadd.f32 %v5633, %v5634
  %v5636 = vadd.f32 %v5064, %v5065
  %v5637 = vadd.f32 %v5636, %v5066
  %v5638 = vadd.f32 %v5637, %v5067
  %v5639 = vadd.f32 %v5638, %v5068
  %v5640 = vadd.f32 %v5639, %v5069
  %v5641 = vadd.f32 %v5640, %v5070
  %v5642 = vadd.f32 %v5641, %v5071
  %v5643 = vadd.f32 %v5642, %v5072
  %v5644 = vadd.f32 %v5643, %v5073
  %v5645 = vadd.f32 %v5644, %v5074
  %v5646 = vadd.f32 %v5645, %v5075
  %v5647 = vadd.f32 %v5646, %v5076
  %v5648 = vadd.f32 %v5647, %v5077
  %v5649 = vadd.f32 %v5648, %v5078
  %v5650 = vadd.f32 %v5649, %v5079
  %v5651 = vadd.f32 %v5650, %v5080
  %v5652 = vadd.f32 %v5651, %v5081
  %v5653 = vadd.f32 %v5652, %v5082
  %v5654 = vadd.f32 %v5653, %v5083
  %v5655 = vadd.f32 %v5654, %v5084
  %v5656 = vadd.f32 %v5655, %v5085
  %v5657 = vadd.f32 %v5656, %v5086
  %v5658 = vadd.f32 %v5657, %v5087
  %v5659 = vadd.f32 %v5658, %v5088
  %v5660 = vadd.f32 %v5659, %v5089
  %v5661 = vadd.f32 %v5660, %v5090
  %v5662 = vadd.f32 %v5661, %v5091
  %v5663 = vadd.f32 %v5662, %v5092
  %v5664 = vadd.f32 %v5663, %v5093
  %v5665 = vadd.f32 %v5664, %v5094
  %v5666 = vadd.f32 %v5665, %v5095
  %v5667 = vrot.slane %v5666, 4
  %v5668 = vadd.f32 %v5666, %v5667
  %v5669 = vrot.slane %v5668, 2
  %v5670 = vadd.f32 %v5668, %v5669
  %v5671 = vrot.slane %v5670, 1
  %v5672 = vadd.f32 %v5670, %v5671
  %v5673 = vadd.f32 %v5096, %v5097
  %v5674 = vadd.f32 %v5673, %v5098
  %v5675 = vadd.f32 %v5674, %v5099
  %v5676 = vadd.f32 %v5675, %v5100
  %v5677 = vadd.f32 %v5676, %v5101
  %v5678 = vadd.f32 %v5677, %v5102
  %v5679 = vadd.f32 %v5678, %v5103
  %v5680 = vadd.f32 %v5679, %v5104
  %v5681 = vadd.f32 %v5680, %v5105
  %v5682 = vadd.f32 %v5681, %v5106
  %v5683 = vadd.f32 %v5682, %v5107
  %v5684 = vadd.f32 %v5683, %v5108
  %v5685 = vadd.f32 %v5684, %v5109
  %v5686 = vadd.f32 %v5685, %v5110
  %v5687 = vadd.f32 %v5686, %v5111
  %v5688 = vadd.f32 %v5687, %v5112
  %v5689 = vadd.f32 %v5688, %v5113
  %v5690 = vadd.f32 %v5689, %v5114
  %v5691 = vadd.f32 %v5690, %v5115
  %v5692 = vadd.f32 %v5691, %v5116
  %v5693 = vadd.f32 %v5692, %v5117
  %v5694 = vadd.f32 %v5693, %v5118
  %v5695 = vadd.f32 %v5694, %v5119
  %v5696 = vadd.f32 %v5695, %v5120
  %v5697 = vadd.f32 %v5696, %v5121
  %v5698 = vadd.f32 %v5697, %v5122
  %v5699 = vadd.f32 %v5698, %v5123
  %v5700 = vadd.f32 %v5699, %v5124
  %v5701 = vadd.f32 %v5700, %v5125
  %v5702 = vadd.f32 %v5701, %v5126
  %v5703 = vadd.f32 %v5702, %v5127
  %v5704 = vrot.slane %v5703, 4
  %v5705 = vadd.f32 %v5703, %v5704
  %v5706 = vrot.slane %v5705, 2
  %v5707 = vadd.f32 %v5705, %v5706
  %v5708 = vrot.slane %v5707, 1
  %v5709 = vadd.f32 %v5707, %v5708
  %v5710 = vadd.f32 %v5128, %v5129
  %v5711 = vadd.f32 %v5710, %v5130
  %v5712 = vadd.f32 %v5711, %v5131
  %v5713 = vadd.f32 %v5712, %v5132
  %v5714 = vadd.f32 %v5713, %v5133
  %v5715 = vadd.f32 %v5714, %v5134
  %v5716 = vadd.f32 %v5715, %v5135
  %v5717 = vadd.f32 %v5716, %v5136
  %v5718 = vadd.f32 %v5717, %v5137
  %v5719 = vadd.f32 %v5718, %v5138
  %v5720 = vadd.f32 %v5719, %v5139
  %v5721 = vadd.f32 %v5720, %v5140
  %v5722 = vadd.f32 %v5721, %v5141
  %v5723 = vadd.f32 %v5722, %v5142
  %v5724 = vadd.f32 %v5723, %v5143
  %v5725 = vadd.f32 %v5724, %v5144
  %v5726 = vadd.f32 %v5725, %v5145
  %v5727 = vadd.f32 %v5726, %v5146
  %v5728 = vadd.f32 %v5727, %v5147
  %v5729 = vadd.f32 %v5728, %v5148
  %v5730 = vadd.f32 %v5729, %v5149
  %v5731 = vadd.f32 %v5730, %v5150
  %v5732 = vadd.f32 %v5731, %v5151
  %v5733 = vadd.f32 %v5732, %v5152
  %v5734 = vadd.f32 %v5733, %v5153
  %v5735 = vadd.f32 %v5734, %v5154
  %v5736 = vadd.f32 %v5735, %v5155
  %v5737 = vadd.f32 %v5736, %v5156
  %v5738 = vadd.f32 %v5737, %v5157
  %v5739 = vadd.f32 %v5738, %v5158
  %v5740 = vadd.f32 %v5739, %v5159
  %v5741 = vrot.slane %v5740, 4
  %v5742 = vadd.f32 %v5740, %v5741
  %v5743 = vrot.slane %v5742, 2
  %v5744 = vadd.f32 %v5742, %v5743
  %v5745 = vrot.slane %v5744, 1
  %v5746 = vadd.f32 %v5744, %v5745
  %v5747 = vadd.f32 %v5160, %v5161
  %v5748 = vadd.f32 %v5747, %v5162
  %v5749 = vadd.f32 %v5748, %v5163
  %v5750 = vadd.f32 %v5749, %v5164
  %v5751 = vadd.f32 %v5750, %v5165
  %v5752 = vadd.f32 %v5751, %v5166
  %v5753 = vadd.f32 %v5752, %v5167
  %v5754 = vadd.f32 %v5753, %v5168
  %v5755 = vadd.f32 %v5754, %v5169
  %v5756 = vadd.f32 %v5755, %v5170
  %v5757 = vadd.f32 %v5756, %v5171
  %v5758 = vadd.f32 %v5757, %v5172
  %v5759 = vadd.f32 %v5758, %v5173
  %v5760 = vadd.f32 %v5759, %v5174
  %v5761 = vadd.f32 %v5760, %v5175
  %v5762 = vadd.f32 %v5761, %v5176
  %v5763 = vadd.f32 %v5762, %v5177
  %v5764 = vadd.f32 %v5763, %v5178
  %v5765 = vadd.f32 %v5764, %v5179
  %v5766 = vadd.f32 %v5765, %v5180
  %v5767 = vadd.f32 %v5766, %v5181
  %v5768 = vadd.f32 %v5767, %v5182
  %v5769 = vadd.f32 %v5768, %v5183
  %v5770 = vadd.f32 %v5769, %v5184
  %v5771 = vadd.f32 %v5770, %v5185
  %v5772 = vadd.f32 %v5771, %v5186
  %v5773 = vadd.f32 %v5772, %v5187
  %v5774 = vadd.f32 %v5773, %v5188
  %v5775 = vadd.f32 %v5774, %v5189
  %v5776 = vadd.f32 %v5775, %v5190
  %v5777 = vadd.f32 %v5776, %v5191
  %v5778 = vrot.slane %v5777, 4
  %v5779 = vadd.f32 %v5777, %v5778
  %v5780 = vrot.slane %v5779, 2
  %v5781 = vadd.f32 %v5779, %v5780
  %v5782 = vrot.slane %v5781, 1
  %v5783 = vadd.f32 %v5781, %v5782
  %v5784 = vrcp.pop 256.0
  %v5785 = vmul.f32 %v5228, %v5784
  %v5786 = vmul.f32 %v5265, %v5784
  %v5787 = vmul.f32 %v5302, %v5784
  %v5788 = vmul.f32 %v5339, %v5784
  %v5789 = vmul.f32 %v5376, %v5784
  %v5790 = vmul.f32 %v5413, %v5784
  %v5791 = vmul.f32 %v5450, %v5784
  %v5792 = vmul.f32 %v5487, %v5784
  %v5793 = vmul.f32 %v5524, %v5784
  %v5794 = vmul.f32 %v5561, %v5784
  %v5795 = vmul.f32 %v5598, %v5784
  %v5796 = vmul.f32 %v5635, %v5784
  %v5797 = vmul.f32 %v5672, %v5784
  %v5798 = vmul.f32 %v5709, %v5784
  %v5799 = vmul.f32 %v5746, %v5784
  %v5800 = vmul.f32 %v5783, %v5784
  %v5801 = vpack.c.bf16 %v5785, %v5785
  %v5802 = vpack.c.bf16 %v5786, %v5786
  %v5803 = vpack.c.bf16 %v5787, %v5787
  %v5804 = vpack.c.bf16 %v5788, %v5788
  %v5805 = vpack.c.bf16 %v5789, %v5789
  %v5806 = vpack.c.bf16 %v5790, %v5790
  %v5807 = vpack.c.bf16 %v5791, %v5791
  %v5808 = vpack.c.bf16 %v5792, %v5792
  %v5809 = vpack.c.bf16 %v5793, %v5793
  %v5810 = vpack.c.bf16 %v5794, %v5794
  %v5811 = vpack.c.bf16 %v5795, %v5795
  %v5812 = vpack.c.bf16 %v5796, %v5796
  %v5813 = vpack.c.bf16 %v5797, %v5797
  %v5814 = vpack.c.bf16 %v5798, %v5798
  %v5815 = vpack.c.bf16 %v5799, %v5799
  %v5816 = vpack.c.bf16 %v5800, %v5800
  %v5833 = vunpack.c.l.b16 %v5801
  %v5834 = vunpack.c.l.b16 %v5802
  %v5835 = vunpack.c.l.b16 %v5803
  %v5836 = vunpack.c.l.b16 %v5804
  %v5837 = vunpack.c.l.b16 %v5805
  %v5838 = vunpack.c.l.b16 %v5806
  %v5839 = vunpack.c.l.b16 %v5807
  %v5840 = vunpack.c.l.b16 %v5808
  %v5841 = vunpack.c.l.b16 %v5809
  %v5842 = vunpack.c.l.b16 %v5810
  %v5843 = vunpack.c.l.b16 %v5811
  %v5844 = vunpack.c.l.b16 %v5812
  %v5845 = vunpack.c.l.b16 %v5813
  %v5846 = vunpack.c.l.b16 %v5814
  %v5847 = vunpack.c.l.b16 %v5815
  %v5848 = vunpack.c.l.b16 %v5816
  %v5849 = vpack.c.b16 %v5833, %v5833
  %v5850 = vpack.c.b16 %v5834, %v5834
  %v5851 = vpack.c.b16 %v5835, %v5835
  %v5852 = vpack.c.b16 %v5836, %v5836
  %v5853 = vpack.c.b16 %v5837, %v5837
  %v5854 = vpack.c.b16 %v5838, %v5838
  %v5855 = vpack.c.b16 %v5839, %v5839
  %v5856 = vpack.c.b16 %v5840, %v5840
  %v5857 = vpack.c.b16 %v5841, %v5841
  %v5858 = vpack.c.b16 %v5842, %v5842
  %v5859 = vpack.c.b16 %v5843, %v5843
  %v5860 = vpack.c.b16 %v5844, %v5844
  %v5861 = vpack.c.b16 %v5845, %v5845
  %v5862 = vpack.c.b16 %v5846, %v5846
  %v5863 = vpack.c.b16 %v5847, %v5847
  %v5864 = vpack.c.b16 %v5848, %v5848
  %v5865 = vunpack.c.l.b16 %v5849
  %v5866 = vunpack.c.l.b16 %v5850
  %v5867 = vunpack.c.l.b16 %v5851
  %v5868 = vunpack.c.l.b16 %v5852
  %v5869 = vunpack.c.l.b16 %v5853
  %v5870 = vunpack.c.l.b16 %v5854
  %v5871 = vunpack.c.l.b16 %v5855
  %v5872 = vunpack.c.l.b16 %v5856
  %v5873 = vunpack.c.l.b16 %v5857
  %v5874 = vunpack.c.l.b16 %v5858
  %v5875 = vunpack.c.l.b16 %v5859
  %v5876 = vunpack.c.l.b16 %v5860
  %v5877 = vunpack.c.l.b16 %v5861
  %v5878 = vunpack.c.l.b16 %v5862
  %v5879 = vunpack.c.l.b16 %v5863
  %v5880 = vunpack.c.l.b16 %v5864
  %vm5881 = vcmask 1041409
  %v5882 = vsel %vm5881, %v5866, %v5865
  %vm5883 = vcmask 1042434
  %v5884 = vsel %vm5883, %v5867, %v5882
  %vm5885 = vcmask 1043459
  %v5886 = vsel %vm5885, %v5868, %v5884
  %vm5887 = vcmask 1044484
  %v5888 = vsel %vm5887, %v5869, %v5886
  %vm5889 = vcmask 1045509
  %v5890 = vsel %vm5889, %v5870, %v5888
  %vm5891 = vcmask 1046534
  %v5892 = vsel %vm5891, %v5871, %v5890
  %vm5893 = vcmask 1047559
  %v5894 = vsel %vm5893, %v5872, %v5892
  %v5895 = vsel %vm5881, %v5874, %v5873
  %v5896 = vsel %vm5883, %v5875, %v5895
  %v5897 = vsel %vm5885, %v5876, %v5896
  %v5898 = vsel %vm5887, %v5877, %v5897
  %v5899 = vsel %vm5889, %v5878, %v5898
  %v5900 = vsel %vm5891, %v5879, %v5899
  %v5901 = vsel %vm5893, %v5880, %v5900
  %v5902 = vpack.c.b16 %v5894, %v5894
  %v5903 = vpack.c.b16 %v5901, %v5901
  %5906 = vst [vmem:[%s3] sm:$0xf] %v5902
  %5907 = vst [vmem:[%s3 + $0x4] sm:$0xf] %v5903
  // Predicated region
  $region14: #{mri_meta_sequence_rnn_forward.2} parent=0 // pred_check
    _
  $region15: #{mri_meta_sequence_rnn_forward.2} parent=0 // pred_check_branch
    %5909 = sbr.rel (0) target = $region17
  $region16: #{mri_meta_sequence_rnn_forward.2} parent=0 // pred_region
    _
  $region17: #{mri_meta_sequence_rnn_forward.2} parent=0 // pred_fallthru
    _
  // Predicated region
  $region18: #{mri_meta_sequence_rnn_forward.2} parent=0 // pred_check
    _
  $region19: #{mri_meta_sequence_rnn_forward.2} parent=0 // pred_check_branch
    %5911 = sbr.rel (0) target = $region21
  $region20: #{mri_meta_sequence_rnn_forward.2} parent=0 // pred_region
    _
  $region21: #{mri_meta_sequence_rnn_forward.2} parent=0 // pred_fallthru
    _

</llo_original>
